<compile_context>
chip_gen: v5e
topology: v5e:2x2
jax: 0.10.0
libtpu: 0.0.40
codegen_flags: <defaults>
</compile_context>

<pallas_src>
import functools

import jax
import jax.numpy as jnp
from jax import lax
from jax.experimental import pallas as pl
from jax.experimental.pallas import tpu as pltpu

MXU_DTYPE = jnp.bfloat16        # matmul operand dtype (accumulation stays f32)
VMEM_LIMIT = 32 * 1024 * 1024   # explicit scoped-VMEM budget (safe on v5e/v6e/v7x)
LANE = 128                      # TPU lane width: channel dims padded to this


def _round_up(x, m):
    return (x + m - 1) // m * m


def _cp(c):
    return _round_up(int(c), LANE)


def _pad_axis(x, axis, size):
    if x.shape[axis] == size:
        return x
    pad = [(0, 0)] * x.ndim
    pad[axis] = (0, size - x.shape[axis])
    return jnp.pad(x, pad)


# ----------------------------------------------------------------------------
# Pallas kernels
# ----------------------------------------------------------------------------

def _linear_kernel(x_ref, w_ref, b_ref, o_ref):
    o_ref[...] = (jnp.dot(x_ref[...].astype(w_ref.dtype), w_ref[...],
                          preferred_element_type=jnp.float32)
                  + b_ref[...])


def linear_pallas(x, wt, b):
    """x (M, K) f32, wt (K, N) bf16, b (1, N) f32 -> (M, N) f32 (bias fused)."""
    x = x.astype(jnp.float32)
    M, K = x.shape
    N = wt.shape[1]
    TM = 128 if M >= 128 else _round_up(max(M, 1), 8)
    Mp = _round_up(M, TM)
    if Mp != M:
        x = jnp.pad(x, ((0, Mp - M), (0, 0)))
    if N % 512 == 0:
        TN = 512
    elif N % 256 == 0:
        TN = 256
    elif N % 128 == 0:
        TN = 128
    else:
        TN = N
    out = pl.pallas_call(
        _linear_kernel,
        out_shape=jax.ShapeDtypeStruct((Mp, N), jnp.float32),
        grid=(Mp // TM, N // TN),
        in_specs=[pl.BlockSpec((TM, K), lambda i, j: (i, 0)),
                  pl.BlockSpec((K, TN), lambda i, j: (0, j)),
                  pl.BlockSpec((1, TN), lambda i, j: (0, j))],
        out_specs=pl.BlockSpec((TM, TN), lambda i, j: (i, j)),
        compiler_params=pltpu.CompilerParams(
            dimension_semantics=("parallel", "parallel"),
            vmem_limit_bytes=VMEM_LIMIT),
    )(x, wt, b)
    return out[:M] if Mp != M else out


def _conv_shift_kernel(x_ref, w_ref, b_ref, o_ref, *, offs, tm):
    """Accumulate kh*kw shifted matmuls from a VMEM-resident flattened image."""
    base = pl.multiple_of(pl.program_id(1) * tm, tm)
    acc = jnp.zeros(o_ref.shape, jnp.float32)
    for k, off in enumerate(offs):
        xs = x_ref[pl.ds(base + off, tm), :]
        acc = acc + jnp.dot(xs.astype(w_ref.dtype), w_ref[k],
                            preferred_element_type=jnp.float32)
    o_ref[...] = acc + b_ref[...]


def conv2d_pallas(x, wmat, bias, kh, kw, stride, padding):
    """NHWC conv.  x (N,H,W,Cin_p) f32; wmat (kh*kw,Cin_p,Cout_p) bf16;
    bias (1,Cout_p) f32.  No HBM im2col: the padded image is flattened to rows,
    kept resident in VMEM per image, and the kernel accumulates kh*kw shifted
    MXU matmuls with the bias fused."""
    N, H, W, Cin_p = x.shape
    (pt, pb), (pleft, pright) = padding
    Hp, Wp = H + pt + pb, W + pleft + pright
    Ho = (Hp - kh) // stride + 1
    Wo = (Wp - kw) // stride + 1
    Cout_p = wmat.shape[-1]
    xp = jnp.pad(x, ((0, 0), (pt, pb), (pleft, pright), (0, 0)))
    P = Hp * Wp
    TM = 128 if P >= 128 else _round_up(P, 8)
    Lo = _round_up(P, TM)
    maxoff = (kh - 1) * Wp + (kw - 1)
    Lp = Lo + maxoff
    xflat = jnp.pad(xp.reshape(N, P, Cin_p), ((0, 0), (0, Lp - P), (0, 0)))
    offs = tuple(di * Wp + dj for di in range(kh) for dj in range(kw))
    out = pl.pallas_call(
        functools.partial(_conv_shift_kernel, offs=offs, tm=TM),
        out_shape=jax.ShapeDtypeStruct((N, Lo, Cout_p), jnp.float32),
        grid=(N, Lo // TM),
        in_specs=[pl.BlockSpec((None, Lp, Cin_p), lambda n, j: (n, 0, 0)),
                  pl.BlockSpec((kh * kw, Cin_p, Cout_p), lambda n, j: (0, 0, 0)),
                  pl.BlockSpec((1, Cout_p), lambda n, j: (0, 0))],
        out_specs=pl.BlockSpec((None, TM, Cout_p), lambda n, j: (n, j, 0)),
        compiler_params=pltpu.CompilerParams(
            dimension_semantics=("parallel", "parallel"),
            vmem_limit_bytes=VMEM_LIMIT),
    )(xflat, wmat, bias)
    full = out[:, :P, :].reshape(N, Hp, Wp, Cout_p)
    return full[:, :(Ho - 1) * stride + 1:stride,
                :(Wo - 1) * stride + 1:stride, :]


def conv_apply(x, cp, stride=1):
    p = cp['pad']
    return conv2d_pallas(x, cp['w'], cp['b'], cp['kh'], cp['kw'], stride,
                         ((p, p), (p, p)))


def conv_transpose_s2k4(x, up):
    """ConvTranspose2d(k=4, s=2, p=1) as 4 sub-pixel 2x2 convolutions (no
    zero-stuffed dilation); the 4 phase outputs are interleaved."""
    N, H, W, _ = x.shape
    w4, b = up['w'], up['b']
    cout_p = w4.shape[-1]
    phases = []
    for a in range(2):
        for bb in range(2):
            pr = (1, 0) if a == 0 else (0, 1)
            pc = (1, 0) if bb == 0 else (0, 1)
            phases.append(conv2d_pallas(x, w4[a * 2 + bb], b, 2, 2, 1, (pr, pc)))
    st = jnp.stack(phases, axis=0).reshape(2, 2, N, H, W, cout_p)
    return st.transpose(2, 3, 0, 4, 1, 5).reshape(N, 2 * H, 2 * W, cout_p)


def _gn_silu_kernel(x_ref, g_ref, b_ref, msum_ref, mexp_ref, o_ref, *, eps):
    x = x_ref[...]                                    # (HW, Cp) f32
    hw = float(x.shape[0])
    s1 = jnp.sum(x, axis=0, keepdims=True)            # (1, Cp)
    s2 = jnp.sum(x * x, axis=0, keepdims=True)
    msum = msum_ref[...]                              # (Cp, GP) group membership
    cnt = jnp.maximum(jnp.sum(msum, axis=0, keepdims=True) * hw, 1.0)
    mean_g = jnp.dot(s1, msum, preferred_element_type=jnp.float32) / cnt
    var_g = (jnp.dot(s2, msum, preferred_element_type=jnp.float32) / cnt
             - mean_g * mean_g)
    rstd_g = lax.rsqrt(jnp.maximum(var_g, 0.0) + eps)
    mexp = mexp_ref[...]                              # (GP, Cp)
    mean_c = jnp.dot(mean_g, mexp, preferred_element_type=jnp.float32)
    rstd_c = jnp.dot(rstd_g, mexp, preferred_element_type=jnp.float32)
    scale = rstd_c * g_ref[...]
    shift = b_ref[...] - mean_c * scale
    y = x * scale + shift
    o_ref[...] = y * jax.nn.sigmoid(y)                # SiLU


def gn_silu(x, p):
    """Fused GroupNorm(eps=1e-5) + SiLU on the native NHWC layout (stats via
    group-membership matmuls; no HBM transposes, no tiled gamma/beta)."""
    N, H, W, Cp = x.shape
    HW = H * W
    GP = p['msum'].shape[1]
    xr = x.reshape(N, HW, Cp)
    out = pl.pallas_call(
        functools.partial(_gn_silu_kernel, eps=1e-5),
        out_shape=jax.ShapeDtypeStruct((N, HW, Cp), jnp.float32),
        grid=(N,),
        in_specs=[pl.BlockSpec((None, HW, Cp), lambda n: (n, 0, 0)),
                  pl.BlockSpec((1, Cp), lambda n: (0, 0)),
                  pl.BlockSpec((1, Cp), lambda n: (0, 0)),
                  pl.BlockSpec((Cp, GP), lambda n: (0, 0)),
                  pl.BlockSpec((GP, Cp), lambda n: (0, 0))],
        out_specs=pl.BlockSpec((None, HW, Cp), lambda n: (n, 0, 0)),
        compiler_params=pltpu.CompilerParams(
            dimension_semantics=("parallel",),
            vmem_limit_bytes=VMEM_LIMIT),
    )(xr, p['gamma'], p['beta'], p['msum'], p['mexp'])
    return out.reshape(N, H, W, Cp)


def _gru_seq_kernel(xg_ref, h0_ref, whhT_ref, bhh_ref, out_ref, h_scr):
    """One grid step = one time step; hidden state carried in VMEM scratch.
    PyTorch gate order r, z, n; recurrent math kept in f32."""
    t = pl.program_id(0)

    @pl.when(t == 0)
    def _init():
        h_scr[...] = h0_ref[...]

    h = h_scr[...]
    hidden = h.shape[-1]
    hg = (jnp.dot(h, whhT_ref[...], preferred_element_type=jnp.float32)
          + bhh_ref[...])
    xg = xg_ref[...]
    r = jax.nn.sigmoid(xg[:, :hidden] + hg[:, :hidden])
    z = jax.nn.sigmoid(xg[:, hidden:2 * hidden] + hg[:, hidden:2 * hidden])
    n = jnp.tanh(xg[:, 2 * hidden:] + r * hg[:, 2 * hidden:])
    h_new = (1.0 - z) * n + z * h
    h_scr[...] = h_new
    out_ref[...] = h_new


def gru_layer(xg, h0, whhT, bhh):
    """Whole-sequence GRU layer in ONE pallas_call (grid over T)."""
    T, B, H3 = xg.shape
    H = h0.shape[-1]
    return pl.pallas_call(
        _gru_seq_kernel,
        out_shape=jax.ShapeDtypeStruct((T, B, H), jnp.float32),
        grid=(T,),
        in_specs=[pl.BlockSpec((None, B, H3), lambda t: (t, 0, 0)),
                  pl.BlockSpec((B, H), lambda t: (0, 0)),
                  pl.BlockSpec((H, H3), lambda t: (0, 0)),
                  pl.BlockSpec((1, H3), lambda t: (0, 0))],
        out_specs=pl.BlockSpec((None, B, H), lambda t: (t, 0, 0)),
        scratch_shapes=[pltpu.VMEM((B, H), jnp.float32)],
        compiler_params=pltpu.CompilerParams(
            dimension_semantics=("arbitrary",),
            vmem_limit_bytes=VMEM_LIMIT),
    )(xg, h0, whhT, bhh)


# ----------------------------------------------------------------------------
# Model blocks
# ----------------------------------------------------------------------------

def res_block(x, p):
    residual = x if p['shortcut'] is None else conv_apply(x, p['shortcut'])
    h = gn_silu(x, p['n1'])
    h = conv_apply(h, p['conv1'])
    h = gn_silu(h, p['n2'])
    # TODO(synk): nn.Dropout is training-only; treated as eval-mode identity.
    h = conv_apply(h, p['conv2'])
    return h + residual


def encoder_forward(x, p):
    x = conv_apply(x, p['conv0'])
    for st in p['stages']:
        x = conv_apply(x, st['conv'], stride=st['stride'])
        for rb in st['blocks']:
            x = res_block(x, rb)
    x = gn_silu(x, p['final_norm'])
    pooled = jnp.mean(x.reshape(x.shape[0], -1, x.shape[-1]), axis=1)  # AvgPool
    return linear_pallas(pooled, p['fc']['w'], p['fc']['b'])           # padded feat


def decoder_forward(feat, text_embed, p):
    N = feat.shape[0]
    y = linear_pallas(feat, p['fc_w'], p['fc_b'])
    H0, W0 = p['initial_hw']
    y = y.reshape(N, H0, W0, p['cp0'])
    for st in p['stages']:
        for rb in st['blocks']:
            y = res_block(y, rb)
        fp = linear_pallas(text_embed, st['film_w'], st['film_b'])
        Cp = st['cp']
        gamma, beta = fp[:, :Cp], fp[:, Cp:2 * Cp]
        y = y * gamma[:, None, None, :] + beta[:, None, None, :]       # FiLM
        if st['up'] is not None:
            y = conv_transpose_s2k4(y, st['up'])
    y = conv_apply(y, p['final_conv'])
    # TODO(synk): F.interpolate bilinear fallback not implemented; with this
    # architecture the decoder output already matches target_size.
    return y


def noise_sequence_rnn_v3_forward(params, src_noise_sequence, text_embed,
                                  initial_hidden_state=None):
    """Exact forward semantics of NoiseSequenceRNN_v3.forward (eval mode)."""
    B, T, C, H, W = src_noise_sequence.shape
    x = src_noise_sequence.reshape(B * T, C, H, W).transpose(0, 2, 3, 1)
    x = _pad_axis(x.astype(jnp.float32), 3, _cp(C))          # lane-pad channels
    feat = encoder_forward(x, params['encoder'])             # (B*T, feat_pad)

    textp = linear_pallas(text_embed.astype(jnp.float32),
                          params['text_proj']['w'], params['text_proj']['b'])
    FP = feat.shape[-1]
    feat_seq = feat.reshape(B, T, FP)
    textp_seq = jnp.broadcast_to(textp[:, None, :], (B, T, FP))
    seq = jnp.concatenate([feat_seq, textp_seq], axis=-1)    # (B, T, 2*FP)

    num_layers = len(params['gru'])
    Hh = params['gru'][0]['hidden']
    if initial_hidden_state is None:
        initial_hidden_state = jnp.zeros((num_layers, B, Hh), jnp.float32)

    finals = []
    for li, lp in enumerate(params['gru']):
        D = seq.shape[-1]
        xg = linear_pallas(seq.reshape(B * T, D), lp['w_ih'], lp['b_ih'])
        xg = xg.reshape(B, T, 3 * Hh).transpose(1, 0, 2)     # (T, B, 3H)
        outs = gru_layer(xg, initial_hidden_state[li].astype(jnp.float32),
                         lp['w_hh'], lp['b_hh'])             # (T, B, H)
        finals.append(outs[-1])
        seq = outs.transpose(1, 0, 2)                        # (B, T, H)
        # TODO(synk): inter-layer GRU dropout is training-only; identity in eval.
    final_hidden_state = jnp.stack(finals, axis=0)

    gru_out_flat = seq.reshape(B * T, Hh)
    text_rep = jnp.repeat(text_embed.astype(jnp.float32), T, axis=0)  # rep_interleave
    dec = decoder_forward(gru_out_flat, text_rep, params['decoder'])  # NHWC padded
    out_ch = params['decoder']['out_ch']
    dec = dec[..., :out_ch].transpose(0, 3, 1, 2)                     # -> NCHW
    output_sequence = dec.reshape(B, T, out_ch, H, W)

    if params['predict_variance']:
        half = out_ch // 2
        mean_seq = output_sequence[:, :, :half]
        log_var_seq = jnp.clip(output_sequence[:, :, half:], -10.0, 10.0)
        return mean_seq, log_var_seq, final_hidden_state
    return output_sequence, final_hidden_state


# ----------------------------------------------------------------------------
# Parameter preparation: PyTorch-layout weights -> lane-padded / pre-transposed
# kernel layouts (done ONCE, outside the forward pass).
# ----------------------------------------------------------------------------

def prep_conv(w, b, pad):
    Cout, Cin, kh, kw = w.shape
    wt = jnp.transpose(w, (2, 3, 1, 0)).reshape(kh * kw, Cin, Cout)
    wt = _pad_axis(_pad_axis(wt, 1, _cp(Cin)), 2, _cp(Cout)).astype(MXU_DTYPE)
    bp = _pad_axis(b.reshape(1, -1), 1, _cp(Cout)).astype(jnp.float32)
    return {'w': wt, 'b': bp, 'kh': kh, 'kw': kw, 'pad': pad}


def prep_convT(w, b):
    # PyTorch ConvTranspose2d weight (Cin, Cout, 4, 4) -> 4 sub-pixel 2x2 kernels.
    rsel = {0: (3, 1), 1: (2, 0)}
    phases = []
    for a in range(2):
        for bb in range(2):
            taps = [w[:, :, rsel[a][dh], rsel[bb][dw]]
                    for dh in range(2) for dw in range(2)]
            phases.append(jnp.stack(taps, axis=0))            # (4, Cin, Cout)
    wp = jnp.stack(phases, axis=0)                            # (4, 4, Cin, Cout)
    wp = _pad_axis(_pad_axis(wp, 2, _cp(w.shape[0])), 3,
                   _cp(w.shape[1])).astype(MXU_DTYPE)
    bp = _pad_axis(b.reshape(1, -1), 1, _cp(w.shape[1])).astype(jnp.float32)
    return {'w': wp, 'b': bp}


def prep_gn(gamma, beta, groups):
    C = int(gamma.shape[0])
    Cp = _cp(C)
    GP = LANE
    assert groups <= GP
    Cg = C // groups
    cidx = jnp.arange(C)
    msum = jnp.zeros((Cp, GP), jnp.float32).at[cidx, cidx // Cg].set(1.0)
    return {'gamma': _pad_axis(gamma.reshape(1, -1).astype(jnp.float32), 1, Cp),
            'beta': _pad_axis(beta.reshape(1, -1).astype(jnp.float32), 1, Cp),
            'msum': msum,
            'mexp': msum.T}


def prep_linear(w, b, in_pad=None, out_pad=None):
    wt = w.T
    if in_pad is not None:
        wt = _pad_axis(wt, 0, in_pad)
    if out_pad is not None:
        wt = _pad_axis(wt, 1, out_pad)
    bp = b.reshape(1, -1)
    if out_pad is not None:
        bp = _pad_axis(bp, 1, out_pad)
    return {'w': wt.astype(MXU_DTYPE), 'b': bp.astype(jnp.float32)}


def prep_resblock(rb):
    return {
        'n1': prep_gn(rb['norm1_w'], rb['norm1_b'], rb['groups1']),
        'conv1': prep_conv(rb['conv1_w'], rb['conv1_b'], pad=1),
        'n2': prep_gn(rb['norm2_w'], rb['norm2_b'], rb['groups2']),
        'conv2': prep_conv(rb['conv2_w'], rb['conv2_b'], pad=1),
        'shortcut': (prep_conv(rb['shortcut_w'], rb['shortcut_b'], pad=0)
                     if 'shortcut_w' in rb else None),
    }


def prep_encoder(e):
    cur_chans = e['fc_w'].shape[1]
    return {
        'conv0': prep_conv(e['initial_conv_w'], e['initial_conv_b'], pad=1),
        'stages': [{
            'stride': st['stride'],
            'conv': prep_conv(st['conv_w'], st['conv_b'], pad=1),
            'blocks': [prep_resblock(rb) for rb in st['blocks']],
        } for st in e['stages']],
        'final_norm': prep_gn(e['final_norm_w'], e['final_norm_b'],
                              e['final_groups']),
        'fc': prep_linear(e['fc_w'], e['fc_b'],
                          in_pad=_cp(cur_chans), out_pad=_cp(e['fc_w'].shape[0])),
    }


def prep_decoder(d):
    C0, H0, W0 = d['initial_reshape']
    Cp0 = _cp(C0)
    feat_in = d['initial_fc_w'].shape[1]
    # Rearrange the initial_fc output so it lands directly in (H0, W0, Cp0).
    w2 = d['initial_fc_w'].reshape(C0, H0, W0, feat_in).transpose(3, 1, 2, 0)
    w2 = _pad_axis(w2, 3, Cp0).reshape(feat_in, H0 * W0 * Cp0)
    b2 = d['initial_fc_b'].reshape(C0, H0, W0).transpose(1, 2, 0)
    b2 = _pad_axis(b2, 2, Cp0).reshape(1, H0 * W0 * Cp0)
    stages = []
    for st in d['stages']:
        C = st['film_w'].shape[0] // 2
        Cp = _cp(C)
        text_dim = st['film_w'].shape[1]
        fw = jnp.zeros((text_dim, 2 * Cp), jnp.float32)
        fw = fw.at[:, :C].set(st['film_w'][:C, :].T)
        fw = fw.at[:, Cp:Cp + C].set(st['film_w'][C:, :].T)
        fb = jnp.zeros((1, 2 * Cp), jnp.float32)
        fb = fb.at[:, :C].set(st['film_b'][:C][None, :])
        fb = fb.at[:, Cp:Cp + C].set(st['film_b'][C:][None, :])
        stages.append({
            'blocks': [prep_resblock(rb) for rb in st['blocks']],
            'film_w': fw.astype(MXU_DTYPE), 'film_b': fb,
            'cp': Cp,
            'up': (prep_convT(st['upsample']['w'], st['upsample']['b'])
                   if st['upsample'] is not None else None),
        })
    return {
        'fc_w': w2.astype(MXU_DTYPE), 'fc_b': b2.astype(jnp.float32),
        'initial_hw': (H0, W0), 'cp0': Cp0,
        'stages': stages,
        'final_conv': prep_conv(d['final_conv_w'], d['final_conv_b'], pad=1),
        'out_ch': d['final_conv_w'].shape[0],
    }


def prep_gru(g, feat_dim):
    FP = _cp(feat_dim)
    layers = []
    for li, lp in enumerate(g):
        H = lp['w_hh'].shape[1]
        if li == 0:
            # GRU input is [noise_feat(feat) | proj_text(feat)], carried here as
            # two lane-padded FP-wide halves -> scatter real columns of w_ih.
            w = lp['w_ih']                      # (3H, 2*feat_dim)
            wt = jnp.zeros((2 * FP, 3 * H), jnp.float32)
            wt = wt.at[:feat_dim, :].set(w[:, :feat_dim].T)
            wt = wt.at[FP:FP + feat_dim, :].set(w[:, feat_dim:].T)
        else:
            wt = lp['w_ih'].T
        layers.append({
            'w_ih': wt.astype(MXU_DTYPE),
            'b_ih': lp['b_ih'].reshape(1, -1).astype(jnp.float32),
            'w_hh': lp['w_hh'].T.astype(jnp.float32),
            'b_hh': lp['b_hh'].reshape(1, -1).astype(jnp.float32),
            'hidden': H,
        })
    return layers


def prepare_params(raw):
    feat_dim = raw['text_proj_w'].shape[0]
    return {
        'predict_variance': raw['predict_variance'],
        'encoder': prep_encoder(raw['encoder']),
        'text_proj': prep_linear(raw['text_proj_w'], raw['text_proj_b'],
                                 out_pad=_cp(feat_dim)),
        'gru': prep_gru(raw['gru'], feat_dim),
        'decoder': prep_decoder(raw['decoder']),
    }


# ----------------------------------------------------------------------------
# Deterministic parameter initialization (shapes follow the PyTorch __init__)
# ----------------------------------------------------------------------------

class KeyGen:
    def __init__(self, key):
        self.key = key

    def __call__(self):
        self.key, sub = jax.random.split(self.key)
        return sub


def _w(kg, shape, scale=0.05):
    return (scale * jax.random.normal(kg(), shape)).astype(jnp.float32)


def _norm_groups(groups, channels):
    g = min(groups, channels) if channels >= groups else 1
    while channels % g != 0 and g > 1:
        g //= 2
    return g


def init_resblock(kg, cin, cout, groups):
    p = {
        'groups1': _norm_groups(groups, cin),
        'groups2': _norm_groups(groups, cout),
        'norm1_w': jnp.ones((cin,), jnp.float32),
        'norm1_b': jnp.zeros((cin,), jnp.float32),
        'conv1_w': _w(kg, (cout, cin, 3, 3)),
        'conv1_b': _w(kg, (cout,)),
        'norm2_w': jnp.ones((cout,), jnp.float32),
        'norm2_b': jnp.zeros((cout,), jnp.float32),
        'conv2_w': _w(kg, (cout, cout, 3, 3)),
        'conv2_b': _w(kg, (cout,)),
    }
    if cin != cout:
        p['shortcut_w'] = _w(kg, (cout, cin, 1, 1))
        p['shortcut_b'] = _w(kg, (cout,))
    return p


def init_encoder(kg, in_chans, base_filters, blocks, feat_dim, groups):
    p = {'initial_conv_w': _w(kg, (base_filters, in_chans, 3, 3)),
         'initial_conv_b': _w(kg, (base_filters,))}
    cur = base_filters
    stages = []
    for i, nb in enumerate(blocks):
        out = base_filters * 2 ** i
        st = {'stride': 2 if i > 0 else 1,
              'conv_w': _w(kg, (out, cur, 3, 3)),
              'conv_b': _w(kg, (out,))}
        cur = out
        st['blocks'] = [init_resblock(kg, cur, cur, groups) for _ in range(nb)]
        stages.append(st)
    p['stages'] = stages
    p['final_groups'] = _norm_groups(groups, cur)
    p['final_norm_w'] = jnp.ones((cur,), jnp.float32)
    p['final_norm_b'] = jnp.zeros((cur,), jnp.float32)
    p['fc_w'] = _w(kg, (feat_dim, cur))
    p['fc_b'] = _w(kg, (feat_dim,))
    return p


def init_decoder(kg, feat_dim, text_dim, target_chans, target_size,
                 base_filters, blocks, groups):
    num_stages = len(blocks)
    initial_chans = base_filters * 2 ** (num_stages - 1)
    initial_size = max(target_size // 2 ** (num_stages - 1), 1)
    p = {'initial_reshape': (initial_chans, initial_size, initial_size),
         'initial_fc_w': _w(kg, (initial_chans * initial_size * initial_size,
                                 feat_dim)),
         'initial_fc_b': _w(kg, (initial_chans * initial_size * initial_size,))}
    cur = initial_chans
    stages = []
    for i in range(num_stages - 1, -1, -1):
        st = {'blocks': [init_resblock(kg, cur, cur, groups)
                         for _ in range(blocks[i])],
              'film_w': _w(kg, (cur * 2, text_dim)),
              'film_b': _w(kg, (cur * 2,))}
        if i > 0:
            out = base_filters * 2 ** (i - 1)
            st['upsample'] = {'w': _w(kg, (cur, out, 4, 4)), 'b': _w(kg, (out,))}
            cur = out
        else:
            st['upsample'] = None
        stages.append(st)
    p['stages'] = stages
    p['final_conv_w'] = _w(kg, (target_chans, cur, 3, 3))
    p['final_conv_b'] = _w(kg, (target_chans,))
    return p


def init_gru(kg, input_dim, hidden, layers):
    ps = []
    d = input_dim
    for _ in range(layers):
        ps.append({'w_ih': _w(kg, (3 * hidden, d)),
                   'w_hh': _w(kg, (3 * hidden, hidden)),
                   'b_ih': _w(kg, (3 * hidden,)),
                   'b_hh': _w(kg, (3 * hidden,))})
        d = hidden
    return ps


def init_model(kg, *, text_embed_dim, noise_img_size, noise_in_chans,
               cnn_base_filters, cnn_num_blocks_per_stage, cnn_feat_dim,
               cnn_groups, gru_hidden_size, gru_num_layers, predict_variance):
    decoder_out_channels = noise_in_chans * 2 if predict_variance else noise_in_chans
    return {
        'predict_variance': predict_variance,
        'encoder': init_encoder(kg, noise_in_chans, cnn_base_filters,
                                cnn_num_blocks_per_stage, cnn_feat_dim, cnn_groups),
        'text_proj_w': _w(kg, (cnn_feat_dim, text_embed_dim)),
        'text_proj_b': _w(kg, (cnn_feat_dim,)),
        'gru': init_gru(kg, cnn_feat_dim + cnn_feat_dim, gru_hidden_size,
                        gru_num_layers),
        'decoder': init_decoder(kg, gru_hidden_size, text_embed_dim,
                                decoder_out_channels, noise_img_size,
                                cnn_base_filters, cnn_num_blocks_per_stage,
                                cnn_groups),
    }


# ----------------------------------------------------------------------------
# Main
# ----------------------------------------------------------------------------

if __name__ == "__main__":
    B, T = 2, 4
    text_embed_dim = 16
    noise_img_size = 16
    noise_in_chans = 4
    cnn_base_filters = 8
    cnn_num_blocks_per_stage = [1, 1]
    cnn_feat_dim = 32
    cnn_groups = 4
    gru_hidden_size = 32
    gru_num_layers = 2
    predict_variance = True

    kg = KeyGen(jax.random.PRNGKey(0))
    raw_params = init_model(
        kg,
        text_embed_dim=text_embed_dim,
        noise_img_size=noise_img_size,
        noise_in_chans=noise_in_chans,
        cnn_base_filters=cnn_base_filters,
        cnn_num_blocks_per_stage=cnn_num_blocks_per_stage,
        cnn_feat_dim=cnn_feat_dim,
        cnn_groups=cnn_groups,
        gru_hidden_size=gru_hidden_size,
        gru_num_layers=gru_num_layers,
        predict_variance=predict_variance,
    )
    params = prepare_params(raw_params)

    k1, k2 = jax.random.split(jax.random.PRNGKey(0))
    src_noise_sequence = jax.random.normal(
        k1, (B, T, noise_in_chans, noise_img_size, noise_img_size), jnp.float32)
    text_embed = jax.random.normal(k2, (B, text_embed_dim), jnp.float32)

    fwd = jax.jit(functools.partial(noise_sequence_rnn_v3_forward, params))
    mean_seq, log_var_seq, final_hidden = fwd(src_noise_sequence, text_embed)
    jax.block_until_ready((mean_seq, log_var_seq, final_hidden))

    assert mean_seq.shape == (B, T, noise_in_chans, noise_img_size, noise_img_size)
    assert log_var_seq.shape == (B, T, noise_in_chans, noise_img_size, noise_img_size)
    assert final_hidden.shape == (gru_num_layers, B, gru_hidden_size)
    assert bool(jnp.all(jnp.isfinite(mean_seq)))
    assert bool(jnp.all(jnp.isfinite(log_var_seq)))
    print("KERNEL_OK")
</pallas_src>

<mosaic_0001>
module attributes {stable_mosaic.version = 11 : i64} {
  func.func @_conv_shift_kernel(%arg0: i32, %arg1: i32, %arg2: memref<1x422x128xf32, #tpu.memory_space<vmem>>, %arg3: memref<9x128x128xbf16, #tpu.memory_space<vmem>>, %arg4: memref<1x128xf32, #tpu.memory_space<vmem>>, %arg5: memref<1x128x128xf32, #tpu.memory_space<vmem>>) attributes {dimension_semantics = [#tpu.dimension_semantics<parallel>, #tpu.dimension_semantics<parallel>], iteration_bounds = array<i64: 8, 3>, scalar_prefetch = 0 : i64, scratch_operands = 0 : i64, tpu.core_type = #tpu.core_type<tc>, window_params = [{transform_indices = @transform_0, window_bounds = array<i64: 1, 422, 128>}, {pipeline_mode = #tpu.pipeline_mode<synchronous>, transform_indices = @transform_1, window_bounds = array<i64: 9, 128, 128>}, {pipeline_mode = #tpu.pipeline_mode<synchronous>, transform_indices = @transform_2, window_bounds = array<i64: 1, 128>}, {transform_indices = @transform_3, window_bounds = array<i64: 1, 128, 128>}]} {
    %c128_i32 = arith.constant 128 : i32
    %0 = arith.muli %arg1, %c128_i32 : i32
    %1 = tpu.assume_multiple %0, 128 : i32
    %cst = arith.constant 0.000000e+00 : f32
    %2 = vector.broadcast %cst : f32 to vector<128x128xf32>
    %c0_i32 = arith.constant 0 : i32
    %3 = arith.addi %1, %c0_i32 : i32
    %c0 = arith.constant 0 : index
    %4 = arith.index_cast %3 : i32 to index
    %c0_0 = arith.constant 0 : index
    %5 = vector.load %arg2[%c0, %4, %c0_0] : memref<1x422x128xf32, #tpu.memory_space<vmem>>, vector<1x128x128xf32>
    %6 = vector.shape_cast %5 : vector<1x128x128xf32> to vector<128x128xf32>
    %7 = arith.truncf %6 : vector<128x128xf32> to vector<128x128xbf16>
    %c0_1 = arith.constant 0 : index
    %c0_2 = arith.constant 0 : index
    %c0_3 = arith.constant 0 : index
    %8 = vector.load %arg3[%c0_1, %c0_2, %c0_3] : memref<9x128x128xbf16, #tpu.memory_space<vmem>>, vector<1x128x128xbf16>
    %9 = vector.shape_cast %8 : vector<1x128x128xbf16> to vector<128x128xbf16>
    %cst_4 = arith.constant dense<0.000000e+00> : vector<128x128xf32>
    %10 = tpu.matmul %7, %9, %cst_4 {dimension_numbers = #tpu.dot_dimension_numbers<[1], [0], [0], [1], [0, 0, 1, 1], [], []>} : vector<128x128xbf16>, vector<128x128xbf16>, vector<128x128xf32> -> vector<128x128xf32>
    %11 = arith.addf %2, %10 : vector<128x128xf32>
    %c1_i32 = arith.constant 1 : i32
    %12 = arith.addi %1, %c1_i32 : i32
    %c0_5 = arith.constant 0 : index
    %13 = arith.index_cast %12 : i32 to index
    %c0_6 = arith.constant 0 : index
    %14 = vector.load %arg2[%c0_5, %13, %c0_6] : memref<1x422x128xf32, #tpu.memory_space<vmem>>, vector<1x128x128xf32>
    %15 = vector.shape_cast %14 : vector<1x128x128xf32> to vector<128x128xf32>
    %16 = arith.truncf %15 : vector<128x128xf32> to vector<128x128xbf16>
    %c1 = arith.constant 1 : index
    %c0_7 = arith.constant 0 : index
    %c0_8 = arith.constant 0 : index
    %17 = vector.load %arg3[%c1, %c0_7, %c0_8] : memref<9x128x128xbf16, #tpu.memory_space<vmem>>, vector<1x128x128xbf16>
    %18 = vector.shape_cast %17 : vector<1x128x128xbf16> to vector<128x128xbf16>
    %cst_9 = arith.constant dense<0.000000e+00> : vector<128x128xf32>
    %19 = tpu.matmul %16, %18, %cst_9 {dimension_numbers = #tpu.dot_dimension_numbers<[1], [0], [0], [1], [0, 0, 1, 1], [], []>} : vector<128x128xbf16>, vector<128x128xbf16>, vector<128x128xf32> -> vector<128x128xf32>
    %20 = arith.addf %11, %19 : vector<128x128xf32>
    %c2_i32 = arith.constant 2 : i32
    %21 = arith.addi %1, %c2_i32 : i32
    %c0_10 = arith.constant 0 : index
    %22 = arith.index_cast %21 : i32 to index
    %c0_11 = arith.constant 0 : index
    %23 = vector.load %arg2[%c0_10, %22, %c0_11] : memref<1x422x128xf32, #tpu.memory_space<vmem>>, vector<1x128x128xf32>
    %24 = vector.shape_cast %23 : vector<1x128x128xf32> to vector<128x128xf32>
    %25 = arith.truncf %24 : vector<128x128xf32> to vector<128x128xbf16>
    %c2 = arith.constant 2 : index
    %c0_12 = arith.constant 0 : index
    %c0_13 = arith.constant 0 : index
    %26 = vector.load %arg3[%c2, %c0_12, %c0_13] : memref<9x128x128xbf16, #tpu.memory_space<vmem>>, vector<1x128x128xbf16>
    %27 = vector.shape_cast %26 : vector<1x128x128xbf16> to vector<128x128xbf16>
    %cst_14 = arith.constant dense<0.000000e+00> : vector<128x128xf32>
    %28 = tpu.matmul %25, %27, %cst_14 {dimension_numbers = #tpu.dot_dimension_numbers<[1], [0], [0], [1], [0, 0, 1, 1], [], []>} : vector<128x128xbf16>, vector<128x128xbf16>, vector<128x128xf32> -> vector<128x128xf32>
    %29 = arith.addf %20, %28 : vector<128x128xf32>
    %c18_i32 = arith.constant 18 : i32
    %30 = arith.addi %1, %c18_i32 : i32
    %c0_15 = arith.constant 0 : index
    %31 = arith.index_cast %30 : i32 to index
    %c0_16 = arith.constant 0 : index
    %32 = vector.load %arg2[%c0_15, %31, %c0_16] : memref<1x422x128xf32, #tpu.memory_space<vmem>>, vector<1x128x128xf32>
    %33 = vector.shape_cast %32 : vector<1x128x128xf32> to vector<128x128xf32>
    %34 = arith.truncf %33 : vector<128x128xf32> to vector<128x128xbf16>
    %c3 = arith.constant 3 : index
    %c0_17 = arith.constant 0 : index
    %c0_18 = arith.constant 0 : index
    %35 = vector.load %arg3[%c3, %c0_17, %c0_18] : memref<9x128x128xbf16, #tpu.memory_space<vmem>>, vector<1x128x128xbf16>
    %36 = vector.shape_cast %35 : vector<1x128x128xbf16> to vector<128x128xbf16>
    %cst_19 = arith.constant dense<0.000000e+00> : vector<128x128xf32>
    %37 = tpu.matmul %34, %36, %cst_19 {dimension_numbers = #tpu.dot_dimension_numbers<[1], [0], [0], [1], [0, 0, 1, 1], [], []>} : vector<128x128xbf16>, vector<128x128xbf16>, vector<128x128xf32> -> vector<128x128xf32>
    %38 = arith.addf %29, %37 : vector<128x128xf32>
    %c19_i32 = arith.constant 19 : i32
    %39 = arith.addi %1, %c19_i32 : i32
    %c0_20 = arith.constant 0 : index
    %40 = arith.index_cast %39 : i32 to index
    %c0_21 = arith.constant 0 : index
    %41 = vector.load %arg2[%c0_20, %40, %c0_21] : memref<1x422x128xf32, #tpu.memory_space<vmem>>, vector<1x128x128xf32>
    %42 = vector.shape_cast %41 : vector<1x128x128xf32> to vector<128x128xf32>
    %43 = arith.truncf %42 : vector<128x128xf32> to vector<128x128xbf16>
    %c4 = arith.constant 4 : index
    %c0_22 = arith.constant 0 : index
    %c0_23 = arith.constant 0 : index
    %44 = vector.load %arg3[%c4, %c0_22, %c0_23] : memref<9x128x128xbf16, #tpu.memory_space<vmem>>, vector<1x128x128xbf16>
    %45 = vector.shape_cast %44 : vector<1x128x128xbf16> to vector<128x128xbf16>
    %cst_24 = arith.constant dense<0.000000e+00> : vector<128x128xf32>
    %46 = tpu.matmul %43, %45, %cst_24 {dimension_numbers = #tpu.dot_dimension_numbers<[1], [0], [0], [1], [0, 0, 1, 1], [], []>} : vector<128x128xbf16>, vector<128x128xbf16>, vector<128x128xf32> -> vector<128x128xf32>
    %47 = arith.addf %38, %46 : vector<128x128xf32>
    %c20_i32 = arith.constant 20 : i32
    %48 = arith.addi %1, %c20_i32 : i32
    %c0_25 = arith.constant 0 : index
    %49 = arith.index_cast %48 : i32 to index
    %c0_26 = arith.constant 0 : index
    %50 = vector.load %arg2[%c0_25, %49, %c0_26] : memref<1x422x128xf32, #tpu.memory_space<vmem>>, vector<1x128x128xf32>
    %51 = vector.shape_cast %50 : vector<1x128x128xf32> to vector<128x128xf32>
    %52 = arith.truncf %51 : vector<128x128xf32> to vector<128x128xbf16>
    %c5 = arith.constant 5 : index
    %c0_27 = arith.constant 0 : index
    %c0_28 = arith.constant 0 : index
    %53 = vector.load %arg3[%c5, %c0_27, %c0_28] : memref<9x128x128xbf16, #tpu.memory_space<vmem>>, vector<1x128x128xbf16>
    %54 = vector.shape_cast %53 : vector<1x128x128xbf16> to vector<128x128xbf16>
    %cst_29 = arith.constant dense<0.000000e+00> : vector<128x128xf32>
    %55 = tpu.matmul %52, %54, %cst_29 {dimension_numbers = #tpu.dot_dimension_numbers<[1], [0], [0], [1], [0, 0, 1, 1], [], []>} : vector<128x128xbf16>, vector<128x128xbf16>, vector<128x128xf32> -> vector<128x128xf32>
    %56 = arith.addf %47, %55 : vector<128x128xf32>
    %c36_i32 = arith.constant 36 : i32
    %57 = arith.addi %1, %c36_i32 : i32
    %c0_30 = arith.constant 0 : index
    %58 = arith.index_cast %57 : i32 to index
    %c0_31 = arith.constant 0 : index
    %59 = vector.load %arg2[%c0_30, %58, %c0_31] : memref<1x422x128xf32, #tpu.memory_space<vmem>>, vector<1x128x128xf32>
    %60 = vector.shape_cast %59 : vector<1x128x128xf32> to vector<128x128xf32>
    %61 = arith.truncf %60 : vector<128x128xf32> to vector<128x128xbf16>
    %c6 = arith.constant 6 : index
    %c0_32 = arith.constant 0 : index
    %c0_33 = arith.constant 0 : index
    %62 = vector.load %arg3[%c6, %c0_32, %c0_33] : memref<9x128x128xbf16, #tpu.memory_space<vmem>>, vector<1x128x128xbf16>
    %63 = vector.shape_cast %62 : vector<1x128x128xbf16> to vector<128x128xbf16>
    %cst_34 = arith.constant dense<0.000000e+00> : vector<128x128xf32>
    %64 = tpu.matmul %61, %63, %cst_34 {dimension_numbers = #tpu.dot_dimension_numbers<[1], [0], [0], [1], [0, 0, 1, 1], [], []>} : vector<128x128xbf16>, vector<128x128xbf16>, vector<128x128xf32> -> vector<128x128xf32>
    %65 = arith.addf %56, %64 : vector<128x128xf32>
    %c37_i32 = arith.constant 37 : i32
    %66 = arith.addi %1, %c37_i32 : i32
    %c0_35 = arith.constant 0 : index
    %67 = arith.index_cast %66 : i32 to index
    %c0_36 = arith.constant 0 : index
    %68 = vector.load %arg2[%c0_35, %67, %c0_36] : memref<1x422x128xf32, #tpu.memory_space<vmem>>, vector<1x128x128xf32>
    %69 = vector.shape_cast %68 : vector<1x128x128xf32> to vector<128x128xf32>
    %70 = arith.truncf %69 : vector<128x128xf32> to vector<128x128xbf16>
    %c7 = arith.constant 7 : index
    %c0_37 = arith.constant 0 : index
    %c0_38 = arith.constant 0 : index
    %71 = vector.load %arg3[%c7, %c0_37, %c0_38] : memref<9x128x128xbf16, #tpu.memory_space<vmem>>, vector<1x128x128xbf16>
    %72 = vector.shape_cast %71 : vector<1x128x128xbf16> to vector<128x128xbf16>
    %cst_39 = arith.constant dense<0.000000e+00> : vector<128x128xf32>
    %73 = tpu.matmul %70, %72, %cst_39 {dimension_numbers = #tpu.dot_dimension_numbers<[1], [0], [0], [1], [0, 0, 1, 1], [], []>} : vector<128x128xbf16>, vector<128x128xbf16>, vector<128x128xf32> -> vector<128x128xf32>
    %74 = arith.addf %65, %73 : vector<128x128xf32>
    %c38_i32 = arith.constant 38 : i32
    %75 = arith.addi %1, %c38_i32 : i32
    %c0_40 = arith.constant 0 : index
    %76 = arith.index_cast %75 : i32 to index
    %c0_41 = arith.constant 0 : index
    %77 = vector.load %arg2[%c0_40, %76, %c0_41] : memref<1x422x128xf32, #tpu.memory_space<vmem>>, vector<1x128x128xf32>
    %78 = vector.shape_cast %77 : vector<1x128x128xf32> to vector<128x128xf32>
    %79 = arith.truncf %78 : vector<128x128xf32> to vector<128x128xbf16>
    %c8 = arith.constant 8 : index
    %c0_42 = arith.constant 0 : index
    %c0_43 = arith.constant 0 : index
    %80 = vector.load %arg3[%c8, %c0_42, %c0_43] : memref<9x128x128xbf16, #tpu.memory_space<vmem>>, vector<1x128x128xbf16>
    %81 = vector.shape_cast %80 : vector<1x128x128xbf16> to vector<128x128xbf16>
    %cst_44 = arith.constant dense<0.000000e+00> : vector<128x128xf32>
    %82 = tpu.matmul %79, %81, %cst_44 {dimension_numbers = #tpu.dot_dimension_numbers<[1], [0], [0], [1], [0, 0, 1, 1], [], []>} : vector<128x128xbf16>, vector<128x128xbf16>, vector<128x128xf32> -> vector<128x128xf32>
    %83 = arith.addf %74, %82 : vector<128x128xf32>
    %c0_45 = arith.constant 0 : index
    %c0_46 = arith.constant 0 : index
    %84 = vector.load %arg4[%c0_45, %c0_46] : memref<1x128xf32, #tpu.memory_space<vmem>>, vector<1x128xf32>
    %85 = vector.broadcast %84 : vector<1x128xf32> to vector<128x128xf32>
    %86 = arith.addf %83, %85 : vector<128x128xf32>
    %c0_47 = arith.constant 0 : index
    %c0_48 = arith.constant 0 : index
    %c0_49 = arith.constant 0 : index
    %87 = vector.load %arg5[%c0_47, %c0_48, %c0_49] : memref<1x128x128xf32, #tpu.memory_space<vmem>>, vector<1x128x128xf32>
    %88 = vector.shape_cast %87 : vector<1x128x128xf32> to vector<128x128xf32>
    %89 = vector.shape_cast %86 : vector<128x128xf32> to vector<1x128x128xf32>
    tpu.vector_store %arg5[%c0_47, %c0_48, %c0_49], %89 {strides = array<i32>} : memref<1x128x128xf32, #tpu.memory_space<vmem>>, vector<1x128x128xf32>,
    return
  }
  func.func @transform_0(%arg0: i32, %arg1: i32) -> (i32, i32, i32) {
    %c0_i32 = arith.constant 0 : i32
    %c0_i32_0 = arith.constant 0 : i32
    %c0_i32_1 = arith.constant 0 : i32
    return %arg0, %c0_i32, %c0_i32_0 : i32, i32, i32
  }
  func.func @transform_1(%arg0: i32, %arg1: i32) -> (i32, i32, i32) {
    %c0_i32 = arith.constant 0 : i32
    %c0_i32_0 = arith.constant 0 : i32
    %c0_i32_1 = arith.constant 0 : i32
    %c0_i32_2 = arith.constant 0 : i32
    return %c0_i32, %c0_i32_0, %c0_i32_1 : i32, i32, i32
  }
  func.func @transform_2(%arg0: i32, %arg1: i32) -> (i32, i32) {
    %c0_i32 = arith.constant 0 : i32
    %c0_i32_0 = arith.constant 0 : i32
    %c0_i32_1 = arith.constant 0 : i32
    return %c0_i32, %c0_i32_0 : i32, i32
  }
  func.func @transform_3(%arg0: i32, %arg1: i32) -> (i32, i32, i32) {
    %c0_i32 = arith.constant 0 : i32
    %c0_i32_0 = arith.constant 0 : i32
    return %arg0, %arg1, %c0_i32 : i32, i32, i32
  }
}

module attributes {stable_mosaic.version = 11 : i64} {
  func.func @_gn_silu_kernel(%arg0: i32, %arg1: memref<1x256x128xf32, #tpu.memory_space<vmem>>, %arg2: memref<1x128xf32, #tpu.memory_space<vmem>>, %arg3: memref<1x128xf32, #tpu.memory_space<vmem>>, %arg4: memref<128x128xf32, #tpu.memory_space<vmem>>, %arg5: memref<128x128xf32, #tpu.memory_space<vmem>>, %arg6: memref<1x256x128xf32, #tpu.memory_space<vmem>>) attributes {dimension_semantics = [#tpu.dimension_semantics<parallel>], iteration_bounds = array<i64: 8>, scalar_prefetch = 0 : i64, scratch_operands = 0 : i64, tpu.core_type = #tpu.core_type<tc>, window_params = [{transform_indices = @transform_0, window_bounds = array<i64: 1, 256, 128>}, {pipeline_mode = #tpu.pipeline_mode<synchronous>, transform_indices = @transform_1, window_bounds = array<i64: 1, 128>}, {pipeline_mode = #tpu.pipeline_mode<synchronous>, transform_indices = @transform_2, window_bounds = array<i64: 1, 128>}, {pipeline_mode = #tpu.pipeline_mode<synchronous>, transform_indices = @transform_3, window_bounds = array<i64: 128, 128>}, {pipeline_mode = #tpu.pipeline_mode<synchronous>, transform_indices = @transform_4, window_bounds = array<i64: 128, 128>}, {transform_indices = @transform_5, window_bounds = array<i64: 1, 256, 128>}]} {
    %c0 = arith.constant 0 : index
    %c0_0 = arith.constant 0 : index
    %c0_1 = arith.constant 0 : index
    %0 = vector.load %arg1[%c0, %c0_0, %c0_1] : memref<1x256x128xf32, #tpu.memory_space<vmem>>, vector<1x256x128xf32>
    %1 = vector.shape_cast %0 : vector<1x256x128xf32> to vector<256x128xf32>
    %cst = arith.constant dense<0.000000e+00> : vector<128xf32>
    %2 = vector.multi_reduction <add>, %1, %cst [0] : vector<256x128xf32> to vector<128xf32>
    %3 = vector.shape_cast %2 : vector<128xf32> to vector<1x128xf32>
    %4 = arith.mulf %1, %1 : vector<256x128xf32>
    %cst_2 = arith.constant dense<0.000000e+00> : vector<128xf32>
    %5 = vector.multi_reduction <add>, %4, %cst_2 [0] : vector<256x128xf32> to vector<128xf32>
    %6 = vector.shape_cast %5 : vector<128xf32> to vector<1x128xf32>
    %c0_3 = arith.constant 0 : index
    %c0_4 = arith.constant 0 : index
    %7 = vector.load %arg4[%c0_3, %c0_4] : memref<128x128xf32, #tpu.memory_space<vmem>>, vector<128x128xf32>
    %cst_5 = arith.constant dense<0.000000e+00> : vector<128xf32>
    %8 = vector.multi_reduction <add>, %7, %cst_5 [0] : vector<128x128xf32> to vector<128xf32>
    %9 = vector.shape_cast %8 : vector<128xf32> to vector<1x128xf32>
    %cst_6 = arith.constant 2.560000e+02 : f32
    %10 = vector.broadcast %cst_6 : f32 to vector<1x128xf32>
    %11 = arith.mulf %9, %10 : vector<1x128xf32>
    %cst_7 = arith.constant 1.000000e+00 : f32
    %12 = vector.broadcast %cst_7 : f32 to vector<1x128xf32>
    %13 = arith.maximumf %11, %12 : vector<1x128xf32>
    %cst_8 = arith.constant dense<0.000000e+00> : vector<1x128xf32>
    %14 = tpu.matmul %3, %7, %cst_8 {dimension_numbers = #tpu.dot_dimension_numbers<[1], [0], [0], [1], [0, 0, 1, 1], [], []>} : vector<1x128xf32>, vector<128x128xf32>, vector<1x128xf32> -> vector<1x128xf32>
    %15 = arith.divf %14, %13 : vector<1x128xf32>
    %cst_9 = arith.constant dense<0.000000e+00> : vector<1x128xf32>
    %16 = tpu.matmul %6, %7, %cst_9 {dimension_numbers = #tpu.dot_dimension_numbers<[1], [0], [0], [1], [0, 0, 1, 1], [], []>} : vector<1x128xf32>, vector<128x128xf32>, vector<1x128xf32> -> vector<1x128xf32>
    %17 = arith.divf %16, %13 : vector<1x128xf32>
    %18 = arith.mulf %15, %15 : vector<1x128xf32>
    %19 = arith.subf %17, %18 : vector<1x128xf32>
    %cst_10 = arith.constant 0.000000e+00 : f32
    %20 = vector.broadcast %cst_10 : f32 to vector<1x128xf32>
    %21 = arith.maximumf %19, %20 : vector<1x128xf32>
    %cst_11 = arith.constant 9.99999974E-6 : f32
    %22 = vector.broadcast %cst_11 : f32 to vector<1x128xf32>
    %23 = arith.addf %21, %22 : vector<1x128xf32>
    %24 = math.rsqrt %23 : vector<1x128xf32>
    %c0_12 = arith.constant 0 : index
    %c0_13 = arith.constant 0 : index
    %25 = vector.load %arg5[%c0_12, %c0_13] : memref<128x128xf32, #tpu.memory_space<vmem>>, vector<128x128xf32>
    %cst_14 = arith.constant dense<0.000000e+00> : vector<1x128xf32>
    %26 = tpu.matmul %15, %25, %cst_14 {dimension_numbers = #tpu.dot_dimension_numbers<[1], [0], [0], [1], [0, 0, 1, 1], [], []>} : vector<1x128xf32>, vector<128x128xf32>, vector<1x128xf32> -> vector<1x128xf32>
    %cst_15 = arith.constant dense<0.000000e+00> : vector<1x128xf32>
    %27 = tpu.matmul %24, %25, %cst_15 {dimension_numbers = #tpu.dot_dimension_numbers<[1], [0], [0], [1], [0, 0, 1, 1], [], []>} : vector<1x128xf32>, vector<128x128xf32>, vector<1x128xf32> -> vector<1x128xf32>
    %c0_16 = arith.constant 0 : index
    %c0_17 = arith.constant 0 : index
    %28 = vector.load %arg2[%c0_16, %c0_17] : memref<1x128xf32, #tpu.memory_space<vmem>>, vector<1x128xf32>
    %29 = arith.mulf %27, %28 : vector<1x128xf32>
    %c0_18 = arith.constant 0 : index
    %c0_19 = arith.constant 0 : index
    %30 = vector.load %arg3[%c0_18, %c0_19] : memref<1x128xf32, #tpu.memory_space<vmem>>, vector<1x128xf32>
    %31 = arith.mulf %26, %29 : vector<1x128xf32>
    %32 = arith.subf %30, %31 : vector<1x128xf32>
    %33 = vector.broadcast %29 : vector<1x128xf32> to vector<256x128xf32>
    %34 = arith.mulf %1, %33 : vector<256x128xf32>
    %35 = vector.broadcast %32 : vector<1x128xf32> to vector<256x128xf32>
    %36 = arith.addf %34, %35 : vector<256x128xf32>
    %37 = arith.negf %36 : vector<256x128xf32>
    %38 = math.exp %37 : vector<256x128xf32>
    %cst_20 = arith.constant 1.000000e+00 : f32
    %39 = vector.broadcast %cst_20 : f32 to vector<256x128xf32>
    %40 = arith.addf %39, %38 : vector<256x128xf32>
    %41 = arith.divf %39, %40 : vector<256x128xf32>
    %42 = arith.mulf %36, %41 : vector<256x128xf32>
    %c0_21 = arith.constant 0 : index
    %c0_22 = arith.constant 0 : index
    %c0_23 = arith.constant 0 : index
    %43 = vector.load %arg6[%c0_21, %c0_22, %c0_23] : memref<1x256x128xf32, #tpu.memory_space<vmem>>, vector<1x256x128xf32>
    %44 = vector.shape_cast %43 : vector<1x256x128xf32> to vector<256x128xf32>
    %45 = vector.shape_cast %42 : vector<256x128xf32> to vector<1x256x128xf32>
    tpu.vector_store %arg6[%c0_21, %c0_22, %c0_23], %45 {strides = array<i32>} : memref<1x256x128xf32, #tpu.memory_space<vmem>>, vector<1x256x128xf32>,
    return
  }
  func.func @transform_0(%arg0: i32) -> (i32, i32, i32) {
    %c0_i32 = arith.constant 0 : i32
    %c0_i32_0 = arith.constant 0 : i32
    %c0_i32_1 = arith.constant 0 : i32
    return %arg0, %c0_i32, %c0_i32_0 : i32, i32, i32
  }
  func.func @transform_1(%arg0: i32) -> (i32, i32) {
    %c0_i32 = arith.constant 0 : i32
    %c0_i32_0 = arith.constant 0 : i32
    %c0_i32_1 = arith.constant 0 : i32
    return %c0_i32, %c0_i32_0 : i32, i32
  }
  func.func @transform_2(%arg0: i32) -> (i32, i32) {
    %c0_i32 = arith.constant 0 : i32
    %c0_i32_0 = arith.constant 0 : i32
    %c0_i32_1 = arith.constant 0 : i32
    return %c0_i32, %c0_i32_0 : i32, i32
  }
  func.func @transform_3(%arg0: i32) -> (i32, i32) {
    %c0_i32 = arith.constant 0 : i32
    %c0_i32_0 = arith.constant 0 : i32
    %c0_i32_1 = arith.constant 0 : i32
    return %c0_i32, %c0_i32_0 : i32, i32
  }
  func.func @transform_4(%arg0: i32) -> (i32, i32) {
    %c0_i32 = arith.constant 0 : i32
    %c0_i32_0 = arith.constant 0 : i32
    %c0_i32_1 = arith.constant 0 : i32
    return %c0_i32, %c0_i32_0 : i32, i32
  }
  func.func @transform_5(%arg0: i32) -> (i32, i32, i32) {
    %c0_i32 = arith.constant 0 : i32
    %c0_i32_0 = arith.constant 0 : i32
    %c0_i32_1 = arith.constant 0 : i32
    return %arg0, %c0_i32, %c0_i32_0 : i32, i32, i32
  }
}

module attributes {stable_mosaic.version = 11 : i64} {
  func.func @_gn_silu_kernel(%arg0: i32, %arg1: memref<1x64x128xf32, #tpu.memory_space<vmem>>, %arg2: memref<1x128xf32, #tpu.memory_space<vmem>>, %arg3: memref<1x128xf32, #tpu.memory_space<vmem>>, %arg4: memref<128x128xf32, #tpu.memory_space<vmem>>, %arg5: memref<128x128xf32, #tpu.memory_space<vmem>>, %arg6: memref<1x64x128xf32, #tpu.memory_space<vmem>>) attributes {dimension_semantics = [#tpu.dimension_semantics<parallel>], iteration_bounds = array<i64: 8>, scalar_prefetch = 0 : i64, scratch_operands = 0 : i64, tpu.core_type = #tpu.core_type<tc>, window_params = [{transform_indices = @transform_0, window_bounds = array<i64: 1, 64, 128>}, {pipeline_mode = #tpu.pipeline_mode<synchronous>, transform_indices = @transform_1, window_bounds = array<i64: 1, 128>}, {pipeline_mode = #tpu.pipeline_mode<synchronous>, transform_indices = @transform_2, window_bounds = array<i64: 1, 128>}, {pipeline_mode = #tpu.pipeline_mode<synchronous>, transform_indices = @transform_3, window_bounds = array<i64: 128, 128>}, {pipeline_mode = #tpu.pipeline_mode<synchronous>, transform_indices = @transform_4, window_bounds = array<i64: 128, 128>}, {transform_indices = @transform_5, window_bounds = array<i64: 1, 64, 128>}]} {
    %c0 = arith.constant 0 : index
    %c0_0 = arith.constant 0 : index
    %c0_1 = arith.constant 0 : index
    %0 = vector.load %arg1[%c0, %c0_0, %c0_1] : memref<1x64x128xf32, #tpu.memory_space<vmem>>, vector<1x64x128xf32>
    %1 = vector.shape_cast %0 : vector<1x64x128xf32> to vector<64x128xf32>
    %cst = arith.constant dense<0.000000e+00> : vector<128xf32>
    %2 = vector.multi_reduction <add>, %1, %cst [0] : vector<64x128xf32> to vector<128xf32>
    %3 = vector.shape_cast %2 : vector<128xf32> to vector<1x128xf32>
    %4 = arith.mulf %1, %1 : vector<64x128xf32>
    %cst_2 = arith.constant dense<0.000000e+00> : vector<128xf32>
    %5 = vector.multi_reduction <add>, %4, %cst_2 [0] : vector<64x128xf32> to vector<128xf32>
    %6 = vector.shape_cast %5 : vector<128xf32> to vector<1x128xf32>
    %c0_3 = arith.constant 0 : index
    %c0_4 = arith.constant 0 : index
    %7 = vector.load %arg4[%c0_3, %c0_4] : memref<128x128xf32, #tpu.memory_space<vmem>>, vector<128x128xf32>
    %cst_5 = arith.constant dense<0.000000e+00> : vector<128xf32>
    %8 = vector.multi_reduction <add>, %7, %cst_5 [0] : vector<128x128xf32> to vector<128xf32>
    %9 = vector.shape_cast %8 : vector<128xf32> to vector<1x128xf32>
    %cst_6 = arith.constant 6.400000e+01 : f32
    %10 = vector.broadcast %cst_6 : f32 to vector<1x128xf32>
    %11 = arith.mulf %9, %10 : vector<1x128xf32>
    %cst_7 = arith.constant 1.000000e+00 : f32
    %12 = vector.broadcast %cst_7 : f32 to vector<1x128xf32>
    %13 = arith.maximumf %11, %12 : vector<1x128xf32>
    %cst_8 = arith.constant dense<0.000000e+00> : vector<1x128xf32>
    %14 = tpu.matmul %3, %7, %cst_8 {dimension_numbers = #tpu.dot_dimension_numbers<[1], [0], [0], [1], [0, 0, 1, 1], [], []>} : vector<1x128xf32>, vector<128x128xf32>, vector<1x128xf32> -> vector<1x128xf32>
    %15 = arith.divf %14, %13 : vector<1x128xf32>
    %cst_9 = arith.constant dense<0.000000e+00> : vector<1x128xf32>
    %16 = tpu.matmul %6, %7, %cst_9 {dimension_numbers = #tpu.dot_dimension_numbers<[1], [0], [0], [1], [0, 0, 1, 1], [], []>} : vector<1x128xf32>, vector<128x128xf32>, vector<1x128xf32> -> vector<1x128xf32>
    %17 = arith.divf %16, %13 : vector<1x128xf32>
    %18 = arith.mulf %15, %15 : vector<1x128xf32>
    %19 = arith.subf %17, %18 : vector<1x128xf32>
    %cst_10 = arith.constant 0.000000e+00 : f32
    %20 = vector.broadcast %cst_10 : f32 to vector<1x128xf32>
    %21 = arith.maximumf %19, %20 : vector<1x128xf32>
    %cst_11 = arith.constant 9.99999974E-6 : f32
    %22 = vector.broadcast %cst_11 : f32 to vector<1x128xf32>
    %23 = arith.addf %21, %22 : vector<1x128xf32>
    %24 = math.rsqrt %23 : vector<1x128xf32>
    %c0_12 = arith.constant 0 : index
    %c0_13 = arith.constant 0 : index
    %25 = vector.load %arg5[%c0_12, %c0_13] : memref<128x128xf32, #tpu.memory_space<vmem>>, vector<128x128xf32>
    %cst_14 = arith.constant dense<0.000000e+00> : vector<1x128xf32>
    %26 = tpu.matmul %15, %25, %cst_14 {dimension_numbers = #tpu.dot_dimension_numbers<[1], [0], [0], [1], [0, 0, 1, 1], [], []>} : vector<1x128xf32>, vector<128x128xf32>, vector<1x128xf32> -> vector<1x128xf32>
    %cst_15 = arith.constant dense<0.000000e+00> : vector<1x128xf32>
    %27 = tpu.matmul %24, %25, %cst_15 {dimension_numbers = #tpu.dot_dimension_numbers<[1], [0], [0], [1], [0, 0, 1, 1], [], []>} : vector<1x128xf32>, vector<128x128xf32>, vector<1x128xf32> -> vector<1x128xf32>
    %c0_16 = arith.constant 0 : index
    %c0_17 = arith.constant 0 : index
    %28 = vector.load %arg2[%c0_16, %c0_17] : memref<1x128xf32, #tpu.memory_space<vmem>>, vector<1x128xf32>
    %29 = arith.mulf %27, %28 : vector<1x128xf32>
    %c0_18 = arith.constant 0 : index
    %c0_19 = arith.constant 0 : index
    %30 = vector.load %arg3[%c0_18, %c0_19] : memref<1x128xf32, #tpu.memory_space<vmem>>, vector<1x128xf32>
    %31 = arith.mulf %26, %29 : vector<1x128xf32>
    %32 = arith.subf %30, %31 : vector<1x128xf32>
    %33 = vector.broadcast %29 : vector<1x128xf32> to vector<64x128xf32>
    %34 = arith.mulf %1, %33 : vector<64x128xf32>
    %35 = vector.broadcast %32 : vector<1x128xf32> to vector<64x128xf32>
    %36 = arith.addf %34, %35 : vector<64x128xf32>
    %37 = arith.negf %36 : vector<64x128xf32>
    %38 = math.exp %37 : vector<64x128xf32>
    %cst_20 = arith.constant 1.000000e+00 : f32
    %39 = vector.broadcast %cst_20 : f32 to vector<64x128xf32>
    %40 = arith.addf %39, %38 : vector<64x128xf32>
    %41 = arith.divf %39, %40 : vector<64x128xf32>
    %42 = arith.mulf %36, %41 : vector<64x128xf32>
    %c0_21 = arith.constant 0 : index
    %c0_22 = arith.constant 0 : index
    %c0_23 = arith.constant 0 : index
    %43 = vector.load %arg6[%c0_21, %c0_22, %c0_23] : memref<1x64x128xf32, #tpu.memory_space<vmem>>, vector<1x64x128xf32>
    %44 = vector.shape_cast %43 : vector<1x64x128xf32> to vector<64x128xf32>
    %45 = vector.shape_cast %42 : vector<64x128xf32> to vector<1x64x128xf32>
    tpu.vector_store %arg6[%c0_21, %c0_22, %c0_23], %45 {strides = array<i32>} : memref<1x64x128xf32, #tpu.memory_space<vmem>>, vector<1x64x128xf32>,
    return
  }
  func.func @transform_0(%arg0: i32) -> (i32, i32, i32) {
    %c0_i32 = arith.constant 0 : i32
    %c0_i32_0 = arith.constant 0 : i32
    %c0_i32_1 = arith.constant 0 : i32
    return %arg0, %c0_i32, %c0_i32_0 : i32, i32, i32
  }
  func.func @transform_1(%arg0: i32) -> (i32, i32) {
    %c0_i32 = arith.constant 0 : i32
    %c0_i32_0 = arith.constant 0 : i32
    %c0_i32_1 = arith.constant 0 : i32
    return %c0_i32, %c0_i32_0 : i32, i32
  }
  func.func @transform_2(%arg0: i32) -> (i32, i32) {
    %c0_i32 = arith.constant 0 : i32
    %c0_i32_0 = arith.constant 0 : i32
    %c0_i32_1 = arith.constant 0 : i32
    return %c0_i32, %c0_i32_0 : i32, i32
  }
  func.func @transform_3(%arg0: i32) -> (i32, i32) {
    %c0_i32 = arith.constant 0 : i32
    %c0_i32_0 = arith.constant 0 : i32
    %c0_i32_1 = arith.constant 0 : i32
    return %c0_i32, %c0_i32_0 : i32, i32
  }
  func.func @transform_4(%arg0: i32) -> (i32, i32) {
    %c0_i32 = arith.constant 0 : i32
    %c0_i32_0 = arith.constant 0 : i32
    %c0_i32_1 = arith.constant 0 : i32
    return %c0_i32, %c0_i32_0 : i32, i32
  }
  func.func @transform_5(%arg0: i32) -> (i32, i32, i32) {
    %c0_i32 = arith.constant 0 : i32
    %c0_i32_0 = arith.constant 0 : i32
    %c0_i32_1 = arith.constant 0 : i32
    return %arg0, %c0_i32, %c0_i32_0 : i32, i32, i32
  }
}

module attributes {stable_mosaic.version = 11 : i64} {
  func.func @_conv_shift_kernel(%arg0: i32, %arg1: i32, %arg2: memref<1x126x128xf32, #tpu.memory_space<vmem>>, %arg3: memref<9x128x128xbf16, #tpu.memory_space<vmem>>, %arg4: memref<1x128xf32, #tpu.memory_space<vmem>>, %arg5: memref<1x104x128xf32, #tpu.memory_space<vmem>>) attributes {dimension_semantics = [#tpu.dimension_semantics<parallel>, #tpu.dimension_semantics<parallel>], iteration_bounds = array<i64: 8, 1>, scalar_prefetch = 0 : i64, scratch_operands = 0 : i64, tpu.core_type = #tpu.core_type<tc>, window_params = [{transform_indices = @transform_0, window_bounds = array<i64: 1, 126, 128>}, {pipeline_mode = #tpu.pipeline_mode<synchronous>, transform_indices = @transform_1, window_bounds = array<i64: 9, 128, 128>}, {pipeline_mode = #tpu.pipeline_mode<synchronous>, transform_indices = @transform_2, window_bounds = array<i64: 1, 128>}, {transform_indices = @transform_3, window_bounds = array<i64: 1, 104, 128>}]} {
    %c104_i32 = arith.constant 104 : i32
    %0 = arith.muli %arg1, %c104_i32 : i32
    %1 = tpu.assume_multiple %0, 104 : i32
    %cst = arith.constant 0.000000e+00 : f32
    %2 = vector.broadcast %cst : f32 to vector<104x128xf32>
    %c0_i32 = arith.constant 0 : i32
    %3 = arith.addi %1, %c0_i32 : i32
    %c0 = arith.constant 0 : index
    %4 = arith.index_cast %3 : i32 to index
    %c0_0 = arith.constant 0 : index
    %5 = vector.load %arg2[%c0, %4, %c0_0] : memref<1x126x128xf32, #tpu.memory_space<vmem>>, vector<1x104x128xf32>
    %6 = vector.shape_cast %5 : vector<1x104x128xf32> to vector<104x128xf32>
    %7 = arith.truncf %6 : vector<104x128xf32> to vector<104x128xbf16>
    %c0_1 = arith.constant 0 : index
    %c0_2 = arith.constant 0 : index
    %c0_3 = arith.constant 0 : index
    %8 = vector.load %arg3[%c0_1, %c0_2, %c0_3] : memref<9x128x128xbf16, #tpu.memory_space<vmem>>, vector<1x128x128xbf16>
    %9 = vector.shape_cast %8 : vector<1x128x128xbf16> to vector<128x128xbf16>
    %cst_4 = arith.constant dense<0.000000e+00> : vector<104x128xf32>
    %10 = tpu.matmul %7, %9, %cst_4 {dimension_numbers = #tpu.dot_dimension_numbers<[1], [0], [0], [1], [0, 0, 1, 1], [], []>} : vector<104x128xbf16>, vector<128x128xbf16>, vector<104x128xf32> -> vector<104x128xf32>
    %11 = arith.addf %2, %10 : vector<104x128xf32>
    %c1_i32 = arith.constant 1 : i32
    %12 = arith.addi %1, %c1_i32 : i32
    %c0_5 = arith.constant 0 : index
    %13 = arith.index_cast %12 : i32 to index
    %c0_6 = arith.constant 0 : index
    %14 = vector.load %arg2[%c0_5, %13, %c0_6] : memref<1x126x128xf32, #tpu.memory_space<vmem>>, vector<1x104x128xf32>
    %15 = vector.shape_cast %14 : vector<1x104x128xf32> to vector<104x128xf32>
    %16 = arith.truncf %15 : vector<104x128xf32> to vector<104x128xbf16>
    %c1 = arith.constant 1 : index
    %c0_7 = arith.constant 0 : index
    %c0_8 = arith.constant 0 : index
    %17 = vector.load %arg3[%c1, %c0_7, %c0_8] : memref<9x128x128xbf16, #tpu.memory_space<vmem>>, vector<1x128x128xbf16>
    %18 = vector.shape_cast %17 : vector<1x128x128xbf16> to vector<128x128xbf16>
    %cst_9 = arith.constant dense<0.000000e+00> : vector<104x128xf32>
    %19 = tpu.matmul %16, %18, %cst_9 {dimension_numbers = #tpu.dot_dimension_numbers<[1], [0], [0], [1], [0, 0, 1, 1], [], []>} : vector<104x128xbf16>, vector<128x128xbf16>, vector<104x128xf32> -> vector<104x128xf32>
    %20 = arith.addf %11, %19 : vector<104x128xf32>
    %c2_i32 = arith.constant 2 : i32
    %21 = arith.addi %1, %c2_i32 : i32
    %c0_10 = arith.constant 0 : index
    %22 = arith.index_cast %21 : i32 to index
    %c0_11 = arith.constant 0 : index
    %23 = vector.load %arg2[%c0_10, %22, %c0_11] : memref<1x126x128xf32, #tpu.memory_space<vmem>>, vector<1x104x128xf32>
    %24 = vector.shape_cast %23 : vector<1x104x128xf32> to vector<104x128xf32>
    %25 = arith.truncf %24 : vector<104x128xf32> to vector<104x128xbf16>
    %c2 = arith.constant 2 : index
    %c0_12 = arith.constant 0 : index
    %c0_13 = arith.constant 0 : index
    %26 = vector.load %arg3[%c2, %c0_12, %c0_13] : memref<9x128x128xbf16, #tpu.memory_space<vmem>>, vector<1x128x128xbf16>
    %27 = vector.shape_cast %26 : vector<1x128x128xbf16> to vector<128x128xbf16>
    %cst_14 = arith.constant dense<0.000000e+00> : vector<104x128xf32>
    %28 = tpu.matmul %25, %27, %cst_14 {dimension_numbers = #tpu.dot_dimension_numbers<[1], [0], [0], [1], [0, 0, 1, 1], [], []>} : vector<104x128xbf16>, vector<128x128xbf16>, vector<104x128xf32> -> vector<104x128xf32>
    %29 = arith.addf %20, %28 : vector<104x128xf32>
    %c10_i32 = arith.constant 10 : i32
    %30 = arith.addi %1, %c10_i32 : i32
    %c0_15 = arith.constant 0 : index
    %31 = arith.index_cast %30 : i32 to index
    %c0_16 = arith.constant 0 : index
    %32 = vector.load %arg2[%c0_15, %31, %c0_16] : memref<1x126x128xf32, #tpu.memory_space<vmem>>, vector<1x104x128xf32>
    %33 = vector.shape_cast %32 : vector<1x104x128xf32> to vector<104x128xf32>
    %34 = arith.truncf %33 : vector<104x128xf32> to vector<104x128xbf16>
    %c3 = arith.constant 3 : index
    %c0_17 = arith.constant 0 : index
    %c0_18 = arith.constant 0 : index
    %35 = vector.load %arg3[%c3, %c0_17, %c0_18] : memref<9x128x128xbf16, #tpu.memory_space<vmem>>, vector<1x128x128xbf16>
    %36 = vector.shape_cast %35 : vector<1x128x128xbf16> to vector<128x128xbf16>
    %cst_19 = arith.constant dense<0.000000e+00> : vector<104x128xf32>
    %37 = tpu.matmul %34, %36, %cst_19 {dimension_numbers = #tpu.dot_dimension_numbers<[1], [0], [0], [1], [0, 0, 1, 1], [], []>} : vector<104x128xbf16>, vector<128x128xbf16>, vector<104x128xf32> -> vector<104x128xf32>
    %38 = arith.addf %29, %37 : vector<104x128xf32>
    %c11_i32 = arith.constant 11 : i32
    %39 = arith.addi %1, %c11_i32 : i32
    %c0_20 = arith.constant 0 : index
    %40 = arith.index_cast %39 : i32 to index
    %c0_21 = arith.constant 0 : index
    %41 = vector.load %arg2[%c0_20, %40, %c0_21] : memref<1x126x128xf32, #tpu.memory_space<vmem>>, vector<1x104x128xf32>
    %42 = vector.shape_cast %41 : vector<1x104x128xf32> to vector<104x128xf32>
    %43 = arith.truncf %42 : vector<104x128xf32> to vector<104x128xbf16>
    %c4 = arith.constant 4 : index
    %c0_22 = arith.constant 0 : index
    %c0_23 = arith.constant 0 : index
    %44 = vector.load %arg3[%c4, %c0_22, %c0_23] : memref<9x128x128xbf16, #tpu.memory_space<vmem>>, vector<1x128x128xbf16>
    %45 = vector.shape_cast %44 : vector<1x128x128xbf16> to vector<128x128xbf16>
    %cst_24 = arith.constant dense<0.000000e+00> : vector<104x128xf32>
    %46 = tpu.matmul %43, %45, %cst_24 {dimension_numbers = #tpu.dot_dimension_numbers<[1], [0], [0], [1], [0, 0, 1, 1], [], []>} : vector<104x128xbf16>, vector<128x128xbf16>, vector<104x128xf32> -> vector<104x128xf32>
    %47 = arith.addf %38, %46 : vector<104x128xf32>
    %c12_i32 = arith.constant 12 : i32
    %48 = arith.addi %1, %c12_i32 : i32
    %c0_25 = arith.constant 0 : index
    %49 = arith.index_cast %48 : i32 to index
    %c0_26 = arith.constant 0 : index
    %50 = vector.load %arg2[%c0_25, %49, %c0_26] : memref<1x126x128xf32, #tpu.memory_space<vmem>>, vector<1x104x128xf32>
    %51 = vector.shape_cast %50 : vector<1x104x128xf32> to vector<104x128xf32>
    %52 = arith.truncf %51 : vector<104x128xf32> to vector<104x128xbf16>
    %c5 = arith.constant 5 : index
    %c0_27 = arith.constant 0 : index
    %c0_28 = arith.constant 0 : index
    %53 = vector.load %arg3[%c5, %c0_27, %c0_28] : memref<9x128x128xbf16, #tpu.memory_space<vmem>>, vector<1x128x128xbf16>
    %54 = vector.shape_cast %53 : vector<1x128x128xbf16> to vector<128x128xbf16>
    %cst_29 = arith.constant dense<0.000000e+00> : vector<104x128xf32>
    %55 = tpu.matmul %52, %54, %cst_29 {dimension_numbers = #tpu.dot_dimension_numbers<[1], [0], [0], [1], [0, 0, 1, 1], [], []>} : vector<104x128xbf16>, vector<128x128xbf16>, vector<104x128xf32> -> vector<104x128xf32>
    %56 = arith.addf %47, %55 : vector<104x128xf32>
    %c20_i32 = arith.constant 20 : i32
    %57 = arith.addi %1, %c20_i32 : i32
    %c0_30 = arith.constant 0 : index
    %58 = arith.index_cast %57 : i32 to index
    %c0_31 = arith.constant 0 : index
    %59 = vector.load %arg2[%c0_30, %58, %c0_31] : memref<1x126x128xf32, #tpu.memory_space<vmem>>, vector<1x104x128xf32>
    %60 = vector.shape_cast %59 : vector<1x104x128xf32> to vector<104x128xf32>
    %61 = arith.truncf %60 : vector<104x128xf32> to vector<104x128xbf16>
    %c6 = arith.constant 6 : index
    %c0_32 = arith.constant 0 : index
    %c0_33 = arith.constant 0 : index
    %62 = vector.load %arg3[%c6, %c0_32, %c0_33] : memref<9x128x128xbf16, #tpu.memory_space<vmem>>, vector<1x128x128xbf16>
    %63 = vector.shape_cast %62 : vector<1x128x128xbf16> to vector<128x128xbf16>
    %cst_34 = arith.constant dense<0.000000e+00> : vector<104x128xf32>
    %64 = tpu.matmul %61, %63, %cst_34 {dimension_numbers = #tpu.dot_dimension_numbers<[1], [0], [0], [1], [0, 0, 1, 1], [], []>} : vector<104x128xbf16>, vector<128x128xbf16>, vector<104x128xf32> -> vector<104x128xf32>
    %65 = arith.addf %56, %64 : vector<104x128xf32>
    %c21_i32 = arith.constant 21 : i32
    %66 = arith.addi %1, %c21_i32 : i32
    %c0_35 = arith.constant 0 : index
    %67 = arith.index_cast %66 : i32 to index
    %c0_36 = arith.constant 0 : index
    %68 = vector.load %arg2[%c0_35, %67, %c0_36] : memref<1x126x128xf32, #tpu.memory_space<vmem>>, vector<1x104x128xf32>
    %69 = vector.shape_cast %68 : vector<1x104x128xf32> to vector<104x128xf32>
    %70 = arith.truncf %69 : vector<104x128xf32> to vector<104x128xbf16>
    %c7 = arith.constant 7 : index
    %c0_37 = arith.constant 0 : index
    %c0_38 = arith.constant 0 : index
    %71 = vector.load %arg3[%c7, %c0_37, %c0_38] : memref<9x128x128xbf16, #tpu.memory_space<vmem>>, vector<1x128x128xbf16>
    %72 = vector.shape_cast %71 : vector<1x128x128xbf16> to vector<128x128xbf16>
    %cst_39 = arith.constant dense<0.000000e+00> : vector<104x128xf32>
    %73 = tpu.matmul %70, %72, %cst_39 {dimension_numbers = #tpu.dot_dimension_numbers<[1], [0], [0], [1], [0, 0, 1, 1], [], []>} : vector<104x128xbf16>, vector<128x128xbf16>, vector<104x128xf32> -> vector<104x128xf32>
    %74 = arith.addf %65, %73 : vector<104x128xf32>
    %c22_i32 = arith.constant 22 : i32
    %75 = arith.addi %1, %c22_i32 : i32
    %c0_40 = arith.constant 0 : index
    %76 = arith.index_cast %75 : i32 to index
    %c0_41 = arith.constant 0 : index
    %77 = vector.load %arg2[%c0_40, %76, %c0_41] : memref<1x126x128xf32, #tpu.memory_space<vmem>>, vector<1x104x128xf32>
    %78 = vector.shape_cast %77 : vector<1x104x128xf32> to vector<104x128xf32>
    %79 = arith.truncf %78 : vector<104x128xf32> to vector<104x128xbf16>
    %c8 = arith.constant 8 : index
    %c0_42 = arith.constant 0 : index
    %c0_43 = arith.constant 0 : index
    %80 = vector.load %arg3[%c8, %c0_42, %c0_43] : memref<9x128x128xbf16, #tpu.memory_space<vmem>>, vector<1x128x128xbf16>
    %81 = vector.shape_cast %80 : vector<1x128x128xbf16> to vector<128x128xbf16>
    %cst_44 = arith.constant dense<0.000000e+00> : vector<104x128xf32>
    %82 = tpu.matmul %79, %81, %cst_44 {dimension_numbers = #tpu.dot_dimension_numbers<[1], [0], [0], [1], [0, 0, 1, 1], [], []>} : vector<104x128xbf16>, vector<128x128xbf16>, vector<104x128xf32> -> vector<104x128xf32>
    %83 = arith.addf %74, %82 : vector<104x128xf32>
    %c0_45 = arith.constant 0 : index
    %c0_46 = arith.constant 0 : index
    %84 = vector.load %arg4[%c0_45, %c0_46] : memref<1x128xf32, #tpu.memory_space<vmem>>, vector<1x128xf32>
    %85 = vector.broadcast %84 : vector<1x128xf32> to vector<104x128xf32>
    %86 = arith.addf %83, %85 : vector<104x128xf32>
    %c0_47 = arith.constant 0 : index
    %c0_48 = arith.constant 0 : index
    %c0_49 = arith.constant 0 : index
    %87 = vector.load %arg5[%c0_47, %c0_48, %c0_49] : memref<1x104x128xf32, #tpu.memory_space<vmem>>, vector<1x104x128xf32>
    %88 = vector.shape_cast %87 : vector<1x104x128xf32> to vector<104x128xf32>
    %89 = vector.shape_cast %86 : vector<104x128xf32> to vector<1x104x128xf32>
    tpu.vector_store %arg5[%c0_47, %c0_48, %c0_49], %89 {strides = array<i32>} : memref<1x104x128xf32, #tpu.memory_space<vmem>>, vector<1x104x128xf32>,
    return
  }
  func.func @transform_0(%arg0: i32, %arg1: i32) -> (i32, i32, i32) {
    %c0_i32 = arith.constant 0 : i32
    %c0_i32_0 = arith.constant 0 : i32
    %c0_i32_1 = arith.constant 0 : i32
    return %arg0, %c0_i32, %c0_i32_0 : i32, i32, i32
  }
  func.func @transform_1(%arg0: i32, %arg1: i32) -> (i32, i32, i32) {
    %c0_i32 = arith.constant 0 : i32
    %c0_i32_0 = arith.constant 0 : i32
    %c0_i32_1 = arith.constant 0 : i32
    %c0_i32_2 = arith.constant 0 : i32
    return %c0_i32, %c0_i32_0, %c0_i32_1 : i32, i32, i32
  }
  func.func @transform_2(%arg0: i32, %arg1: i32) -> (i32, i32) {
    %c0_i32 = arith.constant 0 : i32
    %c0_i32_0 = arith.constant 0 : i32
    %c0_i32_1 = arith.constant 0 : i32
    return %c0_i32, %c0_i32_0 : i32, i32
  }
  func.func @transform_3(%arg0: i32, %arg1: i32) -> (i32, i32, i32) {
    %c0_i32 = arith.constant 0 : i32
    %c0_i32_0 = arith.constant 0 : i32
    return %arg0, %arg1, %c0_i32 : i32, i32, i32
  }
}

module attributes {stable_mosaic.version = 11 : i64} {
  func.func @_linear_kernel(%arg0: i32, %arg1: i32, %arg2: memref<8x16xf32, #tpu.memory_space<vmem>>, %arg3: memref<16x128xbf16, #tpu.memory_space<vmem>>, %arg4: memref<1x128xf32, #tpu.memory_space<vmem>>, %arg5: memref<8x128xf32, #tpu.memory_space<vmem>>) attributes {dimension_semantics = [#tpu.dimension_semantics<parallel>, #tpu.dimension_semantics<parallel>], iteration_bounds = array<i64: 1, 1>, scalar_prefetch = 0 : i64, scratch_operands = 0 : i64, tpu.core_type = #tpu.core_type<tc>, window_params = [{transform_indices = @transform_0, window_bounds = array<i64: 8, 16>}, {transform_indices = @transform_1, window_bounds = array<i64: 16, 128>}, {transform_indices = @transform_2, window_bounds = array<i64: 1, 128>}, {transform_indices = @transform_3, window_bounds = array<i64: 8, 128>}]} {
    %c0 = arith.constant 0 : index
    %c0_0 = arith.constant 0 : index
    %0 = vector.load %arg2[%c0, %c0_0] : memref<8x16xf32, #tpu.memory_space<vmem>>, vector<8x16xf32>
    %1 = arith.truncf %0 : vector<8x16xf32> to vector<8x16xbf16>
    %c0_1 = arith.constant 0 : index
    %c0_2 = arith.constant 0 : index
    %2 = vector.load %arg3[%c0_1, %c0_2] : memref<16x128xbf16, #tpu.memory_space<vmem>>, vector<16x128xbf16>
    %cst = arith.constant dense<0.000000e+00> : vector<8x128xf32>
    %3 = tpu.matmul %1, %2, %cst {dimension_numbers = #tpu.dot_dimension_numbers<[1], [0], [0], [1], [0, 0, 1, 1], [], []>} : vector<8x16xbf16>, vector<16x128xbf16>, vector<8x128xf32> -> vector<8x128xf32>
    %c0_3 = arith.constant 0 : index
    %c0_4 = arith.constant 0 : index
    %4 = vector.load %arg4[%c0_3, %c0_4] : memref<1x128xf32, #tpu.memory_space<vmem>>, vector<1x128xf32>
    %5 = vector.broadcast %4 : vector<1x128xf32> to vector<8x128xf32>
    %6 = arith.addf %3, %5 : vector<8x128xf32>
    %c0_5 = arith.constant 0 : index
    %c0_6 = arith.constant 0 : index
    %7 = vector.load %arg5[%c0_5, %c0_6] : memref<8x128xf32, #tpu.memory_space<vmem>>, vector<8x128xf32>
    tpu.vector_store %arg5[%c0_5, %c0_6], %6 {strides = array<i32>} : memref<8x128xf32, #tpu.memory_space<vmem>>, vector<8x128xf32>,
    return
  }
  func.func @transform_0(%arg0: i32, %arg1: i32) -> (i32, i32) {
    %c0_i32 = arith.constant 0 : i32
    %c0_i32_0 = arith.constant 0 : i32
    return %arg0, %c0_i32 : i32, i32
  }
  func.func @transform_1(%arg0: i32, %arg1: i32) -> (i32, i32) {
    %c0_i32 = arith.constant 0 : i32
    %c0_i32_0 = arith.constant 0 : i32
    return %c0_i32, %arg1 : i32, i32
  }
  func.func @transform_2(%arg0: i32, %arg1: i32) -> (i32, i32) {
    %c0_i32 = arith.constant 0 : i32
    %c0_i32_0 = arith.constant 0 : i32
    return %c0_i32, %arg1 : i32, i32
  }
  func.func @transform_3(%arg0: i32, %arg1: i32) -> (i32, i32) {
    %c0_i32 = arith.constant 0 : i32
    return %arg0, %arg1 : i32, i32
  }
}

module attributes {stable_mosaic.version = 11 : i64} {
  func.func @_linear_kernel(%arg0: i32, %arg1: i32, %arg2: memref<8x128xf32, #tpu.memory_space<vmem>>, %arg3: memref<128x128xbf16, #tpu.memory_space<vmem>>, %arg4: memref<1x128xf32, #tpu.memory_space<vmem>>, %arg5: memref<8x128xf32, #tpu.memory_space<vmem>>) attributes {dimension_semantics = [#tpu.dimension_semantics<parallel>, #tpu.dimension_semantics<parallel>], iteration_bounds = array<i64: 1, 1>, scalar_prefetch = 0 : i64, scratch_operands = 0 : i64, tpu.core_type = #tpu.core_type<tc>, window_params = [{transform_indices = @transform_0, window_bounds = array<i64: 8, 128>}, {transform_indices = @transform_1, window_bounds = array<i64: 128, 128>}, {transform_indices = @transform_2, window_bounds = array<i64: 1, 128>}, {transform_indices = @transform_3, window_bounds = array<i64: 8, 128>}]} {
    %c0 = arith.constant 0 : index
    %c0_0 = arith.constant 0 : index
    %0 = vector.load %arg2[%c0, %c0_0] : memref<8x128xf32, #tpu.memory_space<vmem>>, vector<8x128xf32>
    %1 = arith.truncf %0 : vector<8x128xf32> to vector<8x128xbf16>
    %c0_1 = arith.constant 0 : index
    %c0_2 = arith.constant 0 : index
    %2 = vector.load %arg3[%c0_1, %c0_2] : memref<128x128xbf16, #tpu.memory_space<vmem>>, vector<128x128xbf16>
    %cst = arith.constant dense<0.000000e+00> : vector<8x128xf32>
    %3 = tpu.matmul %1, %2, %cst {dimension_numbers = #tpu.dot_dimension_numbers<[1], [0], [0], [1], [0, 0, 1, 1], [], []>} : vector<8x128xbf16>, vector<128x128xbf16>, vector<8x128xf32> -> vector<8x128xf32>
    %c0_3 = arith.constant 0 : index
    %c0_4 = arith.constant 0 : index
    %4 = vector.load %arg4[%c0_3, %c0_4] : memref<1x128xf32, #tpu.memory_space<vmem>>, vector<1x128xf32>
    %5 = vector.broadcast %4 : vector<1x128xf32> to vector<8x128xf32>
    %6 = arith.addf %3, %5 : vector<8x128xf32>
    %c0_5 = arith.constant 0 : index
    %c0_6 = arith.constant 0 : index
    %7 = vector.load %arg5[%c0_5, %c0_6] : memref<8x128xf32, #tpu.memory_space<vmem>>, vector<8x128xf32>
    tpu.vector_store %arg5[%c0_5, %c0_6], %6 {strides = array<i32>} : memref<8x128xf32, #tpu.memory_space<vmem>>, vector<8x128xf32>,
    return
  }
  func.func @transform_0(%arg0: i32, %arg1: i32) -> (i32, i32) {
    %c0_i32 = arith.constant 0 : i32
    %c0_i32_0 = arith.constant 0 : i32
    return %arg0, %c0_i32 : i32, i32
  }
  func.func @transform_1(%arg0: i32, %arg1: i32) -> (i32, i32) {
    %c0_i32 = arith.constant 0 : i32
    %c0_i32_0 = arith.constant 0 : i32
    return %c0_i32, %arg1 : i32, i32
  }
  func.func @transform_2(%arg0: i32, %arg1: i32) -> (i32, i32) {
    %c0_i32 = arith.constant 0 : i32
    %c0_i32_0 = arith.constant 0 : i32
    return %c0_i32, %arg1 : i32, i32
  }
  func.func @transform_3(%arg0: i32, %arg1: i32) -> (i32, i32) {
    %c0_i32 = arith.constant 0 : i32
    return %arg0, %arg1 : i32, i32
  }
}

module attributes {stable_mosaic.version = 11 : i64} {
  func.func @_linear_kernel(%arg0: i32, %arg1: i32, %arg2: memref<8x256xf32, #tpu.memory_space<vmem>>, %arg3: memref<256x96xbf16, #tpu.memory_space<vmem>>, %arg4: memref<1x96xf32, #tpu.memory_space<vmem>>, %arg5: memref<8x96xf32, #tpu.memory_space<vmem>>) attributes {dimension_semantics = [#tpu.dimension_semantics<parallel>, #tpu.dimension_semantics<parallel>], iteration_bounds = array<i64: 1, 1>, scalar_prefetch = 0 : i64, scratch_operands = 0 : i64, tpu.core_type = #tpu.core_type<tc>, window_params = [{transform_indices = @transform_0, window_bounds = array<i64: 8, 256>}, {transform_indices = @transform_1, window_bounds = array<i64: 256, 96>}, {transform_indices = @transform_2, window_bounds = array<i64: 1, 96>}, {transform_indices = @transform_3, window_bounds = array<i64: 8, 96>}]} {
    %c0 = arith.constant 0 : index
    %c0_0 = arith.constant 0 : index
    %0 = vector.load %arg2[%c0, %c0_0] : memref<8x256xf32, #tpu.memory_space<vmem>>, vector<8x256xf32>
    %1 = arith.truncf %0 : vector<8x256xf32> to vector<8x256xbf16>
    %c0_1 = arith.constant 0 : index
    %c0_2 = arith.constant 0 : index
    %2 = vector.load %arg3[%c0_1, %c0_2] : memref<256x96xbf16, #tpu.memory_space<vmem>>, vector<256x96xbf16>
    %cst = arith.constant dense<0.000000e+00> : vector<8x96xf32>
    %3 = tpu.matmul %1, %2, %cst {dimension_numbers = #tpu.dot_dimension_numbers<[1], [0], [0], [1], [0, 0, 1, 1], [], []>} : vector<8x256xbf16>, vector<256x96xbf16>, vector<8x96xf32> -> vector<8x96xf32>
    %c0_3 = arith.constant 0 : index
    %c0_4 = arith.constant 0 : index
    %4 = vector.load %arg4[%c0_3, %c0_4] : memref<1x96xf32, #tpu.memory_space<vmem>>, vector<1x96xf32>
    %5 = vector.broadcast %4 : vector<1x96xf32> to vector<8x96xf32>
    %6 = arith.addf %3, %5 : vector<8x96xf32>
    %c0_5 = arith.constant 0 : index
    %c0_6 = arith.constant 0 : index
    %7 = vector.load %arg5[%c0_5, %c0_6] : memref<8x96xf32, #tpu.memory_space<vmem>>, vector<8x96xf32>
    tpu.vector_store %arg5[%c0_5, %c0_6], %6 {strides = array<i32>} : memref<8x96xf32, #tpu.memory_space<vmem>>, vector<8x96xf32>,
    return
  }
  func.func @transform_0(%arg0: i32, %arg1: i32) -> (i32, i32) {
    %c0_i32 = arith.constant 0 : i32
    %c0_i32_0 = arith.constant 0 : i32
    return %arg0, %c0_i32 : i32, i32
  }
  func.func @transform_1(%arg0: i32, %arg1: i32) -> (i32, i32) {
    %c0_i32 = arith.constant 0 : i32
    %c0_i32_0 = arith.constant 0 : i32
    return %c0_i32, %arg1 : i32, i32
  }
  func.func @transform_2(%arg0: i32, %arg1: i32) -> (i32, i32) {
    %c0_i32 = arith.constant 0 : i32
    %c0_i32_0 = arith.constant 0 : i32
    return %c0_i32, %arg1 : i32, i32
  }
  func.func @transform_3(%arg0: i32, %arg1: i32) -> (i32, i32) {
    %c0_i32 = arith.constant 0 : i32
    return %arg0, %arg1 : i32, i32
  }
}

module attributes {stable_mosaic.version = 11 : i64} {
  func.func @_linear_kernel(%arg0: i32, %arg1: i32, %arg2: memref<8x32xf32, #tpu.memory_space<vmem>>, %arg3: memref<32x512xbf16, #tpu.memory_space<vmem>>, %arg4: memref<1x512xf32, #tpu.memory_space<vmem>>, %arg5: memref<8x512xf32, #tpu.memory_space<vmem>>) attributes {dimension_semantics = [#tpu.dimension_semantics<parallel>, #tpu.dimension_semantics<parallel>], iteration_bounds = array<i64: 1, 16>, scalar_prefetch = 0 : i64, scratch_operands = 0 : i64, tpu.core_type = #tpu.core_type<tc>, window_params = [{transform_indices = @transform_0, window_bounds = array<i64: 8, 32>}, {transform_indices = @transform_1, window_bounds = array<i64: 32, 512>}, {transform_indices = @transform_2, window_bounds = array<i64: 1, 512>}, {transform_indices = @transform_3, window_bounds = array<i64: 8, 512>}]} {
    %c0 = arith.constant 0 : index
    %c0_0 = arith.constant 0 : index
    %0 = vector.load %arg2[%c0, %c0_0] : memref<8x32xf32, #tpu.memory_space<vmem>>, vector<8x32xf32>
    %1 = arith.truncf %0 : vector<8x32xf32> to vector<8x32xbf16>
    %c0_1 = arith.constant 0 : index
    %c0_2 = arith.constant 0 : index
    %2 = vector.load %arg3[%c0_1, %c0_2] : memref<32x512xbf16, #tpu.memory_space<vmem>>, vector<32x512xbf16>
    %cst = arith.constant dense<0.000000e+00> : vector<8x512xf32>
    %3 = tpu.matmul %1, %2, %cst {dimension_numbers = #tpu.dot_dimension_numbers<[1], [0], [0], [1], [0, 0, 1, 1], [], []>} : vector<8x32xbf16>, vector<32x512xbf16>, vector<8x512xf32> -> vector<8x512xf32>
    %c0_3 = arith.constant 0 : index
    %c0_4 = arith.constant 0 : index
    %4 = vector.load %arg4[%c0_3, %c0_4] : memref<1x512xf32, #tpu.memory_space<vmem>>, vector<1x512xf32>
    %5 = vector.broadcast %4 : vector<1x512xf32> to vector<8x512xf32>
    %6 = arith.addf %3, %5 : vector<8x512xf32>
    %c0_5 = arith.constant 0 : index
    %c0_6 = arith.constant 0 : index
    %7 = vector.load %arg5[%c0_5, %c0_6] : memref<8x512xf32, #tpu.memory_space<vmem>>, vector<8x512xf32>
    tpu.vector_store %arg5[%c0_5, %c0_6], %6 {strides = array<i32>} : memref<8x512xf32, #tpu.memory_space<vmem>>, vector<8x512xf32>,
    return
  }
  func.func @transform_0(%arg0: i32, %arg1: i32) -> (i32, i32) {
    %c0_i32 = arith.constant 0 : i32
    %c0_i32_0 = arith.constant 0 : i32
    return %arg0, %c0_i32 : i32, i32
  }
  func.func @transform_1(%arg0: i32, %arg1: i32) -> (i32, i32) {
    %c0_i32 = arith.constant 0 : i32
    %c0_i32_0 = arith.constant 0 : i32
    return %c0_i32, %arg1 : i32, i32
  }
  func.func @transform_2(%arg0: i32, %arg1: i32) -> (i32, i32) {
    %c0_i32 = arith.constant 0 : i32
    %c0_i32_0 = arith.constant 0 : i32
    return %c0_i32, %arg1 : i32, i32
  }
  func.func @transform_3(%arg0: i32, %arg1: i32) -> (i32, i32) {
    %c0_i32 = arith.constant 0 : i32
    return %arg0, %arg1 : i32, i32
  }
}

module attributes {stable_mosaic.version = 11 : i64} {
  func.func @_gru_seq_kernel(%arg0: i32, %arg1: memref<1x2x96xf32, #tpu.memory_space<vmem>>, %arg2: memref<2x32xf32, #tpu.memory_space<vmem>>, %arg3: memref<32x96xf32, #tpu.memory_space<vmem>>, %arg4: memref<1x96xf32, #tpu.memory_space<vmem>>, %arg5: memref<1x2x32xf32, #tpu.memory_space<vmem>>, %arg6: memref<2x32xf32, #tpu.memory_space<vmem>>) attributes {dimension_semantics = [#tpu.dimension_semantics<arbitrary>], iteration_bounds = array<i64: 4>, scalar_prefetch = 0 : i64, scratch_operands = 1 : i64, tpu.core_type = #tpu.core_type<tc>, window_params = [{transform_indices = @transform_0, window_bounds = array<i64: 1, 2, 96>}, {pipeline_mode = #tpu.pipeline_mode<synchronous>, transform_indices = @transform_1, window_bounds = array<i64: 2, 32>}, {pipeline_mode = #tpu.pipeline_mode<synchronous>, transform_indices = @transform_2, window_bounds = array<i64: 32, 96>}, {pipeline_mode = #tpu.pipeline_mode<synchronous>, transform_indices = @transform_3, window_bounds = array<i64: 1, 96>}, {transform_indices = @transform_4, window_bounds = array<i64: 1, 2, 32>}]} {
    %c0_i32 = arith.constant 0 : i32
    %0 = arith.cmpi eq, %arg0, %c0_i32 : i32
    %1 = arith.extui %0 : i1 to i32
    %c0_i32_0 = arith.constant 0 : i32
    %2 = arith.cmpi ne, %1, %c0_i32_0 : i32
    scf.if %2 {
      %c0_17 = arith.constant 0 : index
      %c0_18 = arith.constant 0 : index
      %41 = vector.load %arg2[%c0_17, %c0_18] : memref<2x32xf32, #tpu.memory_space<vmem>>, vector<2x32xf32>
      %c0_19 = arith.constant 0 : index
      %c0_20 = arith.constant 0 : index
      %42 = vector.load %arg6[%c0_19, %c0_20] : memref<2x32xf32, #tpu.memory_space<vmem>>, vector<2x32xf32>
      tpu.vector_store %arg6[%c0_19, %c0_20], %41 {strides = array<i32>} : memref<2x32xf32, #tpu.memory_space<vmem>>, vector<2x32xf32>,
    } else {
    }
    %c0 = arith.constant 0 : index
    %c0_1 = arith.constant 0 : index
    %3 = vector.load %arg6[%c0, %c0_1] : memref<2x32xf32, #tpu.memory_space<vmem>>, vector<2x32xf32>
    %c0_2 = arith.constant 0 : index
    %c0_3 = arith.constant 0 : index
    %4 = vector.load %arg3[%c0_2, %c0_3] : memref<32x96xf32, #tpu.memory_space<vmem>>, vector<32x96xf32>
    %cst = arith.constant dense<0.000000e+00> : vector<2x96xf32>
    %5 = tpu.matmul %3, %4, %cst {dimension_numbers = #tpu.dot_dimension_numbers<[1], [0], [0], [1], [0, 0, 1, 1], [], []>} : vector<2x32xf32>, vector<32x96xf32>, vector<2x96xf32> -> vector<2x96xf32>
    %c0_4 = arith.constant 0 : index
    %c0_5 = arith.constant 0 : index
    %6 = vector.load %arg4[%c0_4, %c0_5] : memref<1x96xf32, #tpu.memory_space<vmem>>, vector<1x96xf32>
    %7 = vector.broadcast %6 : vector<1x96xf32> to vector<2x96xf32>
    %8 = arith.addf %5, %7 : vector<2x96xf32>
    %c0_6 = arith.constant 0 : index
    %c0_7 = arith.constant 0 : index
    %c0_8 = arith.constant 0 : index
    %9 = vector.load %arg1[%c0_6, %c0_7, %c0_8] : memref<1x2x96xf32, #tpu.memory_space<vmem>>, vector<1x2x96xf32>
    %10 = vector.shape_cast %9 : vector<1x2x96xf32> to vector<2x96xf32>
    %11 = vector.extract_strided_slice %10 {offsets = [0, 0], sizes = [2, 32], strides = [1, 1]} : vector<2x96xf32> to vector<2x32xf32>
    %12 = vector.extract_strided_slice %8 {offsets = [0, 0], sizes = [2, 32], strides = [1, 1]} : vector<2x96xf32> to vector<2x32xf32>
    %13 = arith.addf %11, %12 : vector<2x32xf32>
    %14 = arith.negf %13 : vector<2x32xf32>
    %15 = math.exp %14 : vector<2x32xf32>
    %cst_9 = arith.constant 1.000000e+00 : f32
    %16 = vector.broadcast %cst_9 : f32 to vector<2x32xf32>
    %17 = arith.addf %16, %15 : vector<2x32xf32>
    %18 = arith.divf %16, %17 : vector<2x32xf32>
    %19 = vector.extract_strided_slice %10 {offsets = [0, 32], sizes = [2, 32], strides = [1, 1]} : vector<2x96xf32> to vector<2x32xf32>
    %20 = vector.extract_strided_slice %8 {offsets = [0, 32], sizes = [2, 32], strides = [1, 1]} : vector<2x96xf32> to vector<2x32xf32>
    %21 = arith.addf %19, %20 : vector<2x32xf32>
    %22 = arith.negf %21 : vector<2x32xf32>
    %23 = math.exp %22 : vector<2x32xf32>
    %cst_10 = arith.constant 1.000000e+00 : f32
    %24 = vector.broadcast %cst_10 : f32 to vector<2x32xf32>
    %25 = arith.addf %24, %23 : vector<2x32xf32>
    %26 = arith.divf %24, %25 : vector<2x32xf32>
    %27 = vector.extract_strided_slice %10 {offsets = [0, 64], sizes = [2, 32], strides = [1, 1]} : vector<2x96xf32> to vector<2x32xf32>
    %28 = vector.extract_strided_slice %8 {offsets = [0, 64], sizes = [2, 32], strides = [1, 1]} : vector<2x96xf32> to vector<2x32xf32>
    %29 = arith.mulf %18, %28 : vector<2x32xf32>
    %30 = arith.addf %27, %29 : vector<2x32xf32>
    %31 = math.tanh %30 : vector<2x32xf32>
    %cst_11 = arith.constant 1.000000e+00 : f32
    %32 = vector.broadcast %cst_11 : f32 to vector<2x32xf32>
    %33 = arith.subf %32, %26 : vector<2x32xf32>
    %34 = arith.mulf %33, %31 : vector<2x32xf32>
    %35 = arith.mulf %26, %3 : vector<2x32xf32>
    %36 = arith.addf %34, %35 : vector<2x32xf32>
    %c0_12 = arith.constant 0 : index
    %c0_13 = arith.constant 0 : index
    %37 = vector.load %arg6[%c0_12, %c0_13] : memref<2x32xf32, #tpu.memory_space<vmem>>, vector<2x32xf32>
    tpu.vector_store %arg6[%c0_12, %c0_13], %36 {strides = array<i32>} : memref<2x32xf32, #tpu.memory_space<vmem>>, vector<2x32xf32>,
    %c0_14 = arith.constant 0 : index
    %c0_15 = arith.constant 0 : index
    %c0_16 = arith.constant 0 : index
    %38 = vector.load %arg5[%c0_14, %c0_15, %c0_16] : memref<1x2x32xf32, #tpu.memory_space<vmem>>, vector<1x2x32xf32>
    %39 = vector.shape_cast %38 : vector<1x2x32xf32> to vector<2x32xf32>
    %40 = vector.shape_cast %36 : vector<2x32xf32> to vector<1x2x32xf32>
    tpu.vector_store %arg5[%c0_14, %c0_15, %c0_16], %40 {strides = array<i32>} : memref<1x2x32xf32, #tpu.memory_space<vmem>>, vector<1x2x32xf32>,
    return
  }
  func.func @transform_0(%arg0: i32) -> (i32, i32, i32) {
    %c0_i32 = arith.constant 0 : i32
    %c0_i32_0 = arith.constant 0 : i32
    %c0_i32_1 = arith.constant 0 : i32
    return %arg0, %c0_i32, %c0_i32_0 : i32, i32, i32
  }
  func.func @transform_1(%arg0: i32) -> (i32, i32) {
    %c0_i32 = arith.constant 0 : i32
    %c0_i32_0 = arith.constant 0 : i32
    %c0_i32_1 = arith.constant 0 : i32
    return %c0_i32, %c0_i32_0 : i32, i32
  }
  func.func @transform_2(%arg0: i32) -> (i32, i32) {
    %c0_i32 = arith.constant 0 : i32
    %c0_i32_0 = arith.constant 0 : i32
    %c0_i32_1 = arith.constant 0 : i32
    return %c0_i32, %c0_i32_0 : i32, i32
  }
  func.func @transform_3(%arg0: i32) -> (i32, i32) {
    %c0_i32 = arith.constant 0 : i32
    %c0_i32_0 = arith.constant 0 : i32
    %c0_i32_1 = arith.constant 0 : i32
    return %c0_i32, %c0_i32_0 : i32, i32
  }
  func.func @transform_4(%arg0: i32) -> (i32, i32, i32) {
    %c0_i32 = arith.constant 0 : i32
    %c0_i32_0 = arith.constant 0 : i32
    %c0_i32_1 = arith.constant 0 : i32
    return %arg0, %c0_i32, %c0_i32_0 : i32, i32, i32
  }
}

module attributes {stable_mosaic.version = 11 : i64} {
  func.func @_linear_kernel(%arg0: i32, %arg1: i32, %arg2: memref<8x32xf32, #tpu.memory_space<vmem>>, %arg3: memref<32x96xbf16, #tpu.memory_space<vmem>>, %arg4: memref<1x96xf32, #tpu.memory_space<vmem>>, %arg5: memref<8x96xf32, #tpu.memory_space<vmem>>) attributes {dimension_semantics = [#tpu.dimension_semantics<parallel>, #tpu.dimension_semantics<parallel>], iteration_bounds = array<i64: 1, 1>, scalar_prefetch = 0 : i64, scratch_operands = 0 : i64, tpu.core_type = #tpu.core_type<tc>, window_params = [{transform_indices = @transform_0, window_bounds = array<i64: 8, 32>}, {transform_indices = @transform_1, window_bounds = array<i64: 32, 96>}, {transform_indices = @transform_2, window_bounds = array<i64: 1, 96>}, {transform_indices = @transform_3, window_bounds = array<i64: 8, 96>}]} {
    %c0 = arith.constant 0 : index
    %c0_0 = arith.constant 0 : index
    %0 = vector.load %arg2[%c0, %c0_0] : memref<8x32xf32, #tpu.memory_space<vmem>>, vector<8x32xf32>
    %1 = arith.truncf %0 : vector<8x32xf32> to vector<8x32xbf16>
    %c0_1 = arith.constant 0 : index
    %c0_2 = arith.constant 0 : index
    %2 = vector.load %arg3[%c0_1, %c0_2] : memref<32x96xbf16, #tpu.memory_space<vmem>>, vector<32x96xbf16>
    %cst = arith.constant dense<0.000000e+00> : vector<8x96xf32>
    %3 = tpu.matmul %1, %2, %cst {dimension_numbers = #tpu.dot_dimension_numbers<[1], [0], [0], [1], [0, 0, 1, 1], [], []>} : vector<8x32xbf16>, vector<32x96xbf16>, vector<8x96xf32> -> vector<8x96xf32>
    %c0_3 = arith.constant 0 : index
    %c0_4 = arith.constant 0 : index
    %4 = vector.load %arg4[%c0_3, %c0_4] : memref<1x96xf32, #tpu.memory_space<vmem>>, vector<1x96xf32>
    %5 = vector.broadcast %4 : vector<1x96xf32> to vector<8x96xf32>
    %6 = arith.addf %3, %5 : vector<8x96xf32>
    %c0_5 = arith.constant 0 : index
    %c0_6 = arith.constant 0 : index
    %7 = vector.load %arg5[%c0_5, %c0_6] : memref<8x96xf32, #tpu.memory_space<vmem>>, vector<8x96xf32>
    tpu.vector_store %arg5[%c0_5, %c0_6], %6 {strides = array<i32>} : memref<8x96xf32, #tpu.memory_space<vmem>>, vector<8x96xf32>,
    return
  }
  func.func @transform_0(%arg0: i32, %arg1: i32) -> (i32, i32) {
    %c0_i32 = arith.constant 0 : i32
    %c0_i32_0 = arith.constant 0 : i32
    return %arg0, %c0_i32 : i32, i32
  }
  func.func @transform_1(%arg0: i32, %arg1: i32) -> (i32, i32) {
    %c0_i32 = arith.constant 0 : i32
    %c0_i32_0 = arith.constant 0 : i32
    return %c0_i32, %arg1 : i32, i32
  }
  func.func @transform_2(%arg0: i32, %arg1: i32) -> (i32, i32) {
    %c0_i32 = arith.constant 0 : i32
    %c0_i32_0 = arith.constant 0 : i32
    return %c0_i32, %arg1 : i32, i32
  }
  func.func @transform_3(%arg0: i32, %arg1: i32) -> (i32, i32) {
    %c0_i32 = arith.constant 0 : i32
    return %arg0, %arg1 : i32, i32
  }
}

module attributes {stable_mosaic.version = 11 : i64} {
  func.func @_linear_kernel(%arg0: i32, %arg1: i32, %arg2: memref<8x16xf32, #tpu.memory_space<vmem>>, %arg3: memref<16x256xbf16, #tpu.memory_space<vmem>>, %arg4: memref<1x256xf32, #tpu.memory_space<vmem>>, %arg5: memref<8x256xf32, #tpu.memory_space<vmem>>) attributes {dimension_semantics = [#tpu.dimension_semantics<parallel>, #tpu.dimension_semantics<parallel>], iteration_bounds = array<i64: 1, 1>, scalar_prefetch = 0 : i64, scratch_operands = 0 : i64, tpu.core_type = #tpu.core_type<tc>, window_params = [{transform_indices = @transform_0, window_bounds = array<i64: 8, 16>}, {transform_indices = @transform_1, window_bounds = array<i64: 16, 256>}, {transform_indices = @transform_2, window_bounds = array<i64: 1, 256>}, {transform_indices = @transform_3, window_bounds = array<i64: 8, 256>}]} {
    %c0 = arith.constant 0 : index
    %c0_0 = arith.constant 0 : index
    %0 = vector.load %arg2[%c0, %c0_0] : memref<8x16xf32, #tpu.memory_space<vmem>>, vector<8x16xf32>
    %1 = arith.truncf %0 : vector<8x16xf32> to vector<8x16xbf16>
    %c0_1 = arith.constant 0 : index
    %c0_2 = arith.constant 0 : index
    %2 = vector.load %arg3[%c0_1, %c0_2] : memref<16x256xbf16, #tpu.memory_space<vmem>>, vector<16x256xbf16>
    %cst = arith.constant dense<0.000000e+00> : vector<8x256xf32>
    %3 = tpu.matmul %1, %2, %cst {dimension_numbers = #tpu.dot_dimension_numbers<[1], [0], [0], [1], [0, 0, 1, 1], [], []>} : vector<8x16xbf16>, vector<16x256xbf16>, vector<8x256xf32> -> vector<8x256xf32>
    %c0_3 = arith.constant 0 : index
    %c0_4 = arith.constant 0 : index
    %4 = vector.load %arg4[%c0_3, %c0_4] : memref<1x256xf32, #tpu.memory_space<vmem>>, vector<1x256xf32>
    %5 = vector.broadcast %4 : vector<1x256xf32> to vector<8x256xf32>
    %6 = arith.addf %3, %5 : vector<8x256xf32>
    %c0_5 = arith.constant 0 : index
    %c0_6 = arith.constant 0 : index
    %7 = vector.load %arg5[%c0_5, %c0_6] : memref<8x256xf32, #tpu.memory_space<vmem>>, vector<8x256xf32>
    tpu.vector_store %arg5[%c0_5, %c0_6], %6 {strides = array<i32>} : memref<8x256xf32, #tpu.memory_space<vmem>>, vector<8x256xf32>,
    return
  }
  func.func @transform_0(%arg0: i32, %arg1: i32) -> (i32, i32) {
    %c0_i32 = arith.constant 0 : i32
    %c0_i32_0 = arith.constant 0 : i32
    return %arg0, %c0_i32 : i32, i32
  }
  func.func @transform_1(%arg0: i32, %arg1: i32) -> (i32, i32) {
    %c0_i32 = arith.constant 0 : i32
    %c0_i32_0 = arith.constant 0 : i32
    return %c0_i32, %arg1 : i32, i32
  }
  func.func @transform_2(%arg0: i32, %arg1: i32) -> (i32, i32) {
    %c0_i32 = arith.constant 0 : i32
    %c0_i32_0 = arith.constant 0 : i32
    return %c0_i32, %arg1 : i32, i32
  }
  func.func @transform_3(%arg0: i32, %arg1: i32) -> (i32, i32) {
    %c0_i32 = arith.constant 0 : i32
    return %arg0, %arg1 : i32, i32
  }
}

module attributes {stable_mosaic.version = 11 : i64} {
  func.func @_conv_shift_kernel(%arg0: i32, %arg1: i32, %arg2: memref<1x98x128xf32, #tpu.memory_space<vmem>>, %arg3: memref<4x128x128xbf16, #tpu.memory_space<vmem>>, %arg4: memref<1x128xf32, #tpu.memory_space<vmem>>, %arg5: memref<1x88x128xf32, #tpu.memory_space<vmem>>) attributes {dimension_semantics = [#tpu.dimension_semantics<parallel>, #tpu.dimension_semantics<parallel>], iteration_bounds = array<i64: 8, 1>, scalar_prefetch = 0 : i64, scratch_operands = 0 : i64, tpu.core_type = #tpu.core_type<tc>, window_params = [{transform_indices = @transform_0, window_bounds = array<i64: 1, 98, 128>}, {pipeline_mode = #tpu.pipeline_mode<synchronous>, transform_indices = @transform_1, window_bounds = array<i64: 4, 128, 128>}, {pipeline_mode = #tpu.pipeline_mode<synchronous>, transform_indices = @transform_2, window_bounds = array<i64: 1, 128>}, {transform_indices = @transform_3, window_bounds = array<i64: 1, 88, 128>}]} {
    %c88_i32 = arith.constant 88 : i32
    %0 = arith.muli %arg1, %c88_i32 : i32
    %1 = tpu.assume_multiple %0, 88 : i32
    %cst = arith.constant 0.000000e+00 : f32
    %2 = vector.broadcast %cst : f32 to vector<88x128xf32>
    %c0_i32 = arith.constant 0 : i32
    %3 = arith.addi %1, %c0_i32 : i32
    %c0 = arith.constant 0 : index
    %4 = arith.index_cast %3 : i32 to index
    %c0_0 = arith.constant 0 : index
    %5 = vector.load %arg2[%c0, %4, %c0_0] : memref<1x98x128xf32, #tpu.memory_space<vmem>>, vector<1x88x128xf32>
    %6 = vector.shape_cast %5 : vector<1x88x128xf32> to vector<88x128xf32>
    %7 = arith.truncf %6 : vector<88x128xf32> to vector<88x128xbf16>
    %c0_1 = arith.constant 0 : index
    %c0_2 = arith.constant 0 : index
    %c0_3 = arith.constant 0 : index
    %8 = vector.load %arg3[%c0_1, %c0_2, %c0_3] : memref<4x128x128xbf16, #tpu.memory_space<vmem>>, vector<1x128x128xbf16>
    %9 = vector.shape_cast %8 : vector<1x128x128xbf16> to vector<128x128xbf16>
    %cst_4 = arith.constant dense<0.000000e+00> : vector<88x128xf32>
    %10 = tpu.matmul %7, %9, %cst_4 {dimension_numbers = #tpu.dot_dimension_numbers<[1], [0], [0], [1], [0, 0, 1, 1], [], []>} : vector<88x128xbf16>, vector<128x128xbf16>, vector<88x128xf32> -> vector<88x128xf32>
    %11 = arith.addf %2, %10 : vector<88x128xf32>
    %c1_i32 = arith.constant 1 : i32
    %12 = arith.addi %1, %c1_i32 : i32
    %c0_5 = arith.constant 0 : index
    %13 = arith.index_cast %12 : i32 to index
    %c0_6 = arith.constant 0 : index
    %14 = vector.load %arg2[%c0_5, %13, %c0_6] : memref<1x98x128xf32, #tpu.memory_space<vmem>>, vector<1x88x128xf32>
    %15 = vector.shape_cast %14 : vector<1x88x128xf32> to vector<88x128xf32>
    %16 = arith.truncf %15 : vector<88x128xf32> to vector<88x128xbf16>
    %c1 = arith.constant 1 : index
    %c0_7 = arith.constant 0 : index
    %c0_8 = arith.constant 0 : index
    %17 = vector.load %arg3[%c1, %c0_7, %c0_8] : memref<4x128x128xbf16, #tpu.memory_space<vmem>>, vector<1x128x128xbf16>
    %18 = vector.shape_cast %17 : vector<1x128x128xbf16> to vector<128x128xbf16>
    %cst_9 = arith.constant dense<0.000000e+00> : vector<88x128xf32>
    %19 = tpu.matmul %16, %18, %cst_9 {dimension_numbers = #tpu.dot_dimension_numbers<[1], [0], [0], [1], [0, 0, 1, 1], [], []>} : vector<88x128xbf16>, vector<128x128xbf16>, vector<88x128xf32> -> vector<88x128xf32>
    %20 = arith.addf %11, %19 : vector<88x128xf32>
    %c9_i32 = arith.constant 9 : i32
    %21 = arith.addi %1, %c9_i32 : i32
    %c0_10 = arith.constant 0 : index
    %22 = arith.index_cast %21 : i32 to index
    %c0_11 = arith.constant 0 : index
    %23 = vector.load %arg2[%c0_10, %22, %c0_11] : memref<1x98x128xf32, #tpu.memory_space<vmem>>, vector<1x88x128xf32>
    %24 = vector.shape_cast %23 : vector<1x88x128xf32> to vector<88x128xf32>
    %25 = arith.truncf %24 : vector<88x128xf32> to vector<88x128xbf16>
    %c2 = arith.constant 2 : index
    %c0_12 = arith.constant 0 : index
    %c0_13 = arith.constant 0 : index
    %26 = vector.load %arg3[%c2, %c0_12, %c0_13] : memref<4x128x128xbf16, #tpu.memory_space<vmem>>, vector<1x128x128xbf16>
    %27 = vector.shape_cast %26 : vector<1x128x128xbf16> to vector<128x128xbf16>
    %cst_14 = arith.constant dense<0.000000e+00> : vector<88x128xf32>
    %28 = tpu.matmul %25, %27, %cst_14 {dimension_numbers = #tpu.dot_dimension_numbers<[1], [0], [0], [1], [0, 0, 1, 1], [], []>} : vector<88x128xbf16>, vector<128x128xbf16>, vector<88x128xf32> -> vector<88x128xf32>
    %29 = arith.addf %20, %28 : vector<88x128xf32>
    %c10_i32 = arith.constant 10 : i32
    %30 = arith.addi %1, %c10_i32 : i32
    %c0_15 = arith.constant 0 : index
    %31 = arith.index_cast %30 : i32 to index
    %c0_16 = arith.constant 0 : index
    %32 = vector.load %arg2[%c0_15, %31, %c0_16] : memref<1x98x128xf32, #tpu.memory_space<vmem>>, vector<1x88x128xf32>
    %33 = vector.shape_cast %32 : vector<1x88x128xf32> to vector<88x128xf32>
    %34 = arith.truncf %33 : vector<88x128xf32> to vector<88x128xbf16>
    %c3 = arith.constant 3 : index
    %c0_17 = arith.constant 0 : index
    %c0_18 = arith.constant 0 : index
    %35 = vector.load %arg3[%c3, %c0_17, %c0_18] : memref<4x128x128xbf16, #tpu.memory_space<vmem>>, vector<1x128x128xbf16>
    %36 = vector.shape_cast %35 : vector<1x128x128xbf16> to vector<128x128xbf16>
    %cst_19 = arith.constant dense<0.000000e+00> : vector<88x128xf32>
    %37 = tpu.matmul %34, %36, %cst_19 {dimension_numbers = #tpu.dot_dimension_numbers<[1], [0], [0], [1], [0, 0, 1, 1], [], []>} : vector<88x128xbf16>, vector<128x128xbf16>, vector<88x128xf32> -> vector<88x128xf32>
    %38 = arith.addf %29, %37 : vector<88x128xf32>
    %c0_20 = arith.constant 0 : index
    %c0_21 = arith.constant 0 : index
    %39 = vector.load %arg4[%c0_20, %c0_21] : memref<1x128xf32, #tpu.memory_space<vmem>>, vector<1x128xf32>
    %40 = vector.broadcast %39 : vector<1x128xf32> to vector<88x128xf32>
    %41 = arith.addf %38, %40 : vector<88x128xf32>
    %c0_22 = arith.constant 0 : index
    %c0_23 = arith.constant 0 : index
    %c0_24 = arith.constant 0 : index
    %42 = vector.load %arg5[%c0_22, %c0_23, %c0_24] : memref<1x88x128xf32, #tpu.memory_space<vmem>>, vector<1x88x128xf32>
    %43 = vector.shape_cast %42 : vector<1x88x128xf32> to vector<88x128xf32>
    %44 = vector.shape_cast %41 : vector<88x128xf32> to vector<1x88x128xf32>
    tpu.vector_store %arg5[%c0_22, %c0_23, %c0_24], %44 {strides = array<i32>} : memref<1x88x128xf32, #tpu.memory_space<vmem>>, vector<1x88x128xf32>,
    return
  }
  func.func @transform_0(%arg0: i32, %arg1: i32) -> (i32, i32, i32) {
    %c0_i32 = arith.constant 0 : i32
    %c0_i32_0 = arith.constant 0 : i32
    %c0_i32_1 = arith.constant 0 : i32
    return %arg0, %c0_i32, %c0_i32_0 : i32, i32, i32
  }
  func.func @transform_1(%arg0: i32, %arg1: i32) -> (i32, i32, i32) {
    %c0_i32 = arith.constant 0 : i32
    %c0_i32_0 = arith.constant 0 : i32
    %c0_i32_1 = arith.constant 0 : i32
    %c0_i32_2 = arith.constant 0 : i32
    return %c0_i32, %c0_i32_0, %c0_i32_1 : i32, i32, i32
  }
  func.func @transform_2(%arg0: i32, %arg1: i32) -> (i32, i32) {
    %c0_i32 = arith.constant 0 : i32
    %c0_i32_0 = arith.constant 0 : i32
    %c0_i32_1 = arith.constant 0 : i32
    return %c0_i32, %c0_i32_0 : i32, i32
  }
  func.func @transform_3(%arg0: i32, %arg1: i32) -> (i32, i32, i32) {
    %c0_i32 = arith.constant 0 : i32
    %c0_i32_0 = arith.constant 0 : i32
    return %arg0, %arg1, %c0_i32 : i32, i32, i32
  }
}

</mosaic_0001>

<llo_original>
// kernel: noise_sequence_rnn_v3_forward.34
$region0: #{noise_sequence_rnn_v3_forward.34}
  #allocation0 [shape = 'u32[]', space=smem, size = 0x4, offset = 0x4, fixed_abs, tag = 'smem constant byte address 0x4 - core index']
  #allocation1 [shape = 'u32[72,128]{1,0:T(1,128)}', space=vmem, size = 0x9000, scoped, tag = 'internal scratch']
  %s0 = inlined_call_operand.vmem [shape: f32[8,422,128], index: 0, kind: input, shape index: {}]
  %s1 = inlined_call_operand.vmem [shape: bf16[9,128,128], index: 1, kind: input, shape index: {}]
  %s2 = inlined_call_operand.vmem [shape: f32[1,128], index: 2, kind: input, shape index: {}]
  %s3 = inlined_call_operand.vmem [shape: f32[8,384,128], index: 3, kind: output, shape index: {}]
  %s4 = sld [smem:[#allocation0]]
  $region45: #{noise_sequence_rnn_v3_forward.34} parent=0
    _
  %s6 = ssub.s32 1, %s4
  %s7 = scalar_select 0, %s6, %s4
  loop: start=0, step=1, limit=26
  $region2: #{noise_sequence_rnn_v3_forward.34} parent=0 // loop_pre_header
    _
  $region3: #{noise_sequence_rnn_v3_forward.34} parent=0 // loop_header
    %s9 = sphi 0, %s13
    %p10 = scmp.ge.s32.totalorder %s9, 26
    %s16 = sphi 0, %s28
    %s17 = sphi 0, %s24
    %s18 = sphi 0, %s16
    %s19 = sphi 0, %s17
    %s20 = sphi 0, %s18
    %s21 = sphi 0, %s19
    %s31 = sphi 0, %s33
    %s34 = sphi 0, %s31
    %s35 = sphi 0, %s34
    %s51 = sphi 0, %s35
    %s55 = sphi 0, %s55
    %s57 = sphi 0, %s55
    %s58 = sphi 0, %s57
    %s72 = sphi 0, %s58
    %s76 = sphi 0, %s76
    %s78 = sphi 0, %s76
    %s79 = sphi 0, %s78
    %s93 = sphi 0, %s79
    %s101 = sphi 0, %s103
    %s104 = sphi 0, %s101
    %s105 = sphi 0, %s104
    %s121 = sphi 0, %s105
  $region4: #{noise_sequence_rnn_v3_forward.34} parent=0 // loop_header_branch
    %12 = sbr.rel (%p10) target = $region8
  $region5: #{noise_sequence_rnn_v3_forward.34} parent=0 // loop_body
    %s14 = ssub.s32 %s9, 1
    %s15 = ssub.s32 %s9, 2
    %s22 = sadd.s32 1, %s17
    %p23 = scmp.ge.s32.totalorder %s22, 3
    %s24 = scalar_select %p23, 0, %s22
    %s25 = sadd.s32 1, %s16
    %s26 = scalar_select %p23, %s25, %s16
    %p27 = scmp.ge.s32.totalorder %s26, 8
    %s28 = scalar_select %p27, 0, %s26
    %s29 = ssub.s32 %s16, %s28
    %p30 = scmp.eq.s32.totalorder %s29, 0
    %s32 = sadd.s32 %s31, 1
    %s33 = scalar_select %p30, %s31, %s32
    %p36 = pneg %p30
    %p37 = scmp.eq.s32.totalorder %s9, 23
    %p38 = por %p36, %p37
    %p39 = scmp.ne.s32.totalorder %s31, %s34
    %p40 = scmp.eq.s32.totalorder %s9, 0
    %p41 = por %p39, %p40
    %p42 = scmp.ne.s32.totalorder %s31, %s34
    %p43 = scmp.eq.s32.totalorder %s14, 23
    %p44 = por %p42, %p43
    %p45 = scmp.ne.s32.totalorder %s34, %s35
    %p46 = scmp.eq.s32.totalorder %s14, 0
    %p47 = por %p45, %p46
    %p48 = scmp.ne.s32.totalorder %s34, %s35
    %p49 = scmp.eq.s32.totalorder %s15, 23
    %p50 = por %p48, %p49
    %p52 = scmp.ne.s32.totalorder %s35, %s51
    %p53 = scmp.eq.s32.totalorder %s15, 0
    %p54 = por %p52, %p53
    %s56 = sadd.s32 %s55, 1
    %p59 = scmp.eq.s32.totalorder %s9, 23
    %p60 = scmp.ne.s32.totalorder %s55, %s57
    %p61 = scmp.eq.s32.totalorder %s9, 0
    %p62 = por %p60, %p61
    %p63 = scmp.ne.s32.totalorder %s55, %s57
    %p64 = scmp.eq.s32.totalorder %s14, 23
    %p65 = por %p63, %p64
    %p66 = scmp.ne.s32.totalorder %s57, %s58
    %p67 = scmp.eq.s32.totalorder %s14, 0
    %p68 = por %p66, %p67
    %p69 = scmp.ne.s32.totalorder %s57, %s58
    %p70 = scmp.eq.s32.totalorder %s15, 23
    %p71 = por %p69, %p70
    %p73 = scmp.ne.s32.totalorder %s58, %s72
    %p74 = scmp.eq.s32.totalorder %s15, 0
    %p75 = por %p73, %p74
    %s77 = sadd.s32 %s76, 1
    %p80 = scmp.eq.s32.totalorder %s9, 23
    %p81 = scmp.ne.s32.totalorder %s76, %s78
    %p82 = scmp.eq.s32.totalorder %s9, 0
    %p83 = por %p81, %p82
    %p84 = scmp.ne.s32.totalorder %s76, %s78
    %p85 = scmp.eq.s32.totalorder %s14, 23
    %p86 = por %p84, %p85
    %p87 = scmp.ne.s32.totalorder %s78, %s79
    %p88 = scmp.eq.s32.totalorder %s14, 0
    %p89 = por %p87, %p88
    %p90 = scmp.ne.s32.totalorder %s78, %s79
    %p91 = scmp.eq.s32.totalorder %s15, 23
    %p92 = por %p90, %p91
    %p94 = scmp.ne.s32.totalorder %s79, %s93
    %p95 = scmp.eq.s32.totalorder %s15, 0
    %p96 = por %p94, %p95
    %s97 = ssub.s32 %s16, %s28
    %s98 = ssub.s32 %s17, %s24
    %s99 = sor.u32 %s97, %s98
    %p100 = scmp.eq.s32.totalorder %s99, 0
    %s102 = sadd.s32 %s101, 1
    %s103 = scalar_select %p100, %s101, %s102
    %p106 = pneg %p100
    %p107 = scmp.eq.s32.totalorder %s9, 23
    %p108 = por %p106, %p107
    %p109 = scmp.ne.s32.totalorder %s101, %s104
    %p110 = scmp.eq.s32.totalorder %s9, 0
    %p111 = por %p109, %p110
    %p112 = scmp.ne.s32.totalorder %s101, %s104
    %p113 = scmp.eq.s32.totalorder %s14, 23
    %p114 = por %p112, %p113
    %p115 = scmp.ne.s32.totalorder %s104, %s105
    %p116 = scmp.eq.s32.totalorder %s14, 0
    %p117 = por %p115, %p116
    %p118 = scmp.ne.s32.totalorder %s104, %s105
    %p119 = scmp.eq.s32.totalorder %s15, 23
    %p120 = por %p118, %p119
    %p122 = scmp.ne.s32.totalorder %s105, %s121
    %p123 = scmp.eq.s32.totalorder %s15, 0
    %p124 = por %p122, %p123
    %p125 = scmp.le.s32.totalorder 1, %s9
    %p126 = scmp.lt.s32.totalorder %s9, 25
    %p127 = pnand %p125, %p126
    %p128 = pneg %p127
    // Predicated region
    $region9: #{noise_sequence_rnn_v3_forward.34} parent=5 // pred_check
      _
    $region10: #{noise_sequence_rnn_v3_forward.34} parent=5 // pred_check_branch
      %130 = sbr.rel (%p127) target = $region12
    $region11: #{noise_sequence_rnn_v3_forward.34} parent=5 // pred_region
      %s131 = ssub.s32 %s9, 1
      // Predicated region
      $region13: #{noise_sequence_rnn_v3_forward.34} parent=11 // pred_check
        %p132 = pneg %p68
      $region14: #{noise_sequence_rnn_v3_forward.34} parent=11 // pred_check_branch
        %134 = sbr.rel (%p132) target = $region16
      $region15: #{noise_sequence_rnn_v3_forward.34} parent=11 // pred_region
        _
      $region16: #{noise_sequence_rnn_v3_forward.34} parent=11 // pred_fallthru
        _
      // Predicated region
      $region17: #{noise_sequence_rnn_v3_forward.34} parent=11 // pred_check
        %p135 = pneg %p89
      $region18: #{noise_sequence_rnn_v3_forward.34} parent=11 // pred_check_branch
        %137 = sbr.rel (%p135) target = $region20
      $region19: #{noise_sequence_rnn_v3_forward.34} parent=11 // pred_region
        _
      $region20: #{noise_sequence_rnn_v3_forward.34} parent=11 // pred_fallthru
        _
    $region12: #{noise_sequence_rnn_v3_forward.34} parent=5 // pred_fallthru
      _
    %p138 = scmp.lt.s32.totalorder %s9, 24
    // Predicated region
    $region21: #{noise_sequence_rnn_v3_forward.34} parent=5 // pred_check
      %p139 = pneg %p138
    $region22: #{noise_sequence_rnn_v3_forward.34} parent=5 // pred_check_branch
      %141 = sbr.rel (%p139) target = $region24
    $region23: #{noise_sequence_rnn_v3_forward.34} parent=5 // pred_region
      // Predicated region
      $region25: #{noise_sequence_rnn_v3_forward.34} parent=23 // pred_check
        %p142 = pneg %p41
      $region26: #{noise_sequence_rnn_v3_forward.34} parent=23 // pred_check_branch
        %144 = sbr.rel (%p142) target = $region28
      $region27: #{noise_sequence_rnn_v3_forward.34} parent=23 // pred_region
        %p145 = scmp.lt.s32.totalorder %s16, 7
        %s146 = scalar_select %p145, %s16, 7
        %s147 = smul.addr %s146, 53
        %s148 = smul.addr %s147, 8
        %s149 = scalar_lea.vmem %s0, %s148
      $region28: #{noise_sequence_rnn_v3_forward.34} parent=23 // pred_fallthru
        _
    $region24: #{noise_sequence_rnn_v3_forward.34} parent=5 // pred_fallthru
      _
    %p150 = scmp.le.s32.totalorder 1, %s9
    %p151 = scmp.lt.s32.totalorder %s9, 25
    %p152 = pnand %p150, %p151
    %p153 = pneg %p152
    // Predicated region
    $region29: #{noise_sequence_rnn_v3_forward.34} parent=5 // pred_check
      _
    $region30: #{noise_sequence_rnn_v3_forward.34} parent=5 // pred_check_branch
      %155 = sbr.rel (%p152) target = $region32
    $region31: #{noise_sequence_rnn_v3_forward.34} parent=5 // pred_region
      %s156 = ssub.s32 %s9, 1
      %p157 = scmp.lt.s32.totalorder %s18, 7
      %s158 = scalar_select %p157, %s18, 7
      %s159 = smul.addr %s158, 53
      %s160 = smul.addr %s159, 8
      %s161 = scalar_lea.vmem %s0, %s160
      %p162 = pneg %p47
      %p163 = pneg %p44
      %p164 = pneg %p68
      %p165 = pneg %p65
      %p166 = pneg %p89
      %p167 = pneg %p86
      %p168 = pneg %p117
      %p169 = pneg %p114
      %s170 = smul.u32 16, %s19
      %p171 = scmp.lt.s32.totalorder %s18, 7
      %s172 = scalar_select %p171, %s18, 7
      %p173 = scmp.lt.s32.totalorder %s170, 47
      %s174 = scalar_select %p173, %s170, 47
      %s175 = smul.addr %s172, 48
      %s176 = sadd.s32 %s174, %s175
      %s177 = smul.addr %s176, 8
      %s178 = scalar_lea.vmem %s3, %s177
      %p179 = scmp.lt.s32.totalorder %s18, 7
      %s180 = scalar_select %p179, %s18, 7
      %s181 = smul.addr %s180, 53
      %s182 = smul.addr %s181, 8
      %s183 = scalar_lea.vmem %s0, %s182
      %s184 = smul.u32 16, %s19
      %p185 = scmp.lt.s32.totalorder %s18, 7
      %s186 = scalar_select %p185, %s18, 7
      %p187 = scmp.lt.s32.totalorder %s184, 47
      %s188 = scalar_select %p187, %s184, 47
      %s189 = smul.addr %s186, 48
      %s190 = sadd.s32 %s188, %s189
      %s191 = smul.addr %s190, 8
      %s192 = scalar_lea.vmem %s3, %s191
      %s193 = smul.u32 16, %s19
      %s194 = smul.u32 %s19, 128
      %s195 = scalar_lea.vmem %s183, %s194
      %v196 = vld [vmem:[%s195] sm:$0xff]
      %v197 = vld [vmem:[%s195 + $0x8] sm:$0xff]
      %v198 = vld [vmem:[%s195 + $0x10] sm:$0xff]
      %v199 = vld [vmem:[%s195 + $0x18] sm:$0xff]
      %v200 = vld [vmem:[%s195 + $0x20] sm:$0xff]
      %v201 = vld [vmem:[%s195 + $0x28] sm:$0xff]
      %v202 = vld [vmem:[%s195 + $0x30] sm:$0xff]
      %v203 = vld [vmem:[%s195 + $0x38] sm:$0xff]
      %v204 = vld [vmem:[%s195 + $0x40] sm:$0xff]
      %v205 = vld [vmem:[%s195 + $0x48] sm:$0xff]
      %v206 = vld [vmem:[%s195 + $0x50] sm:$0xff]
      %v207 = vld [vmem:[%s195 + $0x58] sm:$0xff]
      %v208 = vld [vmem:[%s195 + $0x60] sm:$0xff]
      %v209 = vld [vmem:[%s195 + $0x68] sm:$0xff]
      %v210 = vld [vmem:[%s195 + $0x70] sm:$0xff]
      %v211 = vld [vmem:[%s195 + $0x78] sm:$0xff]
      %v212 = vpack.c.bf16 %v197, %v196
      %v213 = vpack.c.bf16 %v199, %v198
      %v214 = vpack.c.bf16 %v201, %v200
      %v215 = vpack.c.bf16 %v203, %v202
      %v216 = vpack.c.bf16 %v205, %v204
      %v217 = vpack.c.bf16 %v207, %v206
      %v218 = vpack.c.bf16 %v209, %v208
      %v219 = vpack.c.bf16 %v211, %v210
      %v220 = vld [vmem:[%s1] sm:$0xf]
      %v221 = vld [vmem:[%s1 + $0x4] sm:$0xf]
      %v222 = vld [vmem:[%s1 + $0x8] sm:$0xf]
      %v223 = vld [vmem:[%s1 + $0xc] sm:$0xf]
      %v224 = vld [vmem:[%s1 + $0x10] sm:$0xf]
      %v225 = vld [vmem:[%s1 + $0x14] sm:$0xf]
      %v226 = vld [vmem:[%s1 + $0x18] sm:$0xf]
      %v227 = vld [vmem:[%s1 + $0x1c] sm:$0xf]
      %v228 = vld [vmem:[%s1 + $0x20] sm:$0xf]
      %v229 = vld [vmem:[%s1 + $0x24] sm:$0xf]
      %v230 = vld [vmem:[%s1 + $0x28] sm:$0xf]
      %v231 = vld [vmem:[%s1 + $0x2c] sm:$0xf]
      %v232 = vld [vmem:[%s1 + $0x30] sm:$0xf]
      %v233 = vld [vmem:[%s1 + $0x34] sm:$0xf]
      %v234 = vld [vmem:[%s1 + $0x38] sm:$0xf]
      %v235 = vld [vmem:[%s1 + $0x3c] sm:$0xf]
      %s236 = sadd.s32 %s194, 1
      %s237 = scalar_lea.vmem %s183, %s236
      %v238 = vld [vmem:[%s237] sm:$0xff]
      %v239 = vld [vmem:[%s237 + $0x8] sm:$0xff]
      %v240 = vld [vmem:[%s237 + $0x10] sm:$0xff]
      %v241 = vld [vmem:[%s237 + $0x18] sm:$0xff]
      %v242 = vld [vmem:[%s237 + $0x20] sm:$0xff]
      %v243 = vld [vmem:[%s237 + $0x28] sm:$0xff]
      %v244 = vld [vmem:[%s237 + $0x30] sm:$0xff]
      %v245 = vld [vmem:[%s237 + $0x38] sm:$0xff]
      %v246 = vld [vmem:[%s237 + $0x40] sm:$0xff]
      %v247 = vld [vmem:[%s237 + $0x48] sm:$0xff]
      %v248 = vld [vmem:[%s237 + $0x50] sm:$0xff]
      %v249 = vld [vmem:[%s237 + $0x58] sm:$0xff]
      %v250 = vld [vmem:[%s237 + $0x60] sm:$0xff]
      %v251 = vld [vmem:[%s237 + $0x68] sm:$0xff]
      %v252 = vld [vmem:[%s237 + $0x70] sm:$0xff]
      %v253 = vld [vmem:[%s237 + $0x78] sm:$0xff]
      %v254 = vpack.c.bf16 %v239, %v238
      %v255 = vpack.c.bf16 %v241, %v240
      %v256 = vpack.c.bf16 %v243, %v242
      %v257 = vpack.c.bf16 %v245, %v244
      %v258 = vpack.c.bf16 %v247, %v246
      %v259 = vpack.c.bf16 %v249, %v248
      %v260 = vpack.c.bf16 %v251, %v250
      %v261 = vpack.c.bf16 %v253, %v252
      %s262 = scalar_lea.vmem %s1, 64
      %v263 = vld [vmem:[%s262] sm:$0xf]
      %v264 = vld [vmem:[%s262 + $0x4] sm:$0xf]
      %v265 = vld [vmem:[%s262 + $0x8] sm:$0xf]
      %v266 = vld [vmem:[%s262 + $0xc] sm:$0xf]
      %v267 = vld [vmem:[%s262 + $0x10] sm:$0xf]
      %v268 = vld [vmem:[%s262 + $0x14] sm:$0xf]
      %v269 = vld [vmem:[%s262 + $0x18] sm:$0xf]
      %v270 = vld [vmem:[%s262 + $0x1c] sm:$0xf]
      %v271 = vld [vmem:[%s262 + $0x20] sm:$0xf]
      %v272 = vld [vmem:[%s262 + $0x24] sm:$0xf]
      %v273 = vld [vmem:[%s262 + $0x28] sm:$0xf]
      %v274 = vld [vmem:[%s262 + $0x2c] sm:$0xf]
      %v275 = vld [vmem:[%s262 + $0x30] sm:$0xf]
      %v276 = vld [vmem:[%s262 + $0x34] sm:$0xf]
      %v277 = vld [vmem:[%s262 + $0x38] sm:$0xf]
      %v278 = vld [vmem:[%s262 + $0x3c] sm:$0xf]
      %v295 = vunpack.c.l.b16 %v263
      %v296 = vunpack.c.l.b16 %v264
      %v297 = vunpack.c.l.b16 %v265
      %v298 = vunpack.c.l.b16 %v266
      %v299 = vunpack.c.l.b16 %v267
      %v300 = vunpack.c.l.b16 %v268
      %v301 = vunpack.c.l.b16 %v269
      %v302 = vunpack.c.l.b16 %v270
      %v303 = vunpack.c.l.b16 %v271
      %v304 = vunpack.c.l.b16 %v272
      %v305 = vunpack.c.l.b16 %v273
      %v306 = vunpack.c.l.b16 %v274
      %v307 = vunpack.c.l.b16 %v275
      %v308 = vunpack.c.l.b16 %v276
      %v309 = vunpack.c.l.b16 %v277
      %v310 = vunpack.c.l.b16 %v278
      %v311 = vpack.c.b16 %v296, %v295
      %v312 = vpack.c.b16 %v298, %v297
      %v313 = vpack.c.b16 %v300, %v299
      %v314 = vpack.c.b16 %v302, %v301
      %v315 = vpack.c.b16 %v304, %v303
      %v316 = vpack.c.b16 %v306, %v305
      %v317 = vpack.c.b16 %v308, %v307
      %v318 = vpack.c.b16 %v310, %v309
      %327 = vmatpush.bf16.msra.mxu0 %v318
      %328 = vmatpush.bf16.msra.mxu0 %v317
      %329 = vmatpush.bf16.msra.mxu0 %v316
      %330 = vmatpush.bf16.msra.mxu0 %v315
      %331 = vmatpush.bf16.msra.mxu0 %v314
      %332 = vmatpush.bf16.msra.mxu0 %v313
      %333 = vmatpush.bf16.msra.mxu0 %v312
      %334 = vmatpush.bf16.msra.mxu0 %v311
      %335 = vmatmul.bf16.gmra.mxu0 %v254
      %v336 = vpop.f32.mrf.mxu0
      %v337 = vadd.f32 0.0, %v336
      %v338 = vpop.f32.mrf.mxu0
      %v339 = vadd.f32 0.0, %v338
      %340 = vmatmul.bf16.gmra.mxu0 %v255
      %v341 = vpop.f32.mrf.mxu0
      %v342 = vadd.f32 0.0, %v341
      %v343 = vpop.f32.mrf.mxu0
      %v344 = vadd.f32 0.0, %v343
      %345 = vmatmul.bf16.gmra.mxu0 %v256
      %v346 = vpop.f32.mrf.mxu0
      %v347 = vadd.f32 0.0, %v346
      %v348 = vpop.f32.mrf.mxu0
      %v349 = vadd.f32 0.0, %v348
      %350 = vmatmul.bf16.gmra.mxu0 %v257
      %v351 = vpop.f32.mrf.mxu0
      %v352 = vadd.f32 0.0, %v351
      %v353 = vpop.f32.mrf.mxu0
      %v354 = vadd.f32 0.0, %v353
      %355 = vmatmul.bf16.gmra.mxu0 %v258
      %v356 = vpop.f32.mrf.mxu0
      %v357 = vadd.f32 0.0, %v356
      %v358 = vpop.f32.mrf.mxu0
      %v359 = vadd.f32 0.0, %v358
      %360 = vmatmul.bf16.gmra.mxu0 %v259
      %v361 = vpop.f32.mrf.mxu0
      %v362 = vadd.f32 0.0, %v361
      %v363 = vpop.f32.mrf.mxu0
      %v364 = vadd.f32 0.0, %v363
      %365 = vmatmul.bf16.gmra.mxu0 %v260
      %v366 = vpop.f32.mrf.mxu0
      %v367 = vadd.f32 0.0, %v366
      %v368 = vpop.f32.mrf.mxu0
      %v369 = vadd.f32 0.0, %v368
      %370 = vmatmul.bf16.gmra.mxu0 %v261
      %v371 = vpop.f32.mrf.mxu0
      %v372 = vadd.f32 0.0, %v371
      %v373 = vpop.f32.mrf.mxu0
      %v374 = vadd.f32 0.0, %v373
      %375 = vdwg.mxu0
      %v392 = vunpack.c.l.b16 %v220
      %v393 = vunpack.c.l.b16 %v221
      %v394 = vunpack.c.l.b16 %v222
      %v395 = vunpack.c.l.b16 %v223
      %v396 = vunpack.c.l.b16 %v224
      %v397 = vunpack.c.l.b16 %v225
      %v398 = vunpack.c.l.b16 %v226
      %v399 = vunpack.c.l.b16 %v227
      %v400 = vunpack.c.l.b16 %v228
      %v401 = vunpack.c.l.b16 %v229
      %v402 = vunpack.c.l.b16 %v230
      %v403 = vunpack.c.l.b16 %v231
      %v404 = vunpack.c.l.b16 %v232
      %v405 = vunpack.c.l.b16 %v233
      %v406 = vunpack.c.l.b16 %v234
      %v407 = vunpack.c.l.b16 %v235
      %v408 = vpack.c.b16 %v393, %v392
      %v409 = vpack.c.b16 %v395, %v394
      %v410 = vpack.c.b16 %v397, %v396
      %v411 = vpack.c.b16 %v399, %v398
      %v412 = vpack.c.b16 %v401, %v400
      %v413 = vpack.c.b16 %v403, %v402
      %v414 = vpack.c.b16 %v405, %v404
      %v415 = vpack.c.b16 %v407, %v406
      %424 = vmatpush.bf16.msra.mxu0 %v415
      %425 = vmatpush.bf16.msra.mxu0 %v414
      %426 = vmatpush.bf16.msra.mxu0 %v413
      %427 = vmatpush.bf16.msra.mxu0 %v412
      %428 = vmatpush.bf16.msra.mxu0 %v411
      %429 = vmatpush.bf16.msra.mxu0 %v410
      %430 = vmatpush.bf16.msra.mxu0 %v409
      %431 = vmatpush.bf16.msra.mxu0 %v408
      %432 = vmatmul.bf16.gmra.mxu0 %v212
      %v433 = vpop.f32.mrf.mxu0
      %v434 = vadd.f32 %v337, %v433
      %v435 = vpop.f32.mrf.mxu0
      %v436 = vadd.f32 %v339, %v435
      %437 = vmatmul.bf16.gmra.mxu0 %v213
      %v438 = vpop.f32.mrf.mxu0
      %v439 = vadd.f32 %v342, %v438
      %v440 = vpop.f32.mrf.mxu0
      %v441 = vadd.f32 %v344, %v440
      %442 = vmatmul.bf16.gmra.mxu0 %v214
      %v443 = vpop.f32.mrf.mxu0
      %v444 = vadd.f32 %v347, %v443
      %v445 = vpop.f32.mrf.mxu0
      %v446 = vadd.f32 %v349, %v445
      %447 = vmatmul.bf16.gmra.mxu0 %v215
      %v448 = vpop.f32.mrf.mxu0
      %v449 = vadd.f32 %v352, %v448
      %v450 = vpop.f32.mrf.mxu0
      %v451 = vadd.f32 %v354, %v450
      %452 = vmatmul.bf16.gmra.mxu0 %v216
      %v453 = vpop.f32.mrf.mxu0
      %v454 = vadd.f32 %v357, %v453
      %v455 = vpop.f32.mrf.mxu0
      %v456 = vadd.f32 %v359, %v455
      %457 = vmatmul.bf16.gmra.mxu0 %v217
      %v458 = vpop.f32.mrf.mxu0
      %v459 = vadd.f32 %v362, %v458
      %v460 = vpop.f32.mrf.mxu0
      %v461 = vadd.f32 %v364, %v460
      %462 = vmatmul.bf16.gmra.mxu0 %v218
      %v463 = vpop.f32.mrf.mxu0
      %v464 = vadd.f32 %v367, %v463
      %v465 = vpop.f32.mrf.mxu0
      %v466 = vadd.f32 %v369, %v465
      %467 = vmatmul.bf16.gmra.mxu0 %v219
      %v468 = vpop.f32.mrf.mxu0
      %v469 = vadd.f32 %v372, %v468
      %v470 = vpop.f32.mrf.mxu0
      %v471 = vadd.f32 %v374, %v470
      %472 = vdwg.mxu0
      %s473 = sadd.s32 %s194, 2
      %s474 = scalar_lea.vmem %s183, %s473
      %v475 = vld [vmem:[%s474] sm:$0xff]
      %v476 = vld [vmem:[%s474 + $0x8] sm:$0xff]
      %v477 = vld [vmem:[%s474 + $0x10] sm:$0xff]
      %v478 = vld [vmem:[%s474 + $0x18] sm:$0xff]
      %v479 = vld [vmem:[%s474 + $0x20] sm:$0xff]
      %v480 = vld [vmem:[%s474 + $0x28] sm:$0xff]
      %v481 = vld [vmem:[%s474 + $0x30] sm:$0xff]
      %v482 = vld [vmem:[%s474 + $0x38] sm:$0xff]
      %v483 = vld [vmem:[%s474 + $0x40] sm:$0xff]
      %v484 = vld [vmem:[%s474 + $0x48] sm:$0xff]
      %v485 = vld [vmem:[%s474 + $0x50] sm:$0xff]
      %v486 = vld [vmem:[%s474 + $0x58] sm:$0xff]
      %v487 = vld [vmem:[%s474 + $0x60] sm:$0xff]
      %v488 = vld [vmem:[%s474 + $0x68] sm:$0xff]
      %v489 = vld [vmem:[%s474 + $0x70] sm:$0xff]
      %v490 = vld [vmem:[%s474 + $0x78] sm:$0xff]
      %v491 = vpack.c.bf16 %v476, %v475
      %v492 = vpack.c.bf16 %v478, %v477
      %v493 = vpack.c.bf16 %v480, %v479
      %v494 = vpack.c.bf16 %v482, %v481
      %v495 = vpack.c.bf16 %v484, %v483
      %v496 = vpack.c.bf16 %v486, %v485
      %v497 = vpack.c.bf16 %v488, %v487
      %v498 = vpack.c.bf16 %v490, %v489
      %s499 = scalar_lea.vmem %s1, 128
      %v500 = vld [vmem:[%s499] sm:$0xf]
      %v501 = vld [vmem:[%s499 + $0x4] sm:$0xf]
      %v502 = vld [vmem:[%s499 + $0x8] sm:$0xf]
      %v503 = vld [vmem:[%s499 + $0xc] sm:$0xf]
      %v504 = vld [vmem:[%s499 + $0x10] sm:$0xf]
      %v505 = vld [vmem:[%s499 + $0x14] sm:$0xf]
      %v506 = vld [vmem:[%s499 + $0x18] sm:$0xf]
      %v507 = vld [vmem:[%s499 + $0x1c] sm:$0xf]
      %v508 = vld [vmem:[%s499 + $0x20] sm:$0xf]
      %v509 = vld [vmem:[%s499 + $0x24] sm:$0xf]
      %v510 = vld [vmem:[%s499 + $0x28] sm:$0xf]
      %v511 = vld [vmem:[%s499 + $0x2c] sm:$0xf]
      %v512 = vld [vmem:[%s499 + $0x30] sm:$0xf]
      %v513 = vld [vmem:[%s499 + $0x34] sm:$0xf]
      %v514 = vld [vmem:[%s499 + $0x38] sm:$0xf]
      %v515 = vld [vmem:[%s499 + $0x3c] sm:$0xf]
      %v532 = vunpack.c.l.b16 %v500
      %v533 = vunpack.c.l.b16 %v501
      %v534 = vunpack.c.l.b16 %v502
      %v535 = vunpack.c.l.b16 %v503
      %v536 = vunpack.c.l.b16 %v504
      %v537 = vunpack.c.l.b16 %v505
      %v538 = vunpack.c.l.b16 %v506
      %v539 = vunpack.c.l.b16 %v507
      %v540 = vunpack.c.l.b16 %v508
      %v541 = vunpack.c.l.b16 %v509
      %v542 = vunpack.c.l.b16 %v510
      %v543 = vunpack.c.l.b16 %v511
      %v544 = vunpack.c.l.b16 %v512
      %v545 = vunpack.c.l.b16 %v513
      %v546 = vunpack.c.l.b16 %v514
      %v547 = vunpack.c.l.b16 %v515
      %v548 = vpack.c.b16 %v533, %v532
      %v549 = vpack.c.b16 %v535, %v534
      %v550 = vpack.c.b16 %v537, %v536
      %v551 = vpack.c.b16 %v539, %v538
      %v552 = vpack.c.b16 %v541, %v540
      %v553 = vpack.c.b16 %v543, %v542
      %v554 = vpack.c.b16 %v545, %v544
      %v555 = vpack.c.b16 %v547, %v546
      %564 = vmatpush.bf16.msra.mxu0 %v555
      %565 = vmatpush.bf16.msra.mxu0 %v554
      %566 = vmatpush.bf16.msra.mxu0 %v553
      %567 = vmatpush.bf16.msra.mxu0 %v552
      %568 = vmatpush.bf16.msra.mxu0 %v551
      %569 = vmatpush.bf16.msra.mxu0 %v550
      %570 = vmatpush.bf16.msra.mxu0 %v549
      %571 = vmatpush.bf16.msra.mxu0 %v548
      %572 = vmatmul.bf16.gmra.mxu0 %v491
      %v573 = vpop.f32.mrf.mxu0
      %v574 = vadd.f32 0.0, %v573
      %v575 = vpop.f32.mrf.mxu0
      %v576 = vadd.f32 0.0, %v575
      %577 = vmatmul.bf16.gmra.mxu0 %v492
      %v578 = vpop.f32.mrf.mxu0
      %v579 = vadd.f32 0.0, %v578
      %v580 = vpop.f32.mrf.mxu0
      %v581 = vadd.f32 0.0, %v580
      %582 = vmatmul.bf16.gmra.mxu0 %v493
      %v583 = vpop.f32.mrf.mxu0
      %v584 = vadd.f32 0.0, %v583
      %v585 = vpop.f32.mrf.mxu0
      %v586 = vadd.f32 0.0, %v585
      %587 = vmatmul.bf16.gmra.mxu0 %v494
      %v588 = vpop.f32.mrf.mxu0
      %v589 = vadd.f32 0.0, %v588
      %v590 = vpop.f32.mrf.mxu0
      %v591 = vadd.f32 0.0, %v590
      %592 = vmatmul.bf16.gmra.mxu0 %v495
      %v593 = vpop.f32.mrf.mxu0
      %v594 = vadd.f32 0.0, %v593
      %v595 = vpop.f32.mrf.mxu0
      %v596 = vadd.f32 0.0, %v595
      %597 = vmatmul.bf16.gmra.mxu0 %v496
      %v598 = vpop.f32.mrf.mxu0
      %v599 = vadd.f32 0.0, %v598
      %v600 = vpop.f32.mrf.mxu0
      %v601 = vadd.f32 0.0, %v600
      %602 = vmatmul.bf16.gmra.mxu0 %v497
      %v603 = vpop.f32.mrf.mxu0
      %v604 = vadd.f32 0.0, %v603
      %v605 = vpop.f32.mrf.mxu0
      %v606 = vadd.f32 0.0, %v605
      %607 = vmatmul.bf16.gmra.mxu0 %v498
      %v608 = vpop.f32.mrf.mxu0
      %v609 = vadd.f32 0.0, %v608
      %v610 = vpop.f32.mrf.mxu0
      %v611 = vadd.f32 0.0, %v610
      %612 = vdwg.mxu0
      %v613 = vadd.f32 %v434, %v574
      %v614 = vadd.f32 %v436, %v576
      %v615 = vadd.f32 %v439, %v579
      %v616 = vadd.f32 %v441, %v581
      %v617 = vadd.f32 %v444, %v584
      %v618 = vadd.f32 %v446, %v586
      %v619 = vadd.f32 %v449, %v589
      %v620 = vadd.f32 %v451, %v591
      %v621 = vadd.f32 %v454, %v594
      %v622 = vadd.f32 %v456, %v596
      %v623 = vadd.f32 %v459, %v599
      %v624 = vadd.f32 %v461, %v601
      %v625 = vadd.f32 %v464, %v604
      %v626 = vadd.f32 %v466, %v606
      %v627 = vadd.f32 %v469, %v609
      %v628 = vadd.f32 %v471, %v611
      %s629 = sadd.s32 %s194, 18
      %s630 = scalar_lea.vmem %s183, %s629
      %v631 = vld [vmem:[%s630] sm:$0xff]
      %v632 = vld [vmem:[%s630 + $0x8] sm:$0xff]
      %v633 = vld [vmem:[%s630 + $0x10] sm:$0xff]
      %v634 = vld [vmem:[%s630 + $0x18] sm:$0xff]
      %v635 = vld [vmem:[%s630 + $0x20] sm:$0xff]
      %v636 = vld [vmem:[%s630 + $0x28] sm:$0xff]
      %v637 = vld [vmem:[%s630 + $0x30] sm:$0xff]
      %v638 = vld [vmem:[%s630 + $0x38] sm:$0xff]
      %v639 = vld [vmem:[%s630 + $0x40] sm:$0xff]
      %v640 = vld [vmem:[%s630 + $0x48] sm:$0xff]
      %v641 = vld [vmem:[%s630 + $0x50] sm:$0xff]
      %v642 = vld [vmem:[%s630 + $0x58] sm:$0xff]
      %v643 = vld [vmem:[%s630 + $0x60] sm:$0xff]
      %v644 = vld [vmem:[%s630 + $0x68] sm:$0xff]
      %v645 = vld [vmem:[%s630 + $0x70] sm:$0xff]
      %v646 = vld [vmem:[%s630 + $0x78] sm:$0xff]
      %v647 = vpack.c.bf16 %v632, %v631
      %v648 = vpack.c.bf16 %v634, %v633
      %v649 = vpack.c.bf16 %v636, %v635
      %v650 = vpack.c.bf16 %v638, %v637
      %v651 = vpack.c.bf16 %v640, %v639
      %v652 = vpack.c.bf16 %v642, %v641
      %v653 = vpack.c.bf16 %v644, %v643
      %v654 = vpack.c.bf16 %v646, %v645
      %s655 = scalar_lea.vmem %s1, 192
      %v656 = vld [vmem:[%s655] sm:$0xf]
      %v657 = vld [vmem:[%s655 + $0x4] sm:$0xf]
      %v658 = vld [vmem:[%s655 + $0x8] sm:$0xf]
      %v659 = vld [vmem:[%s655 + $0xc] sm:$0xf]
      %v660 = vld [vmem:[%s655 + $0x10] sm:$0xf]
      %v661 = vld [vmem:[%s655 + $0x14] sm:$0xf]
      %v662 = vld [vmem:[%s655 + $0x18] sm:$0xf]
      %v663 = vld [vmem:[%s655 + $0x1c] sm:$0xf]
      %v664 = vld [vmem:[%s655 + $0x20] sm:$0xf]
      %v665 = vld [vmem:[%s655 + $0x24] sm:$0xf]
      %v666 = vld [vmem:[%s655 + $0x28] sm:$0xf]
      %v667 = vld [vmem:[%s655 + $0x2c] sm:$0xf]
      %v668 = vld [vmem:[%s655 + $0x30] sm:$0xf]
      %v669 = vld [vmem:[%s655 + $0x34] sm:$0xf]
      %v670 = vld [vmem:[%s655 + $0x38] sm:$0xf]
      %v671 = vld [vmem:[%s655 + $0x3c] sm:$0xf]
      %v688 = vunpack.c.l.b16 %v656
      %v689 = vunpack.c.l.b16 %v657
      %v690 = vunpack.c.l.b16 %v658
      %v691 = vunpack.c.l.b16 %v659
      %v692 = vunpack.c.l.b16 %v660
      %v693 = vunpack.c.l.b16 %v661
      %v694 = vunpack.c.l.b16 %v662
      %v695 = vunpack.c.l.b16 %v663
      %v696 = vunpack.c.l.b16 %v664
      %v697 = vunpack.c.l.b16 %v665
      %v698 = vunpack.c.l.b16 %v666
      %v699 = vunpack.c.l.b16 %v667
      %v700 = vunpack.c.l.b16 %v668
      %v701 = vunpack.c.l.b16 %v669
      %v702 = vunpack.c.l.b16 %v670
      %v703 = vunpack.c.l.b16 %v671
      %v704 = vpack.c.b16 %v689, %v688
      %v705 = vpack.c.b16 %v691, %v690
      %v706 = vpack.c.b16 %v693, %v692
      %v707 = vpack.c.b16 %v695, %v694
      %v708 = vpack.c.b16 %v697, %v696
      %v709 = vpack.c.b16 %v699, %v698
      %v710 = vpack.c.b16 %v701, %v700
      %v711 = vpack.c.b16 %v703, %v702
      %720 = vmatpush.bf16.msra.mxu0 %v711
      %721 = vmatpush.bf16.msra.mxu0 %v710
      %722 = vmatpush.bf16.msra.mxu0 %v709
      %723 = vmatpush.bf16.msra.mxu0 %v708
      %724 = vmatpush.bf16.msra.mxu0 %v707
      %725 = vmatpush.bf16.msra.mxu0 %v706
      %726 = vmatpush.bf16.msra.mxu0 %v705
      %727 = vmatpush.bf16.msra.mxu0 %v704
      %728 = vmatmul.bf16.gmra.mxu0 %v647
      %v729 = vpop.f32.mrf.mxu0
      %v730 = vadd.f32 0.0, %v729
      %v731 = vpop.f32.mrf.mxu0
      %v732 = vadd.f32 0.0, %v731
      %733 = vmatmul.bf16.gmra.mxu0 %v648
      %v734 = vpop.f32.mrf.mxu0
      %v735 = vadd.f32 0.0, %v734
      %v736 = vpop.f32.mrf.mxu0
      %v737 = vadd.f32 0.0, %v736
      %738 = vmatmul.bf16.gmra.mxu0 %v649
      %v739 = vpop.f32.mrf.mxu0
      %v740 = vadd.f32 0.0, %v739
      %v741 = vpop.f32.mrf.mxu0
      %v742 = vadd.f32 0.0, %v741
      %743 = vmatmul.bf16.gmra.mxu0 %v650
      %v744 = vpop.f32.mrf.mxu0
      %v745 = vadd.f32 0.0, %v744
      %v746 = vpop.f32.mrf.mxu0
      %v747 = vadd.f32 0.0, %v746
      %748 = vmatmul.bf16.gmra.mxu0 %v651
      %v749 = vpop.f32.mrf.mxu0
      %v750 = vadd.f32 0.0, %v749
      %v751 = vpop.f32.mrf.mxu0
      %v752 = vadd.f32 0.0, %v751
      %753 = vmatmul.bf16.gmra.mxu0 %v652
      %v754 = vpop.f32.mrf.mxu0
      %v755 = vadd.f32 0.0, %v754
      %v756 = vpop.f32.mrf.mxu0
      %v757 = vadd.f32 0.0, %v756
      %758 = vmatmul.bf16.gmra.mxu0 %v653
      %v759 = vpop.f32.mrf.mxu0
      %v760 = vadd.f32 0.0, %v759
      %v761 = vpop.f32.mrf.mxu0
      %v762 = vadd.f32 0.0, %v761
      %763 = vmatmul.bf16.gmra.mxu0 %v654
      %v764 = vpop.f32.mrf.mxu0
      %v765 = vadd.f32 0.0, %v764
      %v766 = vpop.f32.mrf.mxu0
      %v767 = vadd.f32 0.0, %v766
      %768 = vdwg.mxu0
      %v769 = vadd.f32 %v613, %v730
      %v770 = vadd.f32 %v614, %v732
      %v771 = vadd.f32 %v615, %v735
      %v772 = vadd.f32 %v616, %v737
      %v773 = vadd.f32 %v617, %v740
      %v774 = vadd.f32 %v618, %v742
      %v775 = vadd.f32 %v619, %v745
      %v776 = vadd.f32 %v620, %v747
      %v777 = vadd.f32 %v621, %v750
      %v778 = vadd.f32 %v622, %v752
      %v779 = vadd.f32 %v623, %v755
      %v780 = vadd.f32 %v624, %v757
      %v781 = vadd.f32 %v625, %v760
      %v782 = vadd.f32 %v626, %v762
      %v783 = vadd.f32 %v627, %v765
      %v784 = vadd.f32 %v628, %v767
      %s785 = sadd.s32 %s194, 19
      %s786 = scalar_lea.vmem %s183, %s785
      %v787 = vld [vmem:[%s786] sm:$0xff]
      %v788 = vld [vmem:[%s786 + $0x8] sm:$0xff]
      %v789 = vld [vmem:[%s786 + $0x10] sm:$0xff]
      %v790 = vld [vmem:[%s786 + $0x18] sm:$0xff]
      %v791 = vld [vmem:[%s786 + $0x20] sm:$0xff]
      %v792 = vld [vmem:[%s786 + $0x28] sm:$0xff]
      %v793 = vld [vmem:[%s786 + $0x30] sm:$0xff]
      %v794 = vld [vmem:[%s786 + $0x38] sm:$0xff]
      %v795 = vld [vmem:[%s786 + $0x40] sm:$0xff]
      %v796 = vld [vmem:[%s786 + $0x48] sm:$0xff]
      %v797 = vld [vmem:[%s786 + $0x50] sm:$0xff]
      %v798 = vld [vmem:[%s786 + $0x58] sm:$0xff]
      %v799 = vld [vmem:[%s786 + $0x60] sm:$0xff]
      %v800 = vld [vmem:[%s786 + $0x68] sm:$0xff]
      %v801 = vld [vmem:[%s786 + $0x70] sm:$0xff]
      %v802 = vld [vmem:[%s786 + $0x78] sm:$0xff]
      %v803 = vpack.c.bf16 %v788, %v787
      %v804 = vpack.c.bf16 %v790, %v789
      %v805 = vpack.c.bf16 %v792, %v791
      %v806 = vpack.c.bf16 %v794, %v793
      %v807 = vpack.c.bf16 %v796, %v795
      %v808 = vpack.c.bf16 %v798, %v797
      %v809 = vpack.c.bf16 %v800, %v799
      %v810 = vpack.c.bf16 %v802, %v801
      %s811 = scalar_lea.vmem %s1, 256
      %v812 = vld [vmem:[%s811] sm:$0xf]
      %v813 = vld [vmem:[%s811 + $0x4] sm:$0xf]
      %v814 = vld [vmem:[%s811 + $0x8] sm:$0xf]
      %v815 = vld [vmem:[%s811 + $0xc] sm:$0xf]
      %v816 = vld [vmem:[%s811 + $0x10] sm:$0xf]
      %v817 = vld [vmem:[%s811 + $0x14] sm:$0xf]
      %v818 = vld [vmem:[%s811 + $0x18] sm:$0xf]
      %v819 = vld [vmem:[%s811 + $0x1c] sm:$0xf]
      %v820 = vld [vmem:[%s811 + $0x20] sm:$0xf]
      %v821 = vld [vmem:[%s811 + $0x24] sm:$0xf]
      %v822 = vld [vmem:[%s811 + $0x28] sm:$0xf]
      %v823 = vld [vmem:[%s811 + $0x2c] sm:$0xf]
      %v824 = vld [vmem:[%s811 + $0x30] sm:$0xf]
      %v825 = vld [vmem:[%s811 + $0x34] sm:$0xf]
      %v826 = vld [vmem:[%s811 + $0x38] sm:$0xf]
      %v827 = vld [vmem:[%s811 + $0x3c] sm:$0xf]
      %v844 = vunpack.c.l.b16 %v812
      %v845 = vunpack.c.l.b16 %v813
      %v846 = vunpack.c.l.b16 %v814
      %v847 = vunpack.c.l.b16 %v815
      %v848 = vunpack.c.l.b16 %v816
      %v849 = vunpack.c.l.b16 %v817
      %v850 = vunpack.c.l.b16 %v818
      %v851 = vunpack.c.l.b16 %v819
      %v852 = vunpack.c.l.b16 %v820
      %v853 = vunpack.c.l.b16 %v821
      %v854 = vunpack.c.l.b16 %v822
      %v855 = vunpack.c.l.b16 %v823
      %v856 = vunpack.c.l.b16 %v824
      %v857 = vunpack.c.l.b16 %v825
      %v858 = vunpack.c.l.b16 %v826
      %v859 = vunpack.c.l.b16 %v827
      %v860 = vpack.c.b16 %v845, %v844
      %v861 = vpack.c.b16 %v847, %v846
      %v862 = vpack.c.b16 %v849, %v848
      %v863 = vpack.c.b16 %v851, %v850
      %v864 = vpack.c.b16 %v853, %v852
      %v865 = vpack.c.b16 %v855, %v854
      %v866 = vpack.c.b16 %v857, %v856
      %v867 = vpack.c.b16 %v859, %v858
      %876 = vmatpush.bf16.msra.mxu0 %v867
      %877 = vmatpush.bf16.msra.mxu0 %v866
      %878 = vmatpush.bf16.msra.mxu0 %v865
      %879 = vmatpush.bf16.msra.mxu0 %v864
      %880 = vmatpush.bf16.msra.mxu0 %v863
      %881 = vmatpush.bf16.msra.mxu0 %v862
      %882 = vmatpush.bf16.msra.mxu0 %v861
      %883 = vmatpush.bf16.msra.mxu0 %v860
      %884 = vmatmul.bf16.gmra.mxu0 %v803
      %v885 = vpop.f32.mrf.mxu0
      %v886 = vadd.f32 0.0, %v885
      %v887 = vpop.f32.mrf.mxu0
      %v888 = vadd.f32 0.0, %v887
      %889 = vmatmul.bf16.gmra.mxu0 %v804
      %v890 = vpop.f32.mrf.mxu0
      %v891 = vadd.f32 0.0, %v890
      %v892 = vpop.f32.mrf.mxu0
      %v893 = vadd.f32 0.0, %v892
      %894 = vmatmul.bf16.gmra.mxu0 %v805
      %v895 = vpop.f32.mrf.mxu0
      %v896 = vadd.f32 0.0, %v895
      %v897 = vpop.f32.mrf.mxu0
      %v898 = vadd.f32 0.0, %v897
      %899 = vmatmul.bf16.gmra.mxu0 %v806
      %v900 = vpop.f32.mrf.mxu0
      %v901 = vadd.f32 0.0, %v900
      %v902 = vpop.f32.mrf.mxu0
      %v903 = vadd.f32 0.0, %v902
      %904 = vmatmul.bf16.gmra.mxu0 %v807
      %v905 = vpop.f32.mrf.mxu0
      %v906 = vadd.f32 0.0, %v905
      %v907 = vpop.f32.mrf.mxu0
      %v908 = vadd.f32 0.0, %v907
      %909 = vmatmul.bf16.gmra.mxu0 %v808
      %v910 = vpop.f32.mrf.mxu0
      %v911 = vadd.f32 0.0, %v910
      %v912 = vpop.f32.mrf.mxu0
      %v913 = vadd.f32 0.0, %v912
      %914 = vmatmul.bf16.gmra.mxu0 %v809
      %v915 = vpop.f32.mrf.mxu0
      %v916 = vadd.f32 0.0, %v915
      %v917 = vpop.f32.mrf.mxu0
      %v918 = vadd.f32 0.0, %v917
      %919 = vmatmul.bf16.gmra.mxu0 %v810
      %v920 = vpop.f32.mrf.mxu0
      %v921 = vadd.f32 0.0, %v920
      %v922 = vpop.f32.mrf.mxu0
      %v923 = vadd.f32 0.0, %v922
      %924 = vdwg.mxu0
      %v925 = vadd.f32 %v769, %v886
      %v926 = vadd.f32 %v770, %v888
      %v927 = vadd.f32 %v771, %v891
      %v928 = vadd.f32 %v772, %v893
      %v929 = vadd.f32 %v773, %v896
      %v930 = vadd.f32 %v774, %v898
      %v931 = vadd.f32 %v775, %v901
      %v932 = vadd.f32 %v776, %v903
      %v933 = vadd.f32 %v777, %v906
      %v934 = vadd.f32 %v778, %v908
      %v935 = vadd.f32 %v779, %v911
      %v936 = vadd.f32 %v780, %v913
      %v937 = vadd.f32 %v781, %v916
      %v938 = vadd.f32 %v782, %v918
      %v939 = vadd.f32 %v783, %v921
      %v940 = vadd.f32 %v784, %v923
      %s941 = sadd.s32 %s194, 20
      %s942 = scalar_lea.vmem %s183, %s941
      %v943 = vld [vmem:[%s942] sm:$0xff]
      %v944 = vld [vmem:[%s942 + $0x8] sm:$0xff]
      %v945 = vld [vmem:[%s942 + $0x10] sm:$0xff]
      %v946 = vld [vmem:[%s942 + $0x18] sm:$0xff]
      %v947 = vld [vmem:[%s942 + $0x20] sm:$0xff]
      %v948 = vld [vmem:[%s942 + $0x28] sm:$0xff]
      %v949 = vld [vmem:[%s942 + $0x30] sm:$0xff]
      %v950 = vld [vmem:[%s942 + $0x38] sm:$0xff]
      %v951 = vld [vmem:[%s942 + $0x40] sm:$0xff]
      %v952 = vld [vmem:[%s942 + $0x48] sm:$0xff]
      %v953 = vld [vmem:[%s942 + $0x50] sm:$0xff]
      %v954 = vld [vmem:[%s942 + $0x58] sm:$0xff]
      %v955 = vld [vmem:[%s942 + $0x60] sm:$0xff]
      %v956 = vld [vmem:[%s942 + $0x68] sm:$0xff]
      %v957 = vld [vmem:[%s942 + $0x70] sm:$0xff]
      %v958 = vld [vmem:[%s942 + $0x78] sm:$0xff]
      %v959 = vpack.c.bf16 %v944, %v943
      %v960 = vpack.c.bf16 %v946, %v945
      %v961 = vpack.c.bf16 %v948, %v947
      %v962 = vpack.c.bf16 %v950, %v949
      %v963 = vpack.c.bf16 %v952, %v951
      %v964 = vpack.c.bf16 %v954, %v953
      %v965 = vpack.c.bf16 %v956, %v955
      %v966 = vpack.c.bf16 %v958, %v957
      %s967 = scalar_lea.vmem %s1, 320
      %v968 = vld [vmem:[%s967] sm:$0xf]
      %v969 = vld [vmem:[%s967 + $0x4] sm:$0xf]
      %v970 = vld [vmem:[%s967 + $0x8] sm:$0xf]
      %v971 = vld [vmem:[%s967 + $0xc] sm:$0xf]
      %v972 = vld [vmem:[%s967 + $0x10] sm:$0xf]
      %v973 = vld [vmem:[%s967 + $0x14] sm:$0xf]
      %v974 = vld [vmem:[%s967 + $0x18] sm:$0xf]
      %v975 = vld [vmem:[%s967 + $0x1c] sm:$0xf]
      %v976 = vld [vmem:[%s967 + $0x20] sm:$0xf]
      %v977 = vld [vmem:[%s967 + $0x24] sm:$0xf]
      %v978 = vld [vmem:[%s967 + $0x28] sm:$0xf]
      %v979 = vld [vmem:[%s967 + $0x2c] sm:$0xf]
      %v980 = vld [vmem:[%s967 + $0x30] sm:$0xf]
      %v981 = vld [vmem:[%s967 + $0x34] sm:$0xf]
      %v982 = vld [vmem:[%s967 + $0x38] sm:$0xf]
      %v983 = vld [vmem:[%s967 + $0x3c] sm:$0xf]
      %v1000 = vunpack.c.l.b16 %v968
      %v1001 = vunpack.c.l.b16 %v969
      %v1002 = vunpack.c.l.b16 %v970
      %v1003 = vunpack.c.l.b16 %v971
      %v1004 = vunpack.c.l.b16 %v972
      %v1005 = vunpack.c.l.b16 %v973
      %v1006 = vunpack.c.l.b16 %v974
      %v1007 = vunpack.c.l.b16 %v975
      %v1008 = vunpack.c.l.b16 %v976
      %v1009 = vunpack.c.l.b16 %v977
      %v1010 = vunpack.c.l.b16 %v978
      %v1011 = vunpack.c.l.b16 %v979
      %v1012 = vunpack.c.l.b16 %v980
      %v1013 = vunpack.c.l.b16 %v981
      %v1014 = vunpack.c.l.b16 %v982
      %v1015 = vunpack.c.l.b16 %v983
      %v1016 = vpack.c.b16 %v1001, %v1000
      %v1017 = vpack.c.b16 %v1003, %v1002
      %v1018 = vpack.c.b16 %v1005, %v1004
      %v1019 = vpack.c.b16 %v1007, %v1006
      %v1020 = vpack.c.b16 %v1009, %v1008
      %v1021 = vpack.c.b16 %v1011, %v1010
      %v1022 = vpack.c.b16 %v1013, %v1012
      %v1023 = vpack.c.b16 %v1015, %v1014
      %1032 = vmatpush.bf16.msra.mxu0 %v1023
      %1033 = vmatpush.bf16.msra.mxu0 %v1022
      %1034 = vmatpush.bf16.msra.mxu0 %v1021
      %1035 = vmatpush.bf16.msra.mxu0 %v1020
      %1036 = vmatpush.bf16.msra.mxu0 %v1019
      %1037 = vmatpush.bf16.msra.mxu0 %v1018
      %1038 = vmatpush.bf16.msra.mxu0 %v1017
      %1039 = vmatpush.bf16.msra.mxu0 %v1016
      %1040 = vmatmul.bf16.gmra.mxu0 %v959
      %v1041 = vpop.f32.mrf.mxu0
      %v1042 = vadd.f32 0.0, %v1041
      %v1043 = vpop.f32.mrf.mxu0
      %v1044 = vadd.f32 0.0, %v1043
      %1045 = vmatmul.bf16.gmra.mxu0 %v960
      %v1046 = vpop.f32.mrf.mxu0
      %v1047 = vadd.f32 0.0, %v1046
      %v1048 = vpop.f32.mrf.mxu0
      %v1049 = vadd.f32 0.0, %v1048
      %1050 = vmatmul.bf16.gmra.mxu0 %v961
      %v1051 = vpop.f32.mrf.mxu0
      %v1052 = vadd.f32 0.0, %v1051
      %v1053 = vpop.f32.mrf.mxu0
      %v1054 = vadd.f32 0.0, %v1053
      %1055 = vmatmul.bf16.gmra.mxu0 %v962
      %v1056 = vpop.f32.mrf.mxu0
      %v1057 = vadd.f32 0.0, %v1056
      %v1058 = vpop.f32.mrf.mxu0
      %v1059 = vadd.f32 0.0, %v1058
      %1060 = vmatmul.bf16.gmra.mxu0 %v963
      %v1061 = vpop.f32.mrf.mxu0
      %v1062 = vadd.f32 0.0, %v1061
      %v1063 = vpop.f32.mrf.mxu0
      %v1064 = vadd.f32 0.0, %v1063
      %1065 = vmatmul.bf16.gmra.mxu0 %v964
      %v1066 = vpop.f32.mrf.mxu0
      %v1067 = vadd.f32 0.0, %v1066
      %v1068 = vpop.f32.mrf.mxu0
      %v1069 = vadd.f32 0.0, %v1068
      %1070 = vmatmul.bf16.gmra.mxu0 %v965
      %v1071 = vpop.f32.mrf.mxu0
      %v1072 = vadd.f32 0.0, %v1071
      %v1073 = vpop.f32.mrf.mxu0
      %v1074 = vadd.f32 0.0, %v1073
      %1075 = vmatmul.bf16.gmra.mxu0 %v966
      %v1076 = vpop.f32.mrf.mxu0
      %v1077 = vadd.f32 0.0, %v1076
      %v1078 = vpop.f32.mrf.mxu0
      %v1079 = vadd.f32 0.0, %v1078
      %1080 = vdwg.mxu0
      %v1081 = vadd.f32 %v925, %v1042
      %v1082 = vadd.f32 %v926, %v1044
      %v1083 = vadd.f32 %v927, %v1047
      %v1084 = vadd.f32 %v928, %v1049
      %v1085 = vadd.f32 %v929, %v1052
      %v1086 = vadd.f32 %v930, %v1054
      %v1087 = vadd.f32 %v931, %v1057
      %v1088 = vadd.f32 %v932, %v1059
      %v1089 = vadd.f32 %v933, %v1062
      %v1090 = vadd.f32 %v934, %v1064
      %v1091 = vadd.f32 %v935, %v1067
      %v1092 = vadd.f32 %v936, %v1069
      %v1093 = vadd.f32 %v937, %v1072
      %v1094 = vadd.f32 %v938, %v1074
      %v1095 = vadd.f32 %v939, %v1077
      %v1096 = vadd.f32 %v940, %v1079
      %s1097 = sadd.s32 %s194, 36
      %s1098 = scalar_lea.vmem %s183, %s1097
      %v1099 = vld [vmem:[%s1098] sm:$0xff]
      %v1100 = vld [vmem:[%s1098 + $0x8] sm:$0xff]
      %v1101 = vld [vmem:[%s1098 + $0x10] sm:$0xff]
      %v1102 = vld [vmem:[%s1098 + $0x18] sm:$0xff]
      %v1103 = vld [vmem:[%s1098 + $0x20] sm:$0xff]
      %v1104 = vld [vmem:[%s1098 + $0x28] sm:$0xff]
      %v1105 = vld [vmem:[%s1098 + $0x30] sm:$0xff]
      %v1106 = vld [vmem:[%s1098 + $0x38] sm:$0xff]
      %v1107 = vld [vmem:[%s1098 + $0x40] sm:$0xff]
      %v1108 = vld [vmem:[%s1098 + $0x48] sm:$0xff]
      %v1109 = vld [vmem:[%s1098 + $0x50] sm:$0xff]
      %v1110 = vld [vmem:[%s1098 + $0x58] sm:$0xff]
      %v1111 = vld [vmem:[%s1098 + $0x60] sm:$0xff]
      %v1112 = vld [vmem:[%s1098 + $0x68] sm:$0xff]
      %v1113 = vld [vmem:[%s1098 + $0x70] sm:$0xff]
      %v1114 = vld [vmem:[%s1098 + $0x78] sm:$0xff]
      %v1115 = vpack.c.bf16 %v1100, %v1099
      %v1116 = vpack.c.bf16 %v1102, %v1101
      %v1117 = vpack.c.bf16 %v1104, %v1103
      %v1118 = vpack.c.bf16 %v1106, %v1105
      %v1119 = vpack.c.bf16 %v1108, %v1107
      %v1120 = vpack.c.bf16 %v1110, %v1109
      %v1121 = vpack.c.bf16 %v1112, %v1111
      %v1122 = vpack.c.bf16 %v1114, %v1113
      %s1123 = scalar_lea.vmem %s1, 384
      %v1124 = vld [vmem:[%s1123] sm:$0xf]
      %v1125 = vld [vmem:[%s1123 + $0x4] sm:$0xf]
      %v1126 = vld [vmem:[%s1123 + $0x8] sm:$0xf]
      %v1127 = vld [vmem:[%s1123 + $0xc] sm:$0xf]
      %v1128 = vld [vmem:[%s1123 + $0x10] sm:$0xf]
      %v1129 = vld [vmem:[%s1123 + $0x14] sm:$0xf]
      %v1130 = vld [vmem:[%s1123 + $0x18] sm:$0xf]
      %v1131 = vld [vmem:[%s1123 + $0x1c] sm:$0xf]
      %v1132 = vld [vmem:[%s1123 + $0x20] sm:$0xf]
      %v1133 = vld [vmem:[%s1123 + $0x24] sm:$0xf]
      %v1134 = vld [vmem:[%s1123 + $0x28] sm:$0xf]
      %v1135 = vld [vmem:[%s1123 + $0x2c] sm:$0xf]
      %v1136 = vld [vmem:[%s1123 + $0x30] sm:$0xf]
      %v1137 = vld [vmem:[%s1123 + $0x34] sm:$0xf]
      %v1138 = vld [vmem:[%s1123 + $0x38] sm:$0xf]
      %v1139 = vld [vmem:[%s1123 + $0x3c] sm:$0xf]
      %v1156 = vunpack.c.l.b16 %v1124
      %v1157 = vunpack.c.l.b16 %v1125
      %v1158 = vunpack.c.l.b16 %v1126
      %v1159 = vunpack.c.l.b16 %v1127
      %v1160 = vunpack.c.l.b16 %v1128
      %v1161 = vunpack.c.l.b16 %v1129
      %v1162 = vunpack.c.l.b16 %v1130
      %v1163 = vunpack.c.l.b16 %v1131
      %v1164 = vunpack.c.l.b16 %v1132
      %v1165 = vunpack.c.l.b16 %v1133
      %v1166 = vunpack.c.l.b16 %v1134
      %v1167 = vunpack.c.l.b16 %v1135
      %v1168 = vunpack.c.l.b16 %v1136
      %v1169 = vunpack.c.l.b16 %v1137
      %v1170 = vunpack.c.l.b16 %v1138
      %v1171 = vunpack.c.l.b16 %v1139
      %v1172 = vpack.c.b16 %v1157, %v1156
      %v1173 = vpack.c.b16 %v1159, %v1158
      %v1174 = vpack.c.b16 %v1161, %v1160
      %v1175 = vpack.c.b16 %v1163, %v1162
      %v1176 = vpack.c.b16 %v1165, %v1164
      %v1177 = vpack.c.b16 %v1167, %v1166
      %v1178 = vpack.c.b16 %v1169, %v1168
      %v1179 = vpack.c.b16 %v1171, %v1170
      %1188 = vmatpush.bf16.msra.mxu0 %v1179
      %1189 = vmatpush.bf16.msra.mxu0 %v1178
      %1190 = vmatpush.bf16.msra.mxu0 %v1177
      %1191 = vmatpush.bf16.msra.mxu0 %v1176
      %1192 = vmatpush.bf16.msra.mxu0 %v1175
      %1193 = vmatpush.bf16.msra.mxu0 %v1174
      %1194 = vmatpush.bf16.msra.mxu0 %v1173
      %1195 = vmatpush.bf16.msra.mxu0 %v1172
      %1196 = vmatmul.bf16.gmra.mxu0 %v1115
      %v1197 = vpop.f32.mrf.mxu0
      %v1198 = vadd.f32 0.0, %v1197
      %v1199 = vpop.f32.mrf.mxu0
      %v1200 = vadd.f32 0.0, %v1199
      %1201 = vmatmul.bf16.gmra.mxu0 %v1116
      %v1202 = vpop.f32.mrf.mxu0
      %v1203 = vadd.f32 0.0, %v1202
      %v1204 = vpop.f32.mrf.mxu0
      %v1205 = vadd.f32 0.0, %v1204
      %1206 = vmatmul.bf16.gmra.mxu0 %v1117
      %v1207 = vpop.f32.mrf.mxu0
      %v1208 = vadd.f32 0.0, %v1207
      %v1209 = vpop.f32.mrf.mxu0
      %v1210 = vadd.f32 0.0, %v1209
      %1211 = vmatmul.bf16.gmra.mxu0 %v1118
      %v1212 = vpop.f32.mrf.mxu0
      %v1213 = vadd.f32 0.0, %v1212
      %v1214 = vpop.f32.mrf.mxu0
      %v1215 = vadd.f32 0.0, %v1214
      %1216 = vmatmul.bf16.gmra.mxu0 %v1119
      %v1217 = vpop.f32.mrf.mxu0
      %v1218 = vadd.f32 0.0, %v1217
      %v1219 = vpop.f32.mrf.mxu0
      %v1220 = vadd.f32 0.0, %v1219
      %1221 = vmatmul.bf16.gmra.mxu0 %v1120
      %v1222 = vpop.f32.mrf.mxu0
      %v1223 = vadd.f32 0.0, %v1222
      %v1224 = vpop.f32.mrf.mxu0
      %v1225 = vadd.f32 0.0, %v1224
      %1226 = vmatmul.bf16.gmra.mxu0 %v1121
      %v1227 = vpop.f32.mrf.mxu0
      %v1228 = vadd.f32 0.0, %v1227
      %v1229 = vpop.f32.mrf.mxu0
      %v1230 = vadd.f32 0.0, %v1229
      %1231 = vmatmul.bf16.gmra.mxu0 %v1122
      %v1232 = vpop.f32.mrf.mxu0
      %v1233 = vadd.f32 0.0, %v1232
      %v1234 = vpop.f32.mrf.mxu0
      %v1235 = vadd.f32 0.0, %v1234
      %1236 = vdwg.mxu0
      %v1237 = vadd.f32 %v1081, %v1198
      %v1238 = vadd.f32 %v1082, %v1200
      %v1239 = vadd.f32 %v1083, %v1203
      %v1240 = vadd.f32 %v1084, %v1205
      %v1241 = vadd.f32 %v1085, %v1208
      %v1242 = vadd.f32 %v1086, %v1210
      %v1243 = vadd.f32 %v1087, %v1213
      %v1244 = vadd.f32 %v1088, %v1215
      %v1245 = vadd.f32 %v1089, %v1218
      %v1246 = vadd.f32 %v1090, %v1220
      %v1247 = vadd.f32 %v1091, %v1223
      %v1248 = vadd.f32 %v1092, %v1225
      %v1249 = vadd.f32 %v1093, %v1228
      %v1250 = vadd.f32 %v1094, %v1230
      %v1251 = vadd.f32 %v1095, %v1233
      %v1252 = vadd.f32 %v1096, %v1235
      %s1253 = sadd.s32 %s194, 37
      %s1254 = scalar_lea.vmem %s183, %s1253
      %v1255 = vld [vmem:[%s1254] sm:$0xff]
      %v1256 = vld [vmem:[%s1254 + $0x8] sm:$0xff]
      %v1257 = vld [vmem:[%s1254 + $0x10] sm:$0xff]
      %v1258 = vld [vmem:[%s1254 + $0x18] sm:$0xff]
      %v1259 = vld [vmem:[%s1254 + $0x20] sm:$0xff]
      %v1260 = vld [vmem:[%s1254 + $0x28] sm:$0xff]
      %v1261 = vld [vmem:[%s1254 + $0x30] sm:$0xff]
      %v1262 = vld [vmem:[%s1254 + $0x38] sm:$0xff]
      %v1263 = vld [vmem:[%s1254 + $0x40] sm:$0xff]
      %v1264 = vld [vmem:[%s1254 + $0x48] sm:$0xff]
      %v1265 = vld [vmem:[%s1254 + $0x50] sm:$0xff]
      %v1266 = vld [vmem:[%s1254 + $0x58] sm:$0xff]
      %v1267 = vld [vmem:[%s1254 + $0x60] sm:$0xff]
      %v1268 = vld [vmem:[%s1254 + $0x68] sm:$0xff]
      %v1269 = vld [vmem:[%s1254 + $0x70] sm:$0xff]
      %v1270 = vld [vmem:[%s1254 + $0x78] sm:$0xff]
      %v1271 = vpack.c.bf16 %v1256, %v1255
      %v1272 = vpack.c.bf16 %v1258, %v1257
      %v1273 = vpack.c.bf16 %v1260, %v1259
      %v1274 = vpack.c.bf16 %v1262, %v1261
      %v1275 = vpack.c.bf16 %v1264, %v1263
      %v1276 = vpack.c.bf16 %v1266, %v1265
      %v1277 = vpack.c.bf16 %v1268, %v1267
      %v1278 = vpack.c.bf16 %v1270, %v1269
      %s1279 = scalar_lea.vmem %s1, 448
      %v1280 = vld [vmem:[%s1279] sm:$0xf]
      %v1281 = vld [vmem:[%s1279 + $0x4] sm:$0xf]
      %v1282 = vld [vmem:[%s1279 + $0x8] sm:$0xf]
      %v1283 = vld [vmem:[%s1279 + $0xc] sm:$0xf]
      %v1284 = vld [vmem:[%s1279 + $0x10] sm:$0xf]
      %v1285 = vld [vmem:[%s1279 + $0x14] sm:$0xf]
      %v1286 = vld [vmem:[%s1279 + $0x18] sm:$0xf]
      %v1287 = vld [vmem:[%s1279 + $0x1c] sm:$0xf]
      %v1288 = vld [vmem:[%s1279 + $0x20] sm:$0xf]
      %v1289 = vld [vmem:[%s1279 + $0x24] sm:$0xf]
      %v1290 = vld [vmem:[%s1279 + $0x28] sm:$0xf]
      %v1291 = vld [vmem:[%s1279 + $0x2c] sm:$0xf]
      %v1292 = vld [vmem:[%s1279 + $0x30] sm:$0xf]
      %v1293 = vld [vmem:[%s1279 + $0x34] sm:$0xf]
      %v1294 = vld [vmem:[%s1279 + $0x38] sm:$0xf]
      %v1295 = vld [vmem:[%s1279 + $0x3c] sm:$0xf]
      %v1312 = vunpack.c.l.b16 %v1280
      %v1313 = vunpack.c.l.b16 %v1281
      %v1314 = vunpack.c.l.b16 %v1282
      %v1315 = vunpack.c.l.b16 %v1283
      %v1316 = vunpack.c.l.b16 %v1284
      %v1317 = vunpack.c.l.b16 %v1285
      %v1318 = vunpack.c.l.b16 %v1286
      %v1319 = vunpack.c.l.b16 %v1287
      %v1320 = vunpack.c.l.b16 %v1288
      %v1321 = vunpack.c.l.b16 %v1289
      %v1322 = vunpack.c.l.b16 %v1290
      %v1323 = vunpack.c.l.b16 %v1291
      %v1324 = vunpack.c.l.b16 %v1292
      %v1325 = vunpack.c.l.b16 %v1293
      %v1326 = vunpack.c.l.b16 %v1294
      %v1327 = vunpack.c.l.b16 %v1295
      %v1328 = vpack.c.b16 %v1313, %v1312
      %v1329 = vpack.c.b16 %v1315, %v1314
      %v1330 = vpack.c.b16 %v1317, %v1316
      %v1331 = vpack.c.b16 %v1319, %v1318
      %v1332 = vpack.c.b16 %v1321, %v1320
      %v1333 = vpack.c.b16 %v1323, %v1322
      %v1334 = vpack.c.b16 %v1325, %v1324
      %v1335 = vpack.c.b16 %v1327, %v1326
      %1344 = vmatpush.bf16.msra.mxu0 %v1335
      %1345 = vmatpush.bf16.msra.mxu0 %v1334
      %1346 = vmatpush.bf16.msra.mxu0 %v1333
      %1347 = vmatpush.bf16.msra.mxu0 %v1332
      %1348 = vmatpush.bf16.msra.mxu0 %v1331
      %1349 = vmatpush.bf16.msra.mxu0 %v1330
      %1350 = vmatpush.bf16.msra.mxu0 %v1329
      %1351 = vmatpush.bf16.msra.mxu0 %v1328
      %1352 = vmatmul.bf16.gmra.mxu0 %v1271
      %v1353 = vpop.f32.mrf.mxu0
      %v1354 = vadd.f32 0.0, %v1353
      %v1355 = vpop.f32.mrf.mxu0
      %v1356 = vadd.f32 0.0, %v1355
      %1357 = vmatmul.bf16.gmra.mxu0 %v1272
      %v1358 = vpop.f32.mrf.mxu0
      %v1359 = vadd.f32 0.0, %v1358
      %v1360 = vpop.f32.mrf.mxu0
      %v1361 = vadd.f32 0.0, %v1360
      %1362 = vmatmul.bf16.gmra.mxu0 %v1273
      %v1363 = vpop.f32.mrf.mxu0
      %v1364 = vadd.f32 0.0, %v1363
      %v1365 = vpop.f32.mrf.mxu0
      %v1366 = vadd.f32 0.0, %v1365
      %1367 = vmatmul.bf16.gmra.mxu0 %v1274
      %v1368 = vpop.f32.mrf.mxu0
      %v1369 = vadd.f32 0.0, %v1368
      %v1370 = vpop.f32.mrf.mxu0
      %v1371 = vadd.f32 0.0, %v1370
      %1372 = vmatmul.bf16.gmra.mxu0 %v1275
      %v1373 = vpop.f32.mrf.mxu0
      %v1374 = vadd.f32 0.0, %v1373
      %v1375 = vpop.f32.mrf.mxu0
      %v1376 = vadd.f32 0.0, %v1375
      %1377 = vmatmul.bf16.gmra.mxu0 %v1276
      %v1378 = vpop.f32.mrf.mxu0
      %v1379 = vadd.f32 0.0, %v1378
      %v1380 = vpop.f32.mrf.mxu0
      %v1381 = vadd.f32 0.0, %v1380
      %1382 = vmatmul.bf16.gmra.mxu0 %v1277
      %v1383 = vpop.f32.mrf.mxu0
      %v1384 = vadd.f32 0.0, %v1383
      %v1385 = vpop.f32.mrf.mxu0
      %v1386 = vadd.f32 0.0, %v1385
      %1387 = vmatmul.bf16.gmra.mxu0 %v1278
      %v1388 = vpop.f32.mrf.mxu0
      %v1389 = vadd.f32 0.0, %v1388
      %v1390 = vpop.f32.mrf.mxu0
      %v1391 = vadd.f32 0.0, %v1390
      %1392 = vdwg.mxu0
      %v1393 = vadd.f32 %v1237, %v1354
      %v1394 = vadd.f32 %v1238, %v1356
      %v1395 = vadd.f32 %v1239, %v1359
      %v1396 = vadd.f32 %v1240, %v1361
      %v1397 = vadd.f32 %v1241, %v1364
      %v1398 = vadd.f32 %v1242, %v1366
      %v1399 = vadd.f32 %v1243, %v1369
      %v1400 = vadd.f32 %v1244, %v1371
      %v1401 = vadd.f32 %v1245, %v1374
      %v1402 = vadd.f32 %v1246, %v1376
      %v1403 = vadd.f32 %v1247, %v1379
      %v1404 = vadd.f32 %v1248, %v1381
      %v1405 = vadd.f32 %v1249, %v1384
      %v1406 = vadd.f32 %v1250, %v1386
      %v1407 = vadd.f32 %v1251, %v1389
      %v1408 = vadd.f32 %v1252, %v1391
      %s1409 = sadd.s32 %s194, 38
      %s1410 = scalar_lea.vmem %s183, %s1409
      %v1411 = vld [vmem:[%s1410] sm:$0xff]
      %v1412 = vld [vmem:[%s1410 + $0x8] sm:$0xff]
      %v1413 = vld [vmem:[%s1410 + $0x10] sm:$0xff]
      %v1414 = vld [vmem:[%s1410 + $0x18] sm:$0xff]
      %v1415 = vld [vmem:[%s1410 + $0x20] sm:$0xff]
      %v1416 = vld [vmem:[%s1410 + $0x28] sm:$0xff]
      %v1417 = vld [vmem:[%s1410 + $0x30] sm:$0xff]
      %v1418 = vld [vmem:[%s1410 + $0x38] sm:$0xff]
      %v1419 = vld [vmem:[%s1410 + $0x40] sm:$0xff]
      %v1420 = vld [vmem:[%s1410 + $0x48] sm:$0xff]
      %v1421 = vld [vmem:[%s1410 + $0x50] sm:$0xff]
      %v1422 = vld [vmem:[%s1410 + $0x58] sm:$0xff]
      %v1423 = vld [vmem:[%s1410 + $0x60] sm:$0xff]
      %v1424 = vld [vmem:[%s1410 + $0x68] sm:$0xff]
      %v1425 = vld [vmem:[%s1410 + $0x70] sm:$0xff]
      %v1426 = vld [vmem:[%s1410 + $0x78] sm:$0xff]
      %v1427 = vpack.c.bf16 %v1412, %v1411
      %v1428 = vpack.c.bf16 %v1414, %v1413
      %v1429 = vpack.c.bf16 %v1416, %v1415
      %v1430 = vpack.c.bf16 %v1418, %v1417
      %v1431 = vpack.c.bf16 %v1420, %v1419
      %v1432 = vpack.c.bf16 %v1422, %v1421
      %v1433 = vpack.c.bf16 %v1424, %v1423
      %v1434 = vpack.c.bf16 %v1426, %v1425
      %s1435 = scalar_lea.vmem %s1, 512
      %v1436 = vld [vmem:[%s1435] sm:$0xf]
      %v1437 = vld [vmem:[%s1435 + $0x4] sm:$0xf]
      %v1438 = vld [vmem:[%s1435 + $0x8] sm:$0xf]
      %v1439 = vld [vmem:[%s1435 + $0xc] sm:$0xf]
      %v1440 = vld [vmem:[%s1435 + $0x10] sm:$0xf]
      %v1441 = vld [vmem:[%s1435 + $0x14] sm:$0xf]
      %v1442 = vld [vmem:[%s1435 + $0x18] sm:$0xf]
      %v1443 = vld [vmem:[%s1435 + $0x1c] sm:$0xf]
      %v1444 = vld [vmem:[%s1435 + $0x20] sm:$0xf]
      %v1445 = vld [vmem:[%s1435 + $0x24] sm:$0xf]
      %v1446 = vld [vmem:[%s1435 + $0x28] sm:$0xf]
      %v1447 = vld [vmem:[%s1435 + $0x2c] sm:$0xf]
      %v1448 = vld [vmem:[%s1435 + $0x30] sm:$0xf]
      %v1449 = vld [vmem:[%s1435 + $0x34] sm:$0xf]
      %v1450 = vld [vmem:[%s1435 + $0x38] sm:$0xf]
      %v1451 = vld [vmem:[%s1435 + $0x3c] sm:$0xf]
      %v1468 = vunpack.c.l.b16 %v1436
      %v1469 = vunpack.c.l.b16 %v1437
      %v1470 = vunpack.c.l.b16 %v1438
      %v1471 = vunpack.c.l.b16 %v1439
      %v1472 = vunpack.c.l.b16 %v1440
      %v1473 = vunpack.c.l.b16 %v1441
      %v1474 = vunpack.c.l.b16 %v1442
      %v1475 = vunpack.c.l.b16 %v1443
      %v1476 = vunpack.c.l.b16 %v1444
      %v1477 = vunpack.c.l.b16 %v1445
      %v1478 = vunpack.c.l.b16 %v1446
      %v1479 = vunpack.c.l.b16 %v1447
      %v1480 = vunpack.c.l.b16 %v1448
      %v1481 = vunpack.c.l.b16 %v1449
      %v1482 = vunpack.c.l.b16 %v1450
      %v1483 = vunpack.c.l.b16 %v1451
      %v1484 = vpack.c.b16 %v1469, %v1468
      %v1485 = vpack.c.b16 %v1471, %v1470
      %v1486 = vpack.c.b16 %v1473, %v1472
      %v1487 = vpack.c.b16 %v1475, %v1474
      %v1488 = vpack.c.b16 %v1477, %v1476
      %v1489 = vpack.c.b16 %v1479, %v1478
      %v1490 = vpack.c.b16 %v1481, %v1480
      %v1491 = vpack.c.b16 %v1483, %v1482
      %1500 = vmatpush.bf16.msra.mxu0 %v1491
      %1501 = vmatpush.bf16.msra.mxu0 %v1490
      %1502 = vmatpush.bf16.msra.mxu0 %v1489
      %1503 = vmatpush.bf16.msra.mxu0 %v1488
      %1504 = vmatpush.bf16.msra.mxu0 %v1487
      %1505 = vmatpush.bf16.msra.mxu0 %v1486
      %1506 = vmatpush.bf16.msra.mxu0 %v1485
      %1507 = vmatpush.bf16.msra.mxu0 %v1484
      %1508 = vmatmul.bf16.gmra.mxu0 %v1427
      %v1509 = vpop.f32.mrf.mxu0
      %v1510 = vadd.f32 0.0, %v1509
      %v1511 = vpop.f32.mrf.mxu0
      %v1512 = vadd.f32 0.0, %v1511
      %1513 = vmatmul.bf16.gmra.mxu0 %v1428
      %v1514 = vpop.f32.mrf.mxu0
      %v1515 = vadd.f32 0.0, %v1514
      %v1516 = vpop.f32.mrf.mxu0
      %v1517 = vadd.f32 0.0, %v1516
      %1518 = vmatmul.bf16.gmra.mxu0 %v1429
      %v1519 = vpop.f32.mrf.mxu0
      %v1520 = vadd.f32 0.0, %v1519
      %v1521 = vpop.f32.mrf.mxu0
      %v1522 = vadd.f32 0.0, %v1521
      %1523 = vmatmul.bf16.gmra.mxu0 %v1430
      %v1524 = vpop.f32.mrf.mxu0
      %v1525 = vadd.f32 0.0, %v1524
      %v1526 = vpop.f32.mrf.mxu0
      %v1527 = vadd.f32 0.0, %v1526
      %1528 = vmatmul.bf16.gmra.mxu0 %v1431
      %v1529 = vpop.f32.mrf.mxu0
      %v1530 = vadd.f32 0.0, %v1529
      %v1531 = vpop.f32.mrf.mxu0
      %v1532 = vadd.f32 0.0, %v1531
      %1533 = vmatmul.bf16.gmra.mxu0 %v1432
      %v1534 = vpop.f32.mrf.mxu0
      %v1535 = vadd.f32 0.0, %v1534
      %v1536 = vpop.f32.mrf.mxu0
      %v1537 = vadd.f32 0.0, %v1536
      %1538 = vmatmul.bf16.gmra.mxu0 %v1433
      %v1539 = vpop.f32.mrf.mxu0
      %v1540 = vadd.f32 0.0, %v1539
      %v1541 = vpop.f32.mrf.mxu0
      %v1542 = vadd.f32 0.0, %v1541
      %1543 = vmatmul.bf16.gmra.mxu0 %v1434
      %v1544 = vpop.f32.mrf.mxu0
      %v1545 = vadd.f32 0.0, %v1544
      %v1546 = vpop.f32.mrf.mxu0
      %v1547 = vadd.f32 0.0, %v1546
      %1548 = vdwg.mxu0
      %v1549 = vadd.f32 %v1393, %v1510
      %v1550 = vadd.f32 %v1394, %v1512
      %v1551 = vadd.f32 %v1395, %v1515
      %v1552 = vadd.f32 %v1396, %v1517
      %v1553 = vadd.f32 %v1397, %v1520
      %v1554 = vadd.f32 %v1398, %v1522
      %v1555 = vadd.f32 %v1399, %v1525
      %v1556 = vadd.f32 %v1400, %v1527
      %v1557 = vadd.f32 %v1401, %v1530
      %v1558 = vadd.f32 %v1402, %v1532
      %v1559 = vadd.f32 %v1403, %v1535
      %v1560 = vadd.f32 %v1404, %v1537
      %v1561 = vadd.f32 %v1405, %v1540
      %v1562 = vadd.f32 %v1406, %v1542
      %v1563 = vadd.f32 %v1407, %v1545
      %v1564 = vadd.f32 %v1408, %v1547
      %v1565 = vld [vmem:[%s2] sm:$0x1]
      %v1567 = vperm.slane %v1565, 0
      %v1569 = vadd.f32 %v1549, %v1567
      %v1570 = vadd.f32 %v1550, %v1567
      %v1571 = vadd.f32 %v1551, %v1567
      %v1572 = vadd.f32 %v1552, %v1567
      %v1573 = vadd.f32 %v1553, %v1567
      %v1574 = vadd.f32 %v1554, %v1567
      %v1575 = vadd.f32 %v1555, %v1567
      %v1576 = vadd.f32 %v1556, %v1567
      %v1577 = vadd.f32 %v1557, %v1567
      %v1578 = vadd.f32 %v1558, %v1567
      %v1579 = vadd.f32 %v1559, %v1567
      %v1580 = vadd.f32 %v1560, %v1567
      %v1581 = vadd.f32 %v1561, %v1567
      %v1582 = vadd.f32 %v1562, %v1567
      %v1583 = vadd.f32 %v1563, %v1567
      %v1584 = vadd.f32 %v1564, %v1567
      %1585 = vst [vmem:[%s192] sm:$0xff] %v1569
      %1586 = vst [vmem:[%s192 + $0x8] sm:$0xff] %v1570
      %1587 = vst [vmem:[%s192 + $0x10] sm:$0xff] %v1571
      %1588 = vst [vmem:[%s192 + $0x18] sm:$0xff] %v1572
      %1589 = vst [vmem:[%s192 + $0x20] sm:$0xff] %v1573
      %1590 = vst [vmem:[%s192 + $0x28] sm:$0xff] %v1574
      %1591 = vst [vmem:[%s192 + $0x30] sm:$0xff] %v1575
      %1592 = vst [vmem:[%s192 + $0x38] sm:$0xff] %v1576
      %1593 = vst [vmem:[%s192 + $0x40] sm:$0xff] %v1577
      %1594 = vst [vmem:[%s192 + $0x48] sm:$0xff] %v1578
      %1595 = vst [vmem:[%s192 + $0x50] sm:$0xff] %v1579
      %1596 = vst [vmem:[%s192 + $0x58] sm:$0xff] %v1580
      %1597 = vst [vmem:[%s192 + $0x60] sm:$0xff] %v1581
      %1598 = vst [vmem:[%s192 + $0x68] sm:$0xff] %v1582
      %1599 = vst [vmem:[%s192 + $0x70] sm:$0xff] %v1583
      %1600 = vst [vmem:[%s192 + $0x78] sm:$0xff] %v1584
      %s1601 = smul.u32 16, %s19
      %p1602 = scmp.lt.s32.totalorder %s18, 7
      %s1603 = scalar_select %p1602, %s18, 7
      %p1604 = scmp.lt.s32.totalorder %s1601, 47
      %s1605 = scalar_select %p1604, %s1601, 47
      %s1606 = smul.addr %s1603, 48
      %s1607 = sadd.s32 %s1605, %s1606
      %s1608 = smul.addr %s1607, 8
      %s1609 = scalar_lea.vmem %s3, %s1608
      // Predicated region
      $region33: #{noise_sequence_rnn_v3_forward.34} parent=31 // pred_check
        %p1610 = pneg %p114
      $region34: #{noise_sequence_rnn_v3_forward.34} parent=31 // pred_check_branch
        %1612 = sbr.rel (%p1610) target = $region36
      $region35: #{noise_sequence_rnn_v3_forward.34} parent=31 // pred_region
        %s1613 = smul.u32 16, %s19
      $region36: #{noise_sequence_rnn_v3_forward.34} parent=31 // pred_fallthru
        _
    $region32: #{noise_sequence_rnn_v3_forward.34} parent=5 // pred_fallthru
      _
    %p1614 = scmp.le.s32.totalorder 2, %s9
    // Predicated region
    $region37: #{noise_sequence_rnn_v3_forward.34} parent=5 // pred_check
      %p1615 = pneg %p1614
    $region38: #{noise_sequence_rnn_v3_forward.34} parent=5 // pred_check_branch
      %1617 = sbr.rel (%p1615) target = $region40
    $region39: #{noise_sequence_rnn_v3_forward.34} parent=5 // pred_region
      %s1618 = ssub.s32 %s9, 2
      // Predicated region
      $region41: #{noise_sequence_rnn_v3_forward.34} parent=39 // pred_check
        %p1619 = pneg %p120
      $region42: #{noise_sequence_rnn_v3_forward.34} parent=39 // pred_check_branch
        %1621 = sbr.rel (%p1619) target = $region44
      $region43: #{noise_sequence_rnn_v3_forward.34} parent=39 // pred_region
        %s1622 = smul.u32 16, %s21
        %p1623 = scmp.lt.s32.totalorder %s20, 7
        %s1624 = scalar_select %p1623, %s20, 7
        %p1625 = scmp.lt.s32.totalorder %s1622, 47
        %s1626 = scalar_select %p1625, %s1622, 47
        %s1627 = smul.addr %s1624, 48
        %s1628 = sadd.s32 %s1626, %s1627
        %s1629 = smul.addr %s1628, 8
        %s1630 = scalar_lea.vmem %s3, %s1629
      $region44: #{noise_sequence_rnn_v3_forward.34} parent=39 // pred_fallthru
        _
    $region40: #{noise_sequence_rnn_v3_forward.34} parent=5 // pred_fallthru
      _
  $region6: #{noise_sequence_rnn_v3_forward.34} parent=0 // loop_footer
    %s13 = sadd.s32 1, %s9
  $region7: #{noise_sequence_rnn_v3_forward.34} parent=0 // loop_footer_branch
    %8 = sbr.rel target = $region3
  $region8: #{noise_sequence_rnn_v3_forward.34} parent=0 // loop_exit
    _

// kernel: noise_sequence_rnn_v3_forward.36
$region0: #{noise_sequence_rnn_v3_forward.36}
  #allocation0 [shape = 'u32[]', space=smem, size = 0x4, offset = 0x4, fixed_abs, tag = 'smem constant byte address 0x4 - core index']
  #allocation1 [shape = 'u32[72,128]{1,0:T(1,128)}', space=vmem, size = 0x9000, scoped, tag = 'internal scratch']
  %s0 = inlined_call_operand.vmem [shape: f32[8,256,128], index: 0, kind: input, shape index: {}]
  %s1 = inlined_call_operand.vmem [shape: f32[1,128], index: 1, kind: input, shape index: {}]
  %s2 = inlined_call_operand.vmem [shape: f32[1,128], index: 2, kind: input, shape index: {}]
  %s3 = inlined_call_operand.vmem [shape: f32[128,128], index: 3, kind: input, shape index: {}]
  %s4 = inlined_call_operand.vmem [shape: f32[128,128], index: 4, kind: input, shape index: {}]
  %s5 = inlined_call_operand.vmem [shape: f32[8,256,128], index: 5, kind: output, shape index: {}]
  %s6 = sld [smem:[#allocation0]]
  $region53: #{noise_sequence_rnn_v3_forward.36} parent=0
    _
  %s8 = ssub.s32 1, %s6
  %s9 = scalar_select 0, %s8, %s6
  loop: start=0, step=1, limit=10
  $region2: #{noise_sequence_rnn_v3_forward.36} parent=0 // loop_pre_header
    _
  $region3: #{noise_sequence_rnn_v3_forward.36} parent=0 // loop_header
    %s11 = sphi 0, %s15
    %p12 = scmp.ge.s32.totalorder %s11, 10
    %s21 = sphi 0, %s23
    %s24 = sphi 0, %s21
    %s25 = sphi 0, %s24
    %s41 = sphi 0, %s25
    %s45 = sphi 0, %s45
    %s47 = sphi 0, %s45
    %s48 = sphi 0, %s47
    %s62 = sphi 0, %s48
    %s66 = sphi 0, %s66
    %s68 = sphi 0, %s66
    %s69 = sphi 0, %s68
    %s83 = sphi 0, %s69
    %s87 = sphi 0, %s87
    %s89 = sphi 0, %s87
    %s90 = sphi 0, %s89
    %s104 = sphi 0, %s90
    %s108 = sphi 0, %s108
    %s110 = sphi 0, %s108
    %s111 = sphi 0, %s110
    %s125 = sphi 0, %s111
    %s131 = sphi 0, %s133
    %s134 = sphi 0, %s131
    %s135 = sphi 0, %s134
    %s151 = sphi 0, %s135
  $region4: #{noise_sequence_rnn_v3_forward.36} parent=0 // loop_header_branch
    %14 = sbr.rel (%p12) target = $region8
  $region5: #{noise_sequence_rnn_v3_forward.36} parent=0 // loop_body
    %s16 = ssub.s32 %s11, 1
    %s17 = ssub.s32 %s11, 2
    %s18 = sadd.s32 %s11, 1
    %s19 = ssub.s32 %s11, %s18
    %p20 = scmp.eq.s32.totalorder %s19, 0
    %s22 = sadd.s32 %s21, 1
    %s23 = scalar_select %p20, %s21, %s22
    %p26 = pneg %p20
    %p27 = scmp.eq.s32.totalorder %s11, 7
    %p28 = por %p26, %p27
    %p29 = scmp.ne.s32.totalorder %s21, %s24
    %p30 = scmp.eq.s32.totalorder %s11, 0
    %p31 = por %p29, %p30
    %p32 = scmp.ne.s32.totalorder %s21, %s24
    %p33 = scmp.eq.s32.totalorder %s16, 7
    %p34 = por %p32, %p33
    %p35 = scmp.ne.s32.totalorder %s24, %s25
    %p36 = scmp.eq.s32.totalorder %s16, 0
    %p37 = por %p35, %p36
    %p38 = scmp.ne.s32.totalorder %s24, %s25
    %p39 = scmp.eq.s32.totalorder %s17, 7
    %p40 = por %p38, %p39
    %p42 = scmp.ne.s32.totalorder %s25, %s41
    %p43 = scmp.eq.s32.totalorder %s17, 0
    %p44 = por %p42, %p43
    %s46 = sadd.s32 %s45, 1
    %p49 = scmp.eq.s32.totalorder %s11, 7
    %p50 = scmp.ne.s32.totalorder %s45, %s47
    %p51 = scmp.eq.s32.totalorder %s11, 0
    %p52 = por %p50, %p51
    %p53 = scmp.ne.s32.totalorder %s45, %s47
    %p54 = scmp.eq.s32.totalorder %s16, 7
    %p55 = por %p53, %p54
    %p56 = scmp.ne.s32.totalorder %s47, %s48
    %p57 = scmp.eq.s32.totalorder %s16, 0
    %p58 = por %p56, %p57
    %p59 = scmp.ne.s32.totalorder %s47, %s48
    %p60 = scmp.eq.s32.totalorder %s17, 7
    %p61 = por %p59, %p60
    %p63 = scmp.ne.s32.totalorder %s48, %s62
    %p64 = scmp.eq.s32.totalorder %s17, 0
    %p65 = por %p63, %p64
    %s67 = sadd.s32 %s66, 1
    %p70 = scmp.eq.s32.totalorder %s11, 7
    %p71 = scmp.ne.s32.totalorder %s66, %s68
    %p72 = scmp.eq.s32.totalorder %s11, 0
    %p73 = por %p71, %p72
    %p74 = scmp.ne.s32.totalorder %s66, %s68
    %p75 = scmp.eq.s32.totalorder %s16, 7
    %p76 = por %p74, %p75
    %p77 = scmp.ne.s32.totalorder %s68, %s69
    %p78 = scmp.eq.s32.totalorder %s16, 0
    %p79 = por %p77, %p78
    %p80 = scmp.ne.s32.totalorder %s68, %s69
    %p81 = scmp.eq.s32.totalorder %s17, 7
    %p82 = por %p80, %p81
    %p84 = scmp.ne.s32.totalorder %s69, %s83
    %p85 = scmp.eq.s32.totalorder %s17, 0
    %p86 = por %p84, %p85
    %s88 = sadd.s32 %s87, 1
    %p91 = scmp.eq.s32.totalorder %s11, 7
    %p92 = scmp.ne.s32.totalorder %s87, %s89
    %p93 = scmp.eq.s32.totalorder %s11, 0
    %p94 = por %p92, %p93
    %p95 = scmp.ne.s32.totalorder %s87, %s89
    %p96 = scmp.eq.s32.totalorder %s16, 7
    %p97 = por %p95, %p96
    %p98 = scmp.ne.s32.totalorder %s89, %s90
    %p99 = scmp.eq.s32.totalorder %s16, 0
    %p100 = por %p98, %p99
    %p101 = scmp.ne.s32.totalorder %s89, %s90
    %p102 = scmp.eq.s32.totalorder %s17, 7
    %p103 = por %p101, %p102
    %p105 = scmp.ne.s32.totalorder %s90, %s104
    %p106 = scmp.eq.s32.totalorder %s17, 0
    %p107 = por %p105, %p106
    %s109 = sadd.s32 %s108, 1
    %p112 = scmp.eq.s32.totalorder %s11, 7
    %p113 = scmp.ne.s32.totalorder %s108, %s110
    %p114 = scmp.eq.s32.totalorder %s11, 0
    %p115 = por %p113, %p114
    %p116 = scmp.ne.s32.totalorder %s108, %s110
    %p117 = scmp.eq.s32.totalorder %s16, 7
    %p118 = por %p116, %p117
    %p119 = scmp.ne.s32.totalorder %s110, %s111
    %p120 = scmp.eq.s32.totalorder %s16, 0
    %p121 = por %p119, %p120
    %p122 = scmp.ne.s32.totalorder %s110, %s111
    %p123 = scmp.eq.s32.totalorder %s17, 7
    %p124 = por %p122, %p123
    %p126 = scmp.ne.s32.totalorder %s111, %s125
    %p127 = scmp.eq.s32.totalorder %s17, 0
    %p128 = por %p126, %p127
    %s129 = ssub.s32 %s11, %s18
    %p130 = scmp.eq.s32.totalorder %s129, 0
    %s132 = sadd.s32 %s131, 1
    %s133 = scalar_select %p130, %s131, %s132
    %p136 = pneg %p130
    %p137 = scmp.eq.s32.totalorder %s11, 7
    %p138 = por %p136, %p137
    %p139 = scmp.ne.s32.totalorder %s131, %s134
    %p140 = scmp.eq.s32.totalorder %s11, 0
    %p141 = por %p139, %p140
    %p142 = scmp.ne.s32.totalorder %s131, %s134
    %p143 = scmp.eq.s32.totalorder %s16, 7
    %p144 = por %p142, %p143
    %p145 = scmp.ne.s32.totalorder %s134, %s135
    %p146 = scmp.eq.s32.totalorder %s16, 0
    %p147 = por %p145, %p146
    %p148 = scmp.ne.s32.totalorder %s134, %s135
    %p149 = scmp.eq.s32.totalorder %s17, 7
    %p150 = por %p148, %p149
    %p152 = scmp.ne.s32.totalorder %s135, %s151
    %p153 = scmp.eq.s32.totalorder %s17, 0
    %p154 = por %p152, %p153
    %p155 = scmp.le.s32.totalorder 1, %s11
    %p156 = scmp.lt.s32.totalorder %s11, 9
    %p157 = pnand %p155, %p156
    %p158 = pneg %p157
    // Predicated region
    $region9: #{noise_sequence_rnn_v3_forward.36} parent=5 // pred_check
      _
    $region10: #{noise_sequence_rnn_v3_forward.36} parent=5 // pred_check_branch
      %160 = sbr.rel (%p157) target = $region12
    $region11: #{noise_sequence_rnn_v3_forward.36} parent=5 // pred_region
      %s161 = ssub.s32 %s11, 1
      // Predicated region
      $region13: #{noise_sequence_rnn_v3_forward.36} parent=11 // pred_check
        %p162 = pneg %p58
      $region14: #{noise_sequence_rnn_v3_forward.36} parent=11 // pred_check_branch
        %164 = sbr.rel (%p162) target = $region16
      $region15: #{noise_sequence_rnn_v3_forward.36} parent=11 // pred_region
        _
      $region16: #{noise_sequence_rnn_v3_forward.36} parent=11 // pred_fallthru
        _
      // Predicated region
      $region17: #{noise_sequence_rnn_v3_forward.36} parent=11 // pred_check
        %p165 = pneg %p79
      $region18: #{noise_sequence_rnn_v3_forward.36} parent=11 // pred_check_branch
        %167 = sbr.rel (%p165) target = $region20
      $region19: #{noise_sequence_rnn_v3_forward.36} parent=11 // pred_region
        _
      $region20: #{noise_sequence_rnn_v3_forward.36} parent=11 // pred_fallthru
        _
      // Predicated region
      $region21: #{noise_sequence_rnn_v3_forward.36} parent=11 // pred_check
        %p168 = pneg %p100
      $region22: #{noise_sequence_rnn_v3_forward.36} parent=11 // pred_check_branch
        %170 = sbr.rel (%p168) target = $region24
      $region23: #{noise_sequence_rnn_v3_forward.36} parent=11 // pred_region
        _
      $region24: #{noise_sequence_rnn_v3_forward.36} parent=11 // pred_fallthru
        _
      // Predicated region
      $region25: #{noise_sequence_rnn_v3_forward.36} parent=11 // pred_check
        %p171 = pneg %p121
      $region26: #{noise_sequence_rnn_v3_forward.36} parent=11 // pred_check_branch
        %173 = sbr.rel (%p171) target = $region28
      $region27: #{noise_sequence_rnn_v3_forward.36} parent=11 // pred_region
        _
      $region28: #{noise_sequence_rnn_v3_forward.36} parent=11 // pred_fallthru
        _
    $region12: #{noise_sequence_rnn_v3_forward.36} parent=5 // pred_fallthru
      _
    %p174 = scmp.lt.s32.totalorder %s11, 8
    // Predicated region
    $region29: #{noise_sequence_rnn_v3_forward.36} parent=5 // pred_check
      %p175 = pneg %p174
    $region30: #{noise_sequence_rnn_v3_forward.36} parent=5 // pred_check_branch
      %177 = sbr.rel (%p175) target = $region32
    $region31: #{noise_sequence_rnn_v3_forward.36} parent=5 // pred_region
      // Predicated region
      $region33: #{noise_sequence_rnn_v3_forward.36} parent=31 // pred_check
        %p178 = pneg %p31
      $region34: #{noise_sequence_rnn_v3_forward.36} parent=31 // pred_check_branch
        %180 = sbr.rel (%p178) target = $region36
      $region35: #{noise_sequence_rnn_v3_forward.36} parent=31 // pred_region
        %p181 = scmp.lt.s32.totalorder %s11, 7
        %s182 = scalar_select %p181, %s11, 7
        %s183 = smul.addr %s182, 32
        %s184 = smul.addr %s183, 8
        %s185 = scalar_lea.vmem %s0, %s184
      $region36: #{noise_sequence_rnn_v3_forward.36} parent=31 // pred_fallthru
        _
    $region32: #{noise_sequence_rnn_v3_forward.36} parent=5 // pred_fallthru
      _
    %p186 = scmp.le.s32.totalorder 1, %s11
    %p187 = scmp.lt.s32.totalorder %s11, 9
    %p188 = pnand %p186, %p187
    %p189 = pneg %p188
    // Predicated region
    $region37: #{noise_sequence_rnn_v3_forward.36} parent=5 // pred_check
      _
    $region38: #{noise_sequence_rnn_v3_forward.36} parent=5 // pred_check_branch
      %191 = sbr.rel (%p188) target = $region40
    $region39: #{noise_sequence_rnn_v3_forward.36} parent=5 // pred_region
      %s192 = ssub.s32 %s11, 1
      %p193 = scmp.lt.s32.totalorder %s16, 7
      %s194 = scalar_select %p193, %s16, 7
      %s195 = smul.addr %s194, 32
      %s196 = smul.addr %s195, 8
      %s197 = scalar_lea.vmem %s0, %s196
      %p198 = pneg %p37
      %p199 = pneg %p34
      %p200 = pneg %p58
      %p201 = pneg %p55
      %p202 = pneg %p79
      %p203 = pneg %p76
      %p204 = pneg %p100
      %p205 = pneg %p97
      %p206 = pneg %p121
      %p207 = pneg %p118
      %p208 = pneg %p147
      %p209 = pneg %p144
      %p210 = scmp.lt.s32.totalorder %s16, 7
      %s211 = scalar_select %p210, %s16, 7
      %s212 = smul.addr %s211, 32
      %s213 = smul.addr %s212, 8
      %s214 = scalar_lea.vmem %s5, %s213
      %p215 = scmp.lt.s32.totalorder %s16, 7
      %s216 = scalar_select %p215, %s16, 7
      %s217 = smul.addr %s216, 32
      %s218 = smul.addr %s217, 8
      %s219 = scalar_lea.vmem %s0, %s218
      %p220 = scmp.lt.s32.totalorder %s16, 7
      %s221 = scalar_select %p220, %s16, 7
      %s222 = smul.addr %s221, 32
      %s223 = smul.addr %s222, 8
      %s224 = scalar_lea.vmem %s5, %s223
      %v225 = vld [vmem:[%s219] sm:$0xff]
      %v226 = vld [vmem:[%s219 + $0x8] sm:$0xff]
      %v227 = vld [vmem:[%s219 + $0x10] sm:$0xff]
      %v228 = vld [vmem:[%s219 + $0x18] sm:$0xff]
      %v229 = vld [vmem:[%s219 + $0x20] sm:$0xff]
      %v230 = vld [vmem:[%s219 + $0x28] sm:$0xff]
      %v231 = vld [vmem:[%s219 + $0x30] sm:$0xff]
      %v232 = vld [vmem:[%s219 + $0x38] sm:$0xff]
      %v233 = vld [vmem:[%s219 + $0x40] sm:$0xff]
      %v234 = vld [vmem:[%s219 + $0x48] sm:$0xff]
      %v235 = vld [vmem:[%s219 + $0x50] sm:$0xff]
      %v236 = vld [vmem:[%s219 + $0x58] sm:$0xff]
      %v237 = vld [vmem:[%s219 + $0x60] sm:$0xff]
      %v238 = vld [vmem:[%s219 + $0x68] sm:$0xff]
      %v239 = vld [vmem:[%s219 + $0x70] sm:$0xff]
      %v240 = vld [vmem:[%s219 + $0x78] sm:$0xff]
      %v241 = vld [vmem:[%s219 + $0x80] sm:$0xff]
      %v242 = vld [vmem:[%s219 + $0x88] sm:$0xff]
      %v243 = vld [vmem:[%s219 + $0x90] sm:$0xff]
      %v244 = vld [vmem:[%s219 + $0x98] sm:$0xff]
      %v245 = vld [vmem:[%s219 + $0xa0] sm:$0xff]
      %v246 = vld [vmem:[%s219 + $0xa8] sm:$0xff]
      %v247 = vld [vmem:[%s219 + $0xb0] sm:$0xff]
      %v248 = vld [vmem:[%s219 + $0xb8] sm:$0xff]
      %v249 = vld [vmem:[%s219 + $0xc0] sm:$0xff]
      %v250 = vld [vmem:[%s219 + $0xc8] sm:$0xff]
      %v251 = vld [vmem:[%s219 + $0xd0] sm:$0xff]
      %v252 = vld [vmem:[%s219 + $0xd8] sm:$0xff]
      %v253 = vld [vmem:[%s219 + $0xe0] sm:$0xff]
      %v254 = vld [vmem:[%s219 + $0xe8] sm:$0xff]
      %v255 = vld [vmem:[%s219 + $0xf0] sm:$0xff]
      %v256 = vld [vmem:[%s219 + $0xf8] sm:$0xff]
      %v257 = vadd.f32 %v225, %v226
      %v258 = vadd.f32 %v257, %v227
      %v259 = vadd.f32 %v258, %v228
      %v260 = vadd.f32 %v259, %v229
      %v261 = vadd.f32 %v260, %v230
      %v262 = vadd.f32 %v261, %v231
      %v263 = vadd.f32 %v262, %v232
      %v264 = vadd.f32 %v263, %v233
      %v265 = vadd.f32 %v264, %v234
      %v266 = vadd.f32 %v265, %v235
      %v267 = vadd.f32 %v266, %v236
      %v268 = vadd.f32 %v267, %v237
      %v269 = vadd.f32 %v268, %v238
      %v270 = vadd.f32 %v269, %v239
      %v271 = vadd.f32 %v270, %v240
      %v272 = vadd.f32 %v271, %v241
      %v273 = vadd.f32 %v272, %v242
      %v274 = vadd.f32 %v273, %v243
      %v275 = vadd.f32 %v274, %v244
      %v276 = vadd.f32 %v275, %v245
      %v277 = vadd.f32 %v276, %v246
      %v278 = vadd.f32 %v277, %v247
      %v279 = vadd.f32 %v278, %v248
      %v280 = vadd.f32 %v279, %v249
      %v281 = vadd.f32 %v280, %v250
      %v282 = vadd.f32 %v281, %v251
      %v283 = vadd.f32 %v282, %v252
      %v284 = vadd.f32 %v283, %v253
      %v285 = vadd.f32 %v284, %v254
      %v286 = vadd.f32 %v285, %v255
      %v287 = vadd.f32 %v286, %v256
      %v288 = vrot.slane %v287, 4
      %v289 = vadd.f32 %v287, %v288
      %v290 = vrot.slane %v289, 2
      %v291 = vadd.f32 %v289, %v290
      %v292 = vrot.slane %v291, 1
      %v293 = vadd.f32 %v291, %v292
      %v294 = vmul.f32 %v225, %v225
      %v295 = vmul.f32 %v226, %v226
      %v296 = vmul.f32 %v227, %v227
      %v297 = vmul.f32 %v228, %v228
      %v298 = vmul.f32 %v229, %v229
      %v299 = vmul.f32 %v230, %v230
      %v300 = vmul.f32 %v231, %v231
      %v301 = vmul.f32 %v232, %v232
      %v302 = vmul.f32 %v233, %v233
      %v303 = vmul.f32 %v234, %v234
      %v304 = vmul.f32 %v235, %v235
      %v305 = vmul.f32 %v236, %v236
      %v306 = vmul.f32 %v237, %v237
      %v307 = vmul.f32 %v238, %v238
      %v308 = vmul.f32 %v239, %v239
      %v309 = vmul.f32 %v240, %v240
      %v310 = vmul.f32 %v241, %v241
      %v311 = vmul.f32 %v242, %v242
      %v312 = vmul.f32 %v243, %v243
      %v313 = vmul.f32 %v244, %v244
      %v314 = vmul.f32 %v245, %v245
      %v315 = vmul.f32 %v246, %v246
      %v316 = vmul.f32 %v247, %v247
      %v317 = vmul.f32 %v248, %v248
      %v318 = vmul.f32 %v249, %v249
      %v319 = vmul.f32 %v250, %v250
      %v320 = vmul.f32 %v251, %v251
      %v321 = vmul.f32 %v252, %v252
      %v322 = vmul.f32 %v253, %v253
      %v323 = vmul.f32 %v254, %v254
      %v324 = vmul.f32 %v255, %v255
      %v325 = vmul.f32 %v256, %v256
      %v326 = vadd.f32 %v294, %v295
      %v327 = vadd.f32 %v326, %v296
      %v328 = vadd.f32 %v327, %v297
      %v329 = vadd.f32 %v328, %v298
      %v330 = vadd.f32 %v329, %v299
      %v331 = vadd.f32 %v330, %v300
      %v332 = vadd.f32 %v331, %v301
      %v333 = vadd.f32 %v332, %v302
      %v334 = vadd.f32 %v333, %v303
      %v335 = vadd.f32 %v334, %v304
      %v336 = vadd.f32 %v335, %v305
      %v337 = vadd.f32 %v336, %v306
      %v338 = vadd.f32 %v337, %v307
      %v339 = vadd.f32 %v338, %v308
      %v340 = vadd.f32 %v339, %v309
      %v341 = vadd.f32 %v340, %v310
      %v342 = vadd.f32 %v341, %v311
      %v343 = vadd.f32 %v342, %v312
      %v344 = vadd.f32 %v343, %v313
      %v345 = vadd.f32 %v344, %v314
      %v346 = vadd.f32 %v345, %v315
      %v347 = vadd.f32 %v346, %v316
      %v348 = vadd.f32 %v347, %v317
      %v349 = vadd.f32 %v348, %v318
      %v350 = vadd.f32 %v349, %v319
      %v351 = vadd.f32 %v350, %v320
      %v352 = vadd.f32 %v351, %v321
      %v353 = vadd.f32 %v352, %v322
      %v354 = vadd.f32 %v353, %v323
      %v355 = vadd.f32 %v354, %v324
      %v356 = vadd.f32 %v355, %v325
      %v357 = vrot.slane %v356, 4
      %v358 = vadd.f32 %v356, %v357
      %v359 = vrot.slane %v358, 2
      %v360 = vadd.f32 %v358, %v359
      %v361 = vrot.slane %v360, 1
      %v362 = vadd.f32 %v360, %v361
      %v363 = vld [vmem:[%s3] sm:$0xff]
      %v364 = vld [vmem:[%s3 + $0x8] sm:$0xff]
      %v365 = vld [vmem:[%s3 + $0x10] sm:$0xff]
      %v366 = vld [vmem:[%s3 + $0x18] sm:$0xff]
      %v367 = vld [vmem:[%s3 + $0x20] sm:$0xff]
      %v368 = vld [vmem:[%s3 + $0x28] sm:$0xff]
      %v369 = vld [vmem:[%s3 + $0x30] sm:$0xff]
      %v370 = vld [vmem:[%s3 + $0x38] sm:$0xff]
      %v371 = vld [vmem:[%s3 + $0x40] sm:$0xff]
      %v372 = vld [vmem:[%s3 + $0x48] sm:$0xff]
      %v373 = vld [vmem:[%s3 + $0x50] sm:$0xff]
      %v374 = vld [vmem:[%s3 + $0x58] sm:$0xff]
      %v375 = vld [vmem:[%s3 + $0x60] sm:$0xff]
      %v376 = vld [vmem:[%s3 + $0x68] sm:$0xff]
      %v377 = vld [vmem:[%s3 + $0x70] sm:$0xff]
      %v378 = vld [vmem:[%s3 + $0x78] sm:$0xff]
      %v379 = vadd.f32 %v363, %v364
      %v380 = vadd.f32 %v379, %v365
      %v381 = vadd.f32 %v380, %v366
      %v382 = vadd.f32 %v381, %v367
      %v383 = vadd.f32 %v382, %v368
      %v384 = vadd.f32 %v383, %v369
      %v385 = vadd.f32 %v384, %v370
      %v386 = vadd.f32 %v385, %v371
      %v387 = vadd.f32 %v386, %v372
      %v388 = vadd.f32 %v387, %v373
      %v389 = vadd.f32 %v388, %v374
      %v390 = vadd.f32 %v389, %v375
      %v391 = vadd.f32 %v390, %v376
      %v392 = vadd.f32 %v391, %v377
      %v393 = vadd.f32 %v392, %v378
      %v394 = vrot.slane %v393, 4
      %v395 = vadd.f32 %v393, %v394
      %v396 = vrot.slane %v395, 2
      %v397 = vadd.f32 %v395, %v396
      %v398 = vrot.slane %v397, 1
      %v399 = vadd.f32 %v397, %v398
      %v400 = vmul.f32 %v399, 256.0
      %v401 = vmax.f32 %v400, 1.0
      %402 = vmatpush.msra.mxu0 %v378
      %403 = vmatpush.msra.mxu0 %v377
      %404 = vmatpush.msra.mxu0 %v376
      %405 = vmatpush.msra.mxu0 %v375
      %406 = vmatpush.msra.mxu0 %v374
      %407 = vmatpush.msra.mxu0 %v373
      %408 = vmatpush.msra.mxu0 %v372
      %409 = vmatpush.msra.mxu0 %v371
      %410 = vmatpush.msra.mxu0 %v370
      %411 = vmatpush.msra.mxu0 %v369
      %412 = vmatpush.msra.mxu0 %v368
      %413 = vmatpush.msra.mxu0 %v367
      %414 = vmatpush.msra.mxu0 %v366
      %415 = vmatpush.msra.mxu0 %v365
      %416 = vmatpush.msra.mxu0 %v364
      %417 = vmatpush.msra.mxu0 %v363
      %418 = vmatmul.f32.gmra.mxu0 %v293
      %v419 = vpop.f32.mrf.mxu0
      %v420 = vadd.f32 0.0, %v419
      %421 = vdwg.mxu0
      %v422 = vrcp.pop %v401
      %v423 = vmul.f32 %v401, %v422
      %v424 = vsub.f32 1.0, %v423
      %v425 = vmul.f32 %v422, %v424
      %v426 = vadd.f32 %v422, %v425
      %vm427 = vweird.f32 %v401
      %vm428 = vweird.f32 %v422
      %vm429 = vmor %vm427, %vm428
      %v430 = vsel %vm429, %v422, %v426
      %v431 = vand.u32 2147483647, %v401
      %vm432 = vcmp.eq.f32.partialorder %v431, 8.507059e+37
      %v433 = vand.u32 %v401, 2147483648
      %v434 = vor.u32 1.1754944e-38, %v433
      %v435 = vsel %vm432, %v434, %v430
      %v436 = vmul.f32 %v420, %v435
      %437 = vmatpush.msra.mxu0 %v378
      %438 = vmatpush.msra.mxu0 %v377
      %439 = vmatpush.msra.mxu0 %v376
      %440 = vmatpush.msra.mxu0 %v375
      %441 = vmatpush.msra.mxu0 %v374
      %442 = vmatpush.msra.mxu0 %v373
      %443 = vmatpush.msra.mxu0 %v372
      %444 = vmatpush.msra.mxu0 %v371
      %445 = vmatpush.msra.mxu0 %v370
      %446 = vmatpush.msra.mxu0 %v369
      %447 = vmatpush.msra.mxu0 %v368
      %448 = vmatpush.msra.mxu0 %v367
      %449 = vmatpush.msra.mxu0 %v366
      %450 = vmatpush.msra.mxu0 %v365
      %451 = vmatpush.msra.mxu0 %v364
      %452 = vmatpush.msra.mxu0 %v363
      %453 = vmatmul.f32.gmra.mxu0 %v362
      %v454 = vpop.f32.mrf.mxu0
      %v455 = vadd.f32 0.0, %v454
      %456 = vdwg.mxu0
      %v457 = vmul.f32 %v455, %v435
      %v458 = vmul.f32 %v436, %v436
      %v459 = vsub.f32 %v457, %v458
      %v460 = vmax.f32 %v459, 0.0
      %v461 = vadd.f32 %v460, 1e-05
      %v462 = vrsqrt.pop %v461
      %v463 = vmul.f32 %v462, %v461
      %v464 = vmul.f32 %v463, %v462
      %v465 = vmul.f32 0.5, %v464
      %v466 = vsub.f32 1.5, %v465
      %v467 = vmul.f32 %v462, %v466
      %vm468 = vweird.f32 %v461
      %vm469 = vweird.f32 %v462
      %vm470 = vmor %vm468, %vm469
      %v471 = vsel %vm470, %v462, %v467
      %v472 = vld [vmem:[%s4] sm:$0xff]
      %v473 = vld [vmem:[%s4 + $0x8] sm:$0xff]
      %v474 = vld [vmem:[%s4 + $0x10] sm:$0xff]
      %v475 = vld [vmem:[%s4 + $0x18] sm:$0xff]
      %v476 = vld [vmem:[%s4 + $0x20] sm:$0xff]
      %v477 = vld [vmem:[%s4 + $0x28] sm:$0xff]
      %v478 = vld [vmem:[%s4 + $0x30] sm:$0xff]
      %v479 = vld [vmem:[%s4 + $0x38] sm:$0xff]
      %v480 = vld [vmem:[%s4 + $0x40] sm:$0xff]
      %v481 = vld [vmem:[%s4 + $0x48] sm:$0xff]
      %v482 = vld [vmem:[%s4 + $0x50] sm:$0xff]
      %v483 = vld [vmem:[%s4 + $0x58] sm:$0xff]
      %v484 = vld [vmem:[%s4 + $0x60] sm:$0xff]
      %v485 = vld [vmem:[%s4 + $0x68] sm:$0xff]
      %v486 = vld [vmem:[%s4 + $0x70] sm:$0xff]
      %v487 = vld [vmem:[%s4 + $0x78] sm:$0xff]
      %488 = vmatpush.msra.mxu0 %v487
      %489 = vmatpush.msra.mxu0 %v486
      %490 = vmatpush.msra.mxu0 %v485
      %491 = vmatpush.msra.mxu0 %v484
      %492 = vmatpush.msra.mxu0 %v483
      %493 = vmatpush.msra.mxu0 %v482
      %494 = vmatpush.msra.mxu0 %v481
      %495 = vmatpush.msra.mxu0 %v480
      %496 = vmatpush.msra.mxu0 %v479
      %497 = vmatpush.msra.mxu0 %v478
      %498 = vmatpush.msra.mxu0 %v477
      %499 = vmatpush.msra.mxu0 %v476
      %500 = vmatpush.msra.mxu0 %v475
      %501 = vmatpush.msra.mxu0 %v474
      %502 = vmatpush.msra.mxu0 %v473
      %503 = vmatpush.msra.mxu0 %v472
      %504 = vmatmul.f32.gmra.mxu0 %v436
      %v505 = vpop.f32.mrf.mxu0
      %v506 = vadd.f32 0.0, %v505
      %507 = vdwg.mxu0
      %508 = vmatpush.msra.mxu0 %v487
      %509 = vmatpush.msra.mxu0 %v486
      %510 = vmatpush.msra.mxu0 %v485
      %511 = vmatpush.msra.mxu0 %v484
      %512 = vmatpush.msra.mxu0 %v483
      %513 = vmatpush.msra.mxu0 %v482
      %514 = vmatpush.msra.mxu0 %v481
      %515 = vmatpush.msra.mxu0 %v480
      %516 = vmatpush.msra.mxu0 %v479
      %517 = vmatpush.msra.mxu0 %v478
      %518 = vmatpush.msra.mxu0 %v477
      %519 = vmatpush.msra.mxu0 %v476
      %520 = vmatpush.msra.mxu0 %v475
      %521 = vmatpush.msra.mxu0 %v474
      %522 = vmatpush.msra.mxu0 %v473
      %523 = vmatpush.msra.mxu0 %v472
      %524 = vmatmul.f32.gmra.mxu0 %v471
      %v525 = vpop.f32.mrf.mxu0
      %v526 = vadd.f32 0.0, %v525
      %527 = vdwg.mxu0
      %v528 = vld [vmem:[%s1] sm:$0x1]
      %v529 = vmul.f32 %v526, %v528
      %v530 = vld [vmem:[%s2] sm:$0x1]
      %v531 = vmul.f32 %v506, %v529
      %v532 = vsub.f32 %v530, %v531
      %v533 = vperm.slane %v529, 0
      %v534 = vmul.f32 %v225, %v533
      %v535 = vmul.f32 %v226, %v533
      %v536 = vmul.f32 %v227, %v533
      %v537 = vmul.f32 %v228, %v533
      %v538 = vmul.f32 %v229, %v533
      %v539 = vmul.f32 %v230, %v533
      %v540 = vmul.f32 %v231, %v533
      %v541 = vmul.f32 %v232, %v533
      %v542 = vmul.f32 %v233, %v533
      %v543 = vmul.f32 %v234, %v533
      %v544 = vmul.f32 %v235, %v533
      %v545 = vmul.f32 %v236, %v533
      %v546 = vmul.f32 %v237, %v533
      %v547 = vmul.f32 %v238, %v533
      %v548 = vmul.f32 %v239, %v533
      %v549 = vmul.f32 %v240, %v533
      %v550 = vmul.f32 %v241, %v533
      %v551 = vmul.f32 %v242, %v533
      %v552 = vmul.f32 %v243, %v533
      %v553 = vmul.f32 %v244, %v533
      %v554 = vmul.f32 %v245, %v533
      %v555 = vmul.f32 %v246, %v533
      %v556 = vmul.f32 %v247, %v533
      %v557 = vmul.f32 %v248, %v533
      %v558 = vmul.f32 %v249, %v533
      %v559 = vmul.f32 %v250, %v533
      %v560 = vmul.f32 %v251, %v533
      %v561 = vmul.f32 %v252, %v533
      %v562 = vmul.f32 %v253, %v533
      %v563 = vmul.f32 %v254, %v533
      %v564 = vmul.f32 %v255, %v533
      %v565 = vmul.f32 %v256, %v533
      %v567 = vperm.slane %v532, 0
      %v569 = vadd.f32 %v534, %v567
      %v570 = vadd.f32 %v535, %v567
      %v571 = vadd.f32 %v536, %v567
      %v572 = vadd.f32 %v537, %v567
      %v573 = vadd.f32 %v538, %v567
      %v574 = vadd.f32 %v539, %v567
      %v575 = vadd.f32 %v540, %v567
      %v576 = vadd.f32 %v541, %v567
      %v577 = vadd.f32 %v542, %v567
      %v578 = vadd.f32 %v543, %v567
      %v579 = vadd.f32 %v544, %v567
      %v580 = vadd.f32 %v545, %v567
      %v581 = vadd.f32 %v546, %v567
      %v582 = vadd.f32 %v547, %v567
      %v583 = vadd.f32 %v548, %v567
      %v584 = vadd.f32 %v549, %v567
      %v585 = vadd.f32 %v550, %v567
      %v586 = vadd.f32 %v551, %v567
      %v587 = vadd.f32 %v552, %v567
      %v588 = vadd.f32 %v553, %v567
      %v589 = vadd.f32 %v554, %v567
      %v590 = vadd.f32 %v555, %v567
      %v591 = vadd.f32 %v556, %v567
      %v592 = vadd.f32 %v557, %v567
      %v593 = vadd.f32 %v558, %v567
      %v594 = vadd.f32 %v559, %v567
      %v595 = vadd.f32 %v560, %v567
      %v596 = vadd.f32 %v561, %v567
      %v597 = vadd.f32 %v562, %v567
      %v598 = vadd.f32 %v563, %v567
      %v599 = vadd.f32 %v564, %v567
      %v600 = vadd.f32 %v565, %v567
      %v601 = vxor.u32 %v569, 2147483648
      %v602 = vxor.u32 %v570, 2147483648
      %v603 = vxor.u32 %v571, 2147483648
      %v604 = vxor.u32 %v572, 2147483648
      %v605 = vxor.u32 %v573, 2147483648
      %v606 = vxor.u32 %v574, 2147483648
      %v607 = vxor.u32 %v575, 2147483648
      %v608 = vxor.u32 %v576, 2147483648
      %v609 = vxor.u32 %v577, 2147483648
      %v610 = vxor.u32 %v578, 2147483648
      %v611 = vxor.u32 %v579, 2147483648
      %v612 = vxor.u32 %v580, 2147483648
      %v613 = vxor.u32 %v581, 2147483648
      %v614 = vxor.u32 %v582, 2147483648
      %v615 = vxor.u32 %v583, 2147483648
      %v616 = vxor.u32 %v584, 2147483648
      %v617 = vxor.u32 %v585, 2147483648
      %v618 = vxor.u32 %v586, 2147483648
      %v619 = vxor.u32 %v587, 2147483648
      %v620 = vxor.u32 %v588, 2147483648
      %v621 = vxor.u32 %v589, 2147483648
      %v622 = vxor.u32 %v590, 2147483648
      %v623 = vxor.u32 %v591, 2147483648
      %v624 = vxor.u32 %v592, 2147483648
      %v625 = vxor.u32 %v593, 2147483648
      %v626 = vxor.u32 %v594, 2147483648
      %v627 = vxor.u32 %v595, 2147483648
      %v628 = vxor.u32 %v596, 2147483648
      %v629 = vxor.u32 %v597, 2147483648
      %v630 = vxor.u32 %v598, 2147483648
      %v631 = vxor.u32 %v599, 2147483648
      %v632 = vxor.u32 %v600, 2147483648
      %v633 = vmul.f32 %v601, 1.442695
      %v634 = vpow.pop %v633
      %v635 = vmul.f32 %v602, 1.442695
      %v636 = vpow.pop %v635
      %v637 = vmul.f32 %v603, 1.442695
      %v638 = vpow.pop %v637
      %v639 = vmul.f32 %v604, 1.442695
      %v640 = vpow.pop %v639
      %v641 = vmul.f32 %v605, 1.442695
      %v642 = vpow.pop %v641
      %v643 = vmul.f32 %v606, 1.442695
      %v644 = vpow.pop %v643
      %v645 = vmul.f32 %v607, 1.442695
      %v646 = vpow.pop %v645
      %v647 = vmul.f32 %v608, 1.442695
      %v648 = vpow.pop %v647
      %v649 = vmul.f32 %v609, 1.442695
      %v650 = vpow.pop %v649
      %v651 = vmul.f32 %v610, 1.442695
      %v652 = vpow.pop %v651
      %v653 = vmul.f32 %v611, 1.442695
      %v654 = vpow.pop %v653
      %v655 = vmul.f32 %v612, 1.442695
      %v656 = vpow.pop %v655
      %v657 = vmul.f32 %v613, 1.442695
      %v658 = vpow.pop %v657
      %v659 = vmul.f32 %v614, 1.442695
      %v660 = vpow.pop %v659
      %v661 = vmul.f32 %v615, 1.442695
      %v662 = vpow.pop %v661
      %v663 = vmul.f32 %v616, 1.442695
      %v664 = vpow.pop %v663
      %v665 = vmul.f32 %v617, 1.442695
      %v666 = vpow.pop %v665
      %v667 = vmul.f32 %v618, 1.442695
      %v668 = vpow.pop %v667
      %v669 = vmul.f32 %v619, 1.442695
      %v670 = vpow.pop %v669
      %v671 = vmul.f32 %v620, 1.442695
      %v672 = vpow.pop %v671
      %v673 = vmul.f32 %v621, 1.442695
      %v674 = vpow.pop %v673
      %v675 = vmul.f32 %v622, 1.442695
      %v676 = vpow.pop %v675
      %v677 = vmul.f32 %v623, 1.442695
      %v678 = vpow.pop %v677
      %v679 = vmul.f32 %v624, 1.442695
      %v680 = vpow.pop %v679
      %v681 = vmul.f32 %v625, 1.442695
      %v682 = vpow.pop %v681
      %v683 = vmul.f32 %v626, 1.442695
      %v684 = vpow.pop %v683
      %v685 = vmul.f32 %v627, 1.442695
      %v686 = vpow.pop %v685
      %v687 = vmul.f32 %v628, 1.442695
      %v688 = vpow.pop %v687
      %v689 = vmul.f32 %v629, 1.442695
      %v690 = vpow.pop %v689
      %v691 = vmul.f32 %v630, 1.442695
      %v692 = vpow.pop %v691
      %v693 = vmul.f32 %v631, 1.442695
      %v694 = vpow.pop %v693
      %v695 = vmul.f32 %v632, 1.442695
      %v696 = vpow.pop %v695
      %v697 = vadd.f32 %v634, 1.0
      %v698 = vadd.f32 %v636, 1.0
      %v699 = vadd.f32 %v638, 1.0
      %v700 = vadd.f32 %v640, 1.0
      %v701 = vadd.f32 %v642, 1.0
      %v702 = vadd.f32 %v644, 1.0
      %v703 = vadd.f32 %v646, 1.0
      %v704 = vadd.f32 %v648, 1.0
      %v705 = vadd.f32 %v650, 1.0
      %v706 = vadd.f32 %v652, 1.0
      %v707 = vadd.f32 %v654, 1.0
      %v708 = vadd.f32 %v656, 1.0
      %v709 = vadd.f32 %v658, 1.0
      %v710 = vadd.f32 %v660, 1.0
      %v711 = vadd.f32 %v662, 1.0
      %v712 = vadd.f32 %v664, 1.0
      %v713 = vadd.f32 %v666, 1.0
      %v714 = vadd.f32 %v668, 1.0
      %v715 = vadd.f32 %v670, 1.0
      %v716 = vadd.f32 %v672, 1.0
      %v717 = vadd.f32 %v674, 1.0
      %v718 = vadd.f32 %v676, 1.0
      %v719 = vadd.f32 %v678, 1.0
      %v720 = vadd.f32 %v680, 1.0
      %v721 = vadd.f32 %v682, 1.0
      %v722 = vadd.f32 %v684, 1.0
      %v723 = vadd.f32 %v686, 1.0
      %v724 = vadd.f32 %v688, 1.0
      %v725 = vadd.f32 %v690, 1.0
      %v726 = vadd.f32 %v692, 1.0
      %v727 = vadd.f32 %v694, 1.0
      %v728 = vadd.f32 %v696, 1.0
      %v729 = vrcp.pop %v697
      %v730 = vmul.f32 %v697, %v729
      %v731 = vsub.f32 1.0, %v730
      %v732 = vmul.f32 %v729, %v731
      %v733 = vadd.f32 %v729, %v732
      %vm734 = vweird.f32 %v697
      %vm735 = vweird.f32 %v729
      %vm736 = vmor %vm734, %vm735
      %v737 = vsel %vm736, %v729, %v733
      %v738 = vand.u32 2147483647, %v697
      %vm739 = vcmp.eq.f32.partialorder %v738, 8.507059e+37
      %v740 = vand.u32 %v697, 2147483648
      %v741 = vor.u32 1.1754944e-38, %v740
      %v742 = vsel %vm739, %v741, %v737
      %v743 = vmul.f32 1.0, %v742
      %v744 = vrcp.pop %v698
      %v745 = vmul.f32 %v698, %v744
      %v746 = vsub.f32 1.0, %v745
      %v747 = vmul.f32 %v744, %v746
      %v748 = vadd.f32 %v744, %v747
      %vm749 = vweird.f32 %v698
      %vm750 = vweird.f32 %v744
      %vm751 = vmor %vm749, %vm750
      %v752 = vsel %vm751, %v744, %v748
      %v753 = vand.u32 2147483647, %v698
      %vm754 = vcmp.eq.f32.partialorder %v753, 8.507059e+37
      %v755 = vand.u32 %v698, 2147483648
      %v756 = vor.u32 1.1754944e-38, %v755
      %v757 = vsel %vm754, %v756, %v752
      %v758 = vmul.f32 1.0, %v757
      %v759 = vrcp.pop %v699
      %v760 = vmul.f32 %v699, %v759
      %v761 = vsub.f32 1.0, %v760
      %v762 = vmul.f32 %v759, %v761
      %v763 = vadd.f32 %v759, %v762
      %vm764 = vweird.f32 %v699
      %vm765 = vweird.f32 %v759
      %vm766 = vmor %vm764, %vm765
      %v767 = vsel %vm766, %v759, %v763
      %v768 = vand.u32 2147483647, %v699
      %vm769 = vcmp.eq.f32.partialorder %v768, 8.507059e+37
      %v770 = vand.u32 %v699, 2147483648
      %v771 = vor.u32 1.1754944e-38, %v770
      %v772 = vsel %vm769, %v771, %v767
      %v773 = vmul.f32 1.0, %v772
      %v774 = vrcp.pop %v700
      %v775 = vmul.f32 %v700, %v774
      %v776 = vsub.f32 1.0, %v775
      %v777 = vmul.f32 %v774, %v776
      %v778 = vadd.f32 %v774, %v777
      %vm779 = vweird.f32 %v700
      %vm780 = vweird.f32 %v774
      %vm781 = vmor %vm779, %vm780
      %v782 = vsel %vm781, %v774, %v778
      %v783 = vand.u32 2147483647, %v700
      %vm784 = vcmp.eq.f32.partialorder %v783, 8.507059e+37
      %v785 = vand.u32 %v700, 2147483648
      %v786 = vor.u32 1.1754944e-38, %v785
      %v787 = vsel %vm784, %v786, %v782
      %v788 = vmul.f32 1.0, %v787
      %v789 = vrcp.pop %v701
      %v790 = vmul.f32 %v701, %v789
      %v791 = vsub.f32 1.0, %v790
      %v792 = vmul.f32 %v789, %v791
      %v793 = vadd.f32 %v789, %v792
      %vm794 = vweird.f32 %v701
      %vm795 = vweird.f32 %v789
      %vm796 = vmor %vm794, %vm795
      %v797 = vsel %vm796, %v789, %v793
      %v798 = vand.u32 2147483647, %v701
      %vm799 = vcmp.eq.f32.partialorder %v798, 8.507059e+37
      %v800 = vand.u32 %v701, 2147483648
      %v801 = vor.u32 1.1754944e-38, %v800
      %v802 = vsel %vm799, %v801, %v797
      %v803 = vmul.f32 1.0, %v802
      %v804 = vrcp.pop %v702
      %v805 = vmul.f32 %v702, %v804
      %v806 = vsub.f32 1.0, %v805
      %v807 = vmul.f32 %v804, %v806
      %v808 = vadd.f32 %v804, %v807
      %vm809 = vweird.f32 %v702
      %vm810 = vweird.f32 %v804
      %vm811 = vmor %vm809, %vm810
      %v812 = vsel %vm811, %v804, %v808
      %v813 = vand.u32 2147483647, %v702
      %vm814 = vcmp.eq.f32.partialorder %v813, 8.507059e+37
      %v815 = vand.u32 %v702, 2147483648
      %v816 = vor.u32 1.1754944e-38, %v815
      %v817 = vsel %vm814, %v816, %v812
      %v818 = vmul.f32 1.0, %v817
      %v819 = vrcp.pop %v703
      %v820 = vmul.f32 %v703, %v819
      %v821 = vsub.f32 1.0, %v820
      %v822 = vmul.f32 %v819, %v821
      %v823 = vadd.f32 %v819, %v822
      %vm824 = vweird.f32 %v703
      %vm825 = vweird.f32 %v819
      %vm826 = vmor %vm824, %vm825
      %v827 = vsel %vm826, %v819, %v823
      %v828 = vand.u32 2147483647, %v703
      %vm829 = vcmp.eq.f32.partialorder %v828, 8.507059e+37
      %v830 = vand.u32 %v703, 2147483648
      %v831 = vor.u32 1.1754944e-38, %v830
      %v832 = vsel %vm829, %v831, %v827
      %v833 = vmul.f32 1.0, %v832
      %v834 = vrcp.pop %v704
      %v835 = vmul.f32 %v704, %v834
      %v836 = vsub.f32 1.0, %v835
      %v837 = vmul.f32 %v834, %v836
      %v838 = vadd.f32 %v834, %v837
      %vm839 = vweird.f32 %v704
      %vm840 = vweird.f32 %v834
      %vm841 = vmor %vm839, %vm840
      %v842 = vsel %vm841, %v834, %v838
      %v843 = vand.u32 2147483647, %v704
      %vm844 = vcmp.eq.f32.partialorder %v843, 8.507059e+37
      %v845 = vand.u32 %v704, 2147483648
      %v846 = vor.u32 1.1754944e-38, %v845
      %v847 = vsel %vm844, %v846, %v842
      %v848 = vmul.f32 1.0, %v847
      %v849 = vrcp.pop %v705
      %v850 = vmul.f32 %v705, %v849
      %v851 = vsub.f32 1.0, %v850
      %v852 = vmul.f32 %v849, %v851
      %v853 = vadd.f32 %v849, %v852
      %vm854 = vweird.f32 %v705
      %vm855 = vweird.f32 %v849
      %vm856 = vmor %vm854, %vm855
      %v857 = vsel %vm856, %v849, %v853
      %v858 = vand.u32 2147483647, %v705
      %vm859 = vcmp.eq.f32.partialorder %v858, 8.507059e+37
      %v860 = vand.u32 %v705, 2147483648
      %v861 = vor.u32 1.1754944e-38, %v860
      %v862 = vsel %vm859, %v861, %v857
      %v863 = vmul.f32 1.0, %v862
      %v864 = vrcp.pop %v706
      %v865 = vmul.f32 %v706, %v864
      %v866 = vsub.f32 1.0, %v865
      %v867 = vmul.f32 %v864, %v866
      %v868 = vadd.f32 %v864, %v867
      %vm869 = vweird.f32 %v706
      %vm870 = vweird.f32 %v864
      %vm871 = vmor %vm869, %vm870
      %v872 = vsel %vm871, %v864, %v868
      %v873 = vand.u32 2147483647, %v706
      %vm874 = vcmp.eq.f32.partialorder %v873, 8.507059e+37
      %v875 = vand.u32 %v706, 2147483648
      %v876 = vor.u32 1.1754944e-38, %v875
      %v877 = vsel %vm874, %v876, %v872
      %v878 = vmul.f32 1.0, %v877
      %v879 = vrcp.pop %v707
      %v880 = vmul.f32 %v707, %v879
      %v881 = vsub.f32 1.0, %v880
      %v882 = vmul.f32 %v879, %v881
      %v883 = vadd.f32 %v879, %v882
      %vm884 = vweird.f32 %v707
      %vm885 = vweird.f32 %v879
      %vm886 = vmor %vm884, %vm885
      %v887 = vsel %vm886, %v879, %v883
      %v888 = vand.u32 2147483647, %v707
      %vm889 = vcmp.eq.f32.partialorder %v888, 8.507059e+37
      %v890 = vand.u32 %v707, 2147483648
      %v891 = vor.u32 1.1754944e-38, %v890
      %v892 = vsel %vm889, %v891, %v887
      %v893 = vmul.f32 1.0, %v892
      %v894 = vrcp.pop %v708
      %v895 = vmul.f32 %v708, %v894
      %v896 = vsub.f32 1.0, %v895
      %v897 = vmul.f32 %v894, %v896
      %v898 = vadd.f32 %v894, %v897
      %vm899 = vweird.f32 %v708
      %vm900 = vweird.f32 %v894
      %vm901 = vmor %vm899, %vm900
      %v902 = vsel %vm901, %v894, %v898
      %v903 = vand.u32 2147483647, %v708
      %vm904 = vcmp.eq.f32.partialorder %v903, 8.507059e+37
      %v905 = vand.u32 %v708, 2147483648
      %v906 = vor.u32 1.1754944e-38, %v905
      %v907 = vsel %vm904, %v906, %v902
      %v908 = vmul.f32 1.0, %v907
      %v909 = vrcp.pop %v709
      %v910 = vmul.f32 %v709, %v909
      %v911 = vsub.f32 1.0, %v910
      %v912 = vmul.f32 %v909, %v911
      %v913 = vadd.f32 %v909, %v912
      %vm914 = vweird.f32 %v709
      %vm915 = vweird.f32 %v909
      %vm916 = vmor %vm914, %vm915
      %v917 = vsel %vm916, %v909, %v913
      %v918 = vand.u32 2147483647, %v709
      %vm919 = vcmp.eq.f32.partialorder %v918, 8.507059e+37
      %v920 = vand.u32 %v709, 2147483648
      %v921 = vor.u32 1.1754944e-38, %v920
      %v922 = vsel %vm919, %v921, %v917
      %v923 = vmul.f32 1.0, %v922
      %v924 = vrcp.pop %v710
      %v925 = vmul.f32 %v710, %v924
      %v926 = vsub.f32 1.0, %v925
      %v927 = vmul.f32 %v924, %v926
      %v928 = vadd.f32 %v924, %v927
      %vm929 = vweird.f32 %v710
      %vm930 = vweird.f32 %v924
      %vm931 = vmor %vm929, %vm930
      %v932 = vsel %vm931, %v924, %v928
      %v933 = vand.u32 2147483647, %v710
      %vm934 = vcmp.eq.f32.partialorder %v933, 8.507059e+37
      %v935 = vand.u32 %v710, 2147483648
      %v936 = vor.u32 1.1754944e-38, %v935
      %v937 = vsel %vm934, %v936, %v932
      %v938 = vmul.f32 1.0, %v937
      %v939 = vrcp.pop %v711
      %v940 = vmul.f32 %v711, %v939
      %v941 = vsub.f32 1.0, %v940
      %v942 = vmul.f32 %v939, %v941
      %v943 = vadd.f32 %v939, %v942
      %vm944 = vweird.f32 %v711
      %vm945 = vweird.f32 %v939
      %vm946 = vmor %vm944, %vm945
      %v947 = vsel %vm946, %v939, %v943
      %v948 = vand.u32 2147483647, %v711
      %vm949 = vcmp.eq.f32.partialorder %v948, 8.507059e+37
      %v950 = vand.u32 %v711, 2147483648
      %v951 = vor.u32 1.1754944e-38, %v950
      %v952 = vsel %vm949, %v951, %v947
      %v953 = vmul.f32 1.0, %v952
      %v954 = vrcp.pop %v712
      %v955 = vmul.f32 %v712, %v954
      %v956 = vsub.f32 1.0, %v955
      %v957 = vmul.f32 %v954, %v956
      %v958 = vadd.f32 %v954, %v957
      %vm959 = vweird.f32 %v712
      %vm960 = vweird.f32 %v954
      %vm961 = vmor %vm959, %vm960
      %v962 = vsel %vm961, %v954, %v958
      %v963 = vand.u32 2147483647, %v712
      %vm964 = vcmp.eq.f32.partialorder %v963, 8.507059e+37
      %v965 = vand.u32 %v712, 2147483648
      %v966 = vor.u32 1.1754944e-38, %v965
      %v967 = vsel %vm964, %v966, %v962
      %v968 = vmul.f32 1.0, %v967
      %v969 = vrcp.pop %v713
      %v970 = vmul.f32 %v713, %v969
      %v971 = vsub.f32 1.0, %v970
      %v972 = vmul.f32 %v969, %v971
      %v973 = vadd.f32 %v969, %v972
      %vm974 = vweird.f32 %v713
      %vm975 = vweird.f32 %v969
      %vm976 = vmor %vm974, %vm975
      %v977 = vsel %vm976, %v969, %v973
      %v978 = vand.u32 2147483647, %v713
      %vm979 = vcmp.eq.f32.partialorder %v978, 8.507059e+37
      %v980 = vand.u32 %v713, 2147483648
      %v981 = vor.u32 1.1754944e-38, %v980
      %v982 = vsel %vm979, %v981, %v977
      %v983 = vmul.f32 1.0, %v982
      %v984 = vrcp.pop %v714
      %v985 = vmul.f32 %v714, %v984
      %v986 = vsub.f32 1.0, %v985
      %v987 = vmul.f32 %v984, %v986
      %v988 = vadd.f32 %v984, %v987
      %vm989 = vweird.f32 %v714
      %vm990 = vweird.f32 %v984
      %vm991 = vmor %vm989, %vm990
      %v992 = vsel %vm991, %v984, %v988
      %v993 = vand.u32 2147483647, %v714
      %vm994 = vcmp.eq.f32.partialorder %v993, 8.507059e+37
      %v995 = vand.u32 %v714, 2147483648
      %v996 = vor.u32 1.1754944e-38, %v995
      %v997 = vsel %vm994, %v996, %v992
      %v998 = vmul.f32 1.0, %v997
      %v999 = vrcp.pop %v715
      %v1000 = vmul.f32 %v715, %v999
      %v1001 = vsub.f32 1.0, %v1000
      %v1002 = vmul.f32 %v999, %v1001
      %v1003 = vadd.f32 %v999, %v1002
      %vm1004 = vweird.f32 %v715
      %vm1005 = vweird.f32 %v999
      %vm1006 = vmor %vm1004, %vm1005
      %v1007 = vsel %vm1006, %v999, %v1003
      %v1008 = vand.u32 2147483647, %v715
      %vm1009 = vcmp.eq.f32.partialorder %v1008, 8.507059e+37
      %v1010 = vand.u32 %v715, 2147483648
      %v1011 = vor.u32 1.1754944e-38, %v1010
      %v1012 = vsel %vm1009, %v1011, %v1007
      %v1013 = vmul.f32 1.0, %v1012
      %v1014 = vrcp.pop %v716
      %v1015 = vmul.f32 %v716, %v1014
      %v1016 = vsub.f32 1.0, %v1015
      %v1017 = vmul.f32 %v1014, %v1016
      %v1018 = vadd.f32 %v1014, %v1017
      %vm1019 = vweird.f32 %v716
      %vm1020 = vweird.f32 %v1014
      %vm1021 = vmor %vm1019, %vm1020
      %v1022 = vsel %vm1021, %v1014, %v1018
      %v1023 = vand.u32 2147483647, %v716
      %vm1024 = vcmp.eq.f32.partialorder %v1023, 8.507059e+37
      %v1025 = vand.u32 %v716, 2147483648
      %v1026 = vor.u32 1.1754944e-38, %v1025
      %v1027 = vsel %vm1024, %v1026, %v1022
      %v1028 = vmul.f32 1.0, %v1027
      %v1029 = vrcp.pop %v717
      %v1030 = vmul.f32 %v717, %v1029
      %v1031 = vsub.f32 1.0, %v1030
      %v1032 = vmul.f32 %v1029, %v1031
      %v1033 = vadd.f32 %v1029, %v1032
      %vm1034 = vweird.f32 %v717
      %vm1035 = vweird.f32 %v1029
      %vm1036 = vmor %vm1034, %vm1035
      %v1037 = vsel %vm1036, %v1029, %v1033
      %v1038 = vand.u32 2147483647, %v717
      %vm1039 = vcmp.eq.f32.partialorder %v1038, 8.507059e+37
      %v1040 = vand.u32 %v717, 2147483648
      %v1041 = vor.u32 1.1754944e-38, %v1040
      %v1042 = vsel %vm1039, %v1041, %v1037
      %v1043 = vmul.f32 1.0, %v1042
      %v1044 = vrcp.pop %v718
      %v1045 = vmul.f32 %v718, %v1044
      %v1046 = vsub.f32 1.0, %v1045
      %v1047 = vmul.f32 %v1044, %v1046
      %v1048 = vadd.f32 %v1044, %v1047
      %vm1049 = vweird.f32 %v718
      %vm1050 = vweird.f32 %v1044
      %vm1051 = vmor %vm1049, %vm1050
      %v1052 = vsel %vm1051, %v1044, %v1048
      %v1053 = vand.u32 2147483647, %v718
      %vm1054 = vcmp.eq.f32.partialorder %v1053, 8.507059e+37
      %v1055 = vand.u32 %v718, 2147483648
      %v1056 = vor.u32 1.1754944e-38, %v1055
      %v1057 = vsel %vm1054, %v1056, %v1052
      %v1058 = vmul.f32 1.0, %v1057
      %v1059 = vrcp.pop %v719
      %v1060 = vmul.f32 %v719, %v1059
      %v1061 = vsub.f32 1.0, %v1060
      %v1062 = vmul.f32 %v1059, %v1061
      %v1063 = vadd.f32 %v1059, %v1062
      %vm1064 = vweird.f32 %v719
      %vm1065 = vweird.f32 %v1059
      %vm1066 = vmor %vm1064, %vm1065
      %v1067 = vsel %vm1066, %v1059, %v1063
      %v1068 = vand.u32 2147483647, %v719
      %vm1069 = vcmp.eq.f32.partialorder %v1068, 8.507059e+37
      %v1070 = vand.u32 %v719, 2147483648
      %v1071 = vor.u32 1.1754944e-38, %v1070
      %v1072 = vsel %vm1069, %v1071, %v1067
      %v1073 = vmul.f32 1.0, %v1072
      %v1074 = vrcp.pop %v720
      %v1075 = vmul.f32 %v720, %v1074
      %v1076 = vsub.f32 1.0, %v1075
      %v1077 = vmul.f32 %v1074, %v1076
      %v1078 = vadd.f32 %v1074, %v1077
      %vm1079 = vweird.f32 %v720
      %vm1080 = vweird.f32 %v1074
      %vm1081 = vmor %vm1079, %vm1080
      %v1082 = vsel %vm1081, %v1074, %v1078
      %v1083 = vand.u32 2147483647, %v720
      %vm1084 = vcmp.eq.f32.partialorder %v1083, 8.507059e+37
      %v1085 = vand.u32 %v720, 2147483648
      %v1086 = vor.u32 1.1754944e-38, %v1085
      %v1087 = vsel %vm1084, %v1086, %v1082
      %v1088 = vmul.f32 1.0, %v1087
      %v1089 = vrcp.pop %v721
      %v1090 = vmul.f32 %v721, %v1089
      %v1091 = vsub.f32 1.0, %v1090
      %v1092 = vmul.f32 %v1089, %v1091
      %v1093 = vadd.f32 %v1089, %v1092
      %vm1094 = vweird.f32 %v721
      %vm1095 = vweird.f32 %v1089
      %vm1096 = vmor %vm1094, %vm1095
      %v1097 = vsel %vm1096, %v1089, %v1093
      %v1098 = vand.u32 2147483647, %v721
      %vm1099 = vcmp.eq.f32.partialorder %v1098, 8.507059e+37
      %v1100 = vand.u32 %v721, 2147483648
      %v1101 = vor.u32 1.1754944e-38, %v1100
      %v1102 = vsel %vm1099, %v1101, %v1097
      %v1103 = vmul.f32 1.0, %v1102
      %v1104 = vrcp.pop %v722
      %v1105 = vmul.f32 %v722, %v1104
      %v1106 = vsub.f32 1.0, %v1105
      %v1107 = vmul.f32 %v1104, %v1106
      %v1108 = vadd.f32 %v1104, %v1107
      %vm1109 = vweird.f32 %v722
      %vm1110 = vweird.f32 %v1104
      %vm1111 = vmor %vm1109, %vm1110
      %v1112 = vsel %vm1111, %v1104, %v1108
      %v1113 = vand.u32 2147483647, %v722
      %vm1114 = vcmp.eq.f32.partialorder %v1113, 8.507059e+37
      %v1115 = vand.u32 %v722, 2147483648
      %v1116 = vor.u32 1.1754944e-38, %v1115
      %v1117 = vsel %vm1114, %v1116, %v1112
      %v1118 = vmul.f32 1.0, %v1117
      %v1119 = vrcp.pop %v723
      %v1120 = vmul.f32 %v723, %v1119
      %v1121 = vsub.f32 1.0, %v1120
      %v1122 = vmul.f32 %v1119, %v1121
      %v1123 = vadd.f32 %v1119, %v1122
      %vm1124 = vweird.f32 %v723
      %vm1125 = vweird.f32 %v1119
      %vm1126 = vmor %vm1124, %vm1125
      %v1127 = vsel %vm1126, %v1119, %v1123
      %v1128 = vand.u32 2147483647, %v723
      %vm1129 = vcmp.eq.f32.partialorder %v1128, 8.507059e+37
      %v1130 = vand.u32 %v723, 2147483648
      %v1131 = vor.u32 1.1754944e-38, %v1130
      %v1132 = vsel %vm1129, %v1131, %v1127
      %v1133 = vmul.f32 1.0, %v1132
      %v1134 = vrcp.pop %v724
      %v1135 = vmul.f32 %v724, %v1134
      %v1136 = vsub.f32 1.0, %v1135
      %v1137 = vmul.f32 %v1134, %v1136
      %v1138 = vadd.f32 %v1134, %v1137
      %vm1139 = vweird.f32 %v724
      %vm1140 = vweird.f32 %v1134
      %vm1141 = vmor %vm1139, %vm1140
      %v1142 = vsel %vm1141, %v1134, %v1138
      %v1143 = vand.u32 2147483647, %v724
      %vm1144 = vcmp.eq.f32.partialorder %v1143, 8.507059e+37
      %v1145 = vand.u32 %v724, 2147483648
      %v1146 = vor.u32 1.1754944e-38, %v1145
      %v1147 = vsel %vm1144, %v1146, %v1142
      %v1148 = vmul.f32 1.0, %v1147
      %v1149 = vrcp.pop %v725
      %v1150 = vmul.f32 %v725, %v1149
      %v1151 = vsub.f32 1.0, %v1150
      %v1152 = vmul.f32 %v1149, %v1151
      %v1153 = vadd.f32 %v1149, %v1152
      %vm1154 = vweird.f32 %v725
      %vm1155 = vweird.f32 %v1149
      %vm1156 = vmor %vm1154, %vm1155
      %v1157 = vsel %vm1156, %v1149, %v1153
      %v1158 = vand.u32 2147483647, %v725
      %vm1159 = vcmp.eq.f32.partialorder %v1158, 8.507059e+37
      %v1160 = vand.u32 %v725, 2147483648
      %v1161 = vor.u32 1.1754944e-38, %v1160
      %v1162 = vsel %vm1159, %v1161, %v1157
      %v1163 = vmul.f32 1.0, %v1162
      %v1164 = vrcp.pop %v726
      %v1165 = vmul.f32 %v726, %v1164
      %v1166 = vsub.f32 1.0, %v1165
      %v1167 = vmul.f32 %v1164, %v1166
      %v1168 = vadd.f32 %v1164, %v1167
      %vm1169 = vweird.f32 %v726
      %vm1170 = vweird.f32 %v1164
      %vm1171 = vmor %vm1169, %vm1170
      %v1172 = vsel %vm1171, %v1164, %v1168
      %v1173 = vand.u32 2147483647, %v726
      %vm1174 = vcmp.eq.f32.partialorder %v1173, 8.507059e+37
      %v1175 = vand.u32 %v726, 2147483648
      %v1176 = vor.u32 1.1754944e-38, %v1175
      %v1177 = vsel %vm1174, %v1176, %v1172
      %v1178 = vmul.f32 1.0, %v1177
      %v1179 = vrcp.pop %v727
      %v1180 = vmul.f32 %v727, %v1179
      %v1181 = vsub.f32 1.0, %v1180
      %v1182 = vmul.f32 %v1179, %v1181
      %v1183 = vadd.f32 %v1179, %v1182
      %vm1184 = vweird.f32 %v727
      %vm1185 = vweird.f32 %v1179
      %vm1186 = vmor %vm1184, %vm1185
      %v1187 = vsel %vm1186, %v1179, %v1183
      %v1188 = vand.u32 2147483647, %v727
      %vm1189 = vcmp.eq.f32.partialorder %v1188, 8.507059e+37
      %v1190 = vand.u32 %v727, 2147483648
      %v1191 = vor.u32 1.1754944e-38, %v1190
      %v1192 = vsel %vm1189, %v1191, %v1187
      %v1193 = vmul.f32 1.0, %v1192
      %v1194 = vrcp.pop %v728
      %v1195 = vmul.f32 %v728, %v1194
      %v1196 = vsub.f32 1.0, %v1195
      %v1197 = vmul.f32 %v1194, %v1196
      %v1198 = vadd.f32 %v1194, %v1197
      %vm1199 = vweird.f32 %v728
      %vm1200 = vweird.f32 %v1194
      %vm1201 = vmor %vm1199, %vm1200
      %v1202 = vsel %vm1201, %v1194, %v1198
      %v1203 = vand.u32 2147483647, %v728
      %vm1204 = vcmp.eq.f32.partialorder %v1203, 8.507059e+37
      %v1205 = vand.u32 %v728, 2147483648
      %v1206 = vor.u32 1.1754944e-38, %v1205
      %v1207 = vsel %vm1204, %v1206, %v1202
      %v1208 = vmul.f32 1.0, %v1207
      %v1209 = vmul.f32 %v569, %v743
      %v1210 = vmul.f32 %v570, %v758
      %v1211 = vmul.f32 %v571, %v773
      %v1212 = vmul.f32 %v572, %v788
      %v1213 = vmul.f32 %v573, %v803
      %v1214 = vmul.f32 %v574, %v818
      %v1215 = vmul.f32 %v575, %v833
      %v1216 = vmul.f32 %v576, %v848
      %v1217 = vmul.f32 %v577, %v863
      %v1218 = vmul.f32 %v578, %v878
      %v1219 = vmul.f32 %v579, %v893
      %v1220 = vmul.f32 %v580, %v908
      %v1221 = vmul.f32 %v581, %v923
      %v1222 = vmul.f32 %v582, %v938
      %v1223 = vmul.f32 %v583, %v953
      %v1224 = vmul.f32 %v584, %v968
      %v1225 = vmul.f32 %v585, %v983
      %v1226 = vmul.f32 %v586, %v998
      %v1227 = vmul.f32 %v587, %v1013
      %v1228 = vmul.f32 %v588, %v1028
      %v1229 = vmul.f32 %v589, %v1043
      %v1230 = vmul.f32 %v590, %v1058
      %v1231 = vmul.f32 %v591, %v1073
      %v1232 = vmul.f32 %v592, %v1088
      %v1233 = vmul.f32 %v593, %v1103
      %v1234 = vmul.f32 %v594, %v1118
      %v1235 = vmul.f32 %v595, %v1133
      %v1236 = vmul.f32 %v596, %v1148
      %v1237 = vmul.f32 %v597, %v1163
      %v1238 = vmul.f32 %v598, %v1178
      %v1239 = vmul.f32 %v599, %v1193
      %v1240 = vmul.f32 %v600, %v1208
      %1241 = vst [vmem:[%s224] sm:$0xff] %v1209
      %1242 = vst [vmem:[%s224 + $0x8] sm:$0xff] %v1210
      %1243 = vst [vmem:[%s224 + $0x10] sm:$0xff] %v1211
      %1244 = vst [vmem:[%s224 + $0x18] sm:$0xff] %v1212
      %1245 = vst [vmem:[%s224 + $0x20] sm:$0xff] %v1213
      %1246 = vst [vmem:[%s224 + $0x28] sm:$0xff] %v1214
      %1247 = vst [vmem:[%s224 + $0x30] sm:$0xff] %v1215
      %1248 = vst [vmem:[%s224 + $0x38] sm:$0xff] %v1216
      %1249 = vst [vmem:[%s224 + $0x40] sm:$0xff] %v1217
      %1250 = vst [vmem:[%s224 + $0x48] sm:$0xff] %v1218
      %1251 = vst [vmem:[%s224 + $0x50] sm:$0xff] %v1219
      %1252 = vst [vmem:[%s224 + $0x58] sm:$0xff] %v1220
      %1253 = vst [vmem:[%s224 + $0x60] sm:$0xff] %v1221
      %1254 = vst [vmem:[%s224 + $0x68] sm:$0xff] %v1222
      %1255 = vst [vmem:[%s224 + $0x70] sm:$0xff] %v1223
      %1256 = vst [vmem:[%s224 + $0x78] sm:$0xff] %v1224
      %1257 = vst [vmem:[%s224 + $0x80] sm:$0xff] %v1225
      %1258 = vst [vmem:[%s224 + $0x88] sm:$0xff] %v1226
      %1259 = vst [vmem:[%s224 + $0x90] sm:$0xff] %v1227
      %1260 = vst [vmem:[%s224 + $0x98] sm:$0xff] %v1228
      %1261 = vst [vmem:[%s224 + $0xa0] sm:$0xff] %v1229
      %1262 = vst [vmem:[%s224 + $0xa8] sm:$0xff] %v1230
      %1263 = vst [vmem:[%s224 + $0xb0] sm:$0xff] %v1231
      %1264 = vst [vmem:[%s224 + $0xb8] sm:$0xff] %v1232
      %1265 = vst [vmem:[%s224 + $0xc0] sm:$0xff] %v1233
      %1266 = vst [vmem:[%s224 + $0xc8] sm:$0xff] %v1234
      %1267 = vst [vmem:[%s224 + $0xd0] sm:$0xff] %v1235
      %1268 = vst [vmem:[%s224 + $0xd8] sm:$0xff] %v1236
      %1269 = vst [vmem:[%s224 + $0xe0] sm:$0xff] %v1237
      %1270 = vst [vmem:[%s224 + $0xe8] sm:$0xff] %v1238
      %1271 = vst [vmem:[%s224 + $0xf0] sm:$0xff] %v1239
      %1272 = vst [vmem:[%s224 + $0xf8] sm:$0xff] %v1240
      %p1273 = scmp.lt.s32.totalorder %s16, 7
      %s1274 = scalar_select %p1273, %s16, 7
      %s1275 = smul.addr %s1274, 32
      %s1276 = smul.addr %s1275, 8
      %s1277 = scalar_lea.vmem %s5, %s1276
      // Predicated region
      $region41: #{noise_sequence_rnn_v3_forward.36} parent=39 // pred_check
        %p1278 = pneg %p144
      $region42: #{noise_sequence_rnn_v3_forward.36} parent=39 // pred_check_branch
        %1280 = sbr.rel (%p1278) target = $region44
      $region43: #{noise_sequence_rnn_v3_forward.36} parent=39 // pred_region
        _
      $region44: #{noise_sequence_rnn_v3_forward.36} parent=39 // pred_fallthru
        _
    $region40: #{noise_sequence_rnn_v3_forward.36} parent=5 // pred_fallthru
      _
    %p1281 = scmp.le.s32.totalorder 2, %s11
    // Predicated region
    $region45: #{noise_sequence_rnn_v3_forward.36} parent=5 // pred_check
      %p1282 = pneg %p1281
    $region46: #{noise_sequence_rnn_v3_forward.36} parent=5 // pred_check_branch
      %1284 = sbr.rel (%p1282) target = $region48
    $region47: #{noise_sequence_rnn_v3_forward.36} parent=5 // pred_region
      %s1285 = ssub.s32 %s11, 2
      // Predicated region
      $region49: #{noise_sequence_rnn_v3_forward.36} parent=47 // pred_check
        %p1286 = pneg %p150
      $region50: #{noise_sequence_rnn_v3_forward.36} parent=47 // pred_check_branch
        %1288 = sbr.rel (%p1286) target = $region52
      $region51: #{noise_sequence_rnn_v3_forward.36} parent=47 // pred_region
        %p1289 = scmp.lt.s32.totalorder %s17, 7
        %s1290 = scalar_select %p1289, %s17, 7
        %s1291 = smul.addr %s1290, 32
        %s1292 = smul.addr %s1291, 8
        %s1293 = scalar_lea.vmem %s5, %s1292
      $region52: #{noise_sequence_rnn_v3_forward.36} parent=47 // pred_fallthru
        _
    $region48: #{noise_sequence_rnn_v3_forward.36} parent=5 // pred_fallthru
      _
  $region6: #{noise_sequence_rnn_v3_forward.36} parent=0 // loop_footer
    %s15 = sadd.s32 1, %s11
  $region7: #{noise_sequence_rnn_v3_forward.36} parent=0 // loop_footer_branch
    %10 = sbr.rel target = $region3
  $region8: #{noise_sequence_rnn_v3_forward.36} parent=0 // loop_exit
    _

// kernel: noise_sequence_rnn_v3_forward.41
$region0: #{noise_sequence_rnn_v3_forward.41}
  #allocation0 [shape = 'u32[]', space=smem, size = 0x4, offset = 0x4, fixed_abs, tag = 'smem constant byte address 0x4 - core index']
  #allocation1 [shape = 'u32[72,128]{1,0:T(1,128)}', space=vmem, size = 0x9000, scoped, tag = 'internal scratch']
  %s0 = inlined_call_operand.vmem [shape: f32[8,64,128], index: 0, kind: input, shape index: {}]
  %s1 = inlined_call_operand.vmem [shape: f32[1,128], index: 1, kind: input, shape index: {}]
  %s2 = inlined_call_operand.vmem [shape: f32[1,128], index: 2, kind: input, shape index: {}]
  %s3 = inlined_call_operand.vmem [shape: f32[128,128], index: 3, kind: input, shape index: {}]
  %s4 = inlined_call_operand.vmem [shape: f32[128,128], index: 4, kind: input, shape index: {}]
  %s5 = inlined_call_operand.vmem [shape: f32[8,64,128], index: 5, kind: output, shape index: {}]
  %s6 = sld [smem:[#allocation0]]
  $region53: #{noise_sequence_rnn_v3_forward.41} parent=0
    _
  %s8 = ssub.s32 1, %s6
  %s9 = scalar_select 0, %s8, %s6
  loop: start=0, step=1, limit=10
  $region2: #{noise_sequence_rnn_v3_forward.41} parent=0 // loop_pre_header
    _
  $region3: #{noise_sequence_rnn_v3_forward.41} parent=0 // loop_header
    %s11 = sphi 0, %s15
    %p12 = scmp.ge.s32.totalorder %s11, 10
    %s21 = sphi 0, %s23
    %s24 = sphi 0, %s21
    %s25 = sphi 0, %s24
    %s41 = sphi 0, %s25
    %s45 = sphi 0, %s45
    %s47 = sphi 0, %s45
    %s48 = sphi 0, %s47
    %s62 = sphi 0, %s48
    %s66 = sphi 0, %s66
    %s68 = sphi 0, %s66
    %s69 = sphi 0, %s68
    %s83 = sphi 0, %s69
    %s87 = sphi 0, %s87
    %s89 = sphi 0, %s87
    %s90 = sphi 0, %s89
    %s104 = sphi 0, %s90
    %s108 = sphi 0, %s108
    %s110 = sphi 0, %s108
    %s111 = sphi 0, %s110
    %s125 = sphi 0, %s111
    %s131 = sphi 0, %s133
    %s134 = sphi 0, %s131
    %s135 = sphi 0, %s134
    %s151 = sphi 0, %s135
  $region4: #{noise_sequence_rnn_v3_forward.41} parent=0 // loop_header_branch
    %14 = sbr.rel (%p12) target = $region8
  $region5: #{noise_sequence_rnn_v3_forward.41} parent=0 // loop_body
    %s16 = ssub.s32 %s11, 1
    %s17 = ssub.s32 %s11, 2
    %s18 = sadd.s32 %s11, 1
    %s19 = ssub.s32 %s11, %s18
    %p20 = scmp.eq.s32.totalorder %s19, 0
    %s22 = sadd.s32 %s21, 1
    %s23 = scalar_select %p20, %s21, %s22
    %p26 = pneg %p20
    %p27 = scmp.eq.s32.totalorder %s11, 7
    %p28 = por %p26, %p27
    %p29 = scmp.ne.s32.totalorder %s21, %s24
    %p30 = scmp.eq.s32.totalorder %s11, 0
    %p31 = por %p29, %p30
    %p32 = scmp.ne.s32.totalorder %s21, %s24
    %p33 = scmp.eq.s32.totalorder %s16, 7
    %p34 = por %p32, %p33
    %p35 = scmp.ne.s32.totalorder %s24, %s25
    %p36 = scmp.eq.s32.totalorder %s16, 0
    %p37 = por %p35, %p36
    %p38 = scmp.ne.s32.totalorder %s24, %s25
    %p39 = scmp.eq.s32.totalorder %s17, 7
    %p40 = por %p38, %p39
    %p42 = scmp.ne.s32.totalorder %s25, %s41
    %p43 = scmp.eq.s32.totalorder %s17, 0
    %p44 = por %p42, %p43
    %s46 = sadd.s32 %s45, 1
    %p49 = scmp.eq.s32.totalorder %s11, 7
    %p50 = scmp.ne.s32.totalorder %s45, %s47
    %p51 = scmp.eq.s32.totalorder %s11, 0
    %p52 = por %p50, %p51
    %p53 = scmp.ne.s32.totalorder %s45, %s47
    %p54 = scmp.eq.s32.totalorder %s16, 7
    %p55 = por %p53, %p54
    %p56 = scmp.ne.s32.totalorder %s47, %s48
    %p57 = scmp.eq.s32.totalorder %s16, 0
    %p58 = por %p56, %p57
    %p59 = scmp.ne.s32.totalorder %s47, %s48
    %p60 = scmp.eq.s32.totalorder %s17, 7
    %p61 = por %p59, %p60
    %p63 = scmp.ne.s32.totalorder %s48, %s62
    %p64 = scmp.eq.s32.totalorder %s17, 0
    %p65 = por %p63, %p64
    %s67 = sadd.s32 %s66, 1
    %p70 = scmp.eq.s32.totalorder %s11, 7
    %p71 = scmp.ne.s32.totalorder %s66, %s68
    %p72 = scmp.eq.s32.totalorder %s11, 0
    %p73 = por %p71, %p72
    %p74 = scmp.ne.s32.totalorder %s66, %s68
    %p75 = scmp.eq.s32.totalorder %s16, 7
    %p76 = por %p74, %p75
    %p77 = scmp.ne.s32.totalorder %s68, %s69
    %p78 = scmp.eq.s32.totalorder %s16, 0
    %p79 = por %p77, %p78
    %p80 = scmp.ne.s32.totalorder %s68, %s69
    %p81 = scmp.eq.s32.totalorder %s17, 7
    %p82 = por %p80, %p81
    %p84 = scmp.ne.s32.totalorder %s69, %s83
    %p85 = scmp.eq.s32.totalorder %s17, 0
    %p86 = por %p84, %p85
    %s88 = sadd.s32 %s87, 1
    %p91 = scmp.eq.s32.totalorder %s11, 7
    %p92 = scmp.ne.s32.totalorder %s87, %s89
    %p93 = scmp.eq.s32.totalorder %s11, 0
    %p94 = por %p92, %p93
    %p95 = scmp.ne.s32.totalorder %s87, %s89
    %p96 = scmp.eq.s32.totalorder %s16, 7
    %p97 = por %p95, %p96
    %p98 = scmp.ne.s32.totalorder %s89, %s90
    %p99 = scmp.eq.s32.totalorder %s16, 0
    %p100 = por %p98, %p99
    %p101 = scmp.ne.s32.totalorder %s89, %s90
    %p102 = scmp.eq.s32.totalorder %s17, 7
    %p103 = por %p101, %p102
    %p105 = scmp.ne.s32.totalorder %s90, %s104
    %p106 = scmp.eq.s32.totalorder %s17, 0
    %p107 = por %p105, %p106
    %s109 = sadd.s32 %s108, 1
    %p112 = scmp.eq.s32.totalorder %s11, 7
    %p113 = scmp.ne.s32.totalorder %s108, %s110
    %p114 = scmp.eq.s32.totalorder %s11, 0
    %p115 = por %p113, %p114
    %p116 = scmp.ne.s32.totalorder %s108, %s110
    %p117 = scmp.eq.s32.totalorder %s16, 7
    %p118 = por %p116, %p117
    %p119 = scmp.ne.s32.totalorder %s110, %s111
    %p120 = scmp.eq.s32.totalorder %s16, 0
    %p121 = por %p119, %p120
    %p122 = scmp.ne.s32.totalorder %s110, %s111
    %p123 = scmp.eq.s32.totalorder %s17, 7
    %p124 = por %p122, %p123
    %p126 = scmp.ne.s32.totalorder %s111, %s125
    %p127 = scmp.eq.s32.totalorder %s17, 0
    %p128 = por %p126, %p127
    %s129 = ssub.s32 %s11, %s18
    %p130 = scmp.eq.s32.totalorder %s129, 0
    %s132 = sadd.s32 %s131, 1
    %s133 = scalar_select %p130, %s131, %s132
    %p136 = pneg %p130
    %p137 = scmp.eq.s32.totalorder %s11, 7
    %p138 = por %p136, %p137
    %p139 = scmp.ne.s32.totalorder %s131, %s134
    %p140 = scmp.eq.s32.totalorder %s11, 0
    %p141 = por %p139, %p140
    %p142 = scmp.ne.s32.totalorder %s131, %s134
    %p143 = scmp.eq.s32.totalorder %s16, 7
    %p144 = por %p142, %p143
    %p145 = scmp.ne.s32.totalorder %s134, %s135
    %p146 = scmp.eq.s32.totalorder %s16, 0
    %p147 = por %p145, %p146
    %p148 = scmp.ne.s32.totalorder %s134, %s135
    %p149 = scmp.eq.s32.totalorder %s17, 7
    %p150 = por %p148, %p149
    %p152 = scmp.ne.s32.totalorder %s135, %s151
    %p153 = scmp.eq.s32.totalorder %s17, 0
    %p154 = por %p152, %p153
    %p155 = scmp.le.s32.totalorder 1, %s11
    %p156 = scmp.lt.s32.totalorder %s11, 9
    %p157 = pnand %p155, %p156
    %p158 = pneg %p157
    // Predicated region
    $region9: #{noise_sequence_rnn_v3_forward.41} parent=5 // pred_check
      _
    $region10: #{noise_sequence_rnn_v3_forward.41} parent=5 // pred_check_branch
      %160 = sbr.rel (%p157) target = $region12
    $region11: #{noise_sequence_rnn_v3_forward.41} parent=5 // pred_region
      %s161 = ssub.s32 %s11, 1
      // Predicated region
      $region13: #{noise_sequence_rnn_v3_forward.41} parent=11 // pred_check
        %p162 = pneg %p58
      $region14: #{noise_sequence_rnn_v3_forward.41} parent=11 // pred_check_branch
        %164 = sbr.rel (%p162) target = $region16
      $region15: #{noise_sequence_rnn_v3_forward.41} parent=11 // pred_region
        _
      $region16: #{noise_sequence_rnn_v3_forward.41} parent=11 // pred_fallthru
        _
      // Predicated region
      $region17: #{noise_sequence_rnn_v3_forward.41} parent=11 // pred_check
        %p165 = pneg %p79
      $region18: #{noise_sequence_rnn_v3_forward.41} parent=11 // pred_check_branch
        %167 = sbr.rel (%p165) target = $region20
      $region19: #{noise_sequence_rnn_v3_forward.41} parent=11 // pred_region
        _
      $region20: #{noise_sequence_rnn_v3_forward.41} parent=11 // pred_fallthru
        _
      // Predicated region
      $region21: #{noise_sequence_rnn_v3_forward.41} parent=11 // pred_check
        %p168 = pneg %p100
      $region22: #{noise_sequence_rnn_v3_forward.41} parent=11 // pred_check_branch
        %170 = sbr.rel (%p168) target = $region24
      $region23: #{noise_sequence_rnn_v3_forward.41} parent=11 // pred_region
        _
      $region24: #{noise_sequence_rnn_v3_forward.41} parent=11 // pred_fallthru
        _
      // Predicated region
      $region25: #{noise_sequence_rnn_v3_forward.41} parent=11 // pred_check
        %p171 = pneg %p121
      $region26: #{noise_sequence_rnn_v3_forward.41} parent=11 // pred_check_branch
        %173 = sbr.rel (%p171) target = $region28
      $region27: #{noise_sequence_rnn_v3_forward.41} parent=11 // pred_region
        _
      $region28: #{noise_sequence_rnn_v3_forward.41} parent=11 // pred_fallthru
        _
    $region12: #{noise_sequence_rnn_v3_forward.41} parent=5 // pred_fallthru
      _
    %p174 = scmp.lt.s32.totalorder %s11, 8
    // Predicated region
    $region29: #{noise_sequence_rnn_v3_forward.41} parent=5 // pred_check
      %p175 = pneg %p174
    $region30: #{noise_sequence_rnn_v3_forward.41} parent=5 // pred_check_branch
      %177 = sbr.rel (%p175) target = $region32
    $region31: #{noise_sequence_rnn_v3_forward.41} parent=5 // pred_region
      // Predicated region
      $region33: #{noise_sequence_rnn_v3_forward.41} parent=31 // pred_check
        %p178 = pneg %p31
      $region34: #{noise_sequence_rnn_v3_forward.41} parent=31 // pred_check_branch
        %180 = sbr.rel (%p178) target = $region36
      $region35: #{noise_sequence_rnn_v3_forward.41} parent=31 // pred_region
        %p181 = scmp.lt.s32.totalorder %s11, 7
        %s182 = scalar_select %p181, %s11, 7
        %s183 = smul.addr %s182, 8
        %s184 = smul.addr %s183, 8
        %s185 = scalar_lea.vmem %s0, %s184
      $region36: #{noise_sequence_rnn_v3_forward.41} parent=31 // pred_fallthru
        _
    $region32: #{noise_sequence_rnn_v3_forward.41} parent=5 // pred_fallthru
      _
    %p186 = scmp.le.s32.totalorder 1, %s11
    %p187 = scmp.lt.s32.totalorder %s11, 9
    %p188 = pnand %p186, %p187
    %p189 = pneg %p188
    // Predicated region
    $region37: #{noise_sequence_rnn_v3_forward.41} parent=5 // pred_check
      _
    $region38: #{noise_sequence_rnn_v3_forward.41} parent=5 // pred_check_branch
      %191 = sbr.rel (%p188) target = $region40
    $region39: #{noise_sequence_rnn_v3_forward.41} parent=5 // pred_region
      %s192 = ssub.s32 %s11, 1
      %p193 = scmp.lt.s32.totalorder %s16, 7
      %s194 = scalar_select %p193, %s16, 7
      %s195 = smul.addr %s194, 8
      %s196 = smul.addr %s195, 8
      %s197 = scalar_lea.vmem %s0, %s196
      %p198 = pneg %p37
      %p199 = pneg %p34
      %p200 = pneg %p58
      %p201 = pneg %p55
      %p202 = pneg %p79
      %p203 = pneg %p76
      %p204 = pneg %p100
      %p205 = pneg %p97
      %p206 = pneg %p121
      %p207 = pneg %p118
      %p208 = pneg %p147
      %p209 = pneg %p144
      %p210 = scmp.lt.s32.totalorder %s16, 7
      %s211 = scalar_select %p210, %s16, 7
      %s212 = smul.addr %s211, 8
      %s213 = smul.addr %s212, 8
      %s214 = scalar_lea.vmem %s5, %s213
      %p215 = scmp.lt.s32.totalorder %s16, 7
      %s216 = scalar_select %p215, %s16, 7
      %s217 = smul.addr %s216, 8
      %s218 = smul.addr %s217, 8
      %s219 = scalar_lea.vmem %s0, %s218
      %p220 = scmp.lt.s32.totalorder %s16, 7
      %s221 = scalar_select %p220, %s16, 7
      %s222 = smul.addr %s221, 8
      %s223 = smul.addr %s222, 8
      %s224 = scalar_lea.vmem %s5, %s223
      %v225 = vld [vmem:[%s219] sm:$0xff]
      %v226 = vld [vmem:[%s219 + $0x8] sm:$0xff]
      %v227 = vld [vmem:[%s219 + $0x10] sm:$0xff]
      %v228 = vld [vmem:[%s219 + $0x18] sm:$0xff]
      %v229 = vld [vmem:[%s219 + $0x20] sm:$0xff]
      %v230 = vld [vmem:[%s219 + $0x28] sm:$0xff]
      %v231 = vld [vmem:[%s219 + $0x30] sm:$0xff]
      %v232 = vld [vmem:[%s219 + $0x38] sm:$0xff]
      %v233 = vadd.f32 %v225, %v226
      %v234 = vadd.f32 %v233, %v227
      %v235 = vadd.f32 %v234, %v228
      %v236 = vadd.f32 %v235, %v229
      %v237 = vadd.f32 %v236, %v230
      %v238 = vadd.f32 %v237, %v231
      %v239 = vadd.f32 %v238, %v232
      %v240 = vrot.slane %v239, 4
      %v241 = vadd.f32 %v239, %v240
      %v242 = vrot.slane %v241, 2
      %v243 = vadd.f32 %v241, %v242
      %v244 = vrot.slane %v243, 1
      %v245 = vadd.f32 %v243, %v244
      %v246 = vmul.f32 %v225, %v225
      %v247 = vmul.f32 %v226, %v226
      %v248 = vmul.f32 %v227, %v227
      %v249 = vmul.f32 %v228, %v228
      %v250 = vmul.f32 %v229, %v229
      %v251 = vmul.f32 %v230, %v230
      %v252 = vmul.f32 %v231, %v231
      %v253 = vmul.f32 %v232, %v232
      %v254 = vadd.f32 %v246, %v247
      %v255 = vadd.f32 %v254, %v248
      %v256 = vadd.f32 %v255, %v249
      %v257 = vadd.f32 %v256, %v250
      %v258 = vadd.f32 %v257, %v251
      %v259 = vadd.f32 %v258, %v252
      %v260 = vadd.f32 %v259, %v253
      %v261 = vrot.slane %v260, 4
      %v262 = vadd.f32 %v260, %v261
      %v263 = vrot.slane %v262, 2
      %v264 = vadd.f32 %v262, %v263
      %v265 = vrot.slane %v264, 1
      %v266 = vadd.f32 %v264, %v265
      %v267 = vld [vmem:[%s3] sm:$0xff]
      %v268 = vld [vmem:[%s3 + $0x8] sm:$0xff]
      %v269 = vld [vmem:[%s3 + $0x10] sm:$0xff]
      %v270 = vld [vmem:[%s3 + $0x18] sm:$0xff]
      %v271 = vld [vmem:[%s3 + $0x20] sm:$0xff]
      %v272 = vld [vmem:[%s3 + $0x28] sm:$0xff]
      %v273 = vld [vmem:[%s3 + $0x30] sm:$0xff]
      %v274 = vld [vmem:[%s3 + $0x38] sm:$0xff]
      %v275 = vld [vmem:[%s3 + $0x40] sm:$0xff]
      %v276 = vld [vmem:[%s3 + $0x48] sm:$0xff]
      %v277 = vld [vmem:[%s3 + $0x50] sm:$0xff]
      %v278 = vld [vmem:[%s3 + $0x58] sm:$0xff]
      %v279 = vld [vmem:[%s3 + $0x60] sm:$0xff]
      %v280 = vld [vmem:[%s3 + $0x68] sm:$0xff]
      %v281 = vld [vmem:[%s3 + $0x70] sm:$0xff]
      %v282 = vld [vmem:[%s3 + $0x78] sm:$0xff]
      %v283 = vadd.f32 %v267, %v268
      %v284 = vadd.f32 %v283, %v269
      %v285 = vadd.f32 %v284, %v270
      %v286 = vadd.f32 %v285, %v271
      %v287 = vadd.f32 %v286, %v272
      %v288 = vadd.f32 %v287, %v273
      %v289 = vadd.f32 %v288, %v274
      %v290 = vadd.f32 %v289, %v275
      %v291 = vadd.f32 %v290, %v276
      %v292 = vadd.f32 %v291, %v277
      %v293 = vadd.f32 %v292, %v278
      %v294 = vadd.f32 %v293, %v279
      %v295 = vadd.f32 %v294, %v280
      %v296 = vadd.f32 %v295, %v281
      %v297 = vadd.f32 %v296, %v282
      %v298 = vrot.slane %v297, 4
      %v299 = vadd.f32 %v297, %v298
      %v300 = vrot.slane %v299, 2
      %v301 = vadd.f32 %v299, %v300
      %v302 = vrot.slane %v301, 1
      %v303 = vadd.f32 %v301, %v302
      %v304 = vmul.f32 %v303, 64.0
      %v305 = vmax.f32 %v304, 1.0
      %306 = vmatpush.msra.mxu0 %v282
      %307 = vmatpush.msra.mxu0 %v281
      %308 = vmatpush.msra.mxu0 %v280
      %309 = vmatpush.msra.mxu0 %v279
      %310 = vmatpush.msra.mxu0 %v278
      %311 = vmatpush.msra.mxu0 %v277
      %312 = vmatpush.msra.mxu0 %v276
      %313 = vmatpush.msra.mxu0 %v275
      %314 = vmatpush.msra.mxu0 %v274
      %315 = vmatpush.msra.mxu0 %v273
      %316 = vmatpush.msra.mxu0 %v272
      %317 = vmatpush.msra.mxu0 %v271
      %318 = vmatpush.msra.mxu0 %v270
      %319 = vmatpush.msra.mxu0 %v269
      %320 = vmatpush.msra.mxu0 %v268
      %321 = vmatpush.msra.mxu0 %v267
      %322 = vmatmul.f32.gmra.mxu0 %v245
      %v323 = vpop.f32.mrf.mxu0
      %v324 = vadd.f32 0.0, %v323
      %325 = vdwg.mxu0
      %v326 = vrcp.pop %v305
      %v327 = vmul.f32 %v305, %v326
      %v328 = vsub.f32 1.0, %v327
      %v329 = vmul.f32 %v326, %v328
      %v330 = vadd.f32 %v326, %v329
      %vm331 = vweird.f32 %v305
      %vm332 = vweird.f32 %v326
      %vm333 = vmor %vm331, %vm332
      %v334 = vsel %vm333, %v326, %v330
      %v335 = vand.u32 2147483647, %v305
      %vm336 = vcmp.eq.f32.partialorder %v335, 8.507059e+37
      %v337 = vand.u32 %v305, 2147483648
      %v338 = vor.u32 1.1754944e-38, %v337
      %v339 = vsel %vm336, %v338, %v334
      %v340 = vmul.f32 %v324, %v339
      %341 = vmatpush.msra.mxu0 %v282
      %342 = vmatpush.msra.mxu0 %v281
      %343 = vmatpush.msra.mxu0 %v280
      %344 = vmatpush.msra.mxu0 %v279
      %345 = vmatpush.msra.mxu0 %v278
      %346 = vmatpush.msra.mxu0 %v277
      %347 = vmatpush.msra.mxu0 %v276
      %348 = vmatpush.msra.mxu0 %v275
      %349 = vmatpush.msra.mxu0 %v274
      %350 = vmatpush.msra.mxu0 %v273
      %351 = vmatpush.msra.mxu0 %v272
      %352 = vmatpush.msra.mxu0 %v271
      %353 = vmatpush.msra.mxu0 %v270
      %354 = vmatpush.msra.mxu0 %v269
      %355 = vmatpush.msra.mxu0 %v268
      %356 = vmatpush.msra.mxu0 %v267
      %357 = vmatmul.f32.gmra.mxu0 %v266
      %v358 = vpop.f32.mrf.mxu0
      %v359 = vadd.f32 0.0, %v358
      %360 = vdwg.mxu0
      %v361 = vmul.f32 %v359, %v339
      %v362 = vmul.f32 %v340, %v340
      %v363 = vsub.f32 %v361, %v362
      %v364 = vmax.f32 %v363, 0.0
      %v365 = vadd.f32 %v364, 1e-05
      %v366 = vrsqrt.pop %v365
      %v367 = vmul.f32 %v366, %v365
      %v368 = vmul.f32 %v367, %v366
      %v369 = vmul.f32 0.5, %v368
      %v370 = vsub.f32 1.5, %v369
      %v371 = vmul.f32 %v366, %v370
      %vm372 = vweird.f32 %v365
      %vm373 = vweird.f32 %v366
      %vm374 = vmor %vm372, %vm373
      %v375 = vsel %vm374, %v366, %v371
      %v376 = vld [vmem:[%s4] sm:$0xff]
      %v377 = vld [vmem:[%s4 + $0x8] sm:$0xff]
      %v378 = vld [vmem:[%s4 + $0x10] sm:$0xff]
      %v379 = vld [vmem:[%s4 + $0x18] sm:$0xff]
      %v380 = vld [vmem:[%s4 + $0x20] sm:$0xff]
      %v381 = vld [vmem:[%s4 + $0x28] sm:$0xff]
      %v382 = vld [vmem:[%s4 + $0x30] sm:$0xff]
      %v383 = vld [vmem:[%s4 + $0x38] sm:$0xff]
      %v384 = vld [vmem:[%s4 + $0x40] sm:$0xff]
      %v385 = vld [vmem:[%s4 + $0x48] sm:$0xff]
      %v386 = vld [vmem:[%s4 + $0x50] sm:$0xff]
      %v387 = vld [vmem:[%s4 + $0x58] sm:$0xff]
      %v388 = vld [vmem:[%s4 + $0x60] sm:$0xff]
      %v389 = vld [vmem:[%s4 + $0x68] sm:$0xff]
      %v390 = vld [vmem:[%s4 + $0x70] sm:$0xff]
      %v391 = vld [vmem:[%s4 + $0x78] sm:$0xff]
      %392 = vmatpush.msra.mxu0 %v391
      %393 = vmatpush.msra.mxu0 %v390
      %394 = vmatpush.msra.mxu0 %v389
      %395 = vmatpush.msra.mxu0 %v388
      %396 = vmatpush.msra.mxu0 %v387
      %397 = vmatpush.msra.mxu0 %v386
      %398 = vmatpush.msra.mxu0 %v385
      %399 = vmatpush.msra.mxu0 %v384
      %400 = vmatpush.msra.mxu0 %v383
      %401 = vmatpush.msra.mxu0 %v382
      %402 = vmatpush.msra.mxu0 %v381
      %403 = vmatpush.msra.mxu0 %v380
      %404 = vmatpush.msra.mxu0 %v379
      %405 = vmatpush.msra.mxu0 %v378
      %406 = vmatpush.msra.mxu0 %v377
      %407 = vmatpush.msra.mxu0 %v376
      %408 = vmatmul.f32.gmra.mxu0 %v340
      %v409 = vpop.f32.mrf.mxu0
      %v410 = vadd.f32 0.0, %v409
      %411 = vdwg.mxu0
      %412 = vmatpush.msra.mxu0 %v391
      %413 = vmatpush.msra.mxu0 %v390
      %414 = vmatpush.msra.mxu0 %v389
      %415 = vmatpush.msra.mxu0 %v388
      %416 = vmatpush.msra.mxu0 %v387
      %417 = vmatpush.msra.mxu0 %v386
      %418 = vmatpush.msra.mxu0 %v385
      %419 = vmatpush.msra.mxu0 %v384
      %420 = vmatpush.msra.mxu0 %v383
      %421 = vmatpush.msra.mxu0 %v382
      %422 = vmatpush.msra.mxu0 %v381
      %423 = vmatpush.msra.mxu0 %v380
      %424 = vmatpush.msra.mxu0 %v379
      %425 = vmatpush.msra.mxu0 %v378
      %426 = vmatpush.msra.mxu0 %v377
      %427 = vmatpush.msra.mxu0 %v376
      %428 = vmatmul.f32.gmra.mxu0 %v375
      %v429 = vpop.f32.mrf.mxu0
      %v430 = vadd.f32 0.0, %v429
      %431 = vdwg.mxu0
      %v432 = vld [vmem:[%s1] sm:$0x1]
      %v433 = vmul.f32 %v430, %v432
      %v434 = vld [vmem:[%s2] sm:$0x1]
      %v435 = vmul.f32 %v410, %v433
      %v436 = vsub.f32 %v434, %v435
      %v437 = vperm.slane %v433, 0
      %v438 = vmul.f32 %v225, %v437
      %v439 = vmul.f32 %v226, %v437
      %v440 = vmul.f32 %v227, %v437
      %v441 = vmul.f32 %v228, %v437
      %v442 = vmul.f32 %v229, %v437
      %v443 = vmul.f32 %v230, %v437
      %v444 = vmul.f32 %v231, %v437
      %v445 = vmul.f32 %v232, %v437
      %v447 = vperm.slane %v436, 0
      %v449 = vadd.f32 %v438, %v447
      %v450 = vadd.f32 %v439, %v447
      %v451 = vadd.f32 %v440, %v447
      %v452 = vadd.f32 %v441, %v447
      %v453 = vadd.f32 %v442, %v447
      %v454 = vadd.f32 %v443, %v447
      %v455 = vadd.f32 %v444, %v447
      %v456 = vadd.f32 %v445, %v447
      %v457 = vxor.u32 %v449, 2147483648
      %v458 = vxor.u32 %v450, 2147483648
      %v459 = vxor.u32 %v451, 2147483648
      %v460 = vxor.u32 %v452, 2147483648
      %v461 = vxor.u32 %v453, 2147483648
      %v462 = vxor.u32 %v454, 2147483648
      %v463 = vxor.u32 %v455, 2147483648
      %v464 = vxor.u32 %v456, 2147483648
      %v465 = vmul.f32 %v457, 1.442695
      %v466 = vpow.pop %v465
      %v467 = vmul.f32 %v458, 1.442695
      %v468 = vpow.pop %v467
      %v469 = vmul.f32 %v459, 1.442695
      %v470 = vpow.pop %v469
      %v471 = vmul.f32 %v460, 1.442695
      %v472 = vpow.pop %v471
      %v473 = vmul.f32 %v461, 1.442695
      %v474 = vpow.pop %v473
      %v475 = vmul.f32 %v462, 1.442695
      %v476 = vpow.pop %v475
      %v477 = vmul.f32 %v463, 1.442695
      %v478 = vpow.pop %v477
      %v479 = vmul.f32 %v464, 1.442695
      %v480 = vpow.pop %v479
      %v481 = vadd.f32 %v466, 1.0
      %v482 = vadd.f32 %v468, 1.0
      %v483 = vadd.f32 %v470, 1.0
      %v484 = vadd.f32 %v472, 1.0
      %v485 = vadd.f32 %v474, 1.0
      %v486 = vadd.f32 %v476, 1.0
      %v487 = vadd.f32 %v478, 1.0
      %v488 = vadd.f32 %v480, 1.0
      %v489 = vrcp.pop %v481
      %v490 = vmul.f32 %v481, %v489
      %v491 = vsub.f32 1.0, %v490
      %v492 = vmul.f32 %v489, %v491
      %v493 = vadd.f32 %v489, %v492
      %vm494 = vweird.f32 %v481
      %vm495 = vweird.f32 %v489
      %vm496 = vmor %vm494, %vm495
      %v497 = vsel %vm496, %v489, %v493
      %v498 = vand.u32 2147483647, %v481
      %vm499 = vcmp.eq.f32.partialorder %v498, 8.507059e+37
      %v500 = vand.u32 %v481, 2147483648
      %v501 = vor.u32 1.1754944e-38, %v500
      %v502 = vsel %vm499, %v501, %v497
      %v503 = vmul.f32 1.0, %v502
      %v504 = vrcp.pop %v482
      %v505 = vmul.f32 %v482, %v504
      %v506 = vsub.f32 1.0, %v505
      %v507 = vmul.f32 %v504, %v506
      %v508 = vadd.f32 %v504, %v507
      %vm509 = vweird.f32 %v482
      %vm510 = vweird.f32 %v504
      %vm511 = vmor %vm509, %vm510
      %v512 = vsel %vm511, %v504, %v508
      %v513 = vand.u32 2147483647, %v482
      %vm514 = vcmp.eq.f32.partialorder %v513, 8.507059e+37
      %v515 = vand.u32 %v482, 2147483648
      %v516 = vor.u32 1.1754944e-38, %v515
      %v517 = vsel %vm514, %v516, %v512
      %v518 = vmul.f32 1.0, %v517
      %v519 = vrcp.pop %v483
      %v520 = vmul.f32 %v483, %v519
      %v521 = vsub.f32 1.0, %v520
      %v522 = vmul.f32 %v519, %v521
      %v523 = vadd.f32 %v519, %v522
      %vm524 = vweird.f32 %v483
      %vm525 = vweird.f32 %v519
      %vm526 = vmor %vm524, %vm525
      %v527 = vsel %vm526, %v519, %v523
      %v528 = vand.u32 2147483647, %v483
      %vm529 = vcmp.eq.f32.partialorder %v528, 8.507059e+37
      %v530 = vand.u32 %v483, 2147483648
      %v531 = vor.u32 1.1754944e-38, %v530
      %v532 = vsel %vm529, %v531, %v527
      %v533 = vmul.f32 1.0, %v532
      %v534 = vrcp.pop %v484
      %v535 = vmul.f32 %v484, %v534
      %v536 = vsub.f32 1.0, %v535
      %v537 = vmul.f32 %v534, %v536
      %v538 = vadd.f32 %v534, %v537
      %vm539 = vweird.f32 %v484
      %vm540 = vweird.f32 %v534
      %vm541 = vmor %vm539, %vm540
      %v542 = vsel %vm541, %v534, %v538
      %v543 = vand.u32 2147483647, %v484
      %vm544 = vcmp.eq.f32.partialorder %v543, 8.507059e+37
      %v545 = vand.u32 %v484, 2147483648
      %v546 = vor.u32 1.1754944e-38, %v545
      %v547 = vsel %vm544, %v546, %v542
      %v548 = vmul.f32 1.0, %v547
      %v549 = vrcp.pop %v485
      %v550 = vmul.f32 %v485, %v549
      %v551 = vsub.f32 1.0, %v550
      %v552 = vmul.f32 %v549, %v551
      %v553 = vadd.f32 %v549, %v552
      %vm554 = vweird.f32 %v485
      %vm555 = vweird.f32 %v549
      %vm556 = vmor %vm554, %vm555
      %v557 = vsel %vm556, %v549, %v553
      %v558 = vand.u32 2147483647, %v485
      %vm559 = vcmp.eq.f32.partialorder %v558, 8.507059e+37
      %v560 = vand.u32 %v485, 2147483648
      %v561 = vor.u32 1.1754944e-38, %v560
      %v562 = vsel %vm559, %v561, %v557
      %v563 = vmul.f32 1.0, %v562
      %v564 = vrcp.pop %v486
      %v565 = vmul.f32 %v486, %v564
      %v566 = vsub.f32 1.0, %v565
      %v567 = vmul.f32 %v564, %v566
      %v568 = vadd.f32 %v564, %v567
      %vm569 = vweird.f32 %v486
      %vm570 = vweird.f32 %v564
      %vm571 = vmor %vm569, %vm570
      %v572 = vsel %vm571, %v564, %v568
      %v573 = vand.u32 2147483647, %v486
      %vm574 = vcmp.eq.f32.partialorder %v573, 8.507059e+37
      %v575 = vand.u32 %v486, 2147483648
      %v576 = vor.u32 1.1754944e-38, %v575
      %v577 = vsel %vm574, %v576, %v572
      %v578 = vmul.f32 1.0, %v577
      %v579 = vrcp.pop %v487
      %v580 = vmul.f32 %v487, %v579
      %v581 = vsub.f32 1.0, %v580
      %v582 = vmul.f32 %v579, %v581
      %v583 = vadd.f32 %v579, %v582
      %vm584 = vweird.f32 %v487
      %vm585 = vweird.f32 %v579
      %vm586 = vmor %vm584, %vm585
      %v587 = vsel %vm586, %v579, %v583
      %v588 = vand.u32 2147483647, %v487
      %vm589 = vcmp.eq.f32.partialorder %v588, 8.507059e+37
      %v590 = vand.u32 %v487, 2147483648
      %v591 = vor.u32 1.1754944e-38, %v590
      %v592 = vsel %vm589, %v591, %v587
      %v593 = vmul.f32 1.0, %v592
      %v594 = vrcp.pop %v488
      %v595 = vmul.f32 %v488, %v594
      %v596 = vsub.f32 1.0, %v595
      %v597 = vmul.f32 %v594, %v596
      %v598 = vadd.f32 %v594, %v597
      %vm599 = vweird.f32 %v488
      %vm600 = vweird.f32 %v594
      %vm601 = vmor %vm599, %vm600
      %v602 = vsel %vm601, %v594, %v598
      %v603 = vand.u32 2147483647, %v488
      %vm604 = vcmp.eq.f32.partialorder %v603, 8.507059e+37
      %v605 = vand.u32 %v488, 2147483648
      %v606 = vor.u32 1.1754944e-38, %v605
      %v607 = vsel %vm604, %v606, %v602
      %v608 = vmul.f32 1.0, %v607
      %v609 = vmul.f32 %v449, %v503
      %v610 = vmul.f32 %v450, %v518
      %v611 = vmul.f32 %v451, %v533
      %v612 = vmul.f32 %v452, %v548
      %v613 = vmul.f32 %v453, %v563
      %v614 = vmul.f32 %v454, %v578
      %v615 = vmul.f32 %v455, %v593
      %v616 = vmul.f32 %v456, %v608
      %617 = vst [vmem:[%s224] sm:$0xff] %v609
      %618 = vst [vmem:[%s224 + $0x8] sm:$0xff] %v610
      %619 = vst [vmem:[%s224 + $0x10] sm:$0xff] %v611
      %620 = vst [vmem:[%s224 + $0x18] sm:$0xff] %v612
      %621 = vst [vmem:[%s224 + $0x20] sm:$0xff] %v613
      %622 = vst [vmem:[%s224 + $0x28] sm:$0xff] %v614
      %623 = vst [vmem:[%s224 + $0x30] sm:$0xff] %v615
      %624 = vst [vmem:[%s224 + $0x38] sm:$0xff] %v616
      %p625 = scmp.lt.s32.totalorder %s16, 7
      %s626 = scalar_select %p625, %s16, 7
      %s627 = smul.addr %s626, 8
      %s628 = smul.addr %s627, 8
      %s629 = scalar_lea.vmem %s5, %s628
      // Predicated region
      $region41: #{noise_sequence_rnn_v3_forward.41} parent=39 // pred_check
        %p630 = pneg %p144
      $region42: #{noise_sequence_rnn_v3_forward.41} parent=39 // pred_check_branch
        %632 = sbr.rel (%p630) target = $region44
      $region43: #{noise_sequence_rnn_v3_forward.41} parent=39 // pred_region
        _
      $region44: #{noise_sequence_rnn_v3_forward.41} parent=39 // pred_fallthru
        _
    $region40: #{noise_sequence_rnn_v3_forward.41} parent=5 // pred_fallthru
      _
    %p633 = scmp.le.s32.totalorder 2, %s11
    // Predicated region
    $region45: #{noise_sequence_rnn_v3_forward.41} parent=5 // pred_check
      %p634 = pneg %p633
    $region46: #{noise_sequence_rnn_v3_forward.41} parent=5 // pred_check_branch
      %636 = sbr.rel (%p634) target = $region48
    $region47: #{noise_sequence_rnn_v3_forward.41} parent=5 // pred_region
      %s637 = ssub.s32 %s11, 2
      // Predicated region
      $region49: #{noise_sequence_rnn_v3_forward.41} parent=47 // pred_check
        %p638 = pneg %p150
      $region50: #{noise_sequence_rnn_v3_forward.41} parent=47 // pred_check_branch
        %640 = sbr.rel (%p638) target = $region52
      $region51: #{noise_sequence_rnn_v3_forward.41} parent=47 // pred_region
        %p641 = scmp.lt.s32.totalorder %s17, 7
        %s642 = scalar_select %p641, %s17, 7
        %s643 = smul.addr %s642, 8
        %s644 = smul.addr %s643, 8
        %s645 = scalar_lea.vmem %s5, %s644
      $region52: #{noise_sequence_rnn_v3_forward.41} parent=47 // pred_fallthru
        _
    $region48: #{noise_sequence_rnn_v3_forward.41} parent=5 // pred_fallthru
      _
  $region6: #{noise_sequence_rnn_v3_forward.41} parent=0 // loop_footer
    %s15 = sadd.s32 1, %s11
  $region7: #{noise_sequence_rnn_v3_forward.41} parent=0 // loop_footer_branch
    %10 = sbr.rel target = $region3
  $region8: #{noise_sequence_rnn_v3_forward.41} parent=0 // loop_exit
    _

// kernel: noise_sequence_rnn_v3_forward.47
$region0: #{noise_sequence_rnn_v3_forward.47}
  #allocation0 [shape = 'u32[]', space=smem, size = 0x4, offset = 0x4, fixed_abs, tag = 'smem constant byte address 0x4 - core index']
  #allocation1 [shape = 'u32[72,128]{1,0:T(1,128)}', space=vmem, size = 0x9000, scoped, tag = 'internal scratch']
  %s0 = inlined_call_operand.vmem [shape: f32[8,16], index: 0, kind: input, shape index: {}]
  %s1 = inlined_call_operand.vmem [shape: bf16[16,128], index: 1, kind: input, shape index: {}]
  %s2 = inlined_call_operand.vmem [shape: f32[1,128], index: 2, kind: input, shape index: {}]
  %s3 = inlined_call_operand.vmem [shape: f32[8,128], index: 3, kind: output, shape index: {}]
  %s4 = sld [smem:[#allocation0]]
  $region22: #{noise_sequence_rnn_v3_forward.47} parent=0
    _
  %s6 = ssub.s32 1, %s4
  %s7 = scalar_select 0, %s6, %s4
  // Predicated region
  $region2: #{noise_sequence_rnn_v3_forward.47} parent=0 // pred_check
    _
  $region3: #{noise_sequence_rnn_v3_forward.47} parent=0 // pred_check_branch
    %9 = sbr.rel (0) target = $region5
  $region4: #{noise_sequence_rnn_v3_forward.47} parent=0 // pred_region
    _
  $region5: #{noise_sequence_rnn_v3_forward.47} parent=0 // pred_fallthru
    _
  // Predicated region
  $region6: #{noise_sequence_rnn_v3_forward.47} parent=0 // pred_check
    _
  $region7: #{noise_sequence_rnn_v3_forward.47} parent=0 // pred_check_branch
    %11 = sbr.rel (0) target = $region9
  $region8: #{noise_sequence_rnn_v3_forward.47} parent=0 // pred_region
    _
  $region9: #{noise_sequence_rnn_v3_forward.47} parent=0 // pred_fallthru
    _
  // Predicated region
  $region10: #{noise_sequence_rnn_v3_forward.47} parent=0 // pred_check
    _
  $region11: #{noise_sequence_rnn_v3_forward.47} parent=0 // pred_check_branch
    %13 = sbr.rel (0) target = $region13
  $region12: #{noise_sequence_rnn_v3_forward.47} parent=0 // pred_region
    _
  $region13: #{noise_sequence_rnn_v3_forward.47} parent=0 // pred_fallthru
    _
  %v15 = vld [vmem:[%s0] sm:$0xff]
  %v16 = vpack.c.bf16 %v15, %v15
  %v17 = vld [vmem:[%s1] sm:$0xf]
  %v18 = vld [vmem:[%s1 + $0x4] sm:$0xf]
  %v19 = vld [vmem:[%s2] sm:$0x1]
  %v21 = vperm.slane %v19, 0
  %v25 = vunpack.c.l.b16 %v17
  %v26 = vunpack.c.l.b16 %v18
  %v27 = vpack.c.b16 %v26, %v25
  %vm29 = vcmask 130048
  %v31 = vsel %vm29, %v16, 0
  %33 = vmatpush.bf16.msra.mxu0 0
  %34 = vmatpush.bf16.msra.mxu0 0
  %35 = vmatpush.bf16.msra.mxu0 0
  %36 = vmatpush.bf16.msra.mxu0 0
  %37 = vmatpush.bf16.msra.mxu0 0
  %38 = vmatpush.bf16.msra.mxu0 0
  %39 = vmatpush.bf16.msra.mxu0 0
  %40 = vmatpush.bf16.msra.mxu0 %v27
  %41 = vmatmul.bf16.gmra.mxu0 %v31
  %v42 = vpop.f32.mrf.mxu0
  %v43 = vadd.f32 %v21, %v42
  %v44 = vpop.f32.mrf.mxu0
  %45 = vdwg.mxu0
  %46 = vst [vmem:[%s3] sm:$0xff] %v43
  // Predicated region
  $region14: #{noise_sequence_rnn_v3_forward.47} parent=0 // pred_check
    _
  $region15: #{noise_sequence_rnn_v3_forward.47} parent=0 // pred_check_branch
    %48 = sbr.rel (0) target = $region17
  $region16: #{noise_sequence_rnn_v3_forward.47} parent=0 // pred_region
    _
  $region17: #{noise_sequence_rnn_v3_forward.47} parent=0 // pred_fallthru
    _
  // Predicated region
  $region18: #{noise_sequence_rnn_v3_forward.47} parent=0 // pred_check
    _
  $region19: #{noise_sequence_rnn_v3_forward.47} parent=0 // pred_check_branch
    %50 = sbr.rel (0) target = $region21
  $region20: #{noise_sequence_rnn_v3_forward.47} parent=0 // pred_region
    _
  $region21: #{noise_sequence_rnn_v3_forward.47} parent=0 // pred_fallthru
    _

// kernel: noise_sequence_rnn_v3_forward.42
$region0: #{noise_sequence_rnn_v3_forward.42}
  #allocation0 [shape = 'u32[]', space=smem, size = 0x4, offset = 0x4, fixed_abs, tag = 'smem constant byte address 0x4 - core index']
  #allocation1 [shape = 'u32[72,128]{1,0:T(1,128)}', space=vmem, size = 0x9000, scoped, tag = 'internal scratch']
  %s0 = inlined_call_operand.vmem [shape: f32[8,126,128], index: 0, kind: input, shape index: {}]
  %s1 = inlined_call_operand.vmem [shape: bf16[9,128,128], index: 1, kind: input, shape index: {}]
  %s2 = inlined_call_operand.vmem [shape: f32[1,128], index: 2, kind: input, shape index: {}]
  %s3 = inlined_call_operand.vmem [shape: f32[8,104,128], index: 3, kind: output, shape index: {}]
  %s4 = sld [smem:[#allocation0]]
  $region45: #{noise_sequence_rnn_v3_forward.42} parent=0
    _
  %s6 = ssub.s32 1, %s4
  %s7 = scalar_select 0, %s6, %s4
  loop: start=0, step=1, limit=10
  $region2: #{noise_sequence_rnn_v3_forward.42} parent=0 // loop_pre_header
    _
  $region3: #{noise_sequence_rnn_v3_forward.42} parent=0 // loop_header
    %s9 = sphi 0, %s13
    %p10 = scmp.ge.s32.totalorder %s9, 10
    %s16 = sphi 0, %s28
    %s17 = sphi 0, %s24
    %s18 = sphi 0, %s16
    %s19 = sphi 0, %s17
    %s20 = sphi 0, %s18
    %s21 = sphi 0, %s19
    %s31 = sphi 0, %s33
    %s34 = sphi 0, %s31
    %s35 = sphi 0, %s34
    %s51 = sphi 0, %s35
    %s55 = sphi 0, %s55
    %s57 = sphi 0, %s55
    %s58 = sphi 0, %s57
    %s72 = sphi 0, %s58
    %s76 = sphi 0, %s76
    %s78 = sphi 0, %s76
    %s79 = sphi 0, %s78
    %s93 = sphi 0, %s79
    %s101 = sphi 0, %s103
    %s104 = sphi 0, %s101
    %s105 = sphi 0, %s104
    %s121 = sphi 0, %s105
  $region4: #{noise_sequence_rnn_v3_forward.42} parent=0 // loop_header_branch
    %12 = sbr.rel (%p10) target = $region8
  $region5: #{noise_sequence_rnn_v3_forward.42} parent=0 // loop_body
    %s14 = ssub.s32 %s9, 1
    %s15 = ssub.s32 %s9, 2
    %s22 = sadd.s32 1, %s17
    %p23 = scmp.ge.s32.totalorder %s22, 1
    %s24 = scalar_select %p23, 0, %s22
    %s25 = sadd.s32 1, %s16
    %s26 = scalar_select %p23, %s25, %s16
    %p27 = scmp.ge.s32.totalorder %s26, 8
    %s28 = scalar_select %p27, 0, %s26
    %s29 = ssub.s32 %s16, %s28
    %p30 = scmp.eq.s32.totalorder %s29, 0
    %s32 = sadd.s32 %s31, 1
    %s33 = scalar_select %p30, %s31, %s32
    %p36 = pneg %p30
    %p37 = scmp.eq.s32.totalorder %s9, 7
    %p38 = por %p36, %p37
    %p39 = scmp.ne.s32.totalorder %s31, %s34
    %p40 = scmp.eq.s32.totalorder %s9, 0
    %p41 = por %p39, %p40
    %p42 = scmp.ne.s32.totalorder %s31, %s34
    %p43 = scmp.eq.s32.totalorder %s14, 7
    %p44 = por %p42, %p43
    %p45 = scmp.ne.s32.totalorder %s34, %s35
    %p46 = scmp.eq.s32.totalorder %s14, 0
    %p47 = por %p45, %p46
    %p48 = scmp.ne.s32.totalorder %s34, %s35
    %p49 = scmp.eq.s32.totalorder %s15, 7
    %p50 = por %p48, %p49
    %p52 = scmp.ne.s32.totalorder %s35, %s51
    %p53 = scmp.eq.s32.totalorder %s15, 0
    %p54 = por %p52, %p53
    %s56 = sadd.s32 %s55, 1
    %p59 = scmp.eq.s32.totalorder %s9, 7
    %p60 = scmp.ne.s32.totalorder %s55, %s57
    %p61 = scmp.eq.s32.totalorder %s9, 0
    %p62 = por %p60, %p61
    %p63 = scmp.ne.s32.totalorder %s55, %s57
    %p64 = scmp.eq.s32.totalorder %s14, 7
    %p65 = por %p63, %p64
    %p66 = scmp.ne.s32.totalorder %s57, %s58
    %p67 = scmp.eq.s32.totalorder %s14, 0
    %p68 = por %p66, %p67
    %p69 = scmp.ne.s32.totalorder %s57, %s58
    %p70 = scmp.eq.s32.totalorder %s15, 7
    %p71 = por %p69, %p70
    %p73 = scmp.ne.s32.totalorder %s58, %s72
    %p74 = scmp.eq.s32.totalorder %s15, 0
    %p75 = por %p73, %p74
    %s77 = sadd.s32 %s76, 1
    %p80 = scmp.eq.s32.totalorder %s9, 7
    %p81 = scmp.ne.s32.totalorder %s76, %s78
    %p82 = scmp.eq.s32.totalorder %s9, 0
    %p83 = por %p81, %p82
    %p84 = scmp.ne.s32.totalorder %s76, %s78
    %p85 = scmp.eq.s32.totalorder %s14, 7
    %p86 = por %p84, %p85
    %p87 = scmp.ne.s32.totalorder %s78, %s79
    %p88 = scmp.eq.s32.totalorder %s14, 0
    %p89 = por %p87, %p88
    %p90 = scmp.ne.s32.totalorder %s78, %s79
    %p91 = scmp.eq.s32.totalorder %s15, 7
    %p92 = por %p90, %p91
    %p94 = scmp.ne.s32.totalorder %s79, %s93
    %p95 = scmp.eq.s32.totalorder %s15, 0
    %p96 = por %p94, %p95
    %s97 = ssub.s32 %s16, %s28
    %s98 = ssub.s32 %s17, %s24
    %s99 = sor.u32 %s97, %s98
    %p100 = scmp.eq.s32.totalorder %s99, 0
    %s102 = sadd.s32 %s101, 1
    %s103 = scalar_select %p100, %s101, %s102
    %p106 = pneg %p100
    %p107 = scmp.eq.s32.totalorder %s9, 7
    %p108 = por %p106, %p107
    %p109 = scmp.ne.s32.totalorder %s101, %s104
    %p110 = scmp.eq.s32.totalorder %s9, 0
    %p111 = por %p109, %p110
    %p112 = scmp.ne.s32.totalorder %s101, %s104
    %p113 = scmp.eq.s32.totalorder %s14, 7
    %p114 = por %p112, %p113
    %p115 = scmp.ne.s32.totalorder %s104, %s105
    %p116 = scmp.eq.s32.totalorder %s14, 0
    %p117 = por %p115, %p116
    %p118 = scmp.ne.s32.totalorder %s104, %s105
    %p119 = scmp.eq.s32.totalorder %s15, 7
    %p120 = por %p118, %p119
    %p122 = scmp.ne.s32.totalorder %s105, %s121
    %p123 = scmp.eq.s32.totalorder %s15, 0
    %p124 = por %p122, %p123
    %p125 = scmp.le.s32.totalorder 1, %s9
    %p126 = scmp.lt.s32.totalorder %s9, 9
    %p127 = pnand %p125, %p126
    %p128 = pneg %p127
    // Predicated region
    $region9: #{noise_sequence_rnn_v3_forward.42} parent=5 // pred_check
      _
    $region10: #{noise_sequence_rnn_v3_forward.42} parent=5 // pred_check_branch
      %130 = sbr.rel (%p127) target = $region12
    $region11: #{noise_sequence_rnn_v3_forward.42} parent=5 // pred_region
      %s131 = ssub.s32 %s9, 1
      // Predicated region
      $region13: #{noise_sequence_rnn_v3_forward.42} parent=11 // pred_check
        %p132 = pneg %p68
      $region14: #{noise_sequence_rnn_v3_forward.42} parent=11 // pred_check_branch
        %134 = sbr.rel (%p132) target = $region16
      $region15: #{noise_sequence_rnn_v3_forward.42} parent=11 // pred_region
        _
      $region16: #{noise_sequence_rnn_v3_forward.42} parent=11 // pred_fallthru
        _
      // Predicated region
      $region17: #{noise_sequence_rnn_v3_forward.42} parent=11 // pred_check
        %p135 = pneg %p89
      $region18: #{noise_sequence_rnn_v3_forward.42} parent=11 // pred_check_branch
        %137 = sbr.rel (%p135) target = $region20
      $region19: #{noise_sequence_rnn_v3_forward.42} parent=11 // pred_region
        _
      $region20: #{noise_sequence_rnn_v3_forward.42} parent=11 // pred_fallthru
        _
    $region12: #{noise_sequence_rnn_v3_forward.42} parent=5 // pred_fallthru
      _
    %p138 = scmp.lt.s32.totalorder %s9, 8
    // Predicated region
    $region21: #{noise_sequence_rnn_v3_forward.42} parent=5 // pred_check
      %p139 = pneg %p138
    $region22: #{noise_sequence_rnn_v3_forward.42} parent=5 // pred_check_branch
      %141 = sbr.rel (%p139) target = $region24
    $region23: #{noise_sequence_rnn_v3_forward.42} parent=5 // pred_region
      // Predicated region
      $region25: #{noise_sequence_rnn_v3_forward.42} parent=23 // pred_check
        %p142 = pneg %p41
      $region26: #{noise_sequence_rnn_v3_forward.42} parent=23 // pred_check_branch
        %144 = sbr.rel (%p142) target = $region28
      $region27: #{noise_sequence_rnn_v3_forward.42} parent=23 // pred_region
        %p145 = scmp.lt.s32.totalorder %s16, 7
        %s146 = scalar_select %p145, %s16, 7
        %s147 = smul.addr %s146, 16
        %s148 = smul.addr %s147, 8
        %s149 = scalar_lea.vmem %s0, %s148
      $region28: #{noise_sequence_rnn_v3_forward.42} parent=23 // pred_fallthru
        _
    $region24: #{noise_sequence_rnn_v3_forward.42} parent=5 // pred_fallthru
      _
    %p150 = scmp.le.s32.totalorder 1, %s9
    %p151 = scmp.lt.s32.totalorder %s9, 9
    %p152 = pnand %p150, %p151
    %p153 = pneg %p152
    // Predicated region
    $region29: #{noise_sequence_rnn_v3_forward.42} parent=5 // pred_check
      _
    $region30: #{noise_sequence_rnn_v3_forward.42} parent=5 // pred_check_branch
      %155 = sbr.rel (%p152) target = $region32
    $region31: #{noise_sequence_rnn_v3_forward.42} parent=5 // pred_region
      %s156 = ssub.s32 %s9, 1
      %p157 = scmp.lt.s32.totalorder %s18, 7
      %s158 = scalar_select %p157, %s18, 7
      %s159 = smul.addr %s158, 16
      %s160 = smul.addr %s159, 8
      %s161 = scalar_lea.vmem %s0, %s160
      %p162 = pneg %p47
      %p163 = pneg %p44
      %p164 = pneg %p68
      %p165 = pneg %p65
      %p166 = pneg %p89
      %p167 = pneg %p86
      %p168 = pneg %p117
      %p169 = pneg %p114
      %s170 = smul.u32 13, %s19
      %p171 = scmp.lt.s32.totalorder %s18, 7
      %s172 = scalar_select %p171, %s18, 7
      %p173 = scmp.lt.s32.totalorder %s170, 12
      %s174 = scalar_select %p173, %s170, 12
      %s175 = smul.addr %s172, 13
      %s176 = sadd.s32 %s174, %s175
      %s177 = smul.addr %s176, 8
      %s178 = scalar_lea.vmem %s3, %s177
      %p179 = scmp.lt.s32.totalorder %s18, 7
      %s180 = scalar_select %p179, %s18, 7
      %s181 = smul.addr %s180, 16
      %s182 = smul.addr %s181, 8
      %s183 = scalar_lea.vmem %s0, %s182
      %s184 = smul.u32 13, %s19
      %p185 = scmp.lt.s32.totalorder %s18, 7
      %s186 = scalar_select %p185, %s18, 7
      %p187 = scmp.lt.s32.totalorder %s184, 12
      %s188 = scalar_select %p187, %s184, 12
      %s189 = smul.addr %s186, 13
      %s190 = sadd.s32 %s188, %s189
      %s191 = smul.addr %s190, 8
      %s192 = scalar_lea.vmem %s3, %s191
      %s193 = smul.u32 13, %s19
      %s194 = smul.u32 %s19, 104
      %s195 = scalar_lea.vmem %s183, %s194
      %v196 = vld [vmem:[%s195] sm:$0xff]
      %v197 = vld [vmem:[%s195 + $0x8] sm:$0xff]
      %v198 = vld [vmem:[%s195 + $0x10] sm:$0xff]
      %v199 = vld [vmem:[%s195 + $0x18] sm:$0xff]
      %v200 = vld [vmem:[%s195 + $0x20] sm:$0xff]
      %v201 = vld [vmem:[%s195 + $0x28] sm:$0xff]
      %v202 = vld [vmem:[%s195 + $0x30] sm:$0xff]
      %v203 = vld [vmem:[%s195 + $0x38] sm:$0xff]
      %v204 = vld [vmem:[%s195 + $0x40] sm:$0xff]
      %v205 = vld [vmem:[%s195 + $0x48] sm:$0xff]
      %v206 = vld [vmem:[%s195 + $0x50] sm:$0xff]
      %v207 = vld [vmem:[%s195 + $0x58] sm:$0xff]
      %v208 = vld [vmem:[%s195 + $0x60] sm:$0xff]
      %v209 = vpack.c.bf16 %v197, %v196
      %v210 = vpack.c.bf16 %v199, %v198
      %v211 = vpack.c.bf16 %v201, %v200
      %v212 = vpack.c.bf16 %v203, %v202
      %v213 = vpack.c.bf16 %v205, %v204
      %v214 = vpack.c.bf16 %v207, %v206
      %v215 = vpack.c.bf16 %v208, %v208
      %v216 = vld [vmem:[%s1] sm:$0xf]
      %v217 = vld [vmem:[%s1 + $0x4] sm:$0xf]
      %v218 = vld [vmem:[%s1 + $0x8] sm:$0xf]
      %v219 = vld [vmem:[%s1 + $0xc] sm:$0xf]
      %v220 = vld [vmem:[%s1 + $0x10] sm:$0xf]
      %v221 = vld [vmem:[%s1 + $0x14] sm:$0xf]
      %v222 = vld [vmem:[%s1 + $0x18] sm:$0xf]
      %v223 = vld [vmem:[%s1 + $0x1c] sm:$0xf]
      %v224 = vld [vmem:[%s1 + $0x20] sm:$0xf]
      %v225 = vld [vmem:[%s1 + $0x24] sm:$0xf]
      %v226 = vld [vmem:[%s1 + $0x28] sm:$0xf]
      %v227 = vld [vmem:[%s1 + $0x2c] sm:$0xf]
      %v228 = vld [vmem:[%s1 + $0x30] sm:$0xf]
      %v229 = vld [vmem:[%s1 + $0x34] sm:$0xf]
      %v230 = vld [vmem:[%s1 + $0x38] sm:$0xf]
      %v231 = vld [vmem:[%s1 + $0x3c] sm:$0xf]
      %s232 = sadd.s32 %s194, 1
      %s233 = scalar_lea.vmem %s183, %s232
      %v234 = vld [vmem:[%s233] sm:$0xff]
      %v235 = vld [vmem:[%s233 + $0x8] sm:$0xff]
      %v236 = vld [vmem:[%s233 + $0x10] sm:$0xff]
      %v237 = vld [vmem:[%s233 + $0x18] sm:$0xff]
      %v238 = vld [vmem:[%s233 + $0x20] sm:$0xff]
      %v239 = vld [vmem:[%s233 + $0x28] sm:$0xff]
      %v240 = vld [vmem:[%s233 + $0x30] sm:$0xff]
      %v241 = vld [vmem:[%s233 + $0x38] sm:$0xff]
      %v242 = vld [vmem:[%s233 + $0x40] sm:$0xff]
      %v243 = vld [vmem:[%s233 + $0x48] sm:$0xff]
      %v244 = vld [vmem:[%s233 + $0x50] sm:$0xff]
      %v245 = vld [vmem:[%s233 + $0x58] sm:$0xff]
      %v246 = vld [vmem:[%s233 + $0x60] sm:$0xff]
      %v247 = vpack.c.bf16 %v235, %v234
      %v248 = vpack.c.bf16 %v237, %v236
      %v249 = vpack.c.bf16 %v239, %v238
      %v250 = vpack.c.bf16 %v241, %v240
      %v251 = vpack.c.bf16 %v243, %v242
      %v252 = vpack.c.bf16 %v245, %v244
      %v253 = vpack.c.bf16 %v246, %v246
      %s254 = scalar_lea.vmem %s1, 64
      %v255 = vld [vmem:[%s254] sm:$0xf]
      %v256 = vld [vmem:[%s254 + $0x4] sm:$0xf]
      %v257 = vld [vmem:[%s254 + $0x8] sm:$0xf]
      %v258 = vld [vmem:[%s254 + $0xc] sm:$0xf]
      %v259 = vld [vmem:[%s254 + $0x10] sm:$0xf]
      %v260 = vld [vmem:[%s254 + $0x14] sm:$0xf]
      %v261 = vld [vmem:[%s254 + $0x18] sm:$0xf]
      %v262 = vld [vmem:[%s254 + $0x1c] sm:$0xf]
      %v263 = vld [vmem:[%s254 + $0x20] sm:$0xf]
      %v264 = vld [vmem:[%s254 + $0x24] sm:$0xf]
      %v265 = vld [vmem:[%s254 + $0x28] sm:$0xf]
      %v266 = vld [vmem:[%s254 + $0x2c] sm:$0xf]
      %v267 = vld [vmem:[%s254 + $0x30] sm:$0xf]
      %v268 = vld [vmem:[%s254 + $0x34] sm:$0xf]
      %v269 = vld [vmem:[%s254 + $0x38] sm:$0xf]
      %v270 = vld [vmem:[%s254 + $0x3c] sm:$0xf]
      %v287 = vunpack.c.l.b16 %v255
      %v288 = vunpack.c.l.b16 %v256
      %v289 = vunpack.c.l.b16 %v257
      %v290 = vunpack.c.l.b16 %v258
      %v291 = vunpack.c.l.b16 %v259
      %v292 = vunpack.c.l.b16 %v260
      %v293 = vunpack.c.l.b16 %v261
      %v294 = vunpack.c.l.b16 %v262
      %v295 = vunpack.c.l.b16 %v263
      %v296 = vunpack.c.l.b16 %v264
      %v297 = vunpack.c.l.b16 %v265
      %v298 = vunpack.c.l.b16 %v266
      %v299 = vunpack.c.l.b16 %v267
      %v300 = vunpack.c.l.b16 %v268
      %v301 = vunpack.c.l.b16 %v269
      %v302 = vunpack.c.l.b16 %v270
      %v303 = vpack.c.b16 %v288, %v287
      %v304 = vpack.c.b16 %v290, %v289
      %v305 = vpack.c.b16 %v292, %v291
      %v306 = vpack.c.b16 %v294, %v293
      %v307 = vpack.c.b16 %v296, %v295
      %v308 = vpack.c.b16 %v298, %v297
      %v309 = vpack.c.b16 %v300, %v299
      %v310 = vpack.c.b16 %v302, %v301
      %319 = vmatpush.bf16.msra.mxu0 %v310
      %320 = vmatpush.bf16.msra.mxu0 %v309
      %321 = vmatpush.bf16.msra.mxu0 %v308
      %322 = vmatpush.bf16.msra.mxu0 %v307
      %323 = vmatpush.bf16.msra.mxu0 %v306
      %324 = vmatpush.bf16.msra.mxu0 %v305
      %325 = vmatpush.bf16.msra.mxu0 %v304
      %326 = vmatpush.bf16.msra.mxu0 %v303
      %327 = vmatmul.bf16.gmra.mxu0 %v247
      %v328 = vpop.f32.mrf.mxu0
      %v329 = vadd.f32 0.0, %v328
      %v330 = vpop.f32.mrf.mxu0
      %v331 = vadd.f32 0.0, %v330
      %332 = vmatmul.bf16.gmra.mxu0 %v248
      %v333 = vpop.f32.mrf.mxu0
      %v334 = vadd.f32 0.0, %v333
      %v335 = vpop.f32.mrf.mxu0
      %v336 = vadd.f32 0.0, %v335
      %337 = vmatmul.bf16.gmra.mxu0 %v249
      %v338 = vpop.f32.mrf.mxu0
      %v339 = vadd.f32 0.0, %v338
      %v340 = vpop.f32.mrf.mxu0
      %v341 = vadd.f32 0.0, %v340
      %342 = vmatmul.bf16.gmra.mxu0 %v250
      %v343 = vpop.f32.mrf.mxu0
      %v344 = vadd.f32 0.0, %v343
      %v345 = vpop.f32.mrf.mxu0
      %v346 = vadd.f32 0.0, %v345
      %347 = vmatmul.bf16.gmra.mxu0 %v251
      %v348 = vpop.f32.mrf.mxu0
      %v349 = vadd.f32 0.0, %v348
      %v350 = vpop.f32.mrf.mxu0
      %v351 = vadd.f32 0.0, %v350
      %352 = vmatmul.bf16.gmra.mxu0 %v252
      %v353 = vpop.f32.mrf.mxu0
      %v354 = vadd.f32 0.0, %v353
      %v355 = vpop.f32.mrf.mxu0
      %v356 = vadd.f32 0.0, %v355
      %357 = vmatmul.bf16.gmra.mxu0 %v253
      %v358 = vpop.f32.mrf.mxu0
      %v359 = vadd.f32 0.0, %v358
      %v360 = vpop.f32.mrf.mxu0
      %361 = vdwg.mxu0
      %v378 = vunpack.c.l.b16 %v216
      %v379 = vunpack.c.l.b16 %v217
      %v380 = vunpack.c.l.b16 %v218
      %v381 = vunpack.c.l.b16 %v219
      %v382 = vunpack.c.l.b16 %v220
      %v383 = vunpack.c.l.b16 %v221
      %v384 = vunpack.c.l.b16 %v222
      %v385 = vunpack.c.l.b16 %v223
      %v386 = vunpack.c.l.b16 %v224
      %v387 = vunpack.c.l.b16 %v225
      %v388 = vunpack.c.l.b16 %v226
      %v389 = vunpack.c.l.b16 %v227
      %v390 = vunpack.c.l.b16 %v228
      %v391 = vunpack.c.l.b16 %v229
      %v392 = vunpack.c.l.b16 %v230
      %v393 = vunpack.c.l.b16 %v231
      %v394 = vpack.c.b16 %v379, %v378
      %v395 = vpack.c.b16 %v381, %v380
      %v396 = vpack.c.b16 %v383, %v382
      %v397 = vpack.c.b16 %v385, %v384
      %v398 = vpack.c.b16 %v387, %v386
      %v399 = vpack.c.b16 %v389, %v388
      %v400 = vpack.c.b16 %v391, %v390
      %v401 = vpack.c.b16 %v393, %v392
      %410 = vmatpush.bf16.msra.mxu0 %v401
      %411 = vmatpush.bf16.msra.mxu0 %v400
      %412 = vmatpush.bf16.msra.mxu0 %v399
      %413 = vmatpush.bf16.msra.mxu0 %v398
      %414 = vmatpush.bf16.msra.mxu0 %v397
      %415 = vmatpush.bf16.msra.mxu0 %v396
      %416 = vmatpush.bf16.msra.mxu0 %v395
      %417 = vmatpush.bf16.msra.mxu0 %v394
      %418 = vmatmul.bf16.gmra.mxu0 %v209
      %v419 = vpop.f32.mrf.mxu0
      %v420 = vadd.f32 %v329, %v419
      %v421 = vpop.f32.mrf.mxu0
      %v422 = vadd.f32 %v331, %v421
      %423 = vmatmul.bf16.gmra.mxu0 %v210
      %v424 = vpop.f32.mrf.mxu0
      %v425 = vadd.f32 %v334, %v424
      %v426 = vpop.f32.mrf.mxu0
      %v427 = vadd.f32 %v336, %v426
      %428 = vmatmul.bf16.gmra.mxu0 %v211
      %v429 = vpop.f32.mrf.mxu0
      %v430 = vadd.f32 %v339, %v429
      %v431 = vpop.f32.mrf.mxu0
      %v432 = vadd.f32 %v341, %v431
      %433 = vmatmul.bf16.gmra.mxu0 %v212
      %v434 = vpop.f32.mrf.mxu0
      %v435 = vadd.f32 %v344, %v434
      %v436 = vpop.f32.mrf.mxu0
      %v437 = vadd.f32 %v346, %v436
      %438 = vmatmul.bf16.gmra.mxu0 %v213
      %v439 = vpop.f32.mrf.mxu0
      %v440 = vadd.f32 %v349, %v439
      %v441 = vpop.f32.mrf.mxu0
      %v442 = vadd.f32 %v351, %v441
      %443 = vmatmul.bf16.gmra.mxu0 %v214
      %v444 = vpop.f32.mrf.mxu0
      %v445 = vadd.f32 %v354, %v444
      %v446 = vpop.f32.mrf.mxu0
      %v447 = vadd.f32 %v356, %v446
      %448 = vmatmul.bf16.gmra.mxu0 %v215
      %v449 = vpop.f32.mrf.mxu0
      %v450 = vadd.f32 %v359, %v449
      %v451 = vpop.f32.mrf.mxu0
      %452 = vdwg.mxu0
      %s453 = sadd.s32 %s194, 2
      %s454 = scalar_lea.vmem %s183, %s453
      %v455 = vld [vmem:[%s454] sm:$0xff]
      %v456 = vld [vmem:[%s454 + $0x8] sm:$0xff]
      %v457 = vld [vmem:[%s454 + $0x10] sm:$0xff]
      %v458 = vld [vmem:[%s454 + $0x18] sm:$0xff]
      %v459 = vld [vmem:[%s454 + $0x20] sm:$0xff]
      %v460 = vld [vmem:[%s454 + $0x28] sm:$0xff]
      %v461 = vld [vmem:[%s454 + $0x30] sm:$0xff]
      %v462 = vld [vmem:[%s454 + $0x38] sm:$0xff]
      %v463 = vld [vmem:[%s454 + $0x40] sm:$0xff]
      %v464 = vld [vmem:[%s454 + $0x48] sm:$0xff]
      %v465 = vld [vmem:[%s454 + $0x50] sm:$0xff]
      %v466 = vld [vmem:[%s454 + $0x58] sm:$0xff]
      %v467 = vld [vmem:[%s454 + $0x60] sm:$0xff]
      %v468 = vpack.c.bf16 %v456, %v455
      %v469 = vpack.c.bf16 %v458, %v457
      %v470 = vpack.c.bf16 %v460, %v459
      %v471 = vpack.c.bf16 %v462, %v461
      %v472 = vpack.c.bf16 %v464, %v463
      %v473 = vpack.c.bf16 %v466, %v465
      %v474 = vpack.c.bf16 %v467, %v467
      %s475 = scalar_lea.vmem %s1, 128
      %v476 = vld [vmem:[%s475] sm:$0xf]
      %v477 = vld [vmem:[%s475 + $0x4] sm:$0xf]
      %v478 = vld [vmem:[%s475 + $0x8] sm:$0xf]
      %v479 = vld [vmem:[%s475 + $0xc] sm:$0xf]
      %v480 = vld [vmem:[%s475 + $0x10] sm:$0xf]
      %v481 = vld [vmem:[%s475 + $0x14] sm:$0xf]
      %v482 = vld [vmem:[%s475 + $0x18] sm:$0xf]
      %v483 = vld [vmem:[%s475 + $0x1c] sm:$0xf]
      %v484 = vld [vmem:[%s475 + $0x20] sm:$0xf]
      %v485 = vld [vmem:[%s475 + $0x24] sm:$0xf]
      %v486 = vld [vmem:[%s475 + $0x28] sm:$0xf]
      %v487 = vld [vmem:[%s475 + $0x2c] sm:$0xf]
      %v488 = vld [vmem:[%s475 + $0x30] sm:$0xf]
      %v489 = vld [vmem:[%s475 + $0x34] sm:$0xf]
      %v490 = vld [vmem:[%s475 + $0x38] sm:$0xf]
      %v491 = vld [vmem:[%s475 + $0x3c] sm:$0xf]
      %v508 = vunpack.c.l.b16 %v476
      %v509 = vunpack.c.l.b16 %v477
      %v510 = vunpack.c.l.b16 %v478
      %v511 = vunpack.c.l.b16 %v479
      %v512 = vunpack.c.l.b16 %v480
      %v513 = vunpack.c.l.b16 %v481
      %v514 = vunpack.c.l.b16 %v482
      %v515 = vunpack.c.l.b16 %v483
      %v516 = vunpack.c.l.b16 %v484
      %v517 = vunpack.c.l.b16 %v485
      %v518 = vunpack.c.l.b16 %v486
      %v519 = vunpack.c.l.b16 %v487
      %v520 = vunpack.c.l.b16 %v488
      %v521 = vunpack.c.l.b16 %v489
      %v522 = vunpack.c.l.b16 %v490
      %v523 = vunpack.c.l.b16 %v491
      %v524 = vpack.c.b16 %v509, %v508
      %v525 = vpack.c.b16 %v511, %v510
      %v526 = vpack.c.b16 %v513, %v512
      %v527 = vpack.c.b16 %v515, %v514
      %v528 = vpack.c.b16 %v517, %v516
      %v529 = vpack.c.b16 %v519, %v518
      %v530 = vpack.c.b16 %v521, %v520
      %v531 = vpack.c.b16 %v523, %v522
      %540 = vmatpush.bf16.msra.mxu0 %v531
      %541 = vmatpush.bf16.msra.mxu0 %v530
      %542 = vmatpush.bf16.msra.mxu0 %v529
      %543 = vmatpush.bf16.msra.mxu0 %v528
      %544 = vmatpush.bf16.msra.mxu0 %v527
      %545 = vmatpush.bf16.msra.mxu0 %v526
      %546 = vmatpush.bf16.msra.mxu0 %v525
      %547 = vmatpush.bf16.msra.mxu0 %v524
      %548 = vmatmul.bf16.gmra.mxu0 %v468
      %v549 = vpop.f32.mrf.mxu0
      %v550 = vadd.f32 0.0, %v549
      %v551 = vpop.f32.mrf.mxu0
      %v552 = vadd.f32 0.0, %v551
      %553 = vmatmul.bf16.gmra.mxu0 %v469
      %v554 = vpop.f32.mrf.mxu0
      %v555 = vadd.f32 0.0, %v554
      %v556 = vpop.f32.mrf.mxu0
      %v557 = vadd.f32 0.0, %v556
      %558 = vmatmul.bf16.gmra.mxu0 %v470
      %v559 = vpop.f32.mrf.mxu0
      %v560 = vadd.f32 0.0, %v559
      %v561 = vpop.f32.mrf.mxu0
      %v562 = vadd.f32 0.0, %v561
      %563 = vmatmul.bf16.gmra.mxu0 %v471
      %v564 = vpop.f32.mrf.mxu0
      %v565 = vadd.f32 0.0, %v564
      %v566 = vpop.f32.mrf.mxu0
      %v567 = vadd.f32 0.0, %v566
      %568 = vmatmul.bf16.gmra.mxu0 %v472
      %v569 = vpop.f32.mrf.mxu0
      %v570 = vadd.f32 0.0, %v569
      %v571 = vpop.f32.mrf.mxu0
      %v572 = vadd.f32 0.0, %v571
      %573 = vmatmul.bf16.gmra.mxu0 %v473
      %v574 = vpop.f32.mrf.mxu0
      %v575 = vadd.f32 0.0, %v574
      %v576 = vpop.f32.mrf.mxu0
      %v577 = vadd.f32 0.0, %v576
      %578 = vmatmul.bf16.gmra.mxu0 %v474
      %v579 = vpop.f32.mrf.mxu0
      %v580 = vadd.f32 0.0, %v579
      %v581 = vpop.f32.mrf.mxu0
      %582 = vdwg.mxu0
      %v583 = vadd.f32 %v420, %v550
      %v584 = vadd.f32 %v422, %v552
      %v585 = vadd.f32 %v425, %v555
      %v586 = vadd.f32 %v427, %v557
      %v587 = vadd.f32 %v430, %v560
      %v588 = vadd.f32 %v432, %v562
      %v589 = vadd.f32 %v435, %v565
      %v590 = vadd.f32 %v437, %v567
      %v591 = vadd.f32 %v440, %v570
      %v592 = vadd.f32 %v442, %v572
      %v593 = vadd.f32 %v445, %v575
      %v594 = vadd.f32 %v447, %v577
      %v595 = vadd.f32 %v450, %v580
      %s596 = sadd.s32 %s194, 10
      %s597 = scalar_lea.vmem %s183, %s596
      %v598 = vld [vmem:[%s597] sm:$0xff]
      %v599 = vld [vmem:[%s597 + $0x8] sm:$0xff]
      %v600 = vld [vmem:[%s597 + $0x10] sm:$0xff]
      %v601 = vld [vmem:[%s597 + $0x18] sm:$0xff]
      %v602 = vld [vmem:[%s597 + $0x20] sm:$0xff]
      %v603 = vld [vmem:[%s597 + $0x28] sm:$0xff]
      %v604 = vld [vmem:[%s597 + $0x30] sm:$0xff]
      %v605 = vld [vmem:[%s597 + $0x38] sm:$0xff]
      %v606 = vld [vmem:[%s597 + $0x40] sm:$0xff]
      %v607 = vld [vmem:[%s597 + $0x48] sm:$0xff]
      %v608 = vld [vmem:[%s597 + $0x50] sm:$0xff]
      %v609 = vld [vmem:[%s597 + $0x58] sm:$0xff]
      %v610 = vld [vmem:[%s597 + $0x60] sm:$0xff]
      %v611 = vpack.c.bf16 %v599, %v598
      %v612 = vpack.c.bf16 %v601, %v600
      %v613 = vpack.c.bf16 %v603, %v602
      %v614 = vpack.c.bf16 %v605, %v604
      %v615 = vpack.c.bf16 %v607, %v606
      %v616 = vpack.c.bf16 %v609, %v608
      %v617 = vpack.c.bf16 %v610, %v610
      %s618 = scalar_lea.vmem %s1, 192
      %v619 = vld [vmem:[%s618] sm:$0xf]
      %v620 = vld [vmem:[%s618 + $0x4] sm:$0xf]
      %v621 = vld [vmem:[%s618 + $0x8] sm:$0xf]
      %v622 = vld [vmem:[%s618 + $0xc] sm:$0xf]
      %v623 = vld [vmem:[%s618 + $0x10] sm:$0xf]
      %v624 = vld [vmem:[%s618 + $0x14] sm:$0xf]
      %v625 = vld [vmem:[%s618 + $0x18] sm:$0xf]
      %v626 = vld [vmem:[%s618 + $0x1c] sm:$0xf]
      %v627 = vld [vmem:[%s618 + $0x20] sm:$0xf]
      %v628 = vld [vmem:[%s618 + $0x24] sm:$0xf]
      %v629 = vld [vmem:[%s618 + $0x28] sm:$0xf]
      %v630 = vld [vmem:[%s618 + $0x2c] sm:$0xf]
      %v631 = vld [vmem:[%s618 + $0x30] sm:$0xf]
      %v632 = vld [vmem:[%s618 + $0x34] sm:$0xf]
      %v633 = vld [vmem:[%s618 + $0x38] sm:$0xf]
      %v634 = vld [vmem:[%s618 + $0x3c] sm:$0xf]
      %v651 = vunpack.c.l.b16 %v619
      %v652 = vunpack.c.l.b16 %v620
      %v653 = vunpack.c.l.b16 %v621
      %v654 = vunpack.c.l.b16 %v622
      %v655 = vunpack.c.l.b16 %v623
      %v656 = vunpack.c.l.b16 %v624
      %v657 = vunpack.c.l.b16 %v625
      %v658 = vunpack.c.l.b16 %v626
      %v659 = vunpack.c.l.b16 %v627
      %v660 = vunpack.c.l.b16 %v628
      %v661 = vunpack.c.l.b16 %v629
      %v662 = vunpack.c.l.b16 %v630
      %v663 = vunpack.c.l.b16 %v631
      %v664 = vunpack.c.l.b16 %v632
      %v665 = vunpack.c.l.b16 %v633
      %v666 = vunpack.c.l.b16 %v634
      %v667 = vpack.c.b16 %v652, %v651
      %v668 = vpack.c.b16 %v654, %v653
      %v669 = vpack.c.b16 %v656, %v655
      %v670 = vpack.c.b16 %v658, %v657
      %v671 = vpack.c.b16 %v660, %v659
      %v672 = vpack.c.b16 %v662, %v661
      %v673 = vpack.c.b16 %v664, %v663
      %v674 = vpack.c.b16 %v666, %v665
      %683 = vmatpush.bf16.msra.mxu0 %v674
      %684 = vmatpush.bf16.msra.mxu0 %v673
      %685 = vmatpush.bf16.msra.mxu0 %v672
      %686 = vmatpush.bf16.msra.mxu0 %v671
      %687 = vmatpush.bf16.msra.mxu0 %v670
      %688 = vmatpush.bf16.msra.mxu0 %v669
      %689 = vmatpush.bf16.msra.mxu0 %v668
      %690 = vmatpush.bf16.msra.mxu0 %v667
      %691 = vmatmul.bf16.gmra.mxu0 %v611
      %v692 = vpop.f32.mrf.mxu0
      %v693 = vadd.f32 0.0, %v692
      %v694 = vpop.f32.mrf.mxu0
      %v695 = vadd.f32 0.0, %v694
      %696 = vmatmul.bf16.gmra.mxu0 %v612
      %v697 = vpop.f32.mrf.mxu0
      %v698 = vadd.f32 0.0, %v697
      %v699 = vpop.f32.mrf.mxu0
      %v700 = vadd.f32 0.0, %v699
      %701 = vmatmul.bf16.gmra.mxu0 %v613
      %v702 = vpop.f32.mrf.mxu0
      %v703 = vadd.f32 0.0, %v702
      %v704 = vpop.f32.mrf.mxu0
      %v705 = vadd.f32 0.0, %v704
      %706 = vmatmul.bf16.gmra.mxu0 %v614
      %v707 = vpop.f32.mrf.mxu0
      %v708 = vadd.f32 0.0, %v707
      %v709 = vpop.f32.mrf.mxu0
      %v710 = vadd.f32 0.0, %v709
      %711 = vmatmul.bf16.gmra.mxu0 %v615
      %v712 = vpop.f32.mrf.mxu0
      %v713 = vadd.f32 0.0, %v712
      %v714 = vpop.f32.mrf.mxu0
      %v715 = vadd.f32 0.0, %v714
      %716 = vmatmul.bf16.gmra.mxu0 %v616
      %v717 = vpop.f32.mrf.mxu0
      %v718 = vadd.f32 0.0, %v717
      %v719 = vpop.f32.mrf.mxu0
      %v720 = vadd.f32 0.0, %v719
      %721 = vmatmul.bf16.gmra.mxu0 %v617
      %v722 = vpop.f32.mrf.mxu0
      %v723 = vadd.f32 0.0, %v722
      %v724 = vpop.f32.mrf.mxu0
      %725 = vdwg.mxu0
      %v726 = vadd.f32 %v583, %v693
      %v727 = vadd.f32 %v584, %v695
      %v728 = vadd.f32 %v585, %v698
      %v729 = vadd.f32 %v586, %v700
      %v730 = vadd.f32 %v587, %v703
      %v731 = vadd.f32 %v588, %v705
      %v732 = vadd.f32 %v589, %v708
      %v733 = vadd.f32 %v590, %v710
      %v734 = vadd.f32 %v591, %v713
      %v735 = vadd.f32 %v592, %v715
      %v736 = vadd.f32 %v593, %v718
      %v737 = vadd.f32 %v594, %v720
      %v738 = vadd.f32 %v595, %v723
      %s739 = sadd.s32 %s194, 11
      %s740 = scalar_lea.vmem %s183, %s739
      %v741 = vld [vmem:[%s740] sm:$0xff]
      %v742 = vld [vmem:[%s740 + $0x8] sm:$0xff]
      %v743 = vld [vmem:[%s740 + $0x10] sm:$0xff]
      %v744 = vld [vmem:[%s740 + $0x18] sm:$0xff]
      %v745 = vld [vmem:[%s740 + $0x20] sm:$0xff]
      %v746 = vld [vmem:[%s740 + $0x28] sm:$0xff]
      %v747 = vld [vmem:[%s740 + $0x30] sm:$0xff]
      %v748 = vld [vmem:[%s740 + $0x38] sm:$0xff]
      %v749 = vld [vmem:[%s740 + $0x40] sm:$0xff]
      %v750 = vld [vmem:[%s740 + $0x48] sm:$0xff]
      %v751 = vld [vmem:[%s740 + $0x50] sm:$0xff]
      %v752 = vld [vmem:[%s740 + $0x58] sm:$0xff]
      %v753 = vld [vmem:[%s740 + $0x60] sm:$0xff]
      %v754 = vpack.c.bf16 %v742, %v741
      %v755 = vpack.c.bf16 %v744, %v743
      %v756 = vpack.c.bf16 %v746, %v745
      %v757 = vpack.c.bf16 %v748, %v747
      %v758 = vpack.c.bf16 %v750, %v749
      %v759 = vpack.c.bf16 %v752, %v751
      %v760 = vpack.c.bf16 %v753, %v753
      %s761 = scalar_lea.vmem %s1, 256
      %v762 = vld [vmem:[%s761] sm:$0xf]
      %v763 = vld [vmem:[%s761 + $0x4] sm:$0xf]
      %v764 = vld [vmem:[%s761 + $0x8] sm:$0xf]
      %v765 = vld [vmem:[%s761 + $0xc] sm:$0xf]
      %v766 = vld [vmem:[%s761 + $0x10] sm:$0xf]
      %v767 = vld [vmem:[%s761 + $0x14] sm:$0xf]
      %v768 = vld [vmem:[%s761 + $0x18] sm:$0xf]
      %v769 = vld [vmem:[%s761 + $0x1c] sm:$0xf]
      %v770 = vld [vmem:[%s761 + $0x20] sm:$0xf]
      %v771 = vld [vmem:[%s761 + $0x24] sm:$0xf]
      %v772 = vld [vmem:[%s761 + $0x28] sm:$0xf]
      %v773 = vld [vmem:[%s761 + $0x2c] sm:$0xf]
      %v774 = vld [vmem:[%s761 + $0x30] sm:$0xf]
      %v775 = vld [vmem:[%s761 + $0x34] sm:$0xf]
      %v776 = vld [vmem:[%s761 + $0x38] sm:$0xf]
      %v777 = vld [vmem:[%s761 + $0x3c] sm:$0xf]
      %v794 = vunpack.c.l.b16 %v762
      %v795 = vunpack.c.l.b16 %v763
      %v796 = vunpack.c.l.b16 %v764
      %v797 = vunpack.c.l.b16 %v765
      %v798 = vunpack.c.l.b16 %v766
      %v799 = vunpack.c.l.b16 %v767
      %v800 = vunpack.c.l.b16 %v768
      %v801 = vunpack.c.l.b16 %v769
      %v802 = vunpack.c.l.b16 %v770
      %v803 = vunpack.c.l.b16 %v771
      %v804 = vunpack.c.l.b16 %v772
      %v805 = vunpack.c.l.b16 %v773
      %v806 = vunpack.c.l.b16 %v774
      %v807 = vunpack.c.l.b16 %v775
      %v808 = vunpack.c.l.b16 %v776
      %v809 = vunpack.c.l.b16 %v777
      %v810 = vpack.c.b16 %v795, %v794
      %v811 = vpack.c.b16 %v797, %v796
      %v812 = vpack.c.b16 %v799, %v798
      %v813 = vpack.c.b16 %v801, %v800
      %v814 = vpack.c.b16 %v803, %v802
      %v815 = vpack.c.b16 %v805, %v804
      %v816 = vpack.c.b16 %v807, %v806
      %v817 = vpack.c.b16 %v809, %v808
      %826 = vmatpush.bf16.msra.mxu0 %v817
      %827 = vmatpush.bf16.msra.mxu0 %v816
      %828 = vmatpush.bf16.msra.mxu0 %v815
      %829 = vmatpush.bf16.msra.mxu0 %v814
      %830 = vmatpush.bf16.msra.mxu0 %v813
      %831 = vmatpush.bf16.msra.mxu0 %v812
      %832 = vmatpush.bf16.msra.mxu0 %v811
      %833 = vmatpush.bf16.msra.mxu0 %v810
      %834 = vmatmul.bf16.gmra.mxu0 %v754
      %v835 = vpop.f32.mrf.mxu0
      %v836 = vadd.f32 0.0, %v835
      %v837 = vpop.f32.mrf.mxu0
      %v838 = vadd.f32 0.0, %v837
      %839 = vmatmul.bf16.gmra.mxu0 %v755
      %v840 = vpop.f32.mrf.mxu0
      %v841 = vadd.f32 0.0, %v840
      %v842 = vpop.f32.mrf.mxu0
      %v843 = vadd.f32 0.0, %v842
      %844 = vmatmul.bf16.gmra.mxu0 %v756
      %v845 = vpop.f32.mrf.mxu0
      %v846 = vadd.f32 0.0, %v845
      %v847 = vpop.f32.mrf.mxu0
      %v848 = vadd.f32 0.0, %v847
      %849 = vmatmul.bf16.gmra.mxu0 %v757
      %v850 = vpop.f32.mrf.mxu0
      %v851 = vadd.f32 0.0, %v850
      %v852 = vpop.f32.mrf.mxu0
      %v853 = vadd.f32 0.0, %v852
      %854 = vmatmul.bf16.gmra.mxu0 %v758
      %v855 = vpop.f32.mrf.mxu0
      %v856 = vadd.f32 0.0, %v855
      %v857 = vpop.f32.mrf.mxu0
      %v858 = vadd.f32 0.0, %v857
      %859 = vmatmul.bf16.gmra.mxu0 %v759
      %v860 = vpop.f32.mrf.mxu0
      %v861 = vadd.f32 0.0, %v860
      %v862 = vpop.f32.mrf.mxu0
      %v863 = vadd.f32 0.0, %v862
      %864 = vmatmul.bf16.gmra.mxu0 %v760
      %v865 = vpop.f32.mrf.mxu0
      %v866 = vadd.f32 0.0, %v865
      %v867 = vpop.f32.mrf.mxu0
      %868 = vdwg.mxu0
      %v869 = vadd.f32 %v726, %v836
      %v870 = vadd.f32 %v727, %v838
      %v871 = vadd.f32 %v728, %v841
      %v872 = vadd.f32 %v729, %v843
      %v873 = vadd.f32 %v730, %v846
      %v874 = vadd.f32 %v731, %v848
      %v875 = vadd.f32 %v732, %v851
      %v876 = vadd.f32 %v733, %v853
      %v877 = vadd.f32 %v734, %v856
      %v878 = vadd.f32 %v735, %v858
      %v879 = vadd.f32 %v736, %v861
      %v880 = vadd.f32 %v737, %v863
      %v881 = vadd.f32 %v738, %v866
      %s882 = sadd.s32 %s194, 12
      %s883 = scalar_lea.vmem %s183, %s882
      %v884 = vld [vmem:[%s883] sm:$0xff]
      %v885 = vld [vmem:[%s883 + $0x8] sm:$0xff]
      %v886 = vld [vmem:[%s883 + $0x10] sm:$0xff]
      %v887 = vld [vmem:[%s883 + $0x18] sm:$0xff]
      %v888 = vld [vmem:[%s883 + $0x20] sm:$0xff]
      %v889 = vld [vmem:[%s883 + $0x28] sm:$0xff]
      %v890 = vld [vmem:[%s883 + $0x30] sm:$0xff]
      %v891 = vld [vmem:[%s883 + $0x38] sm:$0xff]
      %v892 = vld [vmem:[%s883 + $0x40] sm:$0xff]
      %v893 = vld [vmem:[%s883 + $0x48] sm:$0xff]
      %v894 = vld [vmem:[%s883 + $0x50] sm:$0xff]
      %v895 = vld [vmem:[%s883 + $0x58] sm:$0xff]
      %v896 = vld [vmem:[%s883 + $0x60] sm:$0xff]
      %v897 = vpack.c.bf16 %v885, %v884
      %v898 = vpack.c.bf16 %v887, %v886
      %v899 = vpack.c.bf16 %v889, %v888
      %v900 = vpack.c.bf16 %v891, %v890
      %v901 = vpack.c.bf16 %v893, %v892
      %v902 = vpack.c.bf16 %v895, %v894
      %v903 = vpack.c.bf16 %v896, %v896
      %s904 = scalar_lea.vmem %s1, 320
      %v905 = vld [vmem:[%s904] sm:$0xf]
      %v906 = vld [vmem:[%s904 + $0x4] sm:$0xf]
      %v907 = vld [vmem:[%s904 + $0x8] sm:$0xf]
      %v908 = vld [vmem:[%s904 + $0xc] sm:$0xf]
      %v909 = vld [vmem:[%s904 + $0x10] sm:$0xf]
      %v910 = vld [vmem:[%s904 + $0x14] sm:$0xf]
      %v911 = vld [vmem:[%s904 + $0x18] sm:$0xf]
      %v912 = vld [vmem:[%s904 + $0x1c] sm:$0xf]
      %v913 = vld [vmem:[%s904 + $0x20] sm:$0xf]
      %v914 = vld [vmem:[%s904 + $0x24] sm:$0xf]
      %v915 = vld [vmem:[%s904 + $0x28] sm:$0xf]
      %v916 = vld [vmem:[%s904 + $0x2c] sm:$0xf]
      %v917 = vld [vmem:[%s904 + $0x30] sm:$0xf]
      %v918 = vld [vmem:[%s904 + $0x34] sm:$0xf]
      %v919 = vld [vmem:[%s904 + $0x38] sm:$0xf]
      %v920 = vld [vmem:[%s904 + $0x3c] sm:$0xf]
      %v937 = vunpack.c.l.b16 %v905
      %v938 = vunpack.c.l.b16 %v906
      %v939 = vunpack.c.l.b16 %v907
      %v940 = vunpack.c.l.b16 %v908
      %v941 = vunpack.c.l.b16 %v909
      %v942 = vunpack.c.l.b16 %v910
      %v943 = vunpack.c.l.b16 %v911
      %v944 = vunpack.c.l.b16 %v912
      %v945 = vunpack.c.l.b16 %v913
      %v946 = vunpack.c.l.b16 %v914
      %v947 = vunpack.c.l.b16 %v915
      %v948 = vunpack.c.l.b16 %v916
      %v949 = vunpack.c.l.b16 %v917
      %v950 = vunpack.c.l.b16 %v918
      %v951 = vunpack.c.l.b16 %v919
      %v952 = vunpack.c.l.b16 %v920
      %v953 = vpack.c.b16 %v938, %v937
      %v954 = vpack.c.b16 %v940, %v939
      %v955 = vpack.c.b16 %v942, %v941
      %v956 = vpack.c.b16 %v944, %v943
      %v957 = vpack.c.b16 %v946, %v945
      %v958 = vpack.c.b16 %v948, %v947
      %v959 = vpack.c.b16 %v950, %v949
      %v960 = vpack.c.b16 %v952, %v951
      %969 = vmatpush.bf16.msra.mxu0 %v960
      %970 = vmatpush.bf16.msra.mxu0 %v959
      %971 = vmatpush.bf16.msra.mxu0 %v958
      %972 = vmatpush.bf16.msra.mxu0 %v957
      %973 = vmatpush.bf16.msra.mxu0 %v956
      %974 = vmatpush.bf16.msra.mxu0 %v955
      %975 = vmatpush.bf16.msra.mxu0 %v954
      %976 = vmatpush.bf16.msra.mxu0 %v953
      %977 = vmatmul.bf16.gmra.mxu0 %v897
      %v978 = vpop.f32.mrf.mxu0
      %v979 = vadd.f32 0.0, %v978
      %v980 = vpop.f32.mrf.mxu0
      %v981 = vadd.f32 0.0, %v980
      %982 = vmatmul.bf16.gmra.mxu0 %v898
      %v983 = vpop.f32.mrf.mxu0
      %v984 = vadd.f32 0.0, %v983
      %v985 = vpop.f32.mrf.mxu0
      %v986 = vadd.f32 0.0, %v985
      %987 = vmatmul.bf16.gmra.mxu0 %v899
      %v988 = vpop.f32.mrf.mxu0
      %v989 = vadd.f32 0.0, %v988
      %v990 = vpop.f32.mrf.mxu0
      %v991 = vadd.f32 0.0, %v990
      %992 = vmatmul.bf16.gmra.mxu0 %v900
      %v993 = vpop.f32.mrf.mxu0
      %v994 = vadd.f32 0.0, %v993
      %v995 = vpop.f32.mrf.mxu0
      %v996 = vadd.f32 0.0, %v995
      %997 = vmatmul.bf16.gmra.mxu0 %v901
      %v998 = vpop.f32.mrf.mxu0
      %v999 = vadd.f32 0.0, %v998
      %v1000 = vpop.f32.mrf.mxu0
      %v1001 = vadd.f32 0.0, %v1000
      %1002 = vmatmul.bf16.gmra.mxu0 %v902
      %v1003 = vpop.f32.mrf.mxu0
      %v1004 = vadd.f32 0.0, %v1003
      %v1005 = vpop.f32.mrf.mxu0
      %v1006 = vadd.f32 0.0, %v1005
      %1007 = vmatmul.bf16.gmra.mxu0 %v903
      %v1008 = vpop.f32.mrf.mxu0
      %v1009 = vadd.f32 0.0, %v1008
      %v1010 = vpop.f32.mrf.mxu0
      %1011 = vdwg.mxu0
      %v1012 = vadd.f32 %v869, %v979
      %v1013 = vadd.f32 %v870, %v981
      %v1014 = vadd.f32 %v871, %v984
      %v1015 = vadd.f32 %v872, %v986
      %v1016 = vadd.f32 %v873, %v989
      %v1017 = vadd.f32 %v874, %v991
      %v1018 = vadd.f32 %v875, %v994
      %v1019 = vadd.f32 %v876, %v996
      %v1020 = vadd.f32 %v877, %v999
      %v1021 = vadd.f32 %v878, %v1001
      %v1022 = vadd.f32 %v879, %v1004
      %v1023 = vadd.f32 %v880, %v1006
      %v1024 = vadd.f32 %v881, %v1009
      %s1025 = sadd.s32 %s194, 20
      %s1026 = scalar_lea.vmem %s183, %s1025
      %v1027 = vld [vmem:[%s1026] sm:$0xff]
      %v1028 = vld [vmem:[%s1026 + $0x8] sm:$0xff]
      %v1029 = vld [vmem:[%s1026 + $0x10] sm:$0xff]
      %v1030 = vld [vmem:[%s1026 + $0x18] sm:$0xff]
      %v1031 = vld [vmem:[%s1026 + $0x20] sm:$0xff]
      %v1032 = vld [vmem:[%s1026 + $0x28] sm:$0xff]
      %v1033 = vld [vmem:[%s1026 + $0x30] sm:$0xff]
      %v1034 = vld [vmem:[%s1026 + $0x38] sm:$0xff]
      %v1035 = vld [vmem:[%s1026 + $0x40] sm:$0xff]
      %v1036 = vld [vmem:[%s1026 + $0x48] sm:$0xff]
      %v1037 = vld [vmem:[%s1026 + $0x50] sm:$0xff]
      %v1038 = vld [vmem:[%s1026 + $0x58] sm:$0xff]
      %v1039 = vld [vmem:[%s1026 + $0x60] sm:$0xff]
      %v1040 = vpack.c.bf16 %v1028, %v1027
      %v1041 = vpack.c.bf16 %v1030, %v1029
      %v1042 = vpack.c.bf16 %v1032, %v1031
      %v1043 = vpack.c.bf16 %v1034, %v1033
      %v1044 = vpack.c.bf16 %v1036, %v1035
      %v1045 = vpack.c.bf16 %v1038, %v1037
      %v1046 = vpack.c.bf16 %v1039, %v1039
      %s1047 = scalar_lea.vmem %s1, 384
      %v1048 = vld [vmem:[%s1047] sm:$0xf]
      %v1049 = vld [vmem:[%s1047 + $0x4] sm:$0xf]
      %v1050 = vld [vmem:[%s1047 + $0x8] sm:$0xf]
      %v1051 = vld [vmem:[%s1047 + $0xc] sm:$0xf]
      %v1052 = vld [vmem:[%s1047 + $0x10] sm:$0xf]
      %v1053 = vld [vmem:[%s1047 + $0x14] sm:$0xf]
      %v1054 = vld [vmem:[%s1047 + $0x18] sm:$0xf]
      %v1055 = vld [vmem:[%s1047 + $0x1c] sm:$0xf]
      %v1056 = vld [vmem:[%s1047 + $0x20] sm:$0xf]
      %v1057 = vld [vmem:[%s1047 + $0x24] sm:$0xf]
      %v1058 = vld [vmem:[%s1047 + $0x28] sm:$0xf]
      %v1059 = vld [vmem:[%s1047 + $0x2c] sm:$0xf]
      %v1060 = vld [vmem:[%s1047 + $0x30] sm:$0xf]
      %v1061 = vld [vmem:[%s1047 + $0x34] sm:$0xf]
      %v1062 = vld [vmem:[%s1047 + $0x38] sm:$0xf]
      %v1063 = vld [vmem:[%s1047 + $0x3c] sm:$0xf]
      %v1080 = vunpack.c.l.b16 %v1048
      %v1081 = vunpack.c.l.b16 %v1049
      %v1082 = vunpack.c.l.b16 %v1050
      %v1083 = vunpack.c.l.b16 %v1051
      %v1084 = vunpack.c.l.b16 %v1052
      %v1085 = vunpack.c.l.b16 %v1053
      %v1086 = vunpack.c.l.b16 %v1054
      %v1087 = vunpack.c.l.b16 %v1055
      %v1088 = vunpack.c.l.b16 %v1056
      %v1089 = vunpack.c.l.b16 %v1057
      %v1090 = vunpack.c.l.b16 %v1058
      %v1091 = vunpack.c.l.b16 %v1059
      %v1092 = vunpack.c.l.b16 %v1060
      %v1093 = vunpack.c.l.b16 %v1061
      %v1094 = vunpack.c.l.b16 %v1062
      %v1095 = vunpack.c.l.b16 %v1063
      %v1096 = vpack.c.b16 %v1081, %v1080
      %v1097 = vpack.c.b16 %v1083, %v1082
      %v1098 = vpack.c.b16 %v1085, %v1084
      %v1099 = vpack.c.b16 %v1087, %v1086
      %v1100 = vpack.c.b16 %v1089, %v1088
      %v1101 = vpack.c.b16 %v1091, %v1090
      %v1102 = vpack.c.b16 %v1093, %v1092
      %v1103 = vpack.c.b16 %v1095, %v1094
      %1112 = vmatpush.bf16.msra.mxu0 %v1103
      %1113 = vmatpush.bf16.msra.mxu0 %v1102
      %1114 = vmatpush.bf16.msra.mxu0 %v1101
      %1115 = vmatpush.bf16.msra.mxu0 %v1100
      %1116 = vmatpush.bf16.msra.mxu0 %v1099
      %1117 = vmatpush.bf16.msra.mxu0 %v1098
      %1118 = vmatpush.bf16.msra.mxu0 %v1097
      %1119 = vmatpush.bf16.msra.mxu0 %v1096
      %1120 = vmatmul.bf16.gmra.mxu0 %v1040
      %v1121 = vpop.f32.mrf.mxu0
      %v1122 = vadd.f32 0.0, %v1121
      %v1123 = vpop.f32.mrf.mxu0
      %v1124 = vadd.f32 0.0, %v1123
      %1125 = vmatmul.bf16.gmra.mxu0 %v1041
      %v1126 = vpop.f32.mrf.mxu0
      %v1127 = vadd.f32 0.0, %v1126
      %v1128 = vpop.f32.mrf.mxu0
      %v1129 = vadd.f32 0.0, %v1128
      %1130 = vmatmul.bf16.gmra.mxu0 %v1042
      %v1131 = vpop.f32.mrf.mxu0
      %v1132 = vadd.f32 0.0, %v1131
      %v1133 = vpop.f32.mrf.mxu0
      %v1134 = vadd.f32 0.0, %v1133
      %1135 = vmatmul.bf16.gmra.mxu0 %v1043
      %v1136 = vpop.f32.mrf.mxu0
      %v1137 = vadd.f32 0.0, %v1136
      %v1138 = vpop.f32.mrf.mxu0
      %v1139 = vadd.f32 0.0, %v1138
      %1140 = vmatmul.bf16.gmra.mxu0 %v1044
      %v1141 = vpop.f32.mrf.mxu0
      %v1142 = vadd.f32 0.0, %v1141
      %v1143 = vpop.f32.mrf.mxu0
      %v1144 = vadd.f32 0.0, %v1143
      %1145 = vmatmul.bf16.gmra.mxu0 %v1045
      %v1146 = vpop.f32.mrf.mxu0
      %v1147 = vadd.f32 0.0, %v1146
      %v1148 = vpop.f32.mrf.mxu0
      %v1149 = vadd.f32 0.0, %v1148
      %1150 = vmatmul.bf16.gmra.mxu0 %v1046
      %v1151 = vpop.f32.mrf.mxu0
      %v1152 = vadd.f32 0.0, %v1151
      %v1153 = vpop.f32.mrf.mxu0
      %1154 = vdwg.mxu0
      %v1155 = vadd.f32 %v1012, %v1122
      %v1156 = vadd.f32 %v1013, %v1124
      %v1157 = vadd.f32 %v1014, %v1127
      %v1158 = vadd.f32 %v1015, %v1129
      %v1159 = vadd.f32 %v1016, %v1132
      %v1160 = vadd.f32 %v1017, %v1134
      %v1161 = vadd.f32 %v1018, %v1137
      %v1162 = vadd.f32 %v1019, %v1139
      %v1163 = vadd.f32 %v1020, %v1142
      %v1164 = vadd.f32 %v1021, %v1144
      %v1165 = vadd.f32 %v1022, %v1147
      %v1166 = vadd.f32 %v1023, %v1149
      %v1167 = vadd.f32 %v1024, %v1152
      %s1168 = sadd.s32 %s194, 21
      %s1169 = scalar_lea.vmem %s183, %s1168
      %v1170 = vld [vmem:[%s1169] sm:$0xff]
      %v1171 = vld [vmem:[%s1169 + $0x8] sm:$0xff]
      %v1172 = vld [vmem:[%s1169 + $0x10] sm:$0xff]
      %v1173 = vld [vmem:[%s1169 + $0x18] sm:$0xff]
      %v1174 = vld [vmem:[%s1169 + $0x20] sm:$0xff]
      %v1175 = vld [vmem:[%s1169 + $0x28] sm:$0xff]
      %v1176 = vld [vmem:[%s1169 + $0x30] sm:$0xff]
      %v1177 = vld [vmem:[%s1169 + $0x38] sm:$0xff]
      %v1178 = vld [vmem:[%s1169 + $0x40] sm:$0xff]
      %v1179 = vld [vmem:[%s1169 + $0x48] sm:$0xff]
      %v1180 = vld [vmem:[%s1169 + $0x50] sm:$0xff]
      %v1181 = vld [vmem:[%s1169 + $0x58] sm:$0xff]
      %v1182 = vld [vmem:[%s1169 + $0x60] sm:$0xff]
      %v1183 = vpack.c.bf16 %v1171, %v1170
      %v1184 = vpack.c.bf16 %v1173, %v1172
      %v1185 = vpack.c.bf16 %v1175, %v1174
      %v1186 = vpack.c.bf16 %v1177, %v1176
      %v1187 = vpack.c.bf16 %v1179, %v1178
      %v1188 = vpack.c.bf16 %v1181, %v1180
      %v1189 = vpack.c.bf16 %v1182, %v1182
      %s1190 = scalar_lea.vmem %s1, 448
      %v1191 = vld [vmem:[%s1190] sm:$0xf]
      %v1192 = vld [vmem:[%s1190 + $0x4] sm:$0xf]
      %v1193 = vld [vmem:[%s1190 + $0x8] sm:$0xf]
      %v1194 = vld [vmem:[%s1190 + $0xc] sm:$0xf]
      %v1195 = vld [vmem:[%s1190 + $0x10] sm:$0xf]
      %v1196 = vld [vmem:[%s1190 + $0x14] sm:$0xf]
      %v1197 = vld [vmem:[%s1190 + $0x18] sm:$0xf]
      %v1198 = vld [vmem:[%s1190 + $0x1c] sm:$0xf]
      %v1199 = vld [vmem:[%s1190 + $0x20] sm:$0xf]
      %v1200 = vld [vmem:[%s1190 + $0x24] sm:$0xf]
      %v1201 = vld [vmem:[%s1190 + $0x28] sm:$0xf]
      %v1202 = vld [vmem:[%s1190 + $0x2c] sm:$0xf]
      %v1203 = vld [vmem:[%s1190 + $0x30] sm:$0xf]
      %v1204 = vld [vmem:[%s1190 + $0x34] sm:$0xf]
      %v1205 = vld [vmem:[%s1190 + $0x38] sm:$0xf]
      %v1206 = vld [vmem:[%s1190 + $0x3c] sm:$0xf]
      %v1223 = vunpack.c.l.b16 %v1191
      %v1224 = vunpack.c.l.b16 %v1192
      %v1225 = vunpack.c.l.b16 %v1193
      %v1226 = vunpack.c.l.b16 %v1194
      %v1227 = vunpack.c.l.b16 %v1195
      %v1228 = vunpack.c.l.b16 %v1196
      %v1229 = vunpack.c.l.b16 %v1197
      %v1230 = vunpack.c.l.b16 %v1198
      %v1231 = vunpack.c.l.b16 %v1199
      %v1232 = vunpack.c.l.b16 %v1200
      %v1233 = vunpack.c.l.b16 %v1201
      %v1234 = vunpack.c.l.b16 %v1202
      %v1235 = vunpack.c.l.b16 %v1203
      %v1236 = vunpack.c.l.b16 %v1204
      %v1237 = vunpack.c.l.b16 %v1205
      %v1238 = vunpack.c.l.b16 %v1206
      %v1239 = vpack.c.b16 %v1224, %v1223
      %v1240 = vpack.c.b16 %v1226, %v1225
      %v1241 = vpack.c.b16 %v1228, %v1227
      %v1242 = vpack.c.b16 %v1230, %v1229
      %v1243 = vpack.c.b16 %v1232, %v1231
      %v1244 = vpack.c.b16 %v1234, %v1233
      %v1245 = vpack.c.b16 %v1236, %v1235
      %v1246 = vpack.c.b16 %v1238, %v1237
      %1255 = vmatpush.bf16.msra.mxu0 %v1246
      %1256 = vmatpush.bf16.msra.mxu0 %v1245
      %1257 = vmatpush.bf16.msra.mxu0 %v1244
      %1258 = vmatpush.bf16.msra.mxu0 %v1243
      %1259 = vmatpush.bf16.msra.mxu0 %v1242
      %1260 = vmatpush.bf16.msra.mxu0 %v1241
      %1261 = vmatpush.bf16.msra.mxu0 %v1240
      %1262 = vmatpush.bf16.msra.mxu0 %v1239
      %1263 = vmatmul.bf16.gmra.mxu0 %v1183
      %v1264 = vpop.f32.mrf.mxu0
      %v1265 = vadd.f32 0.0, %v1264
      %v1266 = vpop.f32.mrf.mxu0
      %v1267 = vadd.f32 0.0, %v1266
      %1268 = vmatmul.bf16.gmra.mxu0 %v1184
      %v1269 = vpop.f32.mrf.mxu0
      %v1270 = vadd.f32 0.0, %v1269
      %v1271 = vpop.f32.mrf.mxu0
      %v1272 = vadd.f32 0.0, %v1271
      %1273 = vmatmul.bf16.gmra.mxu0 %v1185
      %v1274 = vpop.f32.mrf.mxu0
      %v1275 = vadd.f32 0.0, %v1274
      %v1276 = vpop.f32.mrf.mxu0
      %v1277 = vadd.f32 0.0, %v1276
      %1278 = vmatmul.bf16.gmra.mxu0 %v1186
      %v1279 = vpop.f32.mrf.mxu0
      %v1280 = vadd.f32 0.0, %v1279
      %v1281 = vpop.f32.mrf.mxu0
      %v1282 = vadd.f32 0.0, %v1281
      %1283 = vmatmul.bf16.gmra.mxu0 %v1187
      %v1284 = vpop.f32.mrf.mxu0
      %v1285 = vadd.f32 0.0, %v1284
      %v1286 = vpop.f32.mrf.mxu0
      %v1287 = vadd.f32 0.0, %v1286
      %1288 = vmatmul.bf16.gmra.mxu0 %v1188
      %v1289 = vpop.f32.mrf.mxu0
      %v1290 = vadd.f32 0.0, %v1289
      %v1291 = vpop.f32.mrf.mxu0
      %v1292 = vadd.f32 0.0, %v1291
      %1293 = vmatmul.bf16.gmra.mxu0 %v1189
      %v1294 = vpop.f32.mrf.mxu0
      %v1295 = vadd.f32 0.0, %v1294
      %v1296 = vpop.f32.mrf.mxu0
      %1297 = vdwg.mxu0
      %v1298 = vadd.f32 %v1155, %v1265
      %v1299 = vadd.f32 %v1156, %v1267
      %v1300 = vadd.f32 %v1157, %v1270
      %v1301 = vadd.f32 %v1158, %v1272
      %v1302 = vadd.f32 %v1159, %v1275
      %v1303 = vadd.f32 %v1160, %v1277
      %v1304 = vadd.f32 %v1161, %v1280
      %v1305 = vadd.f32 %v1162, %v1282
      %v1306 = vadd.f32 %v1163, %v1285
      %v1307 = vadd.f32 %v1164, %v1287
      %v1308 = vadd.f32 %v1165, %v1290
      %v1309 = vadd.f32 %v1166, %v1292
      %v1310 = vadd.f32 %v1167, %v1295
      %s1311 = sadd.s32 %s194, 22
      %s1312 = scalar_lea.vmem %s183, %s1311
      %v1313 = vld [vmem:[%s1312] sm:$0xff]
      %v1314 = vld [vmem:[%s1312 + $0x8] sm:$0xff]
      %v1315 = vld [vmem:[%s1312 + $0x10] sm:$0xff]
      %v1316 = vld [vmem:[%s1312 + $0x18] sm:$0xff]
      %v1317 = vld [vmem:[%s1312 + $0x20] sm:$0xff]
      %v1318 = vld [vmem:[%s1312 + $0x28] sm:$0xff]
      %v1319 = vld [vmem:[%s1312 + $0x30] sm:$0xff]
      %v1320 = vld [vmem:[%s1312 + $0x38] sm:$0xff]
      %v1321 = vld [vmem:[%s1312 + $0x40] sm:$0xff]
      %v1322 = vld [vmem:[%s1312 + $0x48] sm:$0xff]
      %v1323 = vld [vmem:[%s1312 + $0x50] sm:$0xff]
      %v1324 = vld [vmem:[%s1312 + $0x58] sm:$0xff]
      %v1325 = vld [vmem:[%s1312 + $0x60] sm:$0xff]
      %v1326 = vpack.c.bf16 %v1314, %v1313
      %v1327 = vpack.c.bf16 %v1316, %v1315
      %v1328 = vpack.c.bf16 %v1318, %v1317
      %v1329 = vpack.c.bf16 %v1320, %v1319
      %v1330 = vpack.c.bf16 %v1322, %v1321
      %v1331 = vpack.c.bf16 %v1324, %v1323
      %v1332 = vpack.c.bf16 %v1325, %v1325
      %s1333 = scalar_lea.vmem %s1, 512
      %v1334 = vld [vmem:[%s1333] sm:$0xf]
      %v1335 = vld [vmem:[%s1333 + $0x4] sm:$0xf]
      %v1336 = vld [vmem:[%s1333 + $0x8] sm:$0xf]
      %v1337 = vld [vmem:[%s1333 + $0xc] sm:$0xf]
      %v1338 = vld [vmem:[%s1333 + $0x10] sm:$0xf]
      %v1339 = vld [vmem:[%s1333 + $0x14] sm:$0xf]
      %v1340 = vld [vmem:[%s1333 + $0x18] sm:$0xf]
      %v1341 = vld [vmem:[%s1333 + $0x1c] sm:$0xf]
      %v1342 = vld [vmem:[%s1333 + $0x20] sm:$0xf]
      %v1343 = vld [vmem:[%s1333 + $0x24] sm:$0xf]
      %v1344 = vld [vmem:[%s1333 + $0x28] sm:$0xf]
      %v1345 = vld [vmem:[%s1333 + $0x2c] sm:$0xf]
      %v1346 = vld [vmem:[%s1333 + $0x30] sm:$0xf]
      %v1347 = vld [vmem:[%s1333 + $0x34] sm:$0xf]
      %v1348 = vld [vmem:[%s1333 + $0x38] sm:$0xf]
      %v1349 = vld [vmem:[%s1333 + $0x3c] sm:$0xf]
      %v1366 = vunpack.c.l.b16 %v1334
      %v1367 = vunpack.c.l.b16 %v1335
      %v1368 = vunpack.c.l.b16 %v1336
      %v1369 = vunpack.c.l.b16 %v1337
      %v1370 = vunpack.c.l.b16 %v1338
      %v1371 = vunpack.c.l.b16 %v1339
      %v1372 = vunpack.c.l.b16 %v1340
      %v1373 = vunpack.c.l.b16 %v1341
      %v1374 = vunpack.c.l.b16 %v1342
      %v1375 = vunpack.c.l.b16 %v1343
      %v1376 = vunpack.c.l.b16 %v1344
      %v1377 = vunpack.c.l.b16 %v1345
      %v1378 = vunpack.c.l.b16 %v1346
      %v1379 = vunpack.c.l.b16 %v1347
      %v1380 = vunpack.c.l.b16 %v1348
      %v1381 = vunpack.c.l.b16 %v1349
      %v1382 = vpack.c.b16 %v1367, %v1366
      %v1383 = vpack.c.b16 %v1369, %v1368
      %v1384 = vpack.c.b16 %v1371, %v1370
      %v1385 = vpack.c.b16 %v1373, %v1372
      %v1386 = vpack.c.b16 %v1375, %v1374
      %v1387 = vpack.c.b16 %v1377, %v1376
      %v1388 = vpack.c.b16 %v1379, %v1378
      %v1389 = vpack.c.b16 %v1381, %v1380
      %1398 = vmatpush.bf16.msra.mxu0 %v1389
      %1399 = vmatpush.bf16.msra.mxu0 %v1388
      %1400 = vmatpush.bf16.msra.mxu0 %v1387
      %1401 = vmatpush.bf16.msra.mxu0 %v1386
      %1402 = vmatpush.bf16.msra.mxu0 %v1385
      %1403 = vmatpush.bf16.msra.mxu0 %v1384
      %1404 = vmatpush.bf16.msra.mxu0 %v1383
      %1405 = vmatpush.bf16.msra.mxu0 %v1382
      %1406 = vmatmul.bf16.gmra.mxu0 %v1326
      %v1407 = vpop.f32.mrf.mxu0
      %v1408 = vadd.f32 0.0, %v1407
      %v1409 = vpop.f32.mrf.mxu0
      %v1410 = vadd.f32 0.0, %v1409
      %1411 = vmatmul.bf16.gmra.mxu0 %v1327
      %v1412 = vpop.f32.mrf.mxu0
      %v1413 = vadd.f32 0.0, %v1412
      %v1414 = vpop.f32.mrf.mxu0
      %v1415 = vadd.f32 0.0, %v1414
      %1416 = vmatmul.bf16.gmra.mxu0 %v1328
      %v1417 = vpop.f32.mrf.mxu0
      %v1418 = vadd.f32 0.0, %v1417
      %v1419 = vpop.f32.mrf.mxu0
      %v1420 = vadd.f32 0.0, %v1419
      %1421 = vmatmul.bf16.gmra.mxu0 %v1329
      %v1422 = vpop.f32.mrf.mxu0
      %v1423 = vadd.f32 0.0, %v1422
      %v1424 = vpop.f32.mrf.mxu0
      %v1425 = vadd.f32 0.0, %v1424
      %1426 = vmatmul.bf16.gmra.mxu0 %v1330
      %v1427 = vpop.f32.mrf.mxu0
      %v1428 = vadd.f32 0.0, %v1427
      %v1429 = vpop.f32.mrf.mxu0
      %v1430 = vadd.f32 0.0, %v1429
      %1431 = vmatmul.bf16.gmra.mxu0 %v1331
      %v1432 = vpop.f32.mrf.mxu0
      %v1433 = vadd.f32 0.0, %v1432
      %v1434 = vpop.f32.mrf.mxu0
      %v1435 = vadd.f32 0.0, %v1434
      %1436 = vmatmul.bf16.gmra.mxu0 %v1332
      %v1437 = vpop.f32.mrf.mxu0
      %v1438 = vadd.f32 0.0, %v1437
      %v1439 = vpop.f32.mrf.mxu0
      %1440 = vdwg.mxu0
      %v1441 = vadd.f32 %v1298, %v1408
      %v1442 = vadd.f32 %v1299, %v1410
      %v1443 = vadd.f32 %v1300, %v1413
      %v1444 = vadd.f32 %v1301, %v1415
      %v1445 = vadd.f32 %v1302, %v1418
      %v1446 = vadd.f32 %v1303, %v1420
      %v1447 = vadd.f32 %v1304, %v1423
      %v1448 = vadd.f32 %v1305, %v1425
      %v1449 = vadd.f32 %v1306, %v1428
      %v1450 = vadd.f32 %v1307, %v1430
      %v1451 = vadd.f32 %v1308, %v1433
      %v1452 = vadd.f32 %v1309, %v1435
      %v1453 = vadd.f32 %v1310, %v1438
      %v1454 = vld [vmem:[%s2] sm:$0x1]
      %v1456 = vperm.slane %v1454, 0
      %v1458 = vadd.f32 %v1441, %v1456
      %v1459 = vadd.f32 %v1442, %v1456
      %v1460 = vadd.f32 %v1443, %v1456
      %v1461 = vadd.f32 %v1444, %v1456
      %v1462 = vadd.f32 %v1445, %v1456
      %v1463 = vadd.f32 %v1446, %v1456
      %v1464 = vadd.f32 %v1447, %v1456
      %v1465 = vadd.f32 %v1448, %v1456
      %v1466 = vadd.f32 %v1449, %v1456
      %v1467 = vadd.f32 %v1450, %v1456
      %v1468 = vadd.f32 %v1451, %v1456
      %v1469 = vadd.f32 %v1452, %v1456
      %v1470 = vadd.f32 %v1453, %v1456
      %1471 = vst [vmem:[%s192] sm:$0xff] %v1458
      %1472 = vst [vmem:[%s192 + $0x8] sm:$0xff] %v1459
      %1473 = vst [vmem:[%s192 + $0x10] sm:$0xff] %v1460
      %1474 = vst [vmem:[%s192 + $0x18] sm:$0xff] %v1461
      %1475 = vst [vmem:[%s192 + $0x20] sm:$0xff] %v1462
      %1476 = vst [vmem:[%s192 + $0x28] sm:$0xff] %v1463
      %1477 = vst [vmem:[%s192 + $0x30] sm:$0xff] %v1464
      %1478 = vst [vmem:[%s192 + $0x38] sm:$0xff] %v1465
      %1479 = vst [vmem:[%s192 + $0x40] sm:$0xff] %v1466
      %1480 = vst [vmem:[%s192 + $0x48] sm:$0xff] %v1467
      %1481 = vst [vmem:[%s192 + $0x50] sm:$0xff] %v1468
      %1482 = vst [vmem:[%s192 + $0x58] sm:$0xff] %v1469
      %1483 = vst [vmem:[%s192 + $0x60] sm:$0xff] %v1470
      %s1484 = smul.u32 13, %s19
      %p1485 = scmp.lt.s32.totalorder %s18, 7
      %s1486 = scalar_select %p1485, %s18, 7
      %p1487 = scmp.lt.s32.totalorder %s1484, 12
      %s1488 = scalar_select %p1487, %s1484, 12
      %s1489 = smul.addr %s1486, 13
      %s1490 = sadd.s32 %s1488, %s1489
      %s1491 = smul.addr %s1490, 8
      %s1492 = scalar_lea.vmem %s3, %s1491
      // Predicated region
      $region33: #{noise_sequence_rnn_v3_forward.42} parent=31 // pred_check
        %p1493 = pneg %p114
      $region34: #{noise_sequence_rnn_v3_forward.42} parent=31 // pred_check_branch
        %1495 = sbr.rel (%p1493) target = $region36
      $region35: #{noise_sequence_rnn_v3_forward.42} parent=31 // pred_region
        %s1496 = smul.u32 13, %s19
      $region36: #{noise_sequence_rnn_v3_forward.42} parent=31 // pred_fallthru
        _
    $region32: #{noise_sequence_rnn_v3_forward.42} parent=5 // pred_fallthru
      _
    %p1497 = scmp.le.s32.totalorder 2, %s9
    // Predicated region
    $region37: #{noise_sequence_rnn_v3_forward.42} parent=5 // pred_check
      %p1498 = pneg %p1497
    $region38: #{noise_sequence_rnn_v3_forward.42} parent=5 // pred_check_branch
      %1500 = sbr.rel (%p1498) target = $region40
    $region39: #{noise_sequence_rnn_v3_forward.42} parent=5 // pred_region
      %s1501 = ssub.s32 %s9, 2
      // Predicated region
      $region41: #{noise_sequence_rnn_v3_forward.42} parent=39 // pred_check
        %p1502 = pneg %p120
      $region42: #{noise_sequence_rnn_v3_forward.42} parent=39 // pred_check_branch
        %1504 = sbr.rel (%p1502) target = $region44
      $region43: #{noise_sequence_rnn_v3_forward.42} parent=39 // pred_region
        %s1505 = smul.u32 13, %s21
        %p1506 = scmp.lt.s32.totalorder %s20, 7
        %s1507 = scalar_select %p1506, %s20, 7
        %p1508 = scmp.lt.s32.totalorder %s1505, 12
        %s1509 = scalar_select %p1508, %s1505, 12
        %s1510 = smul.addr %s1507, 13
        %s1511 = sadd.s32 %s1509, %s1510
        %s1512 = smul.addr %s1511, 8
        %s1513 = scalar_lea.vmem %s3, %s1512
      $region44: #{noise_sequence_rnn_v3_forward.42} parent=39 // pred_fallthru
        _
    $region40: #{noise_sequence_rnn_v3_forward.42} parent=5 // pred_fallthru
      _
  $region6: #{noise_sequence_rnn_v3_forward.42} parent=0 // loop_footer
    %s13 = sadd.s32 1, %s9
  $region7: #{noise_sequence_rnn_v3_forward.42} parent=0 // loop_footer_branch
    %8 = sbr.rel target = $region3
  $region8: #{noise_sequence_rnn_v3_forward.42} parent=0 // loop_exit
    _

// kernel: noise_sequence_rnn_v3_forward.46
$region0: #{noise_sequence_rnn_v3_forward.46}
  #allocation0 [shape = 'u32[]', space=smem, size = 0x4, offset = 0x4, fixed_abs, tag = 'smem constant byte address 0x4 - core index']
  #allocation1 [shape = 'u32[72,128]{1,0:T(1,128)}', space=vmem, size = 0x9000, scoped, tag = 'internal scratch']
  %s0 = inlined_call_operand.vmem [shape: f32[8,128], index: 0, kind: input, shape index: {}]
  %s1 = inlined_call_operand.vmem [shape: bf16[128,128], index: 1, kind: input, shape index: {}]
  %s2 = inlined_call_operand.vmem [shape: f32[1,128], index: 2, kind: input, shape index: {}]
  %s3 = inlined_call_operand.vmem [shape: f32[8,128], index: 3, kind: output, shape index: {}]
  %s4 = sld [smem:[#allocation0]]
  $region22: #{noise_sequence_rnn_v3_forward.46} parent=0
    _
  %s6 = ssub.s32 1, %s4
  %s7 = scalar_select 0, %s6, %s4
  // Predicated region
  $region2: #{noise_sequence_rnn_v3_forward.46} parent=0 // pred_check
    _
  $region3: #{noise_sequence_rnn_v3_forward.46} parent=0 // pred_check_branch
    %9 = sbr.rel (0) target = $region5
  $region4: #{noise_sequence_rnn_v3_forward.46} parent=0 // pred_region
    _
  $region5: #{noise_sequence_rnn_v3_forward.46} parent=0 // pred_fallthru
    _
  // Predicated region
  $region6: #{noise_sequence_rnn_v3_forward.46} parent=0 // pred_check
    _
  $region7: #{noise_sequence_rnn_v3_forward.46} parent=0 // pred_check_branch
    %11 = sbr.rel (0) target = $region9
  $region8: #{noise_sequence_rnn_v3_forward.46} parent=0 // pred_region
    _
  $region9: #{noise_sequence_rnn_v3_forward.46} parent=0 // pred_fallthru
    _
  // Predicated region
  $region10: #{noise_sequence_rnn_v3_forward.46} parent=0 // pred_check
    _
  $region11: #{noise_sequence_rnn_v3_forward.46} parent=0 // pred_check_branch
    %13 = sbr.rel (0) target = $region13
  $region12: #{noise_sequence_rnn_v3_forward.46} parent=0 // pred_region
    _
  $region13: #{noise_sequence_rnn_v3_forward.46} parent=0 // pred_fallthru
    _
  %v14 = vld [vmem:[%s0] sm:$0xff]
  %v15 = vpack.c.bf16 %v14, %v14
  %v16 = vld [vmem:[%s1] sm:$0xf]
  %v17 = vld [vmem:[%s1 + $0x4] sm:$0xf]
  %v18 = vld [vmem:[%s1 + $0x8] sm:$0xf]
  %v19 = vld [vmem:[%s1 + $0xc] sm:$0xf]
  %v20 = vld [vmem:[%s1 + $0x10] sm:$0xf]
  %v21 = vld [vmem:[%s1 + $0x14] sm:$0xf]
  %v22 = vld [vmem:[%s1 + $0x18] sm:$0xf]
  %v23 = vld [vmem:[%s1 + $0x1c] sm:$0xf]
  %v24 = vld [vmem:[%s1 + $0x20] sm:$0xf]
  %v25 = vld [vmem:[%s1 + $0x24] sm:$0xf]
  %v26 = vld [vmem:[%s1 + $0x28] sm:$0xf]
  %v27 = vld [vmem:[%s1 + $0x2c] sm:$0xf]
  %v28 = vld [vmem:[%s1 + $0x30] sm:$0xf]
  %v29 = vld [vmem:[%s1 + $0x34] sm:$0xf]
  %v30 = vld [vmem:[%s1 + $0x38] sm:$0xf]
  %v31 = vld [vmem:[%s1 + $0x3c] sm:$0xf]
  %v32 = vld [vmem:[%s2] sm:$0x1]
  %v34 = vperm.slane %v32, 0
  %v52 = vunpack.c.l.b16 %v16
  %v53 = vunpack.c.l.b16 %v17
  %v54 = vunpack.c.l.b16 %v18
  %v55 = vunpack.c.l.b16 %v19
  %v56 = vunpack.c.l.b16 %v20
  %v57 = vunpack.c.l.b16 %v21
  %v58 = vunpack.c.l.b16 %v22
  %v59 = vunpack.c.l.b16 %v23
  %v60 = vunpack.c.l.b16 %v24
  %v61 = vunpack.c.l.b16 %v25
  %v62 = vunpack.c.l.b16 %v26
  %v63 = vunpack.c.l.b16 %v27
  %v64 = vunpack.c.l.b16 %v28
  %v65 = vunpack.c.l.b16 %v29
  %v66 = vunpack.c.l.b16 %v30
  %v67 = vunpack.c.l.b16 %v31
  %v68 = vpack.c.b16 %v53, %v52
  %v69 = vpack.c.b16 %v55, %v54
  %v70 = vpack.c.b16 %v57, %v56
  %v71 = vpack.c.b16 %v59, %v58
  %v72 = vpack.c.b16 %v61, %v60
  %v73 = vpack.c.b16 %v63, %v62
  %v74 = vpack.c.b16 %v65, %v64
  %v75 = vpack.c.b16 %v67, %v66
  %84 = vmatpush.bf16.msra.mxu0 %v75
  %85 = vmatpush.bf16.msra.mxu0 %v74
  %86 = vmatpush.bf16.msra.mxu0 %v73
  %87 = vmatpush.bf16.msra.mxu0 %v72
  %88 = vmatpush.bf16.msra.mxu0 %v71
  %89 = vmatpush.bf16.msra.mxu0 %v70
  %90 = vmatpush.bf16.msra.mxu0 %v69
  %91 = vmatpush.bf16.msra.mxu0 %v68
  %92 = vmatmul.bf16.gmra.mxu0 %v15
  %v93 = vpop.f32.mrf.mxu0
  %v94 = vadd.f32 %v34, %v93
  %v95 = vpop.f32.mrf.mxu0
  %96 = vdwg.mxu0
  %97 = vst [vmem:[%s3] sm:$0xff] %v94
  // Predicated region
  $region14: #{noise_sequence_rnn_v3_forward.46} parent=0 // pred_check
    _
  $region15: #{noise_sequence_rnn_v3_forward.46} parent=0 // pred_check_branch
    %99 = sbr.rel (0) target = $region17
  $region16: #{noise_sequence_rnn_v3_forward.46} parent=0 // pred_region
    _
  $region17: #{noise_sequence_rnn_v3_forward.46} parent=0 // pred_fallthru
    _
  // Predicated region
  $region18: #{noise_sequence_rnn_v3_forward.46} parent=0 // pred_check
    _
  $region19: #{noise_sequence_rnn_v3_forward.46} parent=0 // pred_check_branch
    %101 = sbr.rel (0) target = $region21
  $region20: #{noise_sequence_rnn_v3_forward.46} parent=0 // pred_region
    _
  $region21: #{noise_sequence_rnn_v3_forward.46} parent=0 // pred_fallthru
    _

// kernel: noise_sequence_rnn_v3_forward.48
$region0: #{noise_sequence_rnn_v3_forward.48}
  #allocation0 [shape = 'u32[]', space=smem, size = 0x4, offset = 0x4, fixed_abs, tag = 'smem constant byte address 0x4 - core index']
  #allocation1 [shape = 'u32[72,128]{1,0:T(1,128)}', space=vmem, size = 0x9000, scoped, tag = 'internal scratch']
  %s0 = inlined_call_operand.vmem [shape: f32[8,256], index: 0, kind: input, shape index: {}]
  %s1 = inlined_call_operand.vmem [shape: bf16[256,96], index: 1, kind: input, shape index: {}]
  %s2 = inlined_call_operand.vmem [shape: f32[1,96], index: 2, kind: input, shape index: {}]
  %s3 = inlined_call_operand.vmem [shape: f32[8,96], index: 3, kind: output, shape index: {}]
  %s4 = sld [smem:[#allocation0]]
  $region22: #{noise_sequence_rnn_v3_forward.48} parent=0
    _
  %s6 = ssub.s32 1, %s4
  %s7 = scalar_select 0, %s6, %s4
  // Predicated region
  $region2: #{noise_sequence_rnn_v3_forward.48} parent=0 // pred_check
    _
  $region3: #{noise_sequence_rnn_v3_forward.48} parent=0 // pred_check_branch
    %9 = sbr.rel (0) target = $region5
  $region4: #{noise_sequence_rnn_v3_forward.48} parent=0 // pred_region
    _
  $region5: #{noise_sequence_rnn_v3_forward.48} parent=0 // pred_fallthru
    _
  // Predicated region
  $region6: #{noise_sequence_rnn_v3_forward.48} parent=0 // pred_check
    _
  $region7: #{noise_sequence_rnn_v3_forward.48} parent=0 // pred_check_branch
    %11 = sbr.rel (0) target = $region9
  $region8: #{noise_sequence_rnn_v3_forward.48} parent=0 // pred_region
    _
  $region9: #{noise_sequence_rnn_v3_forward.48} parent=0 // pred_fallthru
    _
  // Predicated region
  $region10: #{noise_sequence_rnn_v3_forward.48} parent=0 // pred_check
    _
  $region11: #{noise_sequence_rnn_v3_forward.48} parent=0 // pred_check_branch
    %13 = sbr.rel (0) target = $region13
  $region12: #{noise_sequence_rnn_v3_forward.48} parent=0 // pred_region
    _
  $region13: #{noise_sequence_rnn_v3_forward.48} parent=0 // pred_fallthru
    _
  %v14 = vld [vmem:[%s0] sm:$0xff]
  %v15 = vld [vmem:[%s0 + $0x8] sm:$0xff]
  %v16 = vpack.c.bf16 %v14, %v14
  %v17 = vpack.c.bf16 %v15, %v15
  %v18 = vld [vmem:[%s1] sm:$0xf]
  %v19 = vld [vmem:[%s1 + $0x4] sm:$0xf]
  %v20 = vld [vmem:[%s1 + $0x8] sm:$0xf]
  %v21 = vld [vmem:[%s1 + $0xc] sm:$0xf]
  %v22 = vld [vmem:[%s1 + $0x10] sm:$0xf]
  %v23 = vld [vmem:[%s1 + $0x14] sm:$0xf]
  %v24 = vld [vmem:[%s1 + $0x18] sm:$0xf]
  %v25 = vld [vmem:[%s1 + $0x1c] sm:$0xf]
  %v26 = vld [vmem:[%s1 + $0x20] sm:$0xf]
  %v27 = vld [vmem:[%s1 + $0x24] sm:$0xf]
  %v28 = vld [vmem:[%s1 + $0x28] sm:$0xf]
  %v29 = vld [vmem:[%s1 + $0x2c] sm:$0xf]
  %v30 = vld [vmem:[%s1 + $0x30] sm:$0xf]
  %v31 = vld [vmem:[%s1 + $0x34] sm:$0xf]
  %v32 = vld [vmem:[%s1 + $0x38] sm:$0xf]
  %v33 = vld [vmem:[%s1 + $0x3c] sm:$0xf]
  %v34 = vld [vmem:[%s1 + $0x40] sm:$0xf]
  %v35 = vld [vmem:[%s1 + $0x44] sm:$0xf]
  %v36 = vld [vmem:[%s1 + $0x48] sm:$0xf]
  %v37 = vld [vmem:[%s1 + $0x4c] sm:$0xf]
  %v38 = vld [vmem:[%s1 + $0x50] sm:$0xf]
  %v39 = vld [vmem:[%s1 + $0x54] sm:$0xf]
  %v40 = vld [vmem:[%s1 + $0x58] sm:$0xf]
  %v41 = vld [vmem:[%s1 + $0x5c] sm:$0xf]
  %v42 = vld [vmem:[%s1 + $0x60] sm:$0xf]
  %v43 = vld [vmem:[%s1 + $0x64] sm:$0xf]
  %v44 = vld [vmem:[%s1 + $0x68] sm:$0xf]
  %v45 = vld [vmem:[%s1 + $0x6c] sm:$0xf]
  %v46 = vld [vmem:[%s1 + $0x70] sm:$0xf]
  %v47 = vld [vmem:[%s1 + $0x74] sm:$0xf]
  %v48 = vld [vmem:[%s1 + $0x78] sm:$0xf]
  %v49 = vld [vmem:[%s1 + $0x7c] sm:$0xf]
  %v50 = vld [vmem:[%s2] sm:$0x1]
  %v52 = vperm.slane %v50, 0
  %v86 = vunpack.c.l.b16 %v18
  %v87 = vunpack.c.l.b16 %v19
  %v88 = vunpack.c.l.b16 %v20
  %v89 = vunpack.c.l.b16 %v21
  %v90 = vunpack.c.l.b16 %v22
  %v91 = vunpack.c.l.b16 %v23
  %v92 = vunpack.c.l.b16 %v24
  %v93 = vunpack.c.l.b16 %v25
  %v94 = vunpack.c.l.b16 %v26
  %v95 = vunpack.c.l.b16 %v27
  %v96 = vunpack.c.l.b16 %v28
  %v97 = vunpack.c.l.b16 %v29
  %v98 = vunpack.c.l.b16 %v30
  %v99 = vunpack.c.l.b16 %v31
  %v100 = vunpack.c.l.b16 %v32
  %v101 = vunpack.c.l.b16 %v33
  %v102 = vunpack.c.l.b16 %v34
  %v103 = vunpack.c.l.b16 %v35
  %v104 = vunpack.c.l.b16 %v36
  %v105 = vunpack.c.l.b16 %v37
  %v106 = vunpack.c.l.b16 %v38
  %v107 = vunpack.c.l.b16 %v39
  %v108 = vunpack.c.l.b16 %v40
  %v109 = vunpack.c.l.b16 %v41
  %v110 = vunpack.c.l.b16 %v42
  %v111 = vunpack.c.l.b16 %v43
  %v112 = vunpack.c.l.b16 %v44
  %v113 = vunpack.c.l.b16 %v45
  %v114 = vunpack.c.l.b16 %v46
  %v115 = vunpack.c.l.b16 %v47
  %v116 = vunpack.c.l.b16 %v48
  %v117 = vunpack.c.l.b16 %v49
  %v118 = vpack.c.b16 %v87, %v86
  %v119 = vpack.c.b16 %v89, %v88
  %v120 = vpack.c.b16 %v91, %v90
  %v121 = vpack.c.b16 %v93, %v92
  %v122 = vpack.c.b16 %v95, %v94
  %v123 = vpack.c.b16 %v97, %v96
  %v124 = vpack.c.b16 %v99, %v98
  %v125 = vpack.c.b16 %v101, %v100
  %v126 = vpack.c.b16 %v103, %v102
  %v127 = vpack.c.b16 %v105, %v104
  %v128 = vpack.c.b16 %v107, %v106
  %v129 = vpack.c.b16 %v109, %v108
  %v130 = vpack.c.b16 %v111, %v110
  %v131 = vpack.c.b16 %v113, %v112
  %v132 = vpack.c.b16 %v115, %v114
  %v133 = vpack.c.b16 %v117, %v116
  %150 = vmatpush.bf16.msra.mxu0 %v125
  %151 = vmatpush.bf16.msra.mxu0 %v124
  %152 = vmatpush.bf16.msra.mxu0 %v123
  %153 = vmatpush.bf16.msra.mxu0 %v122
  %154 = vmatpush.bf16.msra.mxu0 %v121
  %155 = vmatpush.bf16.msra.mxu0 %v120
  %156 = vmatpush.bf16.msra.mxu0 %v119
  %157 = vmatpush.bf16.msra.mxu0 %v118
  %158 = vmatmul.bf16.gmra.mxu0 %v16
  %v159 = vpop.f32.mrf.mxu0
  %v160 = vadd.f32 %v52, %v159
  %v161 = vpop.f32.mrf.mxu0
  %162 = vdwg.mxu0
  %163 = vmatpush.bf16.msra.mxu0 %v133
  %164 = vmatpush.bf16.msra.mxu0 %v132
  %165 = vmatpush.bf16.msra.mxu0 %v131
  %166 = vmatpush.bf16.msra.mxu0 %v130
  %167 = vmatpush.bf16.msra.mxu0 %v129
  %168 = vmatpush.bf16.msra.mxu0 %v128
  %169 = vmatpush.bf16.msra.mxu0 %v127
  %170 = vmatpush.bf16.msra.mxu0 %v126
  %171 = vmatmul.bf16.gmra.mxu0 %v17
  %v172 = vpop.f32.mrf.mxu0
  %v173 = vadd.f32 %v160, %v172
  %v174 = vpop.f32.mrf.mxu0
  %175 = vdwg.mxu0
  %vm176 = vcmask 785408
  %177 = vst.msk [vmem:[%s3] sm:$0xff] %vm176, %v173
  // Predicated region
  $region14: #{noise_sequence_rnn_v3_forward.48} parent=0 // pred_check
    _
  $region15: #{noise_sequence_rnn_v3_forward.48} parent=0 // pred_check_branch
    %179 = sbr.rel (0) target = $region17
  $region16: #{noise_sequence_rnn_v3_forward.48} parent=0 // pred_region
    _
  $region17: #{noise_sequence_rnn_v3_forward.48} parent=0 // pred_fallthru
    _
  // Predicated region
  $region18: #{noise_sequence_rnn_v3_forward.48} parent=0 // pred_check
    _
  $region19: #{noise_sequence_rnn_v3_forward.48} parent=0 // pred_check_branch
    %181 = sbr.rel (0) target = $region21
  $region20: #{noise_sequence_rnn_v3_forward.48} parent=0 // pred_region
    _
  $region21: #{noise_sequence_rnn_v3_forward.48} parent=0 // pred_fallthru
    _

// kernel: noise_sequence_rnn_v3_forward.52
$region0: #{noise_sequence_rnn_v3_forward.52}
  #allocation0 [shape = 'u32[]', space=smem, size = 0x4, offset = 0x4, fixed_abs, tag = 'smem constant byte address 0x4 - core index']
  #allocation1 [shape = 'u32[72,128]{1,0:T(1,128)}', space=vmem, size = 0x9000, scoped, tag = 'internal scratch']
  %s0 = inlined_call_operand.vmem [shape: f32[8,32], index: 0, kind: input, shape index: {}]
  %s1 = inlined_call_operand.vmem [shape: bf16[32,8192], index: 1, kind: input, shape index: {}]
  %s2 = inlined_call_operand.vmem [shape: f32[1,8192], index: 2, kind: input, shape index: {}]
  %s3 = inlined_call_operand.vmem [shape: f32[8,8192], index: 3, kind: output, shape index: {}]
  %s4 = sld [smem:[#allocation0]]
  $region68: #{noise_sequence_rnn_v3_forward.52} parent=0
    _
  %s6 = ssub.s32 1, %s4
  %s7 = scalar_select 0, %s6, %s4
  $region1: #{noise_sequence_rnn_v3_forward.52} parent=0
    #allocation2 [shape = 'u8[65536]{0}', space=vmem, size = 0x10000, scoped, tag = 'input window, operand 1']
    loop: start=0, step=1, limit=18
    $region2: #{noise_sequence_rnn_v3_forward.52} parent=1 // loop_pre_header
      _
    $region3: #{noise_sequence_rnn_v3_forward.52} parent=1 // loop_header
      %s9 = sphi 0, %s13
      %p10 = scmp.ge.s32.totalorder %s9, 18
      %s16 = sphi 0, %s28
      %s17 = sphi 0, %s24
      %s18 = sphi 0, %s16
      %s19 = sphi 0, %s17
      %s20 = sphi 0, %s18
      %s21 = sphi 0, %s19
      %s31 = sphi 0, %s33
      %s34 = sphi 0, %s31
      %s35 = sphi 0, %s34
      %s51 = sphi 0, %s35
      %s57 = sphi 0, %s59
      %s60 = sphi 0, %s57
      %s61 = sphi 0, %s60
      %s77 = sphi 0, %s61
      %s83 = sphi 0, %s85
      %s86 = sphi 0, %s83
      %s87 = sphi 0, %s86
      %s103 = sphi 0, %s87
      %s111 = sphi 0, %s113
      %s114 = sphi 0, %s111
      %s115 = sphi 0, %s114
      %s131 = sphi 0, %s115
    $region4: #{noise_sequence_rnn_v3_forward.52} parent=1 // loop_header_branch
      %12 = sbr.rel (%p10) target = $region8
    $region5: #{noise_sequence_rnn_v3_forward.52} parent=1 // loop_body
      %s14 = ssub.s32 %s9, 1
      %s15 = ssub.s32 %s9, 2
      %s22 = sadd.s32 1, %s17
      %p23 = scmp.ge.s32.totalorder %s22, 16
      %s24 = scalar_select %p23, 0, %s22
      %s25 = sadd.s32 1, %s16
      %s26 = scalar_select %p23, %s25, %s16
      %p27 = scmp.ge.s32.totalorder %s26, 1
      %s28 = scalar_select %p27, 0, %s26
      %s29 = ssub.s32 %s16, %s28
      %p30 = scmp.eq.s32.totalorder %s29, 0
      %s32 = sadd.s32 %s31, 1
      %s33 = scalar_select %p30, %s31, %s32
      %p36 = pneg %p30
      %p37 = scmp.eq.s32.totalorder %s9, 15
      %p38 = por %p36, %p37
      %p39 = scmp.ne.s32.totalorder %s31, %s34
      %p40 = scmp.eq.s32.totalorder %s9, 0
      %p41 = por %p39, %p40
      %p42 = scmp.ne.s32.totalorder %s31, %s34
      %p43 = scmp.eq.s32.totalorder %s14, 15
      %p44 = por %p42, %p43
      %p45 = scmp.ne.s32.totalorder %s34, %s35
      %p46 = scmp.eq.s32.totalorder %s14, 0
      %p47 = por %p45, %p46
      %p48 = scmp.ne.s32.totalorder %s34, %s35
      %p49 = scmp.eq.s32.totalorder %s15, 15
      %p50 = por %p48, %p49
      %p52 = scmp.ne.s32.totalorder %s35, %s51
      %p53 = scmp.eq.s32.totalorder %s15, 0
      %p54 = por %p52, %p53
      %s55 = ssub.s32 %s17, %s24
      %p56 = scmp.eq.s32.totalorder %s55, 0
      %s58 = sadd.s32 %s57, 1
      %s59 = scalar_select %p56, %s57, %s58
      %p62 = pneg %p56
      %p63 = scmp.eq.s32.totalorder %s9, 15
      %p64 = por %p62, %p63
      %p65 = scmp.ne.s32.totalorder %s57, %s60
      %p66 = scmp.eq.s32.totalorder %s9, 0
      %p67 = por %p65, %p66
      %p68 = scmp.ne.s32.totalorder %s57, %s60
      %p69 = scmp.eq.s32.totalorder %s14, 15
      %p70 = por %p68, %p69
      %p71 = scmp.ne.s32.totalorder %s60, %s61
      %p72 = scmp.eq.s32.totalorder %s14, 0
      %p73 = por %p71, %p72
      %p74 = scmp.ne.s32.totalorder %s60, %s61
      %p75 = scmp.eq.s32.totalorder %s15, 15
      %p76 = por %p74, %p75
      %p78 = scmp.ne.s32.totalorder %s61, %s77
      %p79 = scmp.eq.s32.totalorder %s15, 0
      %p80 = por %p78, %p79
      %s81 = ssub.s32 %s17, %s24
      %p82 = scmp.eq.s32.totalorder %s81, 0
      %s84 = sadd.s32 %s83, 1
      %s85 = scalar_select %p82, %s83, %s84
      %p88 = pneg %p82
      %p89 = scmp.eq.s32.totalorder %s9, 15
      %p90 = por %p88, %p89
      %p91 = scmp.ne.s32.totalorder %s83, %s86
      %p92 = scmp.eq.s32.totalorder %s9, 0
      %p93 = por %p91, %p92
      %p94 = scmp.ne.s32.totalorder %s83, %s86
      %p95 = scmp.eq.s32.totalorder %s14, 15
      %p96 = por %p94, %p95
      %p97 = scmp.ne.s32.totalorder %s86, %s87
      %p98 = scmp.eq.s32.totalorder %s14, 0
      %p99 = por %p97, %p98
      %p100 = scmp.ne.s32.totalorder %s86, %s87
      %p101 = scmp.eq.s32.totalorder %s15, 15
      %p102 = por %p100, %p101
      %p104 = scmp.ne.s32.totalorder %s87, %s103
      %p105 = scmp.eq.s32.totalorder %s15, 0
      %p106 = por %p104, %p105
      %s107 = ssub.s32 %s16, %s28
      %s108 = ssub.s32 %s17, %s24
      %s109 = sor.u32 %s107, %s108
      %p110 = scmp.eq.s32.totalorder %s109, 0
      %s112 = sadd.s32 %s111, 1
      %s113 = scalar_select %p110, %s111, %s112
      %p116 = pneg %p110
      %p117 = scmp.eq.s32.totalorder %s9, 15
      %p118 = por %p116, %p117
      %p119 = scmp.ne.s32.totalorder %s111, %s114
      %p120 = scmp.eq.s32.totalorder %s9, 0
      %p121 = por %p119, %p120
      %p122 = scmp.ne.s32.totalorder %s111, %s114
      %p123 = scmp.eq.s32.totalorder %s14, 15
      %p124 = por %p122, %p123
      %p125 = scmp.ne.s32.totalorder %s114, %s115
      %p126 = scmp.eq.s32.totalorder %s14, 0
      %p127 = por %p125, %p126
      %p128 = scmp.ne.s32.totalorder %s114, %s115
      %p129 = scmp.eq.s32.totalorder %s15, 15
      %p130 = por %p128, %p129
      %p132 = scmp.ne.s32.totalorder %s115, %s131
      %p133 = scmp.eq.s32.totalorder %s15, 0
      %p134 = por %p132, %p133
      %p135 = scmp.le.s32.totalorder 1, %s9
      %p136 = scmp.lt.s32.totalorder %s9, 17
      %p137 = pnand %p135, %p136
      %p138 = pneg %p137
      // Predicated region
      $region9: #{noise_sequence_rnn_v3_forward.52} parent=5 // pred_check
        _
      $region10: #{noise_sequence_rnn_v3_forward.52} parent=5 // pred_check_branch
        %140 = sbr.rel (%p137) target = $region12
      $region11: #{noise_sequence_rnn_v3_forward.52} parent=5 // pred_region
        %s141 = ssub.s32 %s9, 1
        // Predicated region
        $region13: #{noise_sequence_rnn_v3_forward.52} parent=11 // pred_check
          %p142 = pneg %p47
        $region14: #{noise_sequence_rnn_v3_forward.52} parent=11 // pred_check_branch
          %144 = sbr.rel (%p142) target = $region16
        $region15: #{noise_sequence_rnn_v3_forward.52} parent=11 // pred_region
          %p145 = scmp.lt.s32.totalorder %s18, 0
          %s146 = scalar_select %p145, %s18, 0
          %s147 = smul.addr %s146, 8
          %s148 = scalar_lea.vmem %s0, %s147
        $region16: #{noise_sequence_rnn_v3_forward.52} parent=11 // pred_fallthru
          _
      $region12: #{noise_sequence_rnn_v3_forward.52} parent=5 // pred_fallthru
        _
      %p149 = scmp.lt.s32.totalorder %s9, 16
      // Predicated region
      $region17: #{noise_sequence_rnn_v3_forward.52} parent=5 // pred_check
        %p150 = pneg %p149
      $region18: #{noise_sequence_rnn_v3_forward.52} parent=5 // pred_check_branch
        %152 = sbr.rel (%p150) target = $region20
      $region19: #{noise_sequence_rnn_v3_forward.52} parent=5 // pred_region
        // Predicated region
        $region21: #{noise_sequence_rnn_v3_forward.52} parent=19 // pred_check
          %p153 = pneg %p67
        $region22: #{noise_sequence_rnn_v3_forward.52} parent=19 // pred_check_branch
          %155 = sbr.rel (%p153) target = $region24
        $region23: #{noise_sequence_rnn_v3_forward.52} parent=19 // pred_region
          %s156 = sand.u32 %s57, 1
          %s157 = sand.u32 %s57, 1
          %s158 = smul.addr %s157, 64
          %s159 = scalar_lea.vmem [#allocation2], %s158
          %s160 = smul.u32 4, %s17
          %s161 = smul.addr %s160, 4
          %s162 = scalar_lea.vmem %s1, %s161
          // Predicated region
          $region25: #{noise_sequence_rnn_v3_forward.52} parent=23 // pred_check
            _
          $region26: #{noise_sequence_rnn_v3_forward.52} parent=23 // pred_check_branch
            %164 = sbr.rel (0) target = $region28
          $region27: #{noise_sequence_rnn_v3_forward.52} parent=23 // pred_region
            // Predicated region
            $region29: #{noise_sequence_rnn_v3_forward.52} parent=27 // pred_check
              _
            $region30: #{noise_sequence_rnn_v3_forward.52} parent=27 // pred_check_branch
              %166 = sbr.rel (0) target = $region32
            $region31: #{noise_sequence_rnn_v3_forward.52} parent=27 // pred_region
              loop: start=0, step=1, limit=1
              $region33: #{noise_sequence_rnn_v3_forward.52} parent=31 // loop_pre_header
                _
              $region34: #{noise_sequence_rnn_v3_forward.52} parent=31 // loop_header
                %s168 = sphi 0, %s172
                %p169 = scmp.ge.s32.totalorder %s168, 1
                %s173 = sphi %s162, %s162
                %s174 = sphi %s159, %s159
              $region35: #{noise_sequence_rnn_v3_forward.52} parent=31 // loop_header_branch
                %171 = sbr.rel (%p169) target = $region39
              $region36: #{noise_sequence_rnn_v3_forward.52} parent=31 // loop_body
                %v175 = vld [vmem:[%s173] sm:$0xff]
                %176 = vst [vmem:[%s174] sm:$0xff] %v175
                %v177 = vld [vmem:[%s173 + $0x8] sm:$0xff]
                %178 = vst [vmem:[%s174 + $0x8] sm:$0xff] %v177
                %v179 = vld [vmem:[%s173 + $0x100] sm:$0xff]
                %180 = vst [vmem:[%s174 + $0x10] sm:$0xff] %v179
                %v181 = vld [vmem:[%s173 + $0x108] sm:$0xff]
                %182 = vst [vmem:[%s174 + $0x18] sm:$0xff] %v181
                %v183 = vld [vmem:[%s173 + $0x200] sm:$0xff]
                %184 = vst [vmem:[%s174 + $0x20] sm:$0xff] %v183
                %v185 = vld [vmem:[%s173 + $0x208] sm:$0xff]
                %186 = vst [vmem:[%s174 + $0x28] sm:$0xff] %v185
                %v187 = vld [vmem:[%s173 + $0x300] sm:$0xff]
                %188 = vst [vmem:[%s174 + $0x30] sm:$0xff] %v187
                %v189 = vld [vmem:[%s173 + $0x308] sm:$0xff]
                %190 = vst [vmem:[%s174 + $0x38] sm:$0xff] %v189
              $region37: #{noise_sequence_rnn_v3_forward.52} parent=31 // loop_footer
                %s172 = sadd.s32 1, %s168
              $region38: #{noise_sequence_rnn_v3_forward.52} parent=31 // loop_footer_branch
                %167 = sbr.rel target = $region34
              $region39: #{noise_sequence_rnn_v3_forward.52} parent=31 // loop_exit
                _
            $region32: #{noise_sequence_rnn_v3_forward.52} parent=27 // pred_fallthru
              _
            // Predicated region
            $region40: #{noise_sequence_rnn_v3_forward.52} parent=27 // pred_check
              _
            $region41: #{noise_sequence_rnn_v3_forward.52} parent=27 // pred_check_branch
              %192 = sbr.rel target = $region43
            $region42: #{noise_sequence_rnn_v3_forward.52} parent=27 // pred_region
              _
            $region43: #{noise_sequence_rnn_v3_forward.52} parent=27 // pred_fallthru
              _
          $region28: #{noise_sequence_rnn_v3_forward.52} parent=23 // pred_fallthru
            _
          %193 = vnop
        $region24: #{noise_sequence_rnn_v3_forward.52} parent=19 // pred_fallthru
          _
        // Predicated region
        $region44: #{noise_sequence_rnn_v3_forward.52} parent=19 // pred_check
          %p194 = pneg %p93
        $region45: #{noise_sequence_rnn_v3_forward.52} parent=19 // pred_check_branch
          %196 = sbr.rel (%p194) target = $region47
        $region46: #{noise_sequence_rnn_v3_forward.52} parent=19 // pred_region
          %s197 = smul.u32 4, %s17
          %p198 = scmp.lt.s32.totalorder %s197, 63
          %s199 = scalar_select %p198, %s197, 63
          %s200 = scalar_lea.vmem %s2, %s199
          %s201 = smul.u32 4, %s17
        $region47: #{noise_sequence_rnn_v3_forward.52} parent=19 // pred_fallthru
          _
      $region20: #{noise_sequence_rnn_v3_forward.52} parent=5 // pred_fallthru
        _
      %p202 = scmp.le.s32.totalorder 1, %s9
      %p203 = scmp.lt.s32.totalorder %s9, 17
      %p204 = pnand %p202, %p203
      %p205 = pneg %p204
      // Predicated region
      $region48: #{noise_sequence_rnn_v3_forward.52} parent=5 // pred_check
        _
      $region49: #{noise_sequence_rnn_v3_forward.52} parent=5 // pred_check_branch
        %207 = sbr.rel (%p204) target = $region51
      $region50: #{noise_sequence_rnn_v3_forward.52} parent=5 // pred_region
        %s208 = ssub.s32 %s9, 1
        %s209 = sand.u32 %s60, 1
        %s210 = sand.u32 %s60, 1
        %s211 = smul.addr %s210, 64
        %s212 = scalar_lea.vmem [#allocation2], %s211
        // Predicated region
        $region52: #{noise_sequence_rnn_v3_forward.52} parent=50 // pred_check
          %p213 = pneg %p73
        $region53: #{noise_sequence_rnn_v3_forward.52} parent=50 // pred_check_branch
          %215 = sbr.rel (%p213) target = $region55
        $region54: #{noise_sequence_rnn_v3_forward.52} parent=50 // pred_region
          _
        $region55: #{noise_sequence_rnn_v3_forward.52} parent=50 // pred_fallthru
          _
        %p216 = scmp.lt.s32.totalorder %s18, 0
        %s217 = scalar_select %p216, %s18, 0
        %s218 = smul.addr %s217, 8
        %s219 = scalar_lea.vmem %s0, %s218
        %p220 = pneg %p47
        %p221 = pneg %p44
        %s222 = sand.u32 %s60, 1
        %s223 = sand.u32 %s60, 1
        %s224 = smul.addr %s223, 64
        %s225 = scalar_lea.vmem [#allocation2], %s224
        %p226 = pneg %p73
        %p227 = pneg %p70
        %s228 = smul.u32 4, %s19
        %p229 = scmp.lt.s32.totalorder %s228, 63
        %s230 = scalar_select %p229, %s228, 63
        %s231 = scalar_lea.vmem %s2, %s230
        %p232 = pneg %p99
        %p233 = pneg %p96
        %p234 = pneg %p127
        %p235 = pneg %p124
        %s236 = smul.u32 4, %s19
        %p237 = scmp.lt.s32.totalorder %s18, 0
        %s238 = scalar_select %p237, %s18, 0
        %p239 = scmp.lt.s32.totalorder %s236, 63
        %s240 = scalar_select %p239, %s236, 63
        %s241 = smul.addr %s238, 64
        %s242 = sadd.s32 %s240, %s241
        %s243 = smul.addr %s242, 8
        %s244 = scalar_lea.vmem %s3, %s243
        %p245 = scmp.lt.s32.totalorder %s18, 0
        %s246 = scalar_select %p245, %s18, 0
        %s247 = smul.addr %s246, 8
        %s248 = scalar_lea.vmem %s0, %s247
        %s249 = smul.u32 4, %s19
        %s250 = smul.u32 4, %s19
        %p251 = scmp.lt.s32.totalorder %s250, 63
        %s252 = scalar_select %p251, %s250, 63
        %s253 = scalar_lea.vmem %s2, %s252
        %s254 = smul.u32 4, %s19
        %s255 = smul.u32 4, %s19
        %p256 = scmp.lt.s32.totalorder %s18, 0
        %s257 = scalar_select %p256, %s18, 0
        %p258 = scmp.lt.s32.totalorder %s255, 63
        %s259 = scalar_select %p258, %s255, 63
        %s260 = smul.addr %s257, 64
        %s261 = sadd.s32 %s259, %s260
        %s262 = smul.addr %s261, 8
        %s263 = scalar_lea.vmem %s3, %s262
        %s264 = smul.u32 4, %s19
        %v266 = vld [vmem:[%s248] sm:$0xff]
        %v267 = vpack.c.bf16 %v266, %v266
        %v268 = vld [vmem:[%s212] sm:$0xff]
        %v269 = vld [vmem:[%s212 + $0x8] sm:$0xff]
        %v270 = vld [vmem:[%s212 + $0x10] sm:$0xff]
        %v271 = vld [vmem:[%s212 + $0x18] sm:$0xff]
        %v272 = vld [vmem:[%s212 + $0x20] sm:$0xff]
        %v273 = vld [vmem:[%s212 + $0x28] sm:$0xff]
        %v274 = vld [vmem:[%s212 + $0x30] sm:$0xff]
        %v275 = vld [vmem:[%s212 + $0x38] sm:$0xff]
        %v276 = vld [vmem:[%s253] sm:$0xf]
        %v278 = vperm.slane %v276, 0
        %v279 = vperm.slane %v276, 1
        %v280 = vperm.slane %v276, 2
        %v281 = vperm.slane %v276, 3
        %v294 = vunpack.c.l.b16 %v268
        %v295 = vunpack.c.h.b16 %v268
        %v296 = vunpack.c.l.b16 %v269
        %v297 = vunpack.c.h.b16 %v269
        %v298 = vunpack.c.l.b16 %v270
        %v299 = vunpack.c.h.b16 %v270
        %v300 = vunpack.c.l.b16 %v271
        %v301 = vunpack.c.h.b16 %v271
        %v302 = vunpack.c.l.b16 %v272
        %v303 = vunpack.c.h.b16 %v272
        %v304 = vunpack.c.l.b16 %v273
        %v305 = vunpack.c.h.b16 %v273
        %v306 = vunpack.c.l.b16 %v274
        %v307 = vunpack.c.h.b16 %v274
        %v308 = vunpack.c.l.b16 %v275
        %v309 = vunpack.c.h.b16 %v275
        %v310 = vpack.c.b16 %v298, %v294
        %v311 = vpack.c.b16 %v299, %v295
        %v312 = vpack.c.b16 %v300, %v296
        %v313 = vpack.c.b16 %v301, %v297
        %v314 = vpack.c.b16 %v306, %v302
        %v315 = vpack.c.b16 %v307, %v303
        %v316 = vpack.c.b16 %v308, %v304
        %v317 = vpack.c.b16 %v309, %v305
        %vm326 = vcmask 261120
        %v328 = vsel %vm326, %v267, 0
        %330 = vmatpush.bf16.msra.mxu0 0
        %331 = vmatpush.bf16.msra.mxu0 0
        %332 = vmatpush.bf16.msra.mxu0 0
        %333 = vmatpush.bf16.msra.mxu0 0
        %334 = vmatpush.bf16.msra.mxu0 0
        %335 = vmatpush.bf16.msra.mxu0 0
        %336 = vmatpush.bf16.msra.mxu0 %v314
        %337 = vmatpush.bf16.msra.mxu0 %v310
        %338 = vmatmul.bf16.gmra.mxu0 %v328
        %v339 = vpop.f32.mrf.mxu0
        %v340 = vadd.f32 %v278, %v339
        %v341 = vpop.f32.mrf.mxu0
        %342 = vdwg.mxu0
        %343 = vmatpush.bf16.msra.mxu0 0
        %344 = vmatpush.bf16.msra.mxu0 0
        %345 = vmatpush.bf16.msra.mxu0 0
        %346 = vmatpush.bf16.msra.mxu0 0
        %347 = vmatpush.bf16.msra.mxu0 0
        %348 = vmatpush.bf16.msra.mxu0 0
        %349 = vmatpush.bf16.msra.mxu0 %v315
        %350 = vmatpush.bf16.msra.mxu0 %v311
        %351 = vmatmul.bf16.gmra.mxu0 %v328
        %v352 = vpop.f32.mrf.mxu0
        %v353 = vadd.f32 %v279, %v352
        %v354 = vpop.f32.mrf.mxu0
        %355 = vdwg.mxu0
        %356 = vmatpush.bf16.msra.mxu0 0
        %357 = vmatpush.bf16.msra.mxu0 0
        %358 = vmatpush.bf16.msra.mxu0 0
        %359 = vmatpush.bf16.msra.mxu0 0
        %360 = vmatpush.bf16.msra.mxu0 0
        %361 = vmatpush.bf16.msra.mxu0 0
        %362 = vmatpush.bf16.msra.mxu0 %v316
        %363 = vmatpush.bf16.msra.mxu0 %v312
        %364 = vmatmul.bf16.gmra.mxu0 %v328
        %v365 = vpop.f32.mrf.mxu0
        %v366 = vadd.f32 %v280, %v365
        %v367 = vpop.f32.mrf.mxu0
        %368 = vdwg.mxu0
        %369 = vmatpush.bf16.msra.mxu0 0
        %370 = vmatpush.bf16.msra.mxu0 0
        %371 = vmatpush.bf16.msra.mxu0 0
        %372 = vmatpush.bf16.msra.mxu0 0
        %373 = vmatpush.bf16.msra.mxu0 0
        %374 = vmatpush.bf16.msra.mxu0 0
        %375 = vmatpush.bf16.msra.mxu0 %v317
        %376 = vmatpush.bf16.msra.mxu0 %v313
        %377 = vmatmul.bf16.gmra.mxu0 %v328
        %v378 = vpop.f32.mrf.mxu0
        %v379 = vadd.f32 %v281, %v378
        %v380 = vpop.f32.mrf.mxu0
        %381 = vdwg.mxu0
        %382 = vst [vmem:[%s263] sm:$0xff] %v340
        %383 = vst [vmem:[%s263 + $0x8] sm:$0xff] %v353
        %384 = vst [vmem:[%s263 + $0x10] sm:$0xff] %v366
        %385 = vst [vmem:[%s263 + $0x18] sm:$0xff] %v379
        %s386 = smul.u32 4, %s19
        %p387 = scmp.lt.s32.totalorder %s18, 0
        %s388 = scalar_select %p387, %s18, 0
        %p389 = scmp.lt.s32.totalorder %s386, 63
        %s390 = scalar_select %p389, %s386, 63
        %s391 = smul.addr %s388, 64
        %s392 = sadd.s32 %s390, %s391
        %s393 = smul.addr %s392, 8
        %s394 = scalar_lea.vmem %s3, %s393
        // Predicated region
        $region56: #{noise_sequence_rnn_v3_forward.52} parent=50 // pred_check
          %p395 = pneg %p124
        $region57: #{noise_sequence_rnn_v3_forward.52} parent=50 // pred_check_branch
          %397 = sbr.rel (%p395) target = $region59
        $region58: #{noise_sequence_rnn_v3_forward.52} parent=50 // pred_region
          %s398 = smul.u32 4, %s19
        $region59: #{noise_sequence_rnn_v3_forward.52} parent=50 // pred_fallthru
          _
      $region51: #{noise_sequence_rnn_v3_forward.52} parent=5 // pred_fallthru
        _
      %p399 = scmp.le.s32.totalorder 2, %s9
      // Predicated region
      $region60: #{noise_sequence_rnn_v3_forward.52} parent=5 // pred_check
        %p400 = pneg %p399
      $region61: #{noise_sequence_rnn_v3_forward.52} parent=5 // pred_check_branch
        %402 = sbr.rel (%p400) target = $region63
      $region62: #{noise_sequence_rnn_v3_forward.52} parent=5 // pred_region
        %s403 = ssub.s32 %s9, 2
        // Predicated region
        $region64: #{noise_sequence_rnn_v3_forward.52} parent=62 // pred_check
          %p404 = pneg %p130
        $region65: #{noise_sequence_rnn_v3_forward.52} parent=62 // pred_check_branch
          %406 = sbr.rel (%p404) target = $region67
        $region66: #{noise_sequence_rnn_v3_forward.52} parent=62 // pred_region
          %s407 = smul.u32 4, %s21
          %p408 = scmp.lt.s32.totalorder %s20, 0
          %s409 = scalar_select %p408, %s20, 0
          %p410 = scmp.lt.s32.totalorder %s407, 63
          %s411 = scalar_select %p410, %s407, 63
          %s412 = smul.addr %s409, 64
          %s413 = sadd.s32 %s411, %s412
          %s414 = smul.addr %s413, 8
          %s415 = scalar_lea.vmem %s3, %s414
        $region67: #{noise_sequence_rnn_v3_forward.52} parent=62 // pred_fallthru
          _
      $region63: #{noise_sequence_rnn_v3_forward.52} parent=5 // pred_fallthru
        _
    $region6: #{noise_sequence_rnn_v3_forward.52} parent=1 // loop_footer
      %s13 = sadd.s32 1, %s9
    $region7: #{noise_sequence_rnn_v3_forward.52} parent=1 // loop_footer_branch
      %8 = sbr.rel target = $region3
    $region8: #{noise_sequence_rnn_v3_forward.52} parent=1 // loop_exit
      _

// kernel: noise_sequence_rnn_v3_forward.50
$region0: #{noise_sequence_rnn_v3_forward.50}
  #allocation0 [shape = 'u32[]', space=smem, size = 0x4, offset = 0x4, fixed_abs, tag = 'smem constant byte address 0x4 - core index']
  #allocation1 [shape = 'u32[72,128]{1,0:T(1,128)}', space=vmem, size = 0x9000, scoped, tag = 'internal scratch']
  %s0 = inlined_call_operand.vmem [shape: f32[8,32], index: 0, kind: input, shape index: {}]
  %s1 = inlined_call_operand.vmem [shape: bf16[32,96], index: 1, kind: input, shape index: {}]
  %s2 = inlined_call_operand.vmem [shape: f32[1,96], index: 2, kind: input, shape index: {}]
  %s3 = inlined_call_operand.vmem [shape: f32[8,96], index: 3, kind: output, shape index: {}]
  %s4 = sld [smem:[#allocation0]]
  $region22: #{noise_sequence_rnn_v3_forward.50} parent=0
    _
  %s6 = ssub.s32 1, %s4
  %s7 = scalar_select 0, %s6, %s4
  // Predicated region
  $region2: #{noise_sequence_rnn_v3_forward.50} parent=0 // pred_check
    _
  $region3: #{noise_sequence_rnn_v3_forward.50} parent=0 // pred_check_branch
    %9 = sbr.rel (0) target = $region5
  $region4: #{noise_sequence_rnn_v3_forward.50} parent=0 // pred_region
    _
  $region5: #{noise_sequence_rnn_v3_forward.50} parent=0 // pred_fallthru
    _
  // Predicated region
  $region6: #{noise_sequence_rnn_v3_forward.50} parent=0 // pred_check
    _
  $region7: #{noise_sequence_rnn_v3_forward.50} parent=0 // pred_check_branch
    %11 = sbr.rel (0) target = $region9
  $region8: #{noise_sequence_rnn_v3_forward.50} parent=0 // pred_region
    _
  $region9: #{noise_sequence_rnn_v3_forward.50} parent=0 // pred_fallthru
    _
  // Predicated region
  $region10: #{noise_sequence_rnn_v3_forward.50} parent=0 // pred_check
    _
  $region11: #{noise_sequence_rnn_v3_forward.50} parent=0 // pred_check_branch
    %13 = sbr.rel (0) target = $region13
  $region12: #{noise_sequence_rnn_v3_forward.50} parent=0 // pred_region
    _
  $region13: #{noise_sequence_rnn_v3_forward.50} parent=0 // pred_fallthru
    _
  %v15 = vld [vmem:[%s0] sm:$0xff]
  %v16 = vpack.c.bf16 %v15, %v15
  %v17 = vld [vmem:[%s1] sm:$0xf]
  %v18 = vld [vmem:[%s1 + $0x4] sm:$0xf]
  %v19 = vld [vmem:[%s1 + $0x8] sm:$0xf]
  %v20 = vld [vmem:[%s1 + $0xc] sm:$0xf]
  %v21 = vld [vmem:[%s2] sm:$0x1]
  %v23 = vperm.slane %v21, 0
  %v29 = vunpack.c.l.b16 %v17
  %v30 = vunpack.c.l.b16 %v18
  %v31 = vunpack.c.l.b16 %v19
  %v32 = vunpack.c.l.b16 %v20
  %v33 = vpack.c.b16 %v30, %v29
  %v34 = vpack.c.b16 %v32, %v31
  %vm37 = vcmask 261120
  %v39 = vsel %vm37, %v16, 0
  %41 = vmatpush.bf16.msra.mxu0 0
  %42 = vmatpush.bf16.msra.mxu0 0
  %43 = vmatpush.bf16.msra.mxu0 0
  %44 = vmatpush.bf16.msra.mxu0 0
  %45 = vmatpush.bf16.msra.mxu0 0
  %46 = vmatpush.bf16.msra.mxu0 0
  %47 = vmatpush.bf16.msra.mxu0 %v34
  %48 = vmatpush.bf16.msra.mxu0 %v33
  %49 = vmatmul.bf16.gmra.mxu0 %v39
  %v50 = vpop.f32.mrf.mxu0
  %v51 = vadd.f32 %v23, %v50
  %v52 = vpop.f32.mrf.mxu0
  %53 = vdwg.mxu0
  %vm54 = vcmask 785408
  %55 = vst.msk [vmem:[%s3] sm:$0xff] %vm54, %v51
  // Predicated region
  $region14: #{noise_sequence_rnn_v3_forward.50} parent=0 // pred_check
    _
  $region15: #{noise_sequence_rnn_v3_forward.50} parent=0 // pred_check_branch
    %57 = sbr.rel (0) target = $region17
  $region16: #{noise_sequence_rnn_v3_forward.50} parent=0 // pred_region
    _
  $region17: #{noise_sequence_rnn_v3_forward.50} parent=0 // pred_fallthru
    _
  // Predicated region
  $region18: #{noise_sequence_rnn_v3_forward.50} parent=0 // pred_check
    _
  $region19: #{noise_sequence_rnn_v3_forward.50} parent=0 // pred_check_branch
    %59 = sbr.rel (0) target = $region21
  $region20: #{noise_sequence_rnn_v3_forward.50} parent=0 // pred_region
    _
  $region21: #{noise_sequence_rnn_v3_forward.50} parent=0 // pred_fallthru
    _

// kernel: noise_sequence_rnn_v3_forward.49
$region0: #{noise_sequence_rnn_v3_forward.49}
  #allocation0 [shape = 'u32[]', space=smem, size = 0x4, offset = 0x4, fixed_abs, tag = 'smem constant byte address 0x4 - core index']
  #allocation1 [shape = 'u32[72,128]{1,0:T(1,128)}', space=vmem, size = 0x9000, scoped, tag = 'internal scratch']
  #allocation2 [shape = 'f32[2,32]{1,0:T(2,128)}', space=vmem, size = 0x400, scoped, tag = 'scratch operand']
  %s0 = inlined_call_operand.vmem [shape: f32[4,2,96], index: 0, kind: input, shape index: {}]
  %s1 = inlined_call_operand.vmem [shape: f32[2,32], index: 1, kind: input, shape index: {}]
  %s2 = inlined_call_operand.vmem [shape: f32[32,96], index: 2, kind: input, shape index: {}]
  %s3 = inlined_call_operand.vmem [shape: f32[1,96], index: 3, kind: input, shape index: {}]
  %s4 = inlined_call_operand.vmem [shape: f32[4,2,32], index: 4, kind: output, shape index: {}]
  %s5 = sld [smem:[#allocation0]]
  $region53: #{noise_sequence_rnn_v3_forward.49} parent=0
    _
  %s7 = ssub.s32 1, %s5
  %s8 = scalar_select 0, %s7, %s5
  loop: start=0, step=1, limit=6
  $region2: #{noise_sequence_rnn_v3_forward.49} parent=0 // loop_pre_header
    _
  $region3: #{noise_sequence_rnn_v3_forward.49} parent=0 // loop_header
    %s10 = sphi 0, %s14
    %p11 = scmp.ge.s32.totalorder %s10, 6
    %s20 = sphi 0, %s22
    %s23 = sphi 0, %s20
    %s24 = sphi 0, %s23
    %s40 = sphi 0, %s24
    %s44 = sphi 0, %s44
    %s46 = sphi 0, %s44
    %s47 = sphi 0, %s46
    %s61 = sphi 0, %s47
    %s65 = sphi 0, %s65
    %s67 = sphi 0, %s65
    %s68 = sphi 0, %s67
    %s82 = sphi 0, %s68
    %s86 = sphi 0, %s86
    %s88 = sphi 0, %s86
    %s89 = sphi 0, %s88
    %s103 = sphi 0, %s89
    %s109 = sphi 0, %s111
    %s112 = sphi 0, %s109
    %s113 = sphi 0, %s112
    %s129 = sphi 0, %s113
  $region4: #{noise_sequence_rnn_v3_forward.49} parent=0 // loop_header_branch
    %13 = sbr.rel (%p11) target = $region8
  $region5: #{noise_sequence_rnn_v3_forward.49} parent=0 // loop_body
    %s15 = ssub.s32 %s10, 1
    %s16 = ssub.s32 %s10, 2
    %s17 = sadd.s32 %s10, 1
    %s18 = ssub.s32 %s10, %s17
    %p19 = scmp.eq.s32.totalorder %s18, 0
    %s21 = sadd.s32 %s20, 1
    %s22 = scalar_select %p19, %s20, %s21
    %p25 = pneg %p19
    %p26 = scmp.eq.s32.totalorder %s10, 3
    %p27 = por %p25, %p26
    %p28 = scmp.ne.s32.totalorder %s20, %s23
    %p29 = scmp.eq.s32.totalorder %s10, 0
    %p30 = por %p28, %p29
    %p31 = scmp.ne.s32.totalorder %s20, %s23
    %p32 = scmp.eq.s32.totalorder %s15, 3
    %p33 = por %p31, %p32
    %p34 = scmp.ne.s32.totalorder %s23, %s24
    %p35 = scmp.eq.s32.totalorder %s15, 0
    %p36 = por %p34, %p35
    %p37 = scmp.ne.s32.totalorder %s23, %s24
    %p38 = scmp.eq.s32.totalorder %s16, 3
    %p39 = por %p37, %p38
    %p41 = scmp.ne.s32.totalorder %s24, %s40
    %p42 = scmp.eq.s32.totalorder %s16, 0
    %p43 = por %p41, %p42
    %s45 = sadd.s32 %s44, 1
    %p48 = scmp.eq.s32.totalorder %s10, 3
    %p49 = scmp.ne.s32.totalorder %s44, %s46
    %p50 = scmp.eq.s32.totalorder %s10, 0
    %p51 = por %p49, %p50
    %p52 = scmp.ne.s32.totalorder %s44, %s46
    %p53 = scmp.eq.s32.totalorder %s15, 3
    %p54 = por %p52, %p53
    %p55 = scmp.ne.s32.totalorder %s46, %s47
    %p56 = scmp.eq.s32.totalorder %s15, 0
    %p57 = por %p55, %p56
    %p58 = scmp.ne.s32.totalorder %s46, %s47
    %p59 = scmp.eq.s32.totalorder %s16, 3
    %p60 = por %p58, %p59
    %p62 = scmp.ne.s32.totalorder %s47, %s61
    %p63 = scmp.eq.s32.totalorder %s16, 0
    %p64 = por %p62, %p63
    %s66 = sadd.s32 %s65, 1
    %p69 = scmp.eq.s32.totalorder %s10, 3
    %p70 = scmp.ne.s32.totalorder %s65, %s67
    %p71 = scmp.eq.s32.totalorder %s10, 0
    %p72 = por %p70, %p71
    %p73 = scmp.ne.s32.totalorder %s65, %s67
    %p74 = scmp.eq.s32.totalorder %s15, 3
    %p75 = por %p73, %p74
    %p76 = scmp.ne.s32.totalorder %s67, %s68
    %p77 = scmp.eq.s32.totalorder %s15, 0
    %p78 = por %p76, %p77
    %p79 = scmp.ne.s32.totalorder %s67, %s68
    %p80 = scmp.eq.s32.totalorder %s16, 3
    %p81 = por %p79, %p80
    %p83 = scmp.ne.s32.totalorder %s68, %s82
    %p84 = scmp.eq.s32.totalorder %s16, 0
    %p85 = por %p83, %p84
    %s87 = sadd.s32 %s86, 1
    %p90 = scmp.eq.s32.totalorder %s10, 3
    %p91 = scmp.ne.s32.totalorder %s86, %s88
    %p92 = scmp.eq.s32.totalorder %s10, 0
    %p93 = por %p91, %p92
    %p94 = scmp.ne.s32.totalorder %s86, %s88
    %p95 = scmp.eq.s32.totalorder %s15, 3
    %p96 = por %p94, %p95
    %p97 = scmp.ne.s32.totalorder %s88, %s89
    %p98 = scmp.eq.s32.totalorder %s15, 0
    %p99 = por %p97, %p98
    %p100 = scmp.ne.s32.totalorder %s88, %s89
    %p101 = scmp.eq.s32.totalorder %s16, 3
    %p102 = por %p100, %p101
    %p104 = scmp.ne.s32.totalorder %s89, %s103
    %p105 = scmp.eq.s32.totalorder %s16, 0
    %p106 = por %p104, %p105
    %s107 = ssub.s32 %s10, %s17
    %p108 = scmp.eq.s32.totalorder %s107, 0
    %s110 = sadd.s32 %s109, 1
    %s111 = scalar_select %p108, %s109, %s110
    %p114 = pneg %p108
    %p115 = scmp.eq.s32.totalorder %s10, 3
    %p116 = por %p114, %p115
    %p117 = scmp.ne.s32.totalorder %s109, %s112
    %p118 = scmp.eq.s32.totalorder %s10, 0
    %p119 = por %p117, %p118
    %p120 = scmp.ne.s32.totalorder %s109, %s112
    %p121 = scmp.eq.s32.totalorder %s15, 3
    %p122 = por %p120, %p121
    %p123 = scmp.ne.s32.totalorder %s112, %s113
    %p124 = scmp.eq.s32.totalorder %s15, 0
    %p125 = por %p123, %p124
    %p126 = scmp.ne.s32.totalorder %s112, %s113
    %p127 = scmp.eq.s32.totalorder %s16, 3
    %p128 = por %p126, %p127
    %p130 = scmp.ne.s32.totalorder %s113, %s129
    %p131 = scmp.eq.s32.totalorder %s16, 0
    %p132 = por %p130, %p131
    %p133 = scmp.le.s32.totalorder 1, %s10
    %p134 = scmp.lt.s32.totalorder %s10, 5
    %p135 = pnand %p133, %p134
    %p136 = pneg %p135
    // Predicated region
    $region9: #{noise_sequence_rnn_v3_forward.49} parent=5 // pred_check
      _
    $region10: #{noise_sequence_rnn_v3_forward.49} parent=5 // pred_check_branch
      %138 = sbr.rel (%p135) target = $region12
    $region11: #{noise_sequence_rnn_v3_forward.49} parent=5 // pred_region
      %s139 = ssub.s32 %s10, 1
      // Predicated region
      $region13: #{noise_sequence_rnn_v3_forward.49} parent=11 // pred_check
        %p140 = pneg %p57
      $region14: #{noise_sequence_rnn_v3_forward.49} parent=11 // pred_check_branch
        %142 = sbr.rel (%p140) target = $region16
      $region15: #{noise_sequence_rnn_v3_forward.49} parent=11 // pred_region
        _
      $region16: #{noise_sequence_rnn_v3_forward.49} parent=11 // pred_fallthru
        _
      // Predicated region
      $region17: #{noise_sequence_rnn_v3_forward.49} parent=11 // pred_check
        %p143 = pneg %p78
      $region18: #{noise_sequence_rnn_v3_forward.49} parent=11 // pred_check_branch
        %145 = sbr.rel (%p143) target = $region20
      $region19: #{noise_sequence_rnn_v3_forward.49} parent=11 // pred_region
        _
      $region20: #{noise_sequence_rnn_v3_forward.49} parent=11 // pred_fallthru
        _
      // Predicated region
      $region21: #{noise_sequence_rnn_v3_forward.49} parent=11 // pred_check
        %p146 = pneg %p99
      $region22: #{noise_sequence_rnn_v3_forward.49} parent=11 // pred_check_branch
        %148 = sbr.rel (%p146) target = $region24
      $region23: #{noise_sequence_rnn_v3_forward.49} parent=11 // pred_region
        _
      $region24: #{noise_sequence_rnn_v3_forward.49} parent=11 // pred_fallthru
        _
    $region12: #{noise_sequence_rnn_v3_forward.49} parent=5 // pred_fallthru
      _
    %p149 = scmp.lt.s32.totalorder %s10, 4
    // Predicated region
    $region25: #{noise_sequence_rnn_v3_forward.49} parent=5 // pred_check
      %p150 = pneg %p149
    $region26: #{noise_sequence_rnn_v3_forward.49} parent=5 // pred_check_branch
      %152 = sbr.rel (%p150) target = $region28
    $region27: #{noise_sequence_rnn_v3_forward.49} parent=5 // pred_region
      // Predicated region
      $region29: #{noise_sequence_rnn_v3_forward.49} parent=27 // pred_check
        %p153 = pneg %p30
      $region30: #{noise_sequence_rnn_v3_forward.49} parent=27 // pred_check_branch
        %155 = sbr.rel (%p153) target = $region32
      $region31: #{noise_sequence_rnn_v3_forward.49} parent=27 // pred_region
        %p156 = scmp.lt.s32.totalorder %s10, 3
        %s157 = scalar_select %p156, %s10, 3
        %s158 = smul.addr %s157, 2
        %s159 = scalar_lea.vmem %s0, %s158
      $region32: #{noise_sequence_rnn_v3_forward.49} parent=27 // pred_fallthru
        _
    $region28: #{noise_sequence_rnn_v3_forward.49} parent=5 // pred_fallthru
      _
    %p160 = scmp.le.s32.totalorder 1, %s10
    %p161 = scmp.lt.s32.totalorder %s10, 5
    %p162 = pnand %p160, %p161
    %p163 = pneg %p162
    // Predicated region
    $region33: #{noise_sequence_rnn_v3_forward.49} parent=5 // pred_check
      _
    $region34: #{noise_sequence_rnn_v3_forward.49} parent=5 // pred_check_branch
      %165 = sbr.rel (%p162) target = $region36
    $region35: #{noise_sequence_rnn_v3_forward.49} parent=5 // pred_region
      %s166 = ssub.s32 %s10, 1
      %p167 = scmp.lt.s32.totalorder %s15, 3
      %s168 = scalar_select %p167, %s15, 3
      %s169 = smul.addr %s168, 2
      %s170 = scalar_lea.vmem %s0, %s169
      %p171 = pneg %p36
      %p172 = pneg %p33
      %p173 = pneg %p57
      %p174 = pneg %p54
      %p175 = pneg %p78
      %p176 = pneg %p75
      %p177 = pneg %p99
      %p178 = pneg %p96
      %p179 = pneg %p125
      %p180 = pneg %p122
      %p181 = scmp.lt.s32.totalorder %s15, 3
      %s182 = scalar_select %p181, %s15, 3
      %s183 = smul.addr %s182, 2
      %s184 = scalar_lea.vmem %s4, %s183
      %p185 = scmp.lt.s32.totalorder %s15, 3
      %s186 = scalar_select %p185, %s15, 3
      %s187 = smul.addr %s186, 2
      %s188 = scalar_lea.vmem %s0, %s187
      %p189 = scmp.lt.s32.totalorder %s15, 3
      %s190 = scalar_select %p189, %s15, 3
      %s191 = smul.addr %s190, 2
      %s192 = scalar_lea.vmem %s4, %s191
      %p193 = scmp.eq.s32.totalorder %s15, 0
      // Predicated region
      $region37: #{noise_sequence_rnn_v3_forward.49} parent=35 // pred_check
        %p194 = pneg %p193
      $region38: #{noise_sequence_rnn_v3_forward.49} parent=35 // pred_check_branch
        %196 = sbr.rel (%p194) target = $region40
      $region39: #{noise_sequence_rnn_v3_forward.49} parent=35 // pred_region
        %v197 = vld [vmem:[%s1] sm:$0x3]
        %vm198 = vcmask 254976
        %199 = vst.msk [vmem:[#allocation2] sm:$0x3] %vm198, %v197
      $region40: #{noise_sequence_rnn_v3_forward.49} parent=35 // pred_fallthru
        _
      %v200 = vld [vmem:[#allocation2] sm:$0x3]
      %v201 = vld [vmem:[%s2] sm:$0xff]
      %v202 = vld [vmem:[%s2 + $0x8] sm:$0xff]
      %v203 = vld [vmem:[%s2 + $0x10] sm:$0xff]
      %v204 = vld [vmem:[%s2 + $0x18] sm:$0xff]
      %v205 = vld [vmem:[%s3] sm:$0x1]
      %v207 = vperm.slane %v205, 0
      %vm209 = vcmask 261120
      %v211 = vsel %vm209, %v200, 0
      %213 = vmatpush.msra.mxu0 0.0
      %214 = vmatpush.msra.mxu0 0.0
      %215 = vmatpush.msra.mxu0 0.0
      %216 = vmatpush.msra.mxu0 0.0
      %217 = vmatpush.msra.mxu0 0.0
      %218 = vmatpush.msra.mxu0 0.0
      %219 = vmatpush.msra.mxu0 0.0
      %220 = vmatpush.msra.mxu0 0.0
      %221 = vmatpush.msra.mxu0 0.0
      %222 = vmatpush.msra.mxu0 0.0
      %223 = vmatpush.msra.mxu0 0.0
      %224 = vmatpush.msra.mxu0 0.0
      %225 = vmatpush.msra.mxu0 %v204
      %226 = vmatpush.msra.mxu0 %v203
      %227 = vmatpush.msra.mxu0 %v202
      %228 = vmatpush.msra.mxu0 %v201
      %229 = vmatmul.f32.gmra.mxu0 %v211
      %v230 = vpop.f32.mrf.mxu0
      %v231 = vadd.f32 %v207, %v230
      %232 = vdwg.mxu0
      %v233 = vld [vmem:[%s188] sm:$0x3]
      %v234 = vadd.f32 %v233, %v231
      %v235 = vxor.u32 %v234, 2147483648
      %v236 = vmul.f32 %v235, 1.442695
      %v237 = vpow.pop %v236
      %v238 = vadd.f32 %v237, 1.0
      %v239 = vrcp.pop %v238
      %v240 = vmul.f32 %v238, %v239
      %v241 = vsub.f32 1.0, %v240
      %v242 = vmul.f32 %v239, %v241
      %v243 = vadd.f32 %v239, %v242
      %vm244 = vweird.f32 %v238
      %vm245 = vweird.f32 %v239
      %vm246 = vmor %vm244, %vm245
      %v247 = vsel %vm246, %v239, %v243
      %v248 = vand.u32 2147483647, %v238
      %vm249 = vcmp.eq.f32.partialorder %v248, 8.507059e+37
      %v250 = vand.u32 %v238, 2147483648
      %v251 = vor.u32 1.1754944e-38, %v250
      %v252 = vsel %vm249, %v251, %v247
      %v253 = vmul.f32 1.0, %v252
      %255 = vrot.lane.b32.xlu0 %v231, 64
      %v256 = vpop.permute.xlu0 %255
      %v258 = vmul.f32 %v253, %v256
      %260 = vrot.lane.b32.xlu0 %v258, 64
      %v261 = vpop.permute.xlu0 %260
      %v263 = vadd.f32 %v233, %v261
      %v264 = vtanh.pop %v263
      %v265 = vsub.f32 1.0, %v253
      %267 = vrot.lane.b32.xlu0 %v264, 96
      %v268 = vpop.permute.xlu0 %267
      %v270 = vmul.f32 %v265, %v268
      %271 = vrot.lane.b32.xlu0 %v200, 32
      %v272 = vpop.permute.xlu0 %271
      %v274 = vmul.f32 %v253, %v272
      %v275 = vadd.f32 %v270, %v274
      %277 = vrot.lane.b32.xlu0 %v275, 96
      %v278 = vpop.permute.xlu0 %277
      %vm280 = vcmask 254976
      %281 = vst.msk [vmem:[#allocation2] sm:$0x3] %vm280, %v278
      %282 = vst.msk [vmem:[%s192] sm:$0x3] %vm280, %v278
      %p283 = scmp.lt.s32.totalorder %s15, 3
      %s284 = scalar_select %p283, %s15, 3
      %s285 = smul.addr %s284, 2
      %s286 = scalar_lea.vmem %s4, %s285
      // Predicated region
      $region41: #{noise_sequence_rnn_v3_forward.49} parent=35 // pred_check
        %p287 = pneg %p122
      $region42: #{noise_sequence_rnn_v3_forward.49} parent=35 // pred_check_branch
        %289 = sbr.rel (%p287) target = $region44
      $region43: #{noise_sequence_rnn_v3_forward.49} parent=35 // pred_region
        _
      $region44: #{noise_sequence_rnn_v3_forward.49} parent=35 // pred_fallthru
        _
    $region36: #{noise_sequence_rnn_v3_forward.49} parent=5 // pred_fallthru
      _
    %p290 = scmp.le.s32.totalorder 2, %s10
    // Predicated region
    $region45: #{noise_sequence_rnn_v3_forward.49} parent=5 // pred_check
      %p291 = pneg %p290
    $region46: #{noise_sequence_rnn_v3_forward.49} parent=5 // pred_check_branch
      %293 = sbr.rel (%p291) target = $region48
    $region47: #{noise_sequence_rnn_v3_forward.49} parent=5 // pred_region
      %s294 = ssub.s32 %s10, 2
      // Predicated region
      $region49: #{noise_sequence_rnn_v3_forward.49} parent=47 // pred_check
        %p295 = pneg %p128
      $region50: #{noise_sequence_rnn_v3_forward.49} parent=47 // pred_check_branch
        %297 = sbr.rel (%p295) target = $region52
      $region51: #{noise_sequence_rnn_v3_forward.49} parent=47 // pred_region
        %p298 = scmp.lt.s32.totalorder %s16, 3
        %s299 = scalar_select %p298, %s16, 3
        %s300 = smul.addr %s299, 2
        %s301 = scalar_lea.vmem %s4, %s300
      $region52: #{noise_sequence_rnn_v3_forward.49} parent=47 // pred_fallthru
        _
    $region48: #{noise_sequence_rnn_v3_forward.49} parent=5 // pred_fallthru
      _
  $region6: #{noise_sequence_rnn_v3_forward.49} parent=0 // loop_footer
    %s14 = sadd.s32 1, %s10
  $region7: #{noise_sequence_rnn_v3_forward.49} parent=0 // loop_footer_branch
    %9 = sbr.rel target = $region3
  $region8: #{noise_sequence_rnn_v3_forward.49} parent=0 // loop_exit
    _

// kernel: noise_sequence_rnn_v3_forward.57
$region0: #{noise_sequence_rnn_v3_forward.57}
  #allocation0 [shape = 'u32[]', space=smem, size = 0x4, offset = 0x4, fixed_abs, tag = 'smem constant byte address 0x4 - core index']
  #allocation1 [shape = 'u32[72,128]{1,0:T(1,128)}', space=vmem, size = 0x9000, scoped, tag = 'internal scratch']
  %s0 = inlined_call_operand.vmem [shape: f32[8,16], index: 0, kind: input, shape index: {}]
  %s1 = inlined_call_operand.vmem [shape: bf16[16,256], index: 1, kind: input, shape index: {}]
  %s2 = inlined_call_operand.vmem [shape: f32[1,256], index: 2, kind: input, shape index: {}]
  %s3 = inlined_call_operand.vmem [shape: f32[8,256], index: 3, kind: output, shape index: {}]
  %s4 = sld [smem:[#allocation0]]
  $region22: #{noise_sequence_rnn_v3_forward.57} parent=0
    _
  %s6 = ssub.s32 1, %s4
  %s7 = scalar_select 0, %s6, %s4
  // Predicated region
  $region2: #{noise_sequence_rnn_v3_forward.57} parent=0 // pred_check
    _
  $region3: #{noise_sequence_rnn_v3_forward.57} parent=0 // pred_check_branch
    %9 = sbr.rel (0) target = $region5
  $region4: #{noise_sequence_rnn_v3_forward.57} parent=0 // pred_region
    _
  $region5: #{noise_sequence_rnn_v3_forward.57} parent=0 // pred_fallthru
    _
  // Predicated region
  $region6: #{noise_sequence_rnn_v3_forward.57} parent=0 // pred_check
    _
  $region7: #{noise_sequence_rnn_v3_forward.57} parent=0 // pred_check_branch
    %11 = sbr.rel (0) target = $region9
  $region8: #{noise_sequence_rnn_v3_forward.57} parent=0 // pred_region
    _
  $region9: #{noise_sequence_rnn_v3_forward.57} parent=0 // pred_fallthru
    _
  // Predicated region
  $region10: #{noise_sequence_rnn_v3_forward.57} parent=0 // pred_check
    _
  $region11: #{noise_sequence_rnn_v3_forward.57} parent=0 // pred_check_branch
    %13 = sbr.rel (0) target = $region13
  $region12: #{noise_sequence_rnn_v3_forward.57} parent=0 // pred_region
    _
  $region13: #{noise_sequence_rnn_v3_forward.57} parent=0 // pred_fallthru
    _
  %v15 = vld [vmem:[%s0] sm:$0xff]
  %v16 = vpack.c.bf16 %v15, %v15
  %v17 = vld [vmem:[%s1] sm:$0xff]
  %v18 = vld [vmem:[%s1 + $0x8] sm:$0xff]
  %v19 = vld [vmem:[%s2] sm:$0x3]
  %v21 = vperm.slane %v19, 0
  %v22 = vperm.slane %v19, 1
  %v27 = vunpack.c.l.b16 %v17
  %v28 = vunpack.c.h.b16 %v17
  %v29 = vunpack.c.l.b16 %v18
  %v30 = vunpack.c.h.b16 %v18
  %v31 = vpack.c.b16 %v29, %v27
  %v32 = vpack.c.b16 %v30, %v28
  %vm35 = vcmask 130048
  %v37 = vsel %vm35, %v16, 0
  %39 = vmatpush.bf16.msra.mxu0 0
  %40 = vmatpush.bf16.msra.mxu0 0
  %41 = vmatpush.bf16.msra.mxu0 0
  %42 = vmatpush.bf16.msra.mxu0 0
  %43 = vmatpush.bf16.msra.mxu0 0
  %44 = vmatpush.bf16.msra.mxu0 0
  %45 = vmatpush.bf16.msra.mxu0 0
  %46 = vmatpush.bf16.msra.mxu0 %v31
  %47 = vmatmul.bf16.gmra.mxu0 %v37
  %v48 = vpop.f32.mrf.mxu0
  %v49 = vadd.f32 %v21, %v48
  %v50 = vpop.f32.mrf.mxu0
  %51 = vdwg.mxu0
  %52 = vmatpush.bf16.msra.mxu0 0
  %53 = vmatpush.bf16.msra.mxu0 0
  %54 = vmatpush.bf16.msra.mxu0 0
  %55 = vmatpush.bf16.msra.mxu0 0
  %56 = vmatpush.bf16.msra.mxu0 0
  %57 = vmatpush.bf16.msra.mxu0 0
  %58 = vmatpush.bf16.msra.mxu0 0
  %59 = vmatpush.bf16.msra.mxu0 %v32
  %60 = vmatmul.bf16.gmra.mxu0 %v37
  %v61 = vpop.f32.mrf.mxu0
  %v62 = vadd.f32 %v22, %v61
  %v63 = vpop.f32.mrf.mxu0
  %64 = vdwg.mxu0
  %65 = vst [vmem:[%s3] sm:$0xff] %v49
  %66 = vst [vmem:[%s3 + $0x8] sm:$0xff] %v62
  // Predicated region
  $region14: #{noise_sequence_rnn_v3_forward.57} parent=0 // pred_check
    _
  $region15: #{noise_sequence_rnn_v3_forward.57} parent=0 // pred_check_branch
    %68 = sbr.rel (0) target = $region17
  $region16: #{noise_sequence_rnn_v3_forward.57} parent=0 // pred_region
    _
  $region17: #{noise_sequence_rnn_v3_forward.57} parent=0 // pred_fallthru
    _
  // Predicated region
  $region18: #{noise_sequence_rnn_v3_forward.57} parent=0 // pred_check
    _
  $region19: #{noise_sequence_rnn_v3_forward.57} parent=0 // pred_check_branch
    %70 = sbr.rel (0) target = $region21
  $region20: #{noise_sequence_rnn_v3_forward.57} parent=0 // pred_region
    _
  $region21: #{noise_sequence_rnn_v3_forward.57} parent=0 // pred_fallthru
    _

// kernel: noise_sequence_rnn_v3_forward.61
$region0: #{noise_sequence_rnn_v3_forward.61}
  #allocation0 [shape = 'u32[]', space=smem, size = 0x4, offset = 0x4, fixed_abs, tag = 'smem constant byte address 0x4 - core index']
  #allocation1 [shape = 'u32[72,128]{1,0:T(1,128)}', space=vmem, size = 0x9000, scoped, tag = 'internal scratch']
  %s0 = inlined_call_operand.vmem [shape: f32[8,98,128], index: 0, kind: input, shape index: {}]
  %s1 = inlined_call_operand.vmem [shape: bf16[4,128,128], index: 1, kind: input, shape index: {}]
  %s2 = inlined_call_operand.vmem [shape: f32[1,128], index: 2, kind: input, shape index: {}]
  %s3 = inlined_call_operand.vmem [shape: f32[8,88,128], index: 3, kind: output, shape index: {}]
  %s4 = sld [smem:[#allocation0]]
  $region45: #{noise_sequence_rnn_v3_forward.61} parent=0
    _
  %s6 = ssub.s32 1, %s4
  %s7 = scalar_select 0, %s6, %s4
  loop: start=0, step=1, limit=10
  $region2: #{noise_sequence_rnn_v3_forward.61} parent=0 // loop_pre_header
    _
  $region3: #{noise_sequence_rnn_v3_forward.61} parent=0 // loop_header
    %s9 = sphi 0, %s13
    %p10 = scmp.ge.s32.totalorder %s9, 10
    %s16 = sphi 0, %s28
    %s17 = sphi 0, %s24
    %s18 = sphi 0, %s16
    %s19 = sphi 0, %s17
    %s20 = sphi 0, %s18
    %s21 = sphi 0, %s19
    %s31 = sphi 0, %s33
    %s34 = sphi 0, %s31
    %s35 = sphi 0, %s34
    %s51 = sphi 0, %s35
    %s55 = sphi 0, %s55
    %s57 = sphi 0, %s55
    %s58 = sphi 0, %s57
    %s72 = sphi 0, %s58
    %s76 = sphi 0, %s76
    %s78 = sphi 0, %s76
    %s79 = sphi 0, %s78
    %s93 = sphi 0, %s79
    %s101 = sphi 0, %s103
    %s104 = sphi 0, %s101
    %s105 = sphi 0, %s104
    %s121 = sphi 0, %s105
  $region4: #{noise_sequence_rnn_v3_forward.61} parent=0 // loop_header_branch
    %12 = sbr.rel (%p10) target = $region8
  $region5: #{noise_sequence_rnn_v3_forward.61} parent=0 // loop_body
    %s14 = ssub.s32 %s9, 1
    %s15 = ssub.s32 %s9, 2
    %s22 = sadd.s32 1, %s17
    %p23 = scmp.ge.s32.totalorder %s22, 1
    %s24 = scalar_select %p23, 0, %s22
    %s25 = sadd.s32 1, %s16
    %s26 = scalar_select %p23, %s25, %s16
    %p27 = scmp.ge.s32.totalorder %s26, 8
    %s28 = scalar_select %p27, 0, %s26
    %s29 = ssub.s32 %s16, %s28
    %p30 = scmp.eq.s32.totalorder %s29, 0
    %s32 = sadd.s32 %s31, 1
    %s33 = scalar_select %p30, %s31, %s32
    %p36 = pneg %p30
    %p37 = scmp.eq.s32.totalorder %s9, 7
    %p38 = por %p36, %p37
    %p39 = scmp.ne.s32.totalorder %s31, %s34
    %p40 = scmp.eq.s32.totalorder %s9, 0
    %p41 = por %p39, %p40
    %p42 = scmp.ne.s32.totalorder %s31, %s34
    %p43 = scmp.eq.s32.totalorder %s14, 7
    %p44 = por %p42, %p43
    %p45 = scmp.ne.s32.totalorder %s34, %s35
    %p46 = scmp.eq.s32.totalorder %s14, 0
    %p47 = por %p45, %p46
    %p48 = scmp.ne.s32.totalorder %s34, %s35
    %p49 = scmp.eq.s32.totalorder %s15, 7
    %p50 = por %p48, %p49
    %p52 = scmp.ne.s32.totalorder %s35, %s51
    %p53 = scmp.eq.s32.totalorder %s15, 0
    %p54 = por %p52, %p53
    %s56 = sadd.s32 %s55, 1
    %p59 = scmp.eq.s32.totalorder %s9, 7
    %p60 = scmp.ne.s32.totalorder %s55, %s57
    %p61 = scmp.eq.s32.totalorder %s9, 0
    %p62 = por %p60, %p61
    %p63 = scmp.ne.s32.totalorder %s55, %s57
    %p64 = scmp.eq.s32.totalorder %s14, 7
    %p65 = por %p63, %p64
    %p66 = scmp.ne.s32.totalorder %s57, %s58
    %p67 = scmp.eq.s32.totalorder %s14, 0
    %p68 = por %p66, %p67
    %p69 = scmp.ne.s32.totalorder %s57, %s58
    %p70 = scmp.eq.s32.totalorder %s15, 7
    %p71 = por %p69, %p70
    %p73 = scmp.ne.s32.totalorder %s58, %s72
    %p74 = scmp.eq.s32.totalorder %s15, 0
    %p75 = por %p73, %p74
    %s77 = sadd.s32 %s76, 1
    %p80 = scmp.eq.s32.totalorder %s9, 7
    %p81 = scmp.ne.s32.totalorder %s76, %s78
    %p82 = scmp.eq.s32.totalorder %s9, 0
    %p83 = por %p81, %p82
    %p84 = scmp.ne.s32.totalorder %s76, %s78
    %p85 = scmp.eq.s32.totalorder %s14, 7
    %p86 = por %p84, %p85
    %p87 = scmp.ne.s32.totalorder %s78, %s79
    %p88 = scmp.eq.s32.totalorder %s14, 0
    %p89 = por %p87, %p88
    %p90 = scmp.ne.s32.totalorder %s78, %s79
    %p91 = scmp.eq.s32.totalorder %s15, 7
    %p92 = por %p90, %p91
    %p94 = scmp.ne.s32.totalorder %s79, %s93
    %p95 = scmp.eq.s32.totalorder %s15, 0
    %p96 = por %p94, %p95
    %s97 = ssub.s32 %s16, %s28
    %s98 = ssub.s32 %s17, %s24
    %s99 = sor.u32 %s97, %s98
    %p100 = scmp.eq.s32.totalorder %s99, 0
    %s102 = sadd.s32 %s101, 1
    %s103 = scalar_select %p100, %s101, %s102
    %p106 = pneg %p100
    %p107 = scmp.eq.s32.totalorder %s9, 7
    %p108 = por %p106, %p107
    %p109 = scmp.ne.s32.totalorder %s101, %s104
    %p110 = scmp.eq.s32.totalorder %s9, 0
    %p111 = por %p109, %p110
    %p112 = scmp.ne.s32.totalorder %s101, %s104
    %p113 = scmp.eq.s32.totalorder %s14, 7
    %p114 = por %p112, %p113
    %p115 = scmp.ne.s32.totalorder %s104, %s105
    %p116 = scmp.eq.s32.totalorder %s14, 0
    %p117 = por %p115, %p116
    %p118 = scmp.ne.s32.totalorder %s104, %s105
    %p119 = scmp.eq.s32.totalorder %s15, 7
    %p120 = por %p118, %p119
    %p122 = scmp.ne.s32.totalorder %s105, %s121
    %p123 = scmp.eq.s32.totalorder %s15, 0
    %p124 = por %p122, %p123
    %p125 = scmp.le.s32.totalorder 1, %s9
    %p126 = scmp.lt.s32.totalorder %s9, 9
    %p127 = pnand %p125, %p126
    %p128 = pneg %p127
    // Predicated region
    $region9: #{noise_sequence_rnn_v3_forward.61} parent=5 // pred_check
      _
    $region10: #{noise_sequence_rnn_v3_forward.61} parent=5 // pred_check_branch
      %130 = sbr.rel (%p127) target = $region12
    $region11: #{noise_sequence_rnn_v3_forward.61} parent=5 // pred_region
      %s131 = ssub.s32 %s9, 1
      // Predicated region
      $region13: #{noise_sequence_rnn_v3_forward.61} parent=11 // pred_check
        %p132 = pneg %p68
      $region14: #{noise_sequence_rnn_v3_forward.61} parent=11 // pred_check_branch
        %134 = sbr.rel (%p132) target = $region16
      $region15: #{noise_sequence_rnn_v3_forward.61} parent=11 // pred_region
        _
      $region16: #{noise_sequence_rnn_v3_forward.61} parent=11 // pred_fallthru
        _
      // Predicated region
      $region17: #{noise_sequence_rnn_v3_forward.61} parent=11 // pred_check
        %p135 = pneg %p89
      $region18: #{noise_sequence_rnn_v3_forward.61} parent=11 // pred_check_branch
        %137 = sbr.rel (%p135) target = $region20
      $region19: #{noise_sequence_rnn_v3_forward.61} parent=11 // pred_region
        _
      $region20: #{noise_sequence_rnn_v3_forward.61} parent=11 // pred_fallthru
        _
    $region12: #{noise_sequence_rnn_v3_forward.61} parent=5 // pred_fallthru
      _
    %p138 = scmp.lt.s32.totalorder %s9, 8
    // Predicated region
    $region21: #{noise_sequence_rnn_v3_forward.61} parent=5 // pred_check
      %p139 = pneg %p138
    $region22: #{noise_sequence_rnn_v3_forward.61} parent=5 // pred_check_branch
      %141 = sbr.rel (%p139) target = $region24
    $region23: #{noise_sequence_rnn_v3_forward.61} parent=5 // pred_region
      // Predicated region
      $region25: #{noise_sequence_rnn_v3_forward.61} parent=23 // pred_check
        %p142 = pneg %p41
      $region26: #{noise_sequence_rnn_v3_forward.61} parent=23 // pred_check_branch
        %144 = sbr.rel (%p142) target = $region28
      $region27: #{noise_sequence_rnn_v3_forward.61} parent=23 // pred_region
        %p145 = scmp.lt.s32.totalorder %s16, 7
        %s146 = scalar_select %p145, %s16, 7
        %s147 = smul.addr %s146, 13
        %s148 = smul.addr %s147, 8
        %s149 = scalar_lea.vmem %s0, %s148
      $region28: #{noise_sequence_rnn_v3_forward.61} parent=23 // pred_fallthru
        _
    $region24: #{noise_sequence_rnn_v3_forward.61} parent=5 // pred_fallthru
      _
    %p150 = scmp.le.s32.totalorder 1, %s9
    %p151 = scmp.lt.s32.totalorder %s9, 9
    %p152 = pnand %p150, %p151
    %p153 = pneg %p152
    // Predicated region
    $region29: #{noise_sequence_rnn_v3_forward.61} parent=5 // pred_check
      _
    $region30: #{noise_sequence_rnn_v3_forward.61} parent=5 // pred_check_branch
      %155 = sbr.rel (%p152) target = $region32
    $region31: #{noise_sequence_rnn_v3_forward.61} parent=5 // pred_region
      %s156 = ssub.s32 %s9, 1
      %p157 = scmp.lt.s32.totalorder %s18, 7
      %s158 = scalar_select %p157, %s18, 7
      %s159 = smul.addr %s158, 13
      %s160 = smul.addr %s159, 8
      %s161 = scalar_lea.vmem %s0, %s160
      %p162 = pneg %p47
      %p163 = pneg %p44
      %p164 = pneg %p68
      %p165 = pneg %p65
      %p166 = pneg %p89
      %p167 = pneg %p86
      %p168 = pneg %p117
      %p169 = pneg %p114
      %s170 = smul.u32 11, %s19
      %p171 = scmp.lt.s32.totalorder %s18, 7
      %s172 = scalar_select %p171, %s18, 7
      %p173 = scmp.lt.s32.totalorder %s170, 10
      %s174 = scalar_select %p173, %s170, 10
      %s175 = smul.addr %s172, 11
      %s176 = sadd.s32 %s174, %s175
      %s177 = smul.addr %s176, 8
      %s178 = scalar_lea.vmem %s3, %s177
      %p179 = scmp.lt.s32.totalorder %s18, 7
      %s180 = scalar_select %p179, %s18, 7
      %s181 = smul.addr %s180, 13
      %s182 = smul.addr %s181, 8
      %s183 = scalar_lea.vmem %s0, %s182
      %s184 = smul.u32 11, %s19
      %p185 = scmp.lt.s32.totalorder %s18, 7
      %s186 = scalar_select %p185, %s18, 7
      %p187 = scmp.lt.s32.totalorder %s184, 10
      %s188 = scalar_select %p187, %s184, 10
      %s189 = smul.addr %s186, 11
      %s190 = sadd.s32 %s188, %s189
      %s191 = smul.addr %s190, 8
      %s192 = scalar_lea.vmem %s3, %s191
      %s193 = smul.u32 11, %s19
      %s194 = smul.u32 %s19, 88
      %s195 = scalar_lea.vmem %s183, %s194
      %v196 = vld [vmem:[%s195] sm:$0xff]
      %v197 = vld [vmem:[%s195 + $0x8] sm:$0xff]
      %v198 = vld [vmem:[%s195 + $0x10] sm:$0xff]
      %v199 = vld [vmem:[%s195 + $0x18] sm:$0xff]
      %v200 = vld [vmem:[%s195 + $0x20] sm:$0xff]
      %v201 = vld [vmem:[%s195 + $0x28] sm:$0xff]
      %v202 = vld [vmem:[%s195 + $0x30] sm:$0xff]
      %v203 = vld [vmem:[%s195 + $0x38] sm:$0xff]
      %v204 = vld [vmem:[%s195 + $0x40] sm:$0xff]
      %v205 = vld [vmem:[%s195 + $0x48] sm:$0xff]
      %v206 = vld [vmem:[%s195 + $0x50] sm:$0xff]
      %v207 = vpack.c.bf16 %v197, %v196
      %v208 = vpack.c.bf16 %v199, %v198
      %v209 = vpack.c.bf16 %v201, %v200
      %v210 = vpack.c.bf16 %v203, %v202
      %v211 = vpack.c.bf16 %v205, %v204
      %v212 = vpack.c.bf16 %v206, %v206
      %v213 = vld [vmem:[%s1] sm:$0xf]
      %v214 = vld [vmem:[%s1 + $0x4] sm:$0xf]
      %v215 = vld [vmem:[%s1 + $0x8] sm:$0xf]
      %v216 = vld [vmem:[%s1 + $0xc] sm:$0xf]
      %v217 = vld [vmem:[%s1 + $0x10] sm:$0xf]
      %v218 = vld [vmem:[%s1 + $0x14] sm:$0xf]
      %v219 = vld [vmem:[%s1 + $0x18] sm:$0xf]
      %v220 = vld [vmem:[%s1 + $0x1c] sm:$0xf]
      %v221 = vld [vmem:[%s1 + $0x20] sm:$0xf]
      %v222 = vld [vmem:[%s1 + $0x24] sm:$0xf]
      %v223 = vld [vmem:[%s1 + $0x28] sm:$0xf]
      %v224 = vld [vmem:[%s1 + $0x2c] sm:$0xf]
      %v225 = vld [vmem:[%s1 + $0x30] sm:$0xf]
      %v226 = vld [vmem:[%s1 + $0x34] sm:$0xf]
      %v227 = vld [vmem:[%s1 + $0x38] sm:$0xf]
      %v228 = vld [vmem:[%s1 + $0x3c] sm:$0xf]
      %s229 = sadd.s32 %s194, 1
      %s230 = scalar_lea.vmem %s183, %s229
      %v231 = vld [vmem:[%s230] sm:$0xff]
      %v232 = vld [vmem:[%s230 + $0x8] sm:$0xff]
      %v233 = vld [vmem:[%s230 + $0x10] sm:$0xff]
      %v234 = vld [vmem:[%s230 + $0x18] sm:$0xff]
      %v235 = vld [vmem:[%s230 + $0x20] sm:$0xff]
      %v236 = vld [vmem:[%s230 + $0x28] sm:$0xff]
      %v237 = vld [vmem:[%s230 + $0x30] sm:$0xff]
      %v238 = vld [vmem:[%s230 + $0x38] sm:$0xff]
      %v239 = vld [vmem:[%s230 + $0x40] sm:$0xff]
      %v240 = vld [vmem:[%s230 + $0x48] sm:$0xff]
      %v241 = vld [vmem:[%s230 + $0x50] sm:$0xff]
      %v242 = vpack.c.bf16 %v232, %v231
      %v243 = vpack.c.bf16 %v234, %v233
      %v244 = vpack.c.bf16 %v236, %v235
      %v245 = vpack.c.bf16 %v238, %v237
      %v246 = vpack.c.bf16 %v240, %v239
      %v247 = vpack.c.bf16 %v241, %v241
      %s248 = scalar_lea.vmem %s1, 64
      %v249 = vld [vmem:[%s248] sm:$0xf]
      %v250 = vld [vmem:[%s248 + $0x4] sm:$0xf]
      %v251 = vld [vmem:[%s248 + $0x8] sm:$0xf]
      %v252 = vld [vmem:[%s248 + $0xc] sm:$0xf]
      %v253 = vld [vmem:[%s248 + $0x10] sm:$0xf]
      %v254 = vld [vmem:[%s248 + $0x14] sm:$0xf]
      %v255 = vld [vmem:[%s248 + $0x18] sm:$0xf]
      %v256 = vld [vmem:[%s248 + $0x1c] sm:$0xf]
      %v257 = vld [vmem:[%s248 + $0x20] sm:$0xf]
      %v258 = vld [vmem:[%s248 + $0x24] sm:$0xf]
      %v259 = vld [vmem:[%s248 + $0x28] sm:$0xf]
      %v260 = vld [vmem:[%s248 + $0x2c] sm:$0xf]
      %v261 = vld [vmem:[%s248 + $0x30] sm:$0xf]
      %v262 = vld [vmem:[%s248 + $0x34] sm:$0xf]
      %v263 = vld [vmem:[%s248 + $0x38] sm:$0xf]
      %v264 = vld [vmem:[%s248 + $0x3c] sm:$0xf]
      %v281 = vunpack.c.l.b16 %v249
      %v282 = vunpack.c.l.b16 %v250
      %v283 = vunpack.c.l.b16 %v251
      %v284 = vunpack.c.l.b16 %v252
      %v285 = vunpack.c.l.b16 %v253
      %v286 = vunpack.c.l.b16 %v254
      %v287 = vunpack.c.l.b16 %v255
      %v288 = vunpack.c.l.b16 %v256
      %v289 = vunpack.c.l.b16 %v257
      %v290 = vunpack.c.l.b16 %v258
      %v291 = vunpack.c.l.b16 %v259
      %v292 = vunpack.c.l.b16 %v260
      %v293 = vunpack.c.l.b16 %v261
      %v294 = vunpack.c.l.b16 %v262
      %v295 = vunpack.c.l.b16 %v263
      %v296 = vunpack.c.l.b16 %v264
      %v297 = vpack.c.b16 %v282, %v281
      %v298 = vpack.c.b16 %v284, %v283
      %v299 = vpack.c.b16 %v286, %v285
      %v300 = vpack.c.b16 %v288, %v287
      %v301 = vpack.c.b16 %v290, %v289
      %v302 = vpack.c.b16 %v292, %v291
      %v303 = vpack.c.b16 %v294, %v293
      %v304 = vpack.c.b16 %v296, %v295
      %313 = vmatpush.bf16.msra.mxu0 %v304
      %314 = vmatpush.bf16.msra.mxu0 %v303
      %315 = vmatpush.bf16.msra.mxu0 %v302
      %316 = vmatpush.bf16.msra.mxu0 %v301
      %317 = vmatpush.bf16.msra.mxu0 %v300
      %318 = vmatpush.bf16.msra.mxu0 %v299
      %319 = vmatpush.bf16.msra.mxu0 %v298
      %320 = vmatpush.bf16.msra.mxu0 %v297
      %321 = vmatmul.bf16.gmra.mxu0 %v242
      %v322 = vpop.f32.mrf.mxu0
      %v323 = vadd.f32 0.0, %v322
      %v324 = vpop.f32.mrf.mxu0
      %v325 = vadd.f32 0.0, %v324
      %326 = vmatmul.bf16.gmra.mxu0 %v243
      %v327 = vpop.f32.mrf.mxu0
      %v328 = vadd.f32 0.0, %v327
      %v329 = vpop.f32.mrf.mxu0
      %v330 = vadd.f32 0.0, %v329
      %331 = vmatmul.bf16.gmra.mxu0 %v244
      %v332 = vpop.f32.mrf.mxu0
      %v333 = vadd.f32 0.0, %v332
      %v334 = vpop.f32.mrf.mxu0
      %v335 = vadd.f32 0.0, %v334
      %336 = vmatmul.bf16.gmra.mxu0 %v245
      %v337 = vpop.f32.mrf.mxu0
      %v338 = vadd.f32 0.0, %v337
      %v339 = vpop.f32.mrf.mxu0
      %v340 = vadd.f32 0.0, %v339
      %341 = vmatmul.bf16.gmra.mxu0 %v246
      %v342 = vpop.f32.mrf.mxu0
      %v343 = vadd.f32 0.0, %v342
      %v344 = vpop.f32.mrf.mxu0
      %v345 = vadd.f32 0.0, %v344
      %346 = vmatmul.bf16.gmra.mxu0 %v247
      %v347 = vpop.f32.mrf.mxu0
      %v348 = vadd.f32 0.0, %v347
      %v349 = vpop.f32.mrf.mxu0
      %350 = vdwg.mxu0
      %v367 = vunpack.c.l.b16 %v213
      %v368 = vunpack.c.l.b16 %v214
      %v369 = vunpack.c.l.b16 %v215
      %v370 = vunpack.c.l.b16 %v216
      %v371 = vunpack.c.l.b16 %v217
      %v372 = vunpack.c.l.b16 %v218
      %v373 = vunpack.c.l.b16 %v219
      %v374 = vunpack.c.l.b16 %v220
      %v375 = vunpack.c.l.b16 %v221
      %v376 = vunpack.c.l.b16 %v222
      %v377 = vunpack.c.l.b16 %v223
      %v378 = vunpack.c.l.b16 %v224
      %v379 = vunpack.c.l.b16 %v225
      %v380 = vunpack.c.l.b16 %v226
      %v381 = vunpack.c.l.b16 %v227
      %v382 = vunpack.c.l.b16 %v228
      %v383 = vpack.c.b16 %v368, %v367
      %v384 = vpack.c.b16 %v370, %v369
      %v385 = vpack.c.b16 %v372, %v371
      %v386 = vpack.c.b16 %v374, %v373
      %v387 = vpack.c.b16 %v376, %v375
      %v388 = vpack.c.b16 %v378, %v377
      %v389 = vpack.c.b16 %v380, %v379
      %v390 = vpack.c.b16 %v382, %v381
      %399 = vmatpush.bf16.msra.mxu0 %v390
      %400 = vmatpush.bf16.msra.mxu0 %v389
      %401 = vmatpush.bf16.msra.mxu0 %v388
      %402 = vmatpush.bf16.msra.mxu0 %v387
      %403 = vmatpush.bf16.msra.mxu0 %v386
      %404 = vmatpush.bf16.msra.mxu0 %v385
      %405 = vmatpush.bf16.msra.mxu0 %v384
      %406 = vmatpush.bf16.msra.mxu0 %v383
      %407 = vmatmul.bf16.gmra.mxu0 %v207
      %v408 = vpop.f32.mrf.mxu0
      %v409 = vadd.f32 %v323, %v408
      %v410 = vpop.f32.mrf.mxu0
      %v411 = vadd.f32 %v325, %v410
      %412 = vmatmul.bf16.gmra.mxu0 %v208
      %v413 = vpop.f32.mrf.mxu0
      %v414 = vadd.f32 %v328, %v413
      %v415 = vpop.f32.mrf.mxu0
      %v416 = vadd.f32 %v330, %v415
      %417 = vmatmul.bf16.gmra.mxu0 %v209
      %v418 = vpop.f32.mrf.mxu0
      %v419 = vadd.f32 %v333, %v418
      %v420 = vpop.f32.mrf.mxu0
      %v421 = vadd.f32 %v335, %v420
      %422 = vmatmul.bf16.gmra.mxu0 %v210
      %v423 = vpop.f32.mrf.mxu0
      %v424 = vadd.f32 %v338, %v423
      %v425 = vpop.f32.mrf.mxu0
      %v426 = vadd.f32 %v340, %v425
      %427 = vmatmul.bf16.gmra.mxu0 %v211
      %v428 = vpop.f32.mrf.mxu0
      %v429 = vadd.f32 %v343, %v428
      %v430 = vpop.f32.mrf.mxu0
      %v431 = vadd.f32 %v345, %v430
      %432 = vmatmul.bf16.gmra.mxu0 %v212
      %v433 = vpop.f32.mrf.mxu0
      %v434 = vadd.f32 %v348, %v433
      %v435 = vpop.f32.mrf.mxu0
      %436 = vdwg.mxu0
      %s437 = sadd.s32 %s194, 9
      %s438 = scalar_lea.vmem %s183, %s437
      %v439 = vld [vmem:[%s438] sm:$0xff]
      %v440 = vld [vmem:[%s438 + $0x8] sm:$0xff]
      %v441 = vld [vmem:[%s438 + $0x10] sm:$0xff]
      %v442 = vld [vmem:[%s438 + $0x18] sm:$0xff]
      %v443 = vld [vmem:[%s438 + $0x20] sm:$0xff]
      %v444 = vld [vmem:[%s438 + $0x28] sm:$0xff]
      %v445 = vld [vmem:[%s438 + $0x30] sm:$0xff]
      %v446 = vld [vmem:[%s438 + $0x38] sm:$0xff]
      %v447 = vld [vmem:[%s438 + $0x40] sm:$0xff]
      %v448 = vld [vmem:[%s438 + $0x48] sm:$0xff]
      %v449 = vld [vmem:[%s438 + $0x50] sm:$0xff]
      %v450 = vpack.c.bf16 %v440, %v439
      %v451 = vpack.c.bf16 %v442, %v441
      %v452 = vpack.c.bf16 %v444, %v443
      %v453 = vpack.c.bf16 %v446, %v445
      %v454 = vpack.c.bf16 %v448, %v447
      %v455 = vpack.c.bf16 %v449, %v449
      %s456 = scalar_lea.vmem %s1, 128
      %v457 = vld [vmem:[%s456] sm:$0xf]
      %v458 = vld [vmem:[%s456 + $0x4] sm:$0xf]
      %v459 = vld [vmem:[%s456 + $0x8] sm:$0xf]
      %v460 = vld [vmem:[%s456 + $0xc] sm:$0xf]
      %v461 = vld [vmem:[%s456 + $0x10] sm:$0xf]
      %v462 = vld [vmem:[%s456 + $0x14] sm:$0xf]
      %v463 = vld [vmem:[%s456 + $0x18] sm:$0xf]
      %v464 = vld [vmem:[%s456 + $0x1c] sm:$0xf]
      %v465 = vld [vmem:[%s456 + $0x20] sm:$0xf]
      %v466 = vld [vmem:[%s456 + $0x24] sm:$0xf]
      %v467 = vld [vmem:[%s456 + $0x28] sm:$0xf]
      %v468 = vld [vmem:[%s456 + $0x2c] sm:$0xf]
      %v469 = vld [vmem:[%s456 + $0x30] sm:$0xf]
      %v470 = vld [vmem:[%s456 + $0x34] sm:$0xf]
      %v471 = vld [vmem:[%s456 + $0x38] sm:$0xf]
      %v472 = vld [vmem:[%s456 + $0x3c] sm:$0xf]
      %v489 = vunpack.c.l.b16 %v457
      %v490 = vunpack.c.l.b16 %v458
      %v491 = vunpack.c.l.b16 %v459
      %v492 = vunpack.c.l.b16 %v460
      %v493 = vunpack.c.l.b16 %v461
      %v494 = vunpack.c.l.b16 %v462
      %v495 = vunpack.c.l.b16 %v463
      %v496 = vunpack.c.l.b16 %v464
      %v497 = vunpack.c.l.b16 %v465
      %v498 = vunpack.c.l.b16 %v466
      %v499 = vunpack.c.l.b16 %v467
      %v500 = vunpack.c.l.b16 %v468
      %v501 = vunpack.c.l.b16 %v469
      %v502 = vunpack.c.l.b16 %v470
      %v503 = vunpack.c.l.b16 %v471
      %v504 = vunpack.c.l.b16 %v472
      %v505 = vpack.c.b16 %v490, %v489
      %v506 = vpack.c.b16 %v492, %v491
      %v507 = vpack.c.b16 %v494, %v493
      %v508 = vpack.c.b16 %v496, %v495
      %v509 = vpack.c.b16 %v498, %v497
      %v510 = vpack.c.b16 %v500, %v499
      %v511 = vpack.c.b16 %v502, %v501
      %v512 = vpack.c.b16 %v504, %v503
      %521 = vmatpush.bf16.msra.mxu0 %v512
      %522 = vmatpush.bf16.msra.mxu0 %v511
      %523 = vmatpush.bf16.msra.mxu0 %v510
      %524 = vmatpush.bf16.msra.mxu0 %v509
      %525 = vmatpush.bf16.msra.mxu0 %v508
      %526 = vmatpush.bf16.msra.mxu0 %v507
      %527 = vmatpush.bf16.msra.mxu0 %v506
      %528 = vmatpush.bf16.msra.mxu0 %v505
      %529 = vmatmul.bf16.gmra.mxu0 %v450
      %v530 = vpop.f32.mrf.mxu0
      %v531 = vadd.f32 0.0, %v530
      %v532 = vpop.f32.mrf.mxu0
      %v533 = vadd.f32 0.0, %v532
      %534 = vmatmul.bf16.gmra.mxu0 %v451
      %v535 = vpop.f32.mrf.mxu0
      %v536 = vadd.f32 0.0, %v535
      %v537 = vpop.f32.mrf.mxu0
      %v538 = vadd.f32 0.0, %v537
      %539 = vmatmul.bf16.gmra.mxu0 %v452
      %v540 = vpop.f32.mrf.mxu0
      %v541 = vadd.f32 0.0, %v540
      %v542 = vpop.f32.mrf.mxu0
      %v543 = vadd.f32 0.0, %v542
      %544 = vmatmul.bf16.gmra.mxu0 %v453
      %v545 = vpop.f32.mrf.mxu0
      %v546 = vadd.f32 0.0, %v545
      %v547 = vpop.f32.mrf.mxu0
      %v548 = vadd.f32 0.0, %v547
      %549 = vmatmul.bf16.gmra.mxu0 %v454
      %v550 = vpop.f32.mrf.mxu0
      %v551 = vadd.f32 0.0, %v550
      %v552 = vpop.f32.mrf.mxu0
      %v553 = vadd.f32 0.0, %v552
      %554 = vmatmul.bf16.gmra.mxu0 %v455
      %v555 = vpop.f32.mrf.mxu0
      %v556 = vadd.f32 0.0, %v555
      %v557 = vpop.f32.mrf.mxu0
      %558 = vdwg.mxu0
      %v559 = vadd.f32 %v409, %v531
      %v560 = vadd.f32 %v411, %v533
      %v561 = vadd.f32 %v414, %v536
      %v562 = vadd.f32 %v416, %v538
      %v563 = vadd.f32 %v419, %v541
      %v564 = vadd.f32 %v421, %v543
      %v565 = vadd.f32 %v424, %v546
      %v566 = vadd.f32 %v426, %v548
      %v567 = vadd.f32 %v429, %v551
      %v568 = vadd.f32 %v431, %v553
      %v569 = vadd.f32 %v434, %v556
      %s570 = sadd.s32 %s194, 10
      %s571 = scalar_lea.vmem %s183, %s570
      %v572 = vld [vmem:[%s571] sm:$0xff]
      %v573 = vld [vmem:[%s571 + $0x8] sm:$0xff]
      %v574 = vld [vmem:[%s571 + $0x10] sm:$0xff]
      %v575 = vld [vmem:[%s571 + $0x18] sm:$0xff]
      %v576 = vld [vmem:[%s571 + $0x20] sm:$0xff]
      %v577 = vld [vmem:[%s571 + $0x28] sm:$0xff]
      %v578 = vld [vmem:[%s571 + $0x30] sm:$0xff]
      %v579 = vld [vmem:[%s571 + $0x38] sm:$0xff]
      %v580 = vld [vmem:[%s571 + $0x40] sm:$0xff]
      %v581 = vld [vmem:[%s571 + $0x48] sm:$0xff]
      %v582 = vld [vmem:[%s571 + $0x50] sm:$0xff]
      %v583 = vpack.c.bf16 %v573, %v572
      %v584 = vpack.c.bf16 %v575, %v574
      %v585 = vpack.c.bf16 %v577, %v576
      %v586 = vpack.c.bf16 %v579, %v578
      %v587 = vpack.c.bf16 %v581, %v580
      %v588 = vpack.c.bf16 %v582, %v582
      %s589 = scalar_lea.vmem %s1, 192
      %v590 = vld [vmem:[%s589] sm:$0xf]
      %v591 = vld [vmem:[%s589 + $0x4] sm:$0xf]
      %v592 = vld [vmem:[%s589 + $0x8] sm:$0xf]
      %v593 = vld [vmem:[%s589 + $0xc] sm:$0xf]
      %v594 = vld [vmem:[%s589 + $0x10] sm:$0xf]
      %v595 = vld [vmem:[%s589 + $0x14] sm:$0xf]
      %v596 = vld [vmem:[%s589 + $0x18] sm:$0xf]
      %v597 = vld [vmem:[%s589 + $0x1c] sm:$0xf]
      %v598 = vld [vmem:[%s589 + $0x20] sm:$0xf]
      %v599 = vld [vmem:[%s589 + $0x24] sm:$0xf]
      %v600 = vld [vmem:[%s589 + $0x28] sm:$0xf]
      %v601 = vld [vmem:[%s589 + $0x2c] sm:$0xf]
      %v602 = vld [vmem:[%s589 + $0x30] sm:$0xf]
      %v603 = vld [vmem:[%s589 + $0x34] sm:$0xf]
      %v604 = vld [vmem:[%s589 + $0x38] sm:$0xf]
      %v605 = vld [vmem:[%s589 + $0x3c] sm:$0xf]
      %v622 = vunpack.c.l.b16 %v590
      %v623 = vunpack.c.l.b16 %v591
      %v624 = vunpack.c.l.b16 %v592
      %v625 = vunpack.c.l.b16 %v593
      %v626 = vunpack.c.l.b16 %v594
      %v627 = vunpack.c.l.b16 %v595
      %v628 = vunpack.c.l.b16 %v596
      %v629 = vunpack.c.l.b16 %v597
      %v630 = vunpack.c.l.b16 %v598
      %v631 = vunpack.c.l.b16 %v599
      %v632 = vunpack.c.l.b16 %v600
      %v633 = vunpack.c.l.b16 %v601
      %v634 = vunpack.c.l.b16 %v602
      %v635 = vunpack.c.l.b16 %v603
      %v636 = vunpack.c.l.b16 %v604
      %v637 = vunpack.c.l.b16 %v605
      %v638 = vpack.c.b16 %v623, %v622
      %v639 = vpack.c.b16 %v625, %v624
      %v640 = vpack.c.b16 %v627, %v626
      %v641 = vpack.c.b16 %v629, %v628
      %v642 = vpack.c.b16 %v631, %v630
      %v643 = vpack.c.b16 %v633, %v632
      %v644 = vpack.c.b16 %v635, %v634
      %v645 = vpack.c.b16 %v637, %v636
      %654 = vmatpush.bf16.msra.mxu0 %v645
      %655 = vmatpush.bf16.msra.mxu0 %v644
      %656 = vmatpush.bf16.msra.mxu0 %v643
      %657 = vmatpush.bf16.msra.mxu0 %v642
      %658 = vmatpush.bf16.msra.mxu0 %v641
      %659 = vmatpush.bf16.msra.mxu0 %v640
      %660 = vmatpush.bf16.msra.mxu0 %v639
      %661 = vmatpush.bf16.msra.mxu0 %v638
      %662 = vmatmul.bf16.gmra.mxu0 %v583
      %v663 = vpop.f32.mrf.mxu0
      %v664 = vadd.f32 0.0, %v663
      %v665 = vpop.f32.mrf.mxu0
      %v666 = vadd.f32 0.0, %v665
      %667 = vmatmul.bf16.gmra.mxu0 %v584
      %v668 = vpop.f32.mrf.mxu0
      %v669 = vadd.f32 0.0, %v668
      %v670 = vpop.f32.mrf.mxu0
      %v671 = vadd.f32 0.0, %v670
      %672 = vmatmul.bf16.gmra.mxu0 %v585
      %v673 = vpop.f32.mrf.mxu0
      %v674 = vadd.f32 0.0, %v673
      %v675 = vpop.f32.mrf.mxu0
      %v676 = vadd.f32 0.0, %v675
      %677 = vmatmul.bf16.gmra.mxu0 %v586
      %v678 = vpop.f32.mrf.mxu0
      %v679 = vadd.f32 0.0, %v678
      %v680 = vpop.f32.mrf.mxu0
      %v681 = vadd.f32 0.0, %v680
      %682 = vmatmul.bf16.gmra.mxu0 %v587
      %v683 = vpop.f32.mrf.mxu0
      %v684 = vadd.f32 0.0, %v683
      %v685 = vpop.f32.mrf.mxu0
      %v686 = vadd.f32 0.0, %v685
      %687 = vmatmul.bf16.gmra.mxu0 %v588
      %v688 = vpop.f32.mrf.mxu0
      %v689 = vadd.f32 0.0, %v688
      %v690 = vpop.f32.mrf.mxu0
      %691 = vdwg.mxu0
      %v692 = vadd.f32 %v559, %v664
      %v693 = vadd.f32 %v560, %v666
      %v694 = vadd.f32 %v561, %v669
      %v695 = vadd.f32 %v562, %v671
      %v696 = vadd.f32 %v563, %v674
      %v697 = vadd.f32 %v564, %v676
      %v698 = vadd.f32 %v565, %v679
      %v699 = vadd.f32 %v566, %v681
      %v700 = vadd.f32 %v567, %v684
      %v701 = vadd.f32 %v568, %v686
      %v702 = vadd.f32 %v569, %v689
      %v703 = vld [vmem:[%s2] sm:$0x1]
      %v705 = vperm.slane %v703, 0
      %v707 = vadd.f32 %v692, %v705
      %v708 = vadd.f32 %v693, %v705
      %v709 = vadd.f32 %v694, %v705
      %v710 = vadd.f32 %v695, %v705
      %v711 = vadd.f32 %v696, %v705
      %v712 = vadd.f32 %v697, %v705
      %v713 = vadd.f32 %v698, %v705
      %v714 = vadd.f32 %v699, %v705
      %v715 = vadd.f32 %v700, %v705
      %v716 = vadd.f32 %v701, %v705
      %v717 = vadd.f32 %v702, %v705
      %718 = vst [vmem:[%s192] sm:$0xff] %v707
      %719 = vst [vmem:[%s192 + $0x8] sm:$0xff] %v708
      %720 = vst [vmem:[%s192 + $0x10] sm:$0xff] %v709
      %721 = vst [vmem:[%s192 + $0x18] sm:$0xff] %v710
      %722 = vst [vmem:[%s192 + $0x20] sm:$0xff] %v711
      %723 = vst [vmem:[%s192 + $0x28] sm:$0xff] %v712
      %724 = vst [vmem:[%s192 + $0x30] sm:$0xff] %v713
      %725 = vst [vmem:[%s192 + $0x38] sm:$0xff] %v714
      %726 = vst [vmem:[%s192 + $0x40] sm:$0xff] %v715
      %727 = vst [vmem:[%s192 + $0x48] sm:$0xff] %v716
      %728 = vst [vmem:[%s192 + $0x50] sm:$0xff] %v717
      %s729 = smul.u32 11, %s19
      %p730 = scmp.lt.s32.totalorder %s18, 7
      %s731 = scalar_select %p730, %s18, 7
      %p732 = scmp.lt.s32.totalorder %s729, 10
      %s733 = scalar_select %p732, %s729, 10
      %s734 = smul.addr %s731, 11
      %s735 = sadd.s32 %s733, %s734
      %s736 = smul.addr %s735, 8
      %s737 = scalar_lea.vmem %s3, %s736
      // Predicated region
      $region33: #{noise_sequence_rnn_v3_forward.61} parent=31 // pred_check
        %p738 = pneg %p114
      $region34: #{noise_sequence_rnn_v3_forward.61} parent=31 // pred_check_branch
        %740 = sbr.rel (%p738) target = $region36
      $region35: #{noise_sequence_rnn_v3_forward.61} parent=31 // pred_region
        %s741 = smul.u32 11, %s19
      $region36: #{noise_sequence_rnn_v3_forward.61} parent=31 // pred_fallthru
        _
    $region32: #{noise_sequence_rnn_v3_forward.61} parent=5 // pred_fallthru
      _
    %p742 = scmp.le.s32.totalorder 2, %s9
    // Predicated region
    $region37: #{noise_sequence_rnn_v3_forward.61} parent=5 // pred_check
      %p743 = pneg %p742
    $region38: #{noise_sequence_rnn_v3_forward.61} parent=5 // pred_check_branch
      %745 = sbr.rel (%p743) target = $region40
    $region39: #{noise_sequence_rnn_v3_forward.61} parent=5 // pred_region
      %s746 = ssub.s32 %s9, 2
      // Predicated region
      $region41: #{noise_sequence_rnn_v3_forward.61} parent=39 // pred_check
        %p747 = pneg %p120
      $region42: #{noise_sequence_rnn_v3_forward.61} parent=39 // pred_check_branch
        %749 = sbr.rel (%p747) target = $region44
      $region43: #{noise_sequence_rnn_v3_forward.61} parent=39 // pred_region
        %s750 = smul.u32 11, %s21
        %p751 = scmp.lt.s32.totalorder %s20, 7
        %s752 = scalar_select %p751, %s20, 7
        %p753 = scmp.lt.s32.totalorder %s750, 10
        %s754 = scalar_select %p753, %s750, 10
        %s755 = smul.addr %s752, 11
        %s756 = sadd.s32 %s754, %s755
        %s757 = smul.addr %s756, 8
        %s758 = scalar_lea.vmem %s3, %s757
      $region44: #{noise_sequence_rnn_v3_forward.61} parent=39 // pred_fallthru
        _
    $region40: #{noise_sequence_rnn_v3_forward.61} parent=5 // pred_fallthru
      _
  $region6: #{noise_sequence_rnn_v3_forward.61} parent=0 // loop_footer
    %s13 = sadd.s32 1, %s9
  $region7: #{noise_sequence_rnn_v3_forward.61} parent=0 // loop_footer_branch
    %8 = sbr.rel target = $region3
  $region8: #{noise_sequence_rnn_v3_forward.61} parent=0 // loop_exit
    _

</llo_original>
